<compile_context>
chip_gen: v6e
topology: v6e:2x2x1
jax: 0.10.0
libtpu: 0.0.40
codegen_flags: <defaults>
</compile_context>

<pallas_src>
import functools

import jax
import jax.numpy as jnp
from jax.experimental import pallas as pl
from jax.experimental.pallas import tpu as pltpu

BN_EPS = 1e-5


def _round_up(x, m):
    return (x + m - 1) // m * m


# ----------------------------- in-kernel helpers -----------------------------

def _conv3x3_taps(h, w_stk, Wp, cout):
    """3x3 conv (stride 1, zero padding) on a padded-flat image, no bias.

    h:     (cin, NSp) activations, zero outside each image's interior.
    w_stk: (9*ceil8(cout), cin), tap-major; each tap's cout rows are zero-padded
           to a full sublane tile so the per-tap result slice is aligned.
    One MXU matmul evaluates all 9 taps at once; taps are then aligned with
    lane rotations (XLU slot) and accumulated in registers (VPU slot).
    """
    nsp = h.shape[1]
    stride = w_stk.shape[0] // 9
    z = jnp.dot(w_stk, h, preferred_element_type=jnp.float32)    # (9*stride, NSp)
    y = None
    tap = 0
    for ky in range(3):
        for kx in range(3):
            s = (ky - 1) * Wp + (kx - 1)           # lane shift of this tap
            zt = z[tap * stride: tap * stride + cout, :]
            if s != 0:
                zt = pltpu.roll(zt, (-s) % nsp, axis=1)
            y = zt if y is None else y + zt
            tap += 1
    return y


def _bn_silu(x, gamma, beta, inv_count, mask):
    """Training-mode BatchNorm (batch stats, biased variance) + SiLU, fully
    in-register.  Result is re-masked so the next conv sees a zero pad ring."""
    mean = jnp.sum(x, axis=1, keepdims=True) * inv_count             # (c, 1)
    var = jnp.sum(x * x, axis=1, keepdims=True) * inv_count - mean * mean
    scale = gamma * jax.lax.rsqrt(var + BN_EPS)
    h = (x - mean) * scale + beta
    return h * (1.0 / (1.0 + jnp.exp(-h))) * mask                    # SiLU


# ----------------------------- fused UpBlock kernel -----------------------------

def _upblock_kernel(*refs, Wp, inv_count, n_act, has_preconv, block_has_id):
    """[optional pre 3x3 conv on act0] -> channel-concat(acts) -> ResBlocks.

    The channel concat is never materialized: conv1 / idconv / BN1 parameters
    arrive pre-split per concatenated piece and partial results are summed.
    """
    refs = list(refs)
    o_ref = refs.pop()                              # single output, no scratch

    def pop():
        return refs.pop(0)[...]

    parts = [pop() for _ in range(n_act)]           # list of (c_j, NSp)
    mask = pop()                                    # (1, NSp): 1 interior, 0 ring/tail

    if has_preconv:                                 # previous UpBlock's upsample-conv
        w_pre, b_pre = pop(), pop()
        parts[0] = (_conv3x3_taps(parts[0], w_pre, Wp, b_pre.shape[0]) + b_pre) * mask

    for has_id in block_has_id:                     # the ResBlocks of this UpBlock
        nparts = len(parts)
        g1s, be1s = [], []
        for _ in range(nparts):
            g1s.append(pop()); be1s.append(pop())
        w1s = [pop() for _ in range(nparts)]
        b1 = pop()
        g2, be2, w2, b2 = pop(), pop(), pop(), pop()
        cout = b1.shape[0]

        # BN1 + SiLU + conv1, accumulated over the concatenated input pieces.
        h1 = None
        for j in range(nparts):
            hj = _bn_silu(parts[j], g1s[j], be1s[j], inv_count, mask)
            cj = _conv3x3_taps(hj, w1s[j], Wp, cout)
            h1 = cj if h1 is None else h1 + cj
        h1 = (h1 + b1) * mask

        # BN2 + SiLU + conv2.
        h2 = _bn_silu(h1, g2, be2, inv_count, mask)
        y = _conv3x3_taps(h2, w2, Wp, cout) + b2

        # identity / 1x1 idconv shortcut.
        if has_id:
            x_id = None
            for j in range(nparts):
                wj = pop()
                cj = jnp.dot(wj, parts[j], preferred_element_type=jnp.float32)
                x_id = cj if x_id is None else x_id + cj
            x_id = x_id + pop()
        else:                                       # only valid for a single piece
            x_id = parts[0]

        parts = [(y + x_id) * mask]

    o_ref[...] = parts[0]


def fused_upblock(parts, mask, blocks, preconv, *, Wp, count):
    """One pallas_call for a whole UpBlock.  grid=() and no BlockSpecs: every
    (tiny) operand is a whole-array VMEM block; nothing touches HBM in between."""
    nsp = parts[0].shape[1]
    args = list(parts) + [mask]
    if preconv is not None:
        args += [preconv[0], preconv[1]]
    has_ids = []
    nparts = len(parts)
    for blk in blocks:
        assert len(blk["conv1_w"]) == nparts
        for j in range(nparts):
            args += [blk["bn1_g"][j], blk["bn1_b"][j]]
        args += list(blk["conv1_w"]) + [blk["conv1_b"],
                blk["bn2_g"], blk["bn2_b"], blk["conv2_w"], blk["conv2_b"]]
        has_id = blk["id_w"] is not None
        assert has_id or nparts == 1
        if has_id:
            args += list(blk["id_w"]) + [blk["id_b"]]
        has_ids.append(has_id)
        nparts = 1                                  # after ResBlock 0 it is one tensor
    cout = (blocks[-1]["conv2_b"] if blocks else preconv[1]).shape[0]
    kernel = functools.partial(
        _upblock_kernel, Wp=Wp, inv_count=1.0 / float(count),
        n_act=len(parts), has_preconv=preconv is not None,
        block_has_id=tuple(has_ids))
    return pl.pallas_call(
        kernel,
        out_shape=jax.ShapeDtypeStruct((cout, nsp), jnp.float32),
    )(*args)


# ----------------------------- layout glue (XLA) -----------------------------

def nchw_to_cs(x):
    """NCHW -> lane-dense (C, N*Sp): zero-pad spatially by 1, flatten to Hp*Wp
    and zero-pad the flat axis up to a multiple of 128 lanes per image."""
    N, C, H, W = x.shape
    Hp, Wp = H + 2, W + 2
    Sp = _round_up(Hp * Wp, 128)
    xp = jnp.pad(x, ((0, 0), (0, 0), (1, 1), (1, 1)))
    xf = xp.reshape(N, C, Hp * Wp)
    xf = jnp.pad(xf, ((0, 0), (0, 0), (0, Sp - Hp * Wp)))
    return jnp.transpose(xf, (1, 0, 2)).reshape(C, N * Sp), H, W, Sp


def cs_to_nchw(xcs, N, H, W):
    C = xcs.shape[0]
    Hp, Wp = H + 2, W + 2
    Sp = xcs.shape[1] // N
    x = xcs.reshape(C, N, Sp)[:, :, :Hp * Wp].reshape(C, N, Hp, Wp)
    return jnp.transpose(x[:, :, 1:-1, 1:-1], (1, 0, 2, 3))


def make_mask(N, H, W, Sp):
    # TODO(synk): could be built in-kernel from iotas; kept as a ~KB input since
    # lane index -> (row, col) needs integer div by non-power-of-2 widths.
    Hp, Wp = H + 2, W + 2
    m2 = jnp.zeros((Hp, Wp), jnp.float32).at[1:-1, 1:-1].set(1.0)
    m = jnp.zeros((Sp,), jnp.float32).at[:Hp * Wp].set(m2.reshape(-1))
    return jnp.tile(m, N).reshape(1, N * Sp)


# ----------------------------- module forward -----------------------------

def unet_up_forward(x_nchw, saved, params):
    saved = list(saved)
    N = x_nchw.shape[0]
    x_cs, H, W, Sp = nchw_to_cs(x_nchw)
    pending_up = None                   # Upsample-Conv3x3 deferred into next kernel
    for p in params["ups"]:
        skip_cs, sH, sW, _ = nchw_to_cs(saved.pop())   # torch.cat([x_up, skip], dim=1)
        assert (sH, sW) == (H, W)
        mask = make_mask(N, H, W, Sp)
        x_cs = fused_upblock([x_cs, skip_cs], mask, p["res_blocks"],
                             preconv=pending_up, Wp=W + 2, count=N * H * W)
        pending_up = None
        if p["up_conv_w"] is not None:
            # nn.Upsample(x2, nearest) is pure index shuffling of a tiny tensor ->
            # XLA glue; its trailing 3x3 conv is fused into the next kernel.
            img = cs_to_nchw(x_cs, N, H, W)
            img = jnp.repeat(jnp.repeat(img, 2, axis=2), 2, axis=3)
            x_cs, H, W, Sp = nchw_to_cs(img)
            pending_up = (p["up_conv_w"], p["up_conv_b"])
    if pending_up is not None:          # only if the final UpBlock had add_up=True
        mask = make_mask(N, H, W, Sp)
        x_cs = fused_upblock([x_cs], mask, [], preconv=pending_up,
                             Wp=W + 2, count=N * H * W)
    return cs_to_nchw(x_cs, N, H, W)


# ----------------------------- parameter init -----------------------------

def _init_conv(key, cin, cout, k):
    kw, kb = jax.random.split(key)
    w = jax.random.normal(kw, (cout, cin, k, k), jnp.float32) * 0.1     # torch OIHW
    b = jax.random.normal(kb, (cout,), jnp.float32) * 0.1
    return w, b


def _pack_conv3x3(w_oihw):
    """torch OIHW (cout, cin, 3, 3) -> (9*ceil8(cout), cin), tap-major (ky, kx);
    each tap's cout rows zero-padded to a full sublane tile."""
    cout, cin = w_oihw.shape[0], w_oihw.shape[1]
    cpad = _round_up(cout, 8)
    w = jnp.transpose(w_oihw, (2, 3, 0, 1)).reshape(9, cout, cin)
    w = jnp.pad(w, ((0, 0), (0, cpad - cout), (0, 0)))
    return w.reshape(9 * cpad, cin)


def init_res_block(key, cin_parts, cout):
    """ResBlock params; conv1/idconv/BN1 are split per concatenated input piece
    so the kernel never materializes the channel concat."""
    cin = sum(cin_parts)
    k1, k2, k3 = jax.random.split(key, 3)
    w1, b1 = _init_conv(k1, cin, cout, 3)
    w2, b2 = _init_conv(k2, cout, cout, 3)
    w1_stk = _pack_conv3x3(w1)
    offs = [0]
    for c in cin_parts:
        offs.append(offs[-1] + c)
    p = {
        "bn1_g": [jnp.ones((c, 1), jnp.float32) for c in cin_parts],   # torch BN init
        "bn1_b": [jnp.zeros((c, 1), jnp.float32) for c in cin_parts],
        "conv1_w": [w1_stk[:, offs[j]:offs[j + 1]] for j in range(len(cin_parts))],
        "conv1_b": b1.reshape(cout, 1),
        "bn2_g": jnp.ones((cout, 1), jnp.float32),
        "bn2_b": jnp.zeros((cout, 1), jnp.float32),
        "conv2_w": _pack_conv3x3(w2),
        "conv2_b": b2.reshape(cout, 1),
        "id_w": None, "id_b": None,
    }
    if cin != cout:                                  # torch: idconv iff shapes differ
        wi, bi = _init_conv(k3, cin, cout, 1)
        wi = wi.reshape(cout, cin)
        p["id_w"] = [wi[:, offs[j]:offs[j + 1]] for j in range(len(cin_parts))]
        p["id_b"] = bi.reshape(cout, 1)
    return p


def init_unet_up_params(key):
    ks = jax.random.split(key, 5)
    # UpBlock0: cat(prev 8, skip 8) -> ResBlock(16->4), ResBlock(4->4), Up+Conv3x3(4->4)
    up0 = {"res_blocks": [init_res_block(ks[0], (8, 8), 4),
                          init_res_block(ks[1], (4,), 4)]}
    uw, ub = _init_conv(ks[2], 4, 4, 3)
    up0["up_conv_w"] = _pack_conv3x3(uw)
    up0["up_conv_b"] = ub.reshape(4, 1)
    # UpBlock1: cat(prev 4, skip 4) -> ResBlock(8->4), ResBlock(4->4), no upsample
    up1 = {"res_blocks": [init_res_block(ks[3], (4, 4), 4),
                          init_res_block(ks[4], (4,), 4)],
           "up_conv_w": None, "up_conv_b": None}
    return {"ups": [up0, up1]}


# ----------------------------- main -----------------------------

if __name__ == "__main__":
    key = jax.random.PRNGKey(0)
    k_x, k_s0, k_s1, k_p = jax.random.split(key, 4)
    B, H, W = 2, 16, 16

    # x = UNetDown output; saved = skip activations from the two DownBlocks.
    x = jax.random.normal(k_x, (B, 8, H // 2, W // 2), jnp.float32)
    saved = [
        jax.random.normal(k_s0, (B, 4, H, W), jnp.float32),
        jax.random.normal(k_s1, (B, 8, H // 2, W // 2), jnp.float32),
    ]
    params = init_unet_up_params(k_p)

    fwd = jax.jit(lambda xx, s0, s1: unet_up_forward(xx, [s0, s1], params))
    out = jax.block_until_ready(fwd(x, saved[0], saved[1]))

    assert out.shape == (B, 4, H, W), out.shape
    assert bool(jnp.all(jnp.isfinite(out)))
    print("KERNEL_OK")
</pallas_src>

<mosaic_0001>
module attributes {stable_mosaic.version = 11 : i64} {
  func.func @_upblock_kernel(%arg0: memref<8x256xf32, #tpu.memory_space<vmem>>, %arg1: memref<8x256xf32, #tpu.memory_space<vmem>>, %arg2: memref<1x256xf32, #tpu.memory_space<vmem>>, %arg3: memref<8x1xf32, #tpu.memory_space<vmem>>, %arg4: memref<8x1xf32, #tpu.memory_space<vmem>>, %arg5: memref<8x1xf32, #tpu.memory_space<vmem>>, %arg6: memref<8x1xf32, #tpu.memory_space<vmem>>, %arg7: memref<72x8xf32, #tpu.memory_space<vmem>>, %arg8: memref<72x8xf32, #tpu.memory_space<vmem>>, %arg9: memref<4x1xf32, #tpu.memory_space<vmem>>, %arg10: memref<4x1xf32, #tpu.memory_space<vmem>>, %arg11: memref<4x1xf32, #tpu.memory_space<vmem>>, %arg12: memref<72x4xf32, #tpu.memory_space<vmem>>, %arg13: memref<4x1xf32, #tpu.memory_space<vmem>>, %arg14: memref<4x8xf32, #tpu.memory_space<vmem>>, %arg15: memref<4x8xf32, #tpu.memory_space<vmem>>, %arg16: memref<4x1xf32, #tpu.memory_space<vmem>>, %arg17: memref<4x1xf32, #tpu.memory_space<vmem>>, %arg18: memref<4x1xf32, #tpu.memory_space<vmem>>, %arg19: memref<72x4xf32, #tpu.memory_space<vmem>>, %arg20: memref<4x1xf32, #tpu.memory_space<vmem>>, %arg21: memref<4x1xf32, #tpu.memory_space<vmem>>, %arg22: memref<4x1xf32, #tpu.memory_space<vmem>>, %arg23: memref<72x4xf32, #tpu.memory_space<vmem>>, %arg24: memref<4x1xf32, #tpu.memory_space<vmem>>, %arg25: memref<4x256xf32, #tpu.memory_space<vmem>>) attributes {dimension_semantics = [], scalar_prefetch = 0 : i64, scratch_operands = 0 : i64, tpu.core_type = #tpu.core_type<tc>} {
    %c0 = arith.constant 0 : index
    %c0_0 = arith.constant 0 : index
    %0 = vector.load %arg0[%c0, %c0_0] : memref<8x256xf32, #tpu.memory_space<vmem>>, vector<8x256xf32>
    %c0_1 = arith.constant 0 : index
    %c0_2 = arith.constant 0 : index
    %1 = vector.load %arg1[%c0_1, %c0_2] : memref<8x256xf32, #tpu.memory_space<vmem>>, vector<8x256xf32>
    %c0_3 = arith.constant 0 : index
    %c0_4 = arith.constant 0 : index
    %2 = vector.load %arg2[%c0_3, %c0_4] : memref<1x256xf32, #tpu.memory_space<vmem>>, vector<1x256xf32>
    %c0_5 = arith.constant 0 : index
    %c0_6 = arith.constant 0 : index
    %3 = vector.load %arg3[%c0_5, %c0_6] : memref<8x1xf32, #tpu.memory_space<vmem>>, vector<8x1xf32>
    %c0_7 = arith.constant 0 : index
    %c0_8 = arith.constant 0 : index
    %4 = vector.load %arg4[%c0_7, %c0_8] : memref<8x1xf32, #tpu.memory_space<vmem>>, vector<8x1xf32>
    %c0_9 = arith.constant 0 : index
    %c0_10 = arith.constant 0 : index
    %5 = vector.load %arg5[%c0_9, %c0_10] : memref<8x1xf32, #tpu.memory_space<vmem>>, vector<8x1xf32>
    %c0_11 = arith.constant 0 : index
    %c0_12 = arith.constant 0 : index
    %6 = vector.load %arg6[%c0_11, %c0_12] : memref<8x1xf32, #tpu.memory_space<vmem>>, vector<8x1xf32>
    %c0_13 = arith.constant 0 : index
    %c0_14 = arith.constant 0 : index
    %7 = vector.load %arg7[%c0_13, %c0_14] : memref<72x8xf32, #tpu.memory_space<vmem>>, vector<72x8xf32>
    %c0_15 = arith.constant 0 : index
    %c0_16 = arith.constant 0 : index
    %8 = vector.load %arg8[%c0_15, %c0_16] : memref<72x8xf32, #tpu.memory_space<vmem>>, vector<72x8xf32>
    %c0_17 = arith.constant 0 : index
    %c0_18 = arith.constant 0 : index
    %9 = vector.load %arg9[%c0_17, %c0_18] : memref<4x1xf32, #tpu.memory_space<vmem>>, vector<4x1xf32>
    %c0_19 = arith.constant 0 : index
    %c0_20 = arith.constant 0 : index
    %10 = vector.load %arg10[%c0_19, %c0_20] : memref<4x1xf32, #tpu.memory_space<vmem>>, vector<4x1xf32>
    %c0_21 = arith.constant 0 : index
    %c0_22 = arith.constant 0 : index
    %11 = vector.load %arg11[%c0_21, %c0_22] : memref<4x1xf32, #tpu.memory_space<vmem>>, vector<4x1xf32>
    %c0_23 = arith.constant 0 : index
    %c0_24 = arith.constant 0 : index
    %12 = vector.load %arg12[%c0_23, %c0_24] : memref<72x4xf32, #tpu.memory_space<vmem>>, vector<72x4xf32>
    %c0_25 = arith.constant 0 : index
    %c0_26 = arith.constant 0 : index
    %13 = vector.load %arg13[%c0_25, %c0_26] : memref<4x1xf32, #tpu.memory_space<vmem>>, vector<4x1xf32>
    %cst = arith.constant dense<0.000000e+00> : vector<8xf32>
    %14 = vector.multi_reduction <add>, %0, %cst [1] : vector<8x256xf32> to vector<8xf32>
    %15 = vector.shape_cast %14 : vector<8xf32> to vector<8x1xf32>
    %cst_27 = arith.constant 7.812500e-03 : f32
    %16 = vector.broadcast %cst_27 : f32 to vector<8x1xf32>
    %17 = arith.mulf %15, %16 : vector<8x1xf32>
    %18 = arith.mulf %0, %0 : vector<8x256xf32>
    %cst_28 = arith.constant dense<0.000000e+00> : vector<8xf32>
    %19 = vector.multi_reduction <add>, %18, %cst_28 [1] : vector<8x256xf32> to vector<8xf32>
    %20 = vector.shape_cast %19 : vector<8xf32> to vector<8x1xf32>
    %cst_29 = arith.constant 7.812500e-03 : f32
    %21 = vector.broadcast %cst_29 : f32 to vector<8x1xf32>
    %22 = arith.mulf %20, %21 : vector<8x1xf32>
    %23 = arith.mulf %17, %17 : vector<8x1xf32>
    %24 = arith.subf %22, %23 : vector<8x1xf32>
    %cst_30 = arith.constant 9.99999974E-6 : f32
    %25 = vector.broadcast %cst_30 : f32 to vector<8x1xf32>
    %26 = arith.addf %24, %25 : vector<8x1xf32>
    %27 = math.rsqrt %26 : vector<8x1xf32>
    %28 = arith.mulf %3, %27 : vector<8x1xf32>
    %29 = vector.broadcast %17 : vector<8x1xf32> to vector<8x256xf32>
    %30 = arith.subf %0, %29 : vector<8x256xf32>
    %31 = vector.broadcast %28 : vector<8x1xf32> to vector<8x256xf32>
    %32 = arith.mulf %30, %31 : vector<8x256xf32>
    %33 = vector.broadcast %4 : vector<8x1xf32> to vector<8x256xf32>
    %34 = arith.addf %32, %33 : vector<8x256xf32>
    %cst_31 = arith.constant 0.000000e+00 : f32
    %35 = vector.broadcast %cst_31 : f32 to vector<8x256xf32>
    %36 = arith.subf %35, %34 : vector<8x256xf32>
    %37 = math.exp %36 : vector<8x256xf32>
    %cst_32 = arith.constant 1.000000e+00 : f32
    %38 = vector.broadcast %cst_32 : f32 to vector<8x256xf32>
    %39 = arith.addf %38, %37 : vector<8x256xf32>
    %cst_33 = arith.constant 1.000000e+00 : f32
    %40 = vector.broadcast %cst_33 : f32 to vector<8x256xf32>
    %41 = arith.divf %40, %39 : vector<8x256xf32>
    %42 = arith.mulf %34, %41 : vector<8x256xf32>
    %43 = vector.broadcast %2 : vector<1x256xf32> to vector<8x256xf32>
    %44 = arith.mulf %42, %43 : vector<8x256xf32>
    %cst_34 = arith.constant dense<0.000000e+00> : vector<72x256xf32>
    %45 = tpu.matmul %7, %44, %cst_34 {dimension_numbers = #tpu.dot_dimension_numbers<[1], [0], [0], [1], [0, 0, 1, 1], [], []>} : vector<72x8xf32>, vector<8x256xf32>, vector<72x256xf32> -> vector<72x256xf32>
    %46 = vector.extract_strided_slice %45 {offsets = [0, 0], sizes = [4, 256], strides = [1, 1]} : vector<72x256xf32> to vector<4x256xf32>
    %c11_i32 = arith.constant 11 : i32
    %47 = tpu.dynamic_rotate %46 by %c11_i32 dim 1 : vector<4x256xf32>, i32 -> vector<4x256xf32>
    %48 = vector.extract_strided_slice %45 {offsets = [8, 0], sizes = [4, 256], strides = [1, 1]} : vector<72x256xf32> to vector<4x256xf32>
    %c10_i32 = arith.constant 10 : i32
    %49 = tpu.dynamic_rotate %48 by %c10_i32 dim 1 : vector<4x256xf32>, i32 -> vector<4x256xf32>
    %50 = arith.addf %47, %49 : vector<4x256xf32>
    %51 = vector.extract_strided_slice %45 {offsets = [16, 0], sizes = [4, 256], strides = [1, 1]} : vector<72x256xf32> to vector<4x256xf32>
    %c9_i32 = arith.constant 9 : i32
    %52 = tpu.dynamic_rotate %51 by %c9_i32 dim 1 : vector<4x256xf32>, i32 -> vector<4x256xf32>
    %53 = arith.addf %50, %52 : vector<4x256xf32>
    %54 = vector.extract_strided_slice %45 {offsets = [24, 0], sizes = [4, 256], strides = [1, 1]} : vector<72x256xf32> to vector<4x256xf32>
    %c1_i32 = arith.constant 1 : i32
    %55 = tpu.dynamic_rotate %54 by %c1_i32 dim 1 : vector<4x256xf32>, i32 -> vector<4x256xf32>
    %56 = arith.addf %53, %55 : vector<4x256xf32>
    %57 = vector.extract_strided_slice %45 {offsets = [32, 0], sizes = [4, 256], strides = [1, 1]} : vector<72x256xf32> to vector<4x256xf32>
    %58 = arith.addf %56, %57 : vector<4x256xf32>
    %59 = vector.extract_strided_slice %45 {offsets = [40, 0], sizes = [4, 256], strides = [1, 1]} : vector<72x256xf32> to vector<4x256xf32>
    %c255_i32 = arith.constant 255 : i32
    %60 = tpu.dynamic_rotate %59 by %c255_i32 dim 1 : vector<4x256xf32>, i32 -> vector<4x256xf32>
    %61 = arith.addf %58, %60 : vector<4x256xf32>
    %62 = vector.extract_strided_slice %45 {offsets = [48, 0], sizes = [4, 256], strides = [1, 1]} : vector<72x256xf32> to vector<4x256xf32>
    %c247_i32 = arith.constant 247 : i32
    %63 = tpu.dynamic_rotate %62 by %c247_i32 dim 1 : vector<4x256xf32>, i32 -> vector<4x256xf32>
    %64 = arith.addf %61, %63 : vector<4x256xf32>
    %65 = vector.extract_strided_slice %45 {offsets = [56, 0], sizes = [4, 256], strides = [1, 1]} : vector<72x256xf32> to vector<4x256xf32>
    %c246_i32 = arith.constant 246 : i32
    %66 = tpu.dynamic_rotate %65 by %c246_i32 dim 1 : vector<4x256xf32>, i32 -> vector<4x256xf32>
    %67 = arith.addf %64, %66 : vector<4x256xf32>
    %68 = vector.extract_strided_slice %45 {offsets = [64, 0], sizes = [4, 256], strides = [1, 1]} : vector<72x256xf32> to vector<4x256xf32>
    %c245_i32 = arith.constant 245 : i32
    %69 = tpu.dynamic_rotate %68 by %c245_i32 dim 1 : vector<4x256xf32>, i32 -> vector<4x256xf32>
    %70 = arith.addf %67, %69 : vector<4x256xf32>
    %cst_35 = arith.constant dense<0.000000e+00> : vector<8xf32>
    %71 = vector.multi_reduction <add>, %1, %cst_35 [1] : vector<8x256xf32> to vector<8xf32>
    %72 = vector.shape_cast %71 : vector<8xf32> to vector<8x1xf32>
    %cst_36 = arith.constant 7.812500e-03 : f32
    %73 = vector.broadcast %cst_36 : f32 to vector<8x1xf32>
    %74 = arith.mulf %72, %73 : vector<8x1xf32>
    %75 = arith.mulf %1, %1 : vector<8x256xf32>
    %cst_37 = arith.constant dense<0.000000e+00> : vector<8xf32>
    %76 = vector.multi_reduction <add>, %75, %cst_37 [1] : vector<8x256xf32> to vector<8xf32>
    %77 = vector.shape_cast %76 : vector<8xf32> to vector<8x1xf32>
    %cst_38 = arith.constant 7.812500e-03 : f32
    %78 = vector.broadcast %cst_38 : f32 to vector<8x1xf32>
    %79 = arith.mulf %77, %78 : vector<8x1xf32>
    %80 = arith.mulf %74, %74 : vector<8x1xf32>
    %81 = arith.subf %79, %80 : vector<8x1xf32>
    %cst_39 = arith.constant 9.99999974E-6 : f32
    %82 = vector.broadcast %cst_39 : f32 to vector<8x1xf32>
    %83 = arith.addf %81, %82 : vector<8x1xf32>
    %84 = math.rsqrt %83 : vector<8x1xf32>
    %85 = arith.mulf %5, %84 : vector<8x1xf32>
    %86 = vector.broadcast %74 : vector<8x1xf32> to vector<8x256xf32>
    %87 = arith.subf %1, %86 : vector<8x256xf32>
    %88 = vector.broadcast %85 : vector<8x1xf32> to vector<8x256xf32>
    %89 = arith.mulf %87, %88 : vector<8x256xf32>
    %90 = vector.broadcast %6 : vector<8x1xf32> to vector<8x256xf32>
    %91 = arith.addf %89, %90 : vector<8x256xf32>
    %cst_40 = arith.constant 0.000000e+00 : f32
    %92 = vector.broadcast %cst_40 : f32 to vector<8x256xf32>
    %93 = arith.subf %92, %91 : vector<8x256xf32>
    %94 = math.exp %93 : vector<8x256xf32>
    %cst_41 = arith.constant 1.000000e+00 : f32
    %95 = vector.broadcast %cst_41 : f32 to vector<8x256xf32>
    %96 = arith.addf %95, %94 : vector<8x256xf32>
    %cst_42 = arith.constant 1.000000e+00 : f32
    %97 = vector.broadcast %cst_42 : f32 to vector<8x256xf32>
    %98 = arith.divf %97, %96 : vector<8x256xf32>
    %99 = arith.mulf %91, %98 : vector<8x256xf32>
    %100 = vector.broadcast %2 : vector<1x256xf32> to vector<8x256xf32>
    %101 = arith.mulf %99, %100 : vector<8x256xf32>
    %cst_43 = arith.constant dense<0.000000e+00> : vector<72x256xf32>
    %102 = tpu.matmul %8, %101, %cst_43 {dimension_numbers = #tpu.dot_dimension_numbers<[1], [0], [0], [1], [0, 0, 1, 1], [], []>} : vector<72x8xf32>, vector<8x256xf32>, vector<72x256xf32> -> vector<72x256xf32>
    %103 = vector.extract_strided_slice %102 {offsets = [0, 0], sizes = [4, 256], strides = [1, 1]} : vector<72x256xf32> to vector<4x256xf32>
    %c11_i32_44 = arith.constant 11 : i32
    %104 = tpu.dynamic_rotate %103 by %c11_i32_44 dim 1 : vector<4x256xf32>, i32 -> vector<4x256xf32>
    %105 = vector.extract_strided_slice %102 {offsets = [8, 0], sizes = [4, 256], strides = [1, 1]} : vector<72x256xf32> to vector<4x256xf32>
    %c10_i32_45 = arith.constant 10 : i32
    %106 = tpu.dynamic_rotate %105 by %c10_i32_45 dim 1 : vector<4x256xf32>, i32 -> vector<4x256xf32>
    %107 = arith.addf %104, %106 : vector<4x256xf32>
    %108 = vector.extract_strided_slice %102 {offsets = [16, 0], sizes = [4, 256], strides = [1, 1]} : vector<72x256xf32> to vector<4x256xf32>
    %c9_i32_46 = arith.constant 9 : i32
    %109 = tpu.dynamic_rotate %108 by %c9_i32_46 dim 1 : vector<4x256xf32>, i32 -> vector<4x256xf32>
    %110 = arith.addf %107, %109 : vector<4x256xf32>
    %111 = vector.extract_strided_slice %102 {offsets = [24, 0], sizes = [4, 256], strides = [1, 1]} : vector<72x256xf32> to vector<4x256xf32>
    %c1_i32_47 = arith.constant 1 : i32
    %112 = tpu.dynamic_rotate %111 by %c1_i32_47 dim 1 : vector<4x256xf32>, i32 -> vector<4x256xf32>
    %113 = arith.addf %110, %112 : vector<4x256xf32>
    %114 = vector.extract_strided_slice %102 {offsets = [32, 0], sizes = [4, 256], strides = [1, 1]} : vector<72x256xf32> to vector<4x256xf32>
    %115 = arith.addf %113, %114 : vector<4x256xf32>
    %116 = vector.extract_strided_slice %102 {offsets = [40, 0], sizes = [4, 256], strides = [1, 1]} : vector<72x256xf32> to vector<4x256xf32>
    %c255_i32_48 = arith.constant 255 : i32
    %117 = tpu.dynamic_rotate %116 by %c255_i32_48 dim 1 : vector<4x256xf32>, i32 -> vector<4x256xf32>
    %118 = arith.addf %115, %117 : vector<4x256xf32>
    %119 = vector.extract_strided_slice %102 {offsets = [48, 0], sizes = [4, 256], strides = [1, 1]} : vector<72x256xf32> to vector<4x256xf32>
    %c247_i32_49 = arith.constant 247 : i32
    %120 = tpu.dynamic_rotate %119 by %c247_i32_49 dim 1 : vector<4x256xf32>, i32 -> vector<4x256xf32>
    %121 = arith.addf %118, %120 : vector<4x256xf32>
    %122 = vector.extract_strided_slice %102 {offsets = [56, 0], sizes = [4, 256], strides = [1, 1]} : vector<72x256xf32> to vector<4x256xf32>
    %c246_i32_50 = arith.constant 246 : i32
    %123 = tpu.dynamic_rotate %122 by %c246_i32_50 dim 1 : vector<4x256xf32>, i32 -> vector<4x256xf32>
    %124 = arith.addf %121, %123 : vector<4x256xf32>
    %125 = vector.extract_strided_slice %102 {offsets = [64, 0], sizes = [4, 256], strides = [1, 1]} : vector<72x256xf32> to vector<4x256xf32>
    %c245_i32_51 = arith.constant 245 : i32
    %126 = tpu.dynamic_rotate %125 by %c245_i32_51 dim 1 : vector<4x256xf32>, i32 -> vector<4x256xf32>
    %127 = arith.addf %124, %126 : vector<4x256xf32>
    %128 = arith.addf %70, %127 : vector<4x256xf32>
    %129 = vector.broadcast %9 : vector<4x1xf32> to vector<4x256xf32>
    %130 = arith.addf %128, %129 : vector<4x256xf32>
    %131 = vector.broadcast %2 : vector<1x256xf32> to vector<4x256xf32>
    %132 = arith.mulf %130, %131 : vector<4x256xf32>
    %cst_52 = arith.constant dense<0.000000e+00> : vector<4xf32>
    %133 = vector.multi_reduction <add>, %132, %cst_52 [1] : vector<4x256xf32> to vector<4xf32>
    %134 = vector.shape_cast %133 : vector<4xf32> to vector<4x1xf32>
    %cst_53 = arith.constant 7.812500e-03 : f32
    %135 = vector.broadcast %cst_53 : f32 to vector<4x1xf32>
    %136 = arith.mulf %134, %135 : vector<4x1xf32>
    %137 = arith.mulf %132, %132 : vector<4x256xf32>
    %cst_54 = arith.constant dense<0.000000e+00> : vector<4xf32>
    %138 = vector.multi_reduction <add>, %137, %cst_54 [1] : vector<4x256xf32> to vector<4xf32>
    %139 = vector.shape_cast %138 : vector<4xf32> to vector<4x1xf32>
    %cst_55 = arith.constant 7.812500e-03 : f32
    %140 = vector.broadcast %cst_55 : f32 to vector<4x1xf32>
    %141 = arith.mulf %139, %140 : vector<4x1xf32>
    %142 = arith.mulf %136, %136 : vector<4x1xf32>
    %143 = arith.subf %141, %142 : vector<4x1xf32>
    %cst_56 = arith.constant 9.99999974E-6 : f32
    %144 = vector.broadcast %cst_56 : f32 to vector<4x1xf32>
    %145 = arith.addf %143, %144 : vector<4x1xf32>
    %146 = math.rsqrt %145 : vector<4x1xf32>
    %147 = arith.mulf %10, %146 : vector<4x1xf32>
    %148 = vector.broadcast %136 : vector<4x1xf32> to vector<4x256xf32>
    %149 = arith.subf %132, %148 : vector<4x256xf32>
    %150 = vector.broadcast %147 : vector<4x1xf32> to vector<4x256xf32>
    %151 = arith.mulf %149, %150 : vector<4x256xf32>
    %152 = vector.broadcast %11 : vector<4x1xf32> to vector<4x256xf32>
    %153 = arith.addf %151, %152 : vector<4x256xf32>
    %cst_57 = arith.constant 0.000000e+00 : f32
    %154 = vector.broadcast %cst_57 : f32 to vector<4x256xf32>
    %155 = arith.subf %154, %153 : vector<4x256xf32>
    %156 = math.exp %155 : vector<4x256xf32>
    %cst_58 = arith.constant 1.000000e+00 : f32
    %157 = vector.broadcast %cst_58 : f32 to vector<4x256xf32>
    %158 = arith.addf %157, %156 : vector<4x256xf32>
    %cst_59 = arith.constant 1.000000e+00 : f32
    %159 = vector.broadcast %cst_59 : f32 to vector<4x256xf32>
    %160 = arith.divf %159, %158 : vector<4x256xf32>
    %161 = arith.mulf %153, %160 : vector<4x256xf32>
    %162 = vector.broadcast %2 : vector<1x256xf32> to vector<4x256xf32>
    %163 = arith.mulf %161, %162 : vector<4x256xf32>
    %cst_60 = arith.constant dense<0.000000e+00> : vector<72x256xf32>
    %164 = tpu.matmul %12, %163, %cst_60 {dimension_numbers = #tpu.dot_dimension_numbers<[1], [0], [0], [1], [0, 0, 1, 1], [], []>} : vector<72x4xf32>, vector<4x256xf32>, vector<72x256xf32> -> vector<72x256xf32>
    %165 = vector.extract_strided_slice %164 {offsets = [0, 0], sizes = [4, 256], strides = [1, 1]} : vector<72x256xf32> to vector<4x256xf32>
    %c11_i32_61 = arith.constant 11 : i32
    %166 = tpu.dynamic_rotate %165 by %c11_i32_61 dim 1 : vector<4x256xf32>, i32 -> vector<4x256xf32>
    %167 = vector.extract_strided_slice %164 {offsets = [8, 0], sizes = [4, 256], strides = [1, 1]} : vector<72x256xf32> to vector<4x256xf32>
    %c10_i32_62 = arith.constant 10 : i32
    %168 = tpu.dynamic_rotate %167 by %c10_i32_62 dim 1 : vector<4x256xf32>, i32 -> vector<4x256xf32>
    %169 = arith.addf %166, %168 : vector<4x256xf32>
    %170 = vector.extract_strided_slice %164 {offsets = [16, 0], sizes = [4, 256], strides = [1, 1]} : vector<72x256xf32> to vector<4x256xf32>
    %c9_i32_63 = arith.constant 9 : i32
    %171 = tpu.dynamic_rotate %170 by %c9_i32_63 dim 1 : vector<4x256xf32>, i32 -> vector<4x256xf32>
    %172 = arith.addf %169, %171 : vector<4x256xf32>
    %173 = vector.extract_strided_slice %164 {offsets = [24, 0], sizes = [4, 256], strides = [1, 1]} : vector<72x256xf32> to vector<4x256xf32>
    %c1_i32_64 = arith.constant 1 : i32
    %174 = tpu.dynamic_rotate %173 by %c1_i32_64 dim 1 : vector<4x256xf32>, i32 -> vector<4x256xf32>
    %175 = arith.addf %172, %174 : vector<4x256xf32>
    %176 = vector.extract_strided_slice %164 {offsets = [32, 0], sizes = [4, 256], strides = [1, 1]} : vector<72x256xf32> to vector<4x256xf32>
    %177 = arith.addf %175, %176 : vector<4x256xf32>
    %178 = vector.extract_strided_slice %164 {offsets = [40, 0], sizes = [4, 256], strides = [1, 1]} : vector<72x256xf32> to vector<4x256xf32>
    %c255_i32_65 = arith.constant 255 : i32
    %179 = tpu.dynamic_rotate %178 by %c255_i32_65 dim 1 : vector<4x256xf32>, i32 -> vector<4x256xf32>
    %180 = arith.addf %177, %179 : vector<4x256xf32>
    %181 = vector.extract_strided_slice %164 {offsets = [48, 0], sizes = [4, 256], strides = [1, 1]} : vector<72x256xf32> to vector<4x256xf32>
    %c247_i32_66 = arith.constant 247 : i32
    %182 = tpu.dynamic_rotate %181 by %c247_i32_66 dim 1 : vector<4x256xf32>, i32 -> vector<4x256xf32>
    %183 = arith.addf %180, %182 : vector<4x256xf32>
    %184 = vector.extract_strided_slice %164 {offsets = [56, 0], sizes = [4, 256], strides = [1, 1]} : vector<72x256xf32> to vector<4x256xf32>
    %c246_i32_67 = arith.constant 246 : i32
    %185 = tpu.dynamic_rotate %184 by %c246_i32_67 dim 1 : vector<4x256xf32>, i32 -> vector<4x256xf32>
    %186 = arith.addf %183, %185 : vector<4x256xf32>
    %187 = vector.extract_strided_slice %164 {offsets = [64, 0], sizes = [4, 256], strides = [1, 1]} : vector<72x256xf32> to vector<4x256xf32>
    %c245_i32_68 = arith.constant 245 : i32
    %188 = tpu.dynamic_rotate %187 by %c245_i32_68 dim 1 : vector<4x256xf32>, i32 -> vector<4x256xf32>
    %189 = arith.addf %186, %188 : vector<4x256xf32>
    %190 = vector.broadcast %13 : vector<4x1xf32> to vector<4x256xf32>
    %191 = arith.addf %189, %190 : vector<4x256xf32>
    %c0_69 = arith.constant 0 : index
    %c0_70 = arith.constant 0 : index
    %192 = vector.load %arg14[%c0_69, %c0_70] : memref<4x8xf32, #tpu.memory_space<vmem>>, vector<4x8xf32>
    %cst_71 = arith.constant dense<0.000000e+00> : vector<4x256xf32>
    %193 = tpu.matmul %192, %0, %cst_71 {dimension_numbers = #tpu.dot_dimension_numbers<[1], [0], [0], [1], [0, 0, 1, 1], [], []>} : vector<4x8xf32>, vector<8x256xf32>, vector<4x256xf32> -> vector<4x256xf32>
    %c0_72 = arith.constant 0 : index
    %c0_73 = arith.constant 0 : index
    %194 = vector.load %arg15[%c0_72, %c0_73] : memref<4x8xf32, #tpu.memory_space<vmem>>, vector<4x8xf32>
    %cst_74 = arith.constant dense<0.000000e+00> : vector<4x256xf32>
    %195 = tpu.matmul %194, %1, %cst_74 {dimension_numbers = #tpu.dot_dimension_numbers<[1], [0], [0], [1], [0, 0, 1, 1], [], []>} : vector<4x8xf32>, vector<8x256xf32>, vector<4x256xf32> -> vector<4x256xf32>
    %196 = arith.addf %193, %195 : vector<4x256xf32>
    %c0_75 = arith.constant 0 : index
    %c0_76 = arith.constant 0 : index
    %197 = vector.load %arg16[%c0_75, %c0_76] : memref<4x1xf32, #tpu.memory_space<vmem>>, vector<4x1xf32>
    %198 = vector.broadcast %197 : vector<4x1xf32> to vector<4x256xf32>
    %199 = arith.addf %196, %198 : vector<4x256xf32>
    %200 = arith.addf %191, %199 : vector<4x256xf32>
    %201 = vector.broadcast %2 : vector<1x256xf32> to vector<4x256xf32>
    %202 = arith.mulf %200, %201 : vector<4x256xf32>
    %c0_77 = arith.constant 0 : index
    %c0_78 = arith.constant 0 : index
    %203 = vector.load %arg17[%c0_77, %c0_78] : memref<4x1xf32, #tpu.memory_space<vmem>>, vector<4x1xf32>
    %c0_79 = arith.constant 0 : index
    %c0_80 = arith.constant 0 : index
    %204 = vector.load %arg18[%c0_79, %c0_80] : memref<4x1xf32, #tpu.memory_space<vmem>>, vector<4x1xf32>
    %c0_81 = arith.constant 0 : index
    %c0_82 = arith.constant 0 : index
    %205 = vector.load %arg19[%c0_81, %c0_82] : memref<72x4xf32, #tpu.memory_space<vmem>>, vector<72x4xf32>
    %c0_83 = arith.constant 0 : index
    %c0_84 = arith.constant 0 : index
    %206 = vector.load %arg20[%c0_83, %c0_84] : memref<4x1xf32, #tpu.memory_space<vmem>>, vector<4x1xf32>
    %c0_85 = arith.constant 0 : index
    %c0_86 = arith.constant 0 : index
    %207 = vector.load %arg21[%c0_85, %c0_86] : memref<4x1xf32, #tpu.memory_space<vmem>>, vector<4x1xf32>
    %c0_87 = arith.constant 0 : index
    %c0_88 = arith.constant 0 : index
    %208 = vector.load %arg22[%c0_87, %c0_88] : memref<4x1xf32, #tpu.memory_space<vmem>>, vector<4x1xf32>
    %c0_89 = arith.constant 0 : index
    %c0_90 = arith.constant 0 : index
    %209 = vector.load %arg23[%c0_89, %c0_90] : memref<72x4xf32, #tpu.memory_space<vmem>>, vector<72x4xf32>
    %c0_91 = arith.constant 0 : index
    %c0_92 = arith.constant 0 : index
    %210 = vector.load %arg24[%c0_91, %c0_92] : memref<4x1xf32, #tpu.memory_space<vmem>>, vector<4x1xf32>
    %cst_93 = arith.constant dense<0.000000e+00> : vector<4xf32>
    %211 = vector.multi_reduction <add>, %202, %cst_93 [1] : vector<4x256xf32> to vector<4xf32>
    %212 = vector.shape_cast %211 : vector<4xf32> to vector<4x1xf32>
    %cst_94 = arith.constant 7.812500e-03 : f32
    %213 = vector.broadcast %cst_94 : f32 to vector<4x1xf32>
    %214 = arith.mulf %212, %213 : vector<4x1xf32>
    %215 = arith.mulf %202, %202 : vector<4x256xf32>
    %cst_95 = arith.constant dense<0.000000e+00> : vector<4xf32>
    %216 = vector.multi_reduction <add>, %215, %cst_95 [1] : vector<4x256xf32> to vector<4xf32>
    %217 = vector.shape_cast %216 : vector<4xf32> to vector<4x1xf32>
    %cst_96 = arith.constant 7.812500e-03 : f32
    %218 = vector.broadcast %cst_96 : f32 to vector<4x1xf32>
    %219 = arith.mulf %217, %218 : vector<4x1xf32>
    %220 = arith.mulf %214, %214 : vector<4x1xf32>
    %221 = arith.subf %219, %220 : vector<4x1xf32>
    %cst_97 = arith.constant 9.99999974E-6 : f32
    %222 = vector.broadcast %cst_97 : f32 to vector<4x1xf32>
    %223 = arith.addf %221, %222 : vector<4x1xf32>
    %224 = math.rsqrt %223 : vector<4x1xf32>
    %225 = arith.mulf %203, %224 : vector<4x1xf32>
    %226 = vector.broadcast %214 : vector<4x1xf32> to vector<4x256xf32>
    %227 = arith.subf %202, %226 : vector<4x256xf32>
    %228 = vector.broadcast %225 : vector<4x1xf32> to vector<4x256xf32>
    %229 = arith.mulf %227, %228 : vector<4x256xf32>
    %230 = vector.broadcast %204 : vector<4x1xf32> to vector<4x256xf32>
    %231 = arith.addf %229, %230 : vector<4x256xf32>
    %cst_98 = arith.constant 0.000000e+00 : f32
    %232 = vector.broadcast %cst_98 : f32 to vector<4x256xf32>
    %233 = arith.subf %232, %231 : vector<4x256xf32>
    %234 = math.exp %233 : vector<4x256xf32>
    %cst_99 = arith.constant 1.000000e+00 : f32
    %235 = vector.broadcast %cst_99 : f32 to vector<4x256xf32>
    %236 = arith.addf %235, %234 : vector<4x256xf32>
    %cst_100 = arith.constant 1.000000e+00 : f32
    %237 = vector.broadcast %cst_100 : f32 to vector<4x256xf32>
    %238 = arith.divf %237, %236 : vector<4x256xf32>
    %239 = arith.mulf %231, %238 : vector<4x256xf32>
    %240 = vector.broadcast %2 : vector<1x256xf32> to vector<4x256xf32>
    %241 = arith.mulf %239, %240 : vector<4x256xf32>
    %cst_101 = arith.constant dense<0.000000e+00> : vector<72x256xf32>
    %242 = tpu.matmul %205, %241, %cst_101 {dimension_numbers = #tpu.dot_dimension_numbers<[1], [0], [0], [1], [0, 0, 1, 1], [], []>} : vector<72x4xf32>, vector<4x256xf32>, vector<72x256xf32> -> vector<72x256xf32>
    %243 = vector.extract_strided_slice %242 {offsets = [0, 0], sizes = [4, 256], strides = [1, 1]} : vector<72x256xf32> to vector<4x256xf32>
    %c11_i32_102 = arith.constant 11 : i32
    %244 = tpu.dynamic_rotate %243 by %c11_i32_102 dim 1 : vector<4x256xf32>, i32 -> vector<4x256xf32>
    %245 = vector.extract_strided_slice %242 {offsets = [8, 0], sizes = [4, 256], strides = [1, 1]} : vector<72x256xf32> to vector<4x256xf32>
    %c10_i32_103 = arith.constant 10 : i32
    %246 = tpu.dynamic_rotate %245 by %c10_i32_103 dim 1 : vector<4x256xf32>, i32 -> vector<4x256xf32>
    %247 = arith.addf %244, %246 : vector<4x256xf32>
    %248 = vector.extract_strided_slice %242 {offsets = [16, 0], sizes = [4, 256], strides = [1, 1]} : vector<72x256xf32> to vector<4x256xf32>
    %c9_i32_104 = arith.constant 9 : i32
    %249 = tpu.dynamic_rotate %248 by %c9_i32_104 dim 1 : vector<4x256xf32>, i32 -> vector<4x256xf32>
    %250 = arith.addf %247, %249 : vector<4x256xf32>
    %251 = vector.extract_strided_slice %242 {offsets = [24, 0], sizes = [4, 256], strides = [1, 1]} : vector<72x256xf32> to vector<4x256xf32>
    %c1_i32_105 = arith.constant 1 : i32
    %252 = tpu.dynamic_rotate %251 by %c1_i32_105 dim 1 : vector<4x256xf32>, i32 -> vector<4x256xf32>
    %253 = arith.addf %250, %252 : vector<4x256xf32>
    %254 = vector.extract_strided_slice %242 {offsets = [32, 0], sizes = [4, 256], strides = [1, 1]} : vector<72x256xf32> to vector<4x256xf32>
    %255 = arith.addf %253, %254 : vector<4x256xf32>
    %256 = vector.extract_strided_slice %242 {offsets = [40, 0], sizes = [4, 256], strides = [1, 1]} : vector<72x256xf32> to vector<4x256xf32>
    %c255_i32_106 = arith.constant 255 : i32
    %257 = tpu.dynamic_rotate %256 by %c255_i32_106 dim 1 : vector<4x256xf32>, i32 -> vector<4x256xf32>
    %258 = arith.addf %255, %257 : vector<4x256xf32>
    %259 = vector.extract_strided_slice %242 {offsets = [48, 0], sizes = [4, 256], strides = [1, 1]} : vector<72x256xf32> to vector<4x256xf32>
    %c247_i32_107 = arith.constant 247 : i32
    %260 = tpu.dynamic_rotate %259 by %c247_i32_107 dim 1 : vector<4x256xf32>, i32 -> vector<4x256xf32>
    %261 = arith.addf %258, %260 : vector<4x256xf32>
    %262 = vector.extract_strided_slice %242 {offsets = [56, 0], sizes = [4, 256], strides = [1, 1]} : vector<72x256xf32> to vector<4x256xf32>
    %c246_i32_108 = arith.constant 246 : i32
    %263 = tpu.dynamic_rotate %262 by %c246_i32_108 dim 1 : vector<4x256xf32>, i32 -> vector<4x256xf32>
    %264 = arith.addf %261, %263 : vector<4x256xf32>
    %265 = vector.extract_strided_slice %242 {offsets = [64, 0], sizes = [4, 256], strides = [1, 1]} : vector<72x256xf32> to vector<4x256xf32>
    %c245_i32_109 = arith.constant 245 : i32
    %266 = tpu.dynamic_rotate %265 by %c245_i32_109 dim 1 : vector<4x256xf32>, i32 -> vector<4x256xf32>
    %267 = arith.addf %264, %266 : vector<4x256xf32>
    %268 = vector.broadcast %206 : vector<4x1xf32> to vector<4x256xf32>
    %269 = arith.addf %267, %268 : vector<4x256xf32>
    %270 = vector.broadcast %2 : vector<1x256xf32> to vector<4x256xf32>
    %271 = arith.mulf %269, %270 : vector<4x256xf32>
    %cst_110 = arith.constant dense<0.000000e+00> : vector<4xf32>
    %272 = vector.multi_reduction <add>, %271, %cst_110 [1] : vector<4x256xf32> to vector<4xf32>
    %273 = vector.shape_cast %272 : vector<4xf32> to vector<4x1xf32>
    %cst_111 = arith.constant 7.812500e-03 : f32
    %274 = vector.broadcast %cst_111 : f32 to vector<4x1xf32>
    %275 = arith.mulf %273, %274 : vector<4x1xf32>
    %276 = arith.mulf %271, %271 : vector<4x256xf32>
    %cst_112 = arith.constant dense<0.000000e+00> : vector<4xf32>
    %277 = vector.multi_reduction <add>, %276, %cst_112 [1] : vector<4x256xf32> to vector<4xf32>
    %278 = vector.shape_cast %277 : vector<4xf32> to vector<4x1xf32>
    %cst_113 = arith.constant 7.812500e-03 : f32
    %279 = vector.broadcast %cst_113 : f32 to vector<4x1xf32>
    %280 = arith.mulf %278, %279 : vector<4x1xf32>
    %281 = arith.mulf %275, %275 : vector<4x1xf32>
    %282 = arith.subf %280, %281 : vector<4x1xf32>
    %cst_114 = arith.constant 9.99999974E-6 : f32
    %283 = vector.broadcast %cst_114 : f32 to vector<4x1xf32>
    %284 = arith.addf %282, %283 : vector<4x1xf32>
    %285 = math.rsqrt %284 : vector<4x1xf32>
    %286 = arith.mulf %207, %285 : vector<4x1xf32>
    %287 = vector.broadcast %275 : vector<4x1xf32> to vector<4x256xf32>
    %288 = arith.subf %271, %287 : vector<4x256xf32>
    %289 = vector.broadcast %286 : vector<4x1xf32> to vector<4x256xf32>
    %290 = arith.mulf %288, %289 : vector<4x256xf32>
    %291 = vector.broadcast %208 : vector<4x1xf32> to vector<4x256xf32>
    %292 = arith.addf %290, %291 : vector<4x256xf32>
    %cst_115 = arith.constant 0.000000e+00 : f32
    %293 = vector.broadcast %cst_115 : f32 to vector<4x256xf32>
    %294 = arith.subf %293, %292 : vector<4x256xf32>
    %295 = math.exp %294 : vector<4x256xf32>
    %cst_116 = arith.constant 1.000000e+00 : f32
    %296 = vector.broadcast %cst_116 : f32 to vector<4x256xf32>
    %297 = arith.addf %296, %295 : vector<4x256xf32>
    %cst_117 = arith.constant 1.000000e+00 : f32
    %298 = vector.broadcast %cst_117 : f32 to vector<4x256xf32>
    %299 = arith.divf %298, %297 : vector<4x256xf32>
    %300 = arith.mulf %292, %299 : vector<4x256xf32>
    %301 = vector.broadcast %2 : vector<1x256xf32> to vector<4x256xf32>
    %302 = arith.mulf %300, %301 : vector<4x256xf32>
    %cst_118 = arith.constant dense<0.000000e+00> : vector<72x256xf32>
    %303 = tpu.matmul %209, %302, %cst_118 {dimension_numbers = #tpu.dot_dimension_numbers<[1], [0], [0], [1], [0, 0, 1, 1], [], []>} : vector<72x4xf32>, vector<4x256xf32>, vector<72x256xf32> -> vector<72x256xf32>
    %304 = vector.extract_strided_slice %303 {offsets = [0, 0], sizes = [4, 256], strides = [1, 1]} : vector<72x256xf32> to vector<4x256xf32>
    %c11_i32_119 = arith.constant 11 : i32
    %305 = tpu.dynamic_rotate %304 by %c11_i32_119 dim 1 : vector<4x256xf32>, i32 -> vector<4x256xf32>
    %306 = vector.extract_strided_slice %303 {offsets = [8, 0], sizes = [4, 256], strides = [1, 1]} : vector<72x256xf32> to vector<4x256xf32>
    %c10_i32_120 = arith.constant 10 : i32
    %307 = tpu.dynamic_rotate %306 by %c10_i32_120 dim 1 : vector<4x256xf32>, i32 -> vector<4x256xf32>
    %308 = arith.addf %305, %307 : vector<4x256xf32>
    %309 = vector.extract_strided_slice %303 {offsets = [16, 0], sizes = [4, 256], strides = [1, 1]} : vector<72x256xf32> to vector<4x256xf32>
    %c9_i32_121 = arith.constant 9 : i32
    %310 = tpu.dynamic_rotate %309 by %c9_i32_121 dim 1 : vector<4x256xf32>, i32 -> vector<4x256xf32>
    %311 = arith.addf %308, %310 : vector<4x256xf32>
    %312 = vector.extract_strided_slice %303 {offsets = [24, 0], sizes = [4, 256], strides = [1, 1]} : vector<72x256xf32> to vector<4x256xf32>
    %c1_i32_122 = arith.constant 1 : i32
    %313 = tpu.dynamic_rotate %312 by %c1_i32_122 dim 1 : vector<4x256xf32>, i32 -> vector<4x256xf32>
    %314 = arith.addf %311, %313 : vector<4x256xf32>
    %315 = vector.extract_strided_slice %303 {offsets = [32, 0], sizes = [4, 256], strides = [1, 1]} : vector<72x256xf32> to vector<4x256xf32>
    %316 = arith.addf %314, %315 : vector<4x256xf32>
    %317 = vector.extract_strided_slice %303 {offsets = [40, 0], sizes = [4, 256], strides = [1, 1]} : vector<72x256xf32> to vector<4x256xf32>
    %c255_i32_123 = arith.constant 255 : i32
    %318 = tpu.dynamic_rotate %317 by %c255_i32_123 dim 1 : vector<4x256xf32>, i32 -> vector<4x256xf32>
    %319 = arith.addf %316, %318 : vector<4x256xf32>
    %320 = vector.extract_strided_slice %303 {offsets = [48, 0], sizes = [4, 256], strides = [1, 1]} : vector<72x256xf32> to vector<4x256xf32>
    %c247_i32_124 = arith.constant 247 : i32
    %321 = tpu.dynamic_rotate %320 by %c247_i32_124 dim 1 : vector<4x256xf32>, i32 -> vector<4x256xf32>
    %322 = arith.addf %319, %321 : vector<4x256xf32>
    %323 = vector.extract_strided_slice %303 {offsets = [56, 0], sizes = [4, 256], strides = [1, 1]} : vector<72x256xf32> to vector<4x256xf32>
    %c246_i32_125 = arith.constant 246 : i32
    %324 = tpu.dynamic_rotate %323 by %c246_i32_125 dim 1 : vector<4x256xf32>, i32 -> vector<4x256xf32>
    %325 = arith.addf %322, %324 : vector<4x256xf32>
    %326 = vector.extract_strided_slice %303 {offsets = [64, 0], sizes = [4, 256], strides = [1, 1]} : vector<72x256xf32> to vector<4x256xf32>
    %c245_i32_126 = arith.constant 245 : i32
    %327 = tpu.dynamic_rotate %326 by %c245_i32_126 dim 1 : vector<4x256xf32>, i32 -> vector<4x256xf32>
    %328 = arith.addf %325, %327 : vector<4x256xf32>
    %329 = vector.broadcast %210 : vector<4x1xf32> to vector<4x256xf32>
    %330 = arith.addf %328, %329 : vector<4x256xf32>
    %331 = arith.addf %330, %202 : vector<4x256xf32>
    %332 = vector.broadcast %2 : vector<1x256xf32> to vector<4x256xf32>
    %333 = arith.mulf %331, %332 : vector<4x256xf32>
    %c0_127 = arith.constant 0 : index
    %c0_128 = arith.constant 0 : index
    %334 = vector.load %arg25[%c0_127, %c0_128] : memref<4x256xf32, #tpu.memory_space<vmem>>, vector<4x256xf32>
    tpu.vector_store %arg25[%c0_127, %c0_128], %333 {strides = array<i32>} : memref<4x256xf32, #tpu.memory_space<vmem>>, vector<4x256xf32>,
    return
  }
}

module attributes {stable_mosaic.version = 11 : i64} {
  func.func @_upblock_kernel(%arg0: memref<4x768xf32, #tpu.memory_space<vmem>>, %arg1: memref<4x768xf32, #tpu.memory_space<vmem>>, %arg2: memref<1x768xf32, #tpu.memory_space<vmem>>, %arg3: memref<72x4xf32, #tpu.memory_space<vmem>>, %arg4: memref<4x1xf32, #tpu.memory_space<vmem>>, %arg5: memref<4x1xf32, #tpu.memory_space<vmem>>, %arg6: memref<4x1xf32, #tpu.memory_space<vmem>>, %arg7: memref<4x1xf32, #tpu.memory_space<vmem>>, %arg8: memref<4x1xf32, #tpu.memory_space<vmem>>, %arg9: memref<72x4xf32, #tpu.memory_space<vmem>>, %arg10: memref<72x4xf32, #tpu.memory_space<vmem>>, %arg11: memref<4x1xf32, #tpu.memory_space<vmem>>, %arg12: memref<4x1xf32, #tpu.memory_space<vmem>>, %arg13: memref<4x1xf32, #tpu.memory_space<vmem>>, %arg14: memref<72x4xf32, #tpu.memory_space<vmem>>, %arg15: memref<4x1xf32, #tpu.memory_space<vmem>>, %arg16: memref<4x4xf32, #tpu.memory_space<vmem>>, %arg17: memref<4x4xf32, #tpu.memory_space<vmem>>, %arg18: memref<4x1xf32, #tpu.memory_space<vmem>>, %arg19: memref<4x1xf32, #tpu.memory_space<vmem>>, %arg20: memref<4x1xf32, #tpu.memory_space<vmem>>, %arg21: memref<72x4xf32, #tpu.memory_space<vmem>>, %arg22: memref<4x1xf32, #tpu.memory_space<vmem>>, %arg23: memref<4x1xf32, #tpu.memory_space<vmem>>, %arg24: memref<4x1xf32, #tpu.memory_space<vmem>>, %arg25: memref<72x4xf32, #tpu.memory_space<vmem>>, %arg26: memref<4x1xf32, #tpu.memory_space<vmem>>, %arg27: memref<4x768xf32, #tpu.memory_space<vmem>>) attributes {dimension_semantics = [], scalar_prefetch = 0 : i64, scratch_operands = 0 : i64, tpu.core_type = #tpu.core_type<tc>} {
    %c0 = arith.constant 0 : index
    %c0_0 = arith.constant 0 : index
    %0 = vector.load %arg0[%c0, %c0_0] : memref<4x768xf32, #tpu.memory_space<vmem>>, vector<4x768xf32>
    %c0_1 = arith.constant 0 : index
    %c0_2 = arith.constant 0 : index
    %1 = vector.load %arg1[%c0_1, %c0_2] : memref<4x768xf32, #tpu.memory_space<vmem>>, vector<4x768xf32>
    %c0_3 = arith.constant 0 : index
    %c0_4 = arith.constant 0 : index
    %2 = vector.load %arg2[%c0_3, %c0_4] : memref<1x768xf32, #tpu.memory_space<vmem>>, vector<1x768xf32>
    %c0_5 = arith.constant 0 : index
    %c0_6 = arith.constant 0 : index
    %3 = vector.load %arg3[%c0_5, %c0_6] : memref<72x4xf32, #tpu.memory_space<vmem>>, vector<72x4xf32>
    %c0_7 = arith.constant 0 : index
    %c0_8 = arith.constant 0 : index
    %4 = vector.load %arg4[%c0_7, %c0_8] : memref<4x1xf32, #tpu.memory_space<vmem>>, vector<4x1xf32>
    %cst = arith.constant dense<0.000000e+00> : vector<72x768xf32>
    %5 = tpu.matmul %3, %0, %cst {dimension_numbers = #tpu.dot_dimension_numbers<[1], [0], [0], [1], [0, 0, 1, 1], [], []>} : vector<72x4xf32>, vector<4x768xf32>, vector<72x768xf32> -> vector<72x768xf32>
    %6 = vector.extract_strided_slice %5 {offsets = [0, 0], sizes = [4, 768], strides = [1, 1]} : vector<72x768xf32> to vector<4x768xf32>
    %c19_i32 = arith.constant 19 : i32
    %7 = tpu.dynamic_rotate %6 by %c19_i32 dim 1 : vector<4x768xf32>, i32 -> vector<4x768xf32>
    %8 = vector.extract_strided_slice %5 {offsets = [8, 0], sizes = [4, 768], strides = [1, 1]} : vector<72x768xf32> to vector<4x768xf32>
    %c18_i32 = arith.constant 18 : i32
    %9 = tpu.dynamic_rotate %8 by %c18_i32 dim 1 : vector<4x768xf32>, i32 -> vector<4x768xf32>
    %10 = arith.addf %7, %9 : vector<4x768xf32>
    %11 = vector.extract_strided_slice %5 {offsets = [16, 0], sizes = [4, 768], strides = [1, 1]} : vector<72x768xf32> to vector<4x768xf32>
    %c17_i32 = arith.constant 17 : i32
    %12 = tpu.dynamic_rotate %11 by %c17_i32 dim 1 : vector<4x768xf32>, i32 -> vector<4x768xf32>
    %13 = arith.addf %10, %12 : vector<4x768xf32>
    %14 = vector.extract_strided_slice %5 {offsets = [24, 0], sizes = [4, 768], strides = [1, 1]} : vector<72x768xf32> to vector<4x768xf32>
    %c1_i32 = arith.constant 1 : i32
    %15 = tpu.dynamic_rotate %14 by %c1_i32 dim 1 : vector<4x768xf32>, i32 -> vector<4x768xf32>
    %16 = arith.addf %13, %15 : vector<4x768xf32>
    %17 = vector.extract_strided_slice %5 {offsets = [32, 0], sizes = [4, 768], strides = [1, 1]} : vector<72x768xf32> to vector<4x768xf32>
    %18 = arith.addf %16, %17 : vector<4x768xf32>
    %19 = vector.extract_strided_slice %5 {offsets = [40, 0], sizes = [4, 768], strides = [1, 1]} : vector<72x768xf32> to vector<4x768xf32>
    %c767_i32 = arith.constant 767 : i32
    %20 = tpu.dynamic_rotate %19 by %c767_i32 dim 1 : vector<4x768xf32>, i32 -> vector<4x768xf32>
    %21 = arith.addf %18, %20 : vector<4x768xf32>
    %22 = vector.extract_strided_slice %5 {offsets = [48, 0], sizes = [4, 768], strides = [1, 1]} : vector<72x768xf32> to vector<4x768xf32>
    %c751_i32 = arith.constant 751 : i32
    %23 = tpu.dynamic_rotate %22 by %c751_i32 dim 1 : vector<4x768xf32>, i32 -> vector<4x768xf32>
    %24 = arith.addf %21, %23 : vector<4x768xf32>
    %25 = vector.extract_strided_slice %5 {offsets = [56, 0], sizes = [4, 768], strides = [1, 1]} : vector<72x768xf32> to vector<4x768xf32>
    %c750_i32 = arith.constant 750 : i32
    %26 = tpu.dynamic_rotate %25 by %c750_i32 dim 1 : vector<4x768xf32>, i32 -> vector<4x768xf32>
    %27 = arith.addf %24, %26 : vector<4x768xf32>
    %28 = vector.extract_strided_slice %5 {offsets = [64, 0], sizes = [4, 768], strides = [1, 1]} : vector<72x768xf32> to vector<4x768xf32>
    %c749_i32 = arith.constant 749 : i32
    %29 = tpu.dynamic_rotate %28 by %c749_i32 dim 1 : vector<4x768xf32>, i32 -> vector<4x768xf32>
    %30 = arith.addf %27, %29 : vector<4x768xf32>
    %31 = vector.broadcast %4 : vector<4x1xf32> to vector<4x768xf32>
    %32 = arith.addf %30, %31 : vector<4x768xf32>
    %33 = vector.broadcast %2 : vector<1x768xf32> to vector<4x768xf32>
    %34 = arith.mulf %32, %33 : vector<4x768xf32>
    %c0_9 = arith.constant 0 : index
    %c0_10 = arith.constant 0 : index
    %35 = vector.load %arg5[%c0_9, %c0_10] : memref<4x1xf32, #tpu.memory_space<vmem>>, vector<4x1xf32>
    %c0_11 = arith.constant 0 : index
    %c0_12 = arith.constant 0 : index
    %36 = vector.load %arg6[%c0_11, %c0_12] : memref<4x1xf32, #tpu.memory_space<vmem>>, vector<4x1xf32>
    %c0_13 = arith.constant 0 : index
    %c0_14 = arith.constant 0 : index
    %37 = vector.load %arg7[%c0_13, %c0_14] : memref<4x1xf32, #tpu.memory_space<vmem>>, vector<4x1xf32>
    %c0_15 = arith.constant 0 : index
    %c0_16 = arith.constant 0 : index
    %38 = vector.load %arg8[%c0_15, %c0_16] : memref<4x1xf32, #tpu.memory_space<vmem>>, vector<4x1xf32>
    %c0_17 = arith.constant 0 : index
    %c0_18 = arith.constant 0 : index
    %39 = vector.load %arg9[%c0_17, %c0_18] : memref<72x4xf32, #tpu.memory_space<vmem>>, vector<72x4xf32>
    %c0_19 = arith.constant 0 : index
    %c0_20 = arith.constant 0 : index
    %40 = vector.load %arg10[%c0_19, %c0_20] : memref<72x4xf32, #tpu.memory_space<vmem>>, vector<72x4xf32>
    %c0_21 = arith.constant 0 : index
    %c0_22 = arith.constant 0 : index
    %41 = vector.load %arg11[%c0_21, %c0_22] : memref<4x1xf32, #tpu.memory_space<vmem>>, vector<4x1xf32>
    %c0_23 = arith.constant 0 : index
    %c0_24 = arith.constant 0 : index
    %42 = vector.load %arg12[%c0_23, %c0_24] : memref<4x1xf32, #tpu.memory_space<vmem>>, vector<4x1xf32>
    %c0_25 = arith.constant 0 : index
    %c0_26 = arith.constant 0 : index
    %43 = vector.load %arg13[%c0_25, %c0_26] : memref<4x1xf32, #tpu.memory_space<vmem>>, vector<4x1xf32>
    %c0_27 = arith.constant 0 : index
    %c0_28 = arith.constant 0 : index
    %44 = vector.load %arg14[%c0_27, %c0_28] : memref<72x4xf32, #tpu.memory_space<vmem>>, vector<72x4xf32>
    %c0_29 = arith.constant 0 : index
    %c0_30 = arith.constant 0 : index
    %45 = vector.load %arg15[%c0_29, %c0_30] : memref<4x1xf32, #tpu.memory_space<vmem>>, vector<4x1xf32>
    %cst_31 = arith.constant dense<0.000000e+00> : vector<4xf32>
    %46 = vector.multi_reduction <add>, %34, %cst_31 [1] : vector<4x768xf32> to vector<4xf32>
    %47 = vector.shape_cast %46 : vector<4xf32> to vector<4x1xf32>
    %cst_32 = arith.constant 0.001953125 : f32
    %48 = vector.broadcast %cst_32 : f32 to vector<4x1xf32>
    %49 = arith.mulf %47, %48 : vector<4x1xf32>
    %50 = arith.mulf %34, %34 : vector<4x768xf32>
    %cst_33 = arith.constant dense<0.000000e+00> : vector<4xf32>
    %51 = vector.multi_reduction <add>, %50, %cst_33 [1] : vector<4x768xf32> to vector<4xf32>
    %52 = vector.shape_cast %51 : vector<4xf32> to vector<4x1xf32>
    %cst_34 = arith.constant 0.001953125 : f32
    %53 = vector.broadcast %cst_34 : f32 to vector<4x1xf32>
    %54 = arith.mulf %52, %53 : vector<4x1xf32>
    %55 = arith.mulf %49, %49 : vector<4x1xf32>
    %56 = arith.subf %54, %55 : vector<4x1xf32>
    %cst_35 = arith.constant 9.99999974E-6 : f32
    %57 = vector.broadcast %cst_35 : f32 to vector<4x1xf32>
    %58 = arith.addf %56, %57 : vector<4x1xf32>
    %59 = math.rsqrt %58 : vector<4x1xf32>
    %60 = arith.mulf %35, %59 : vector<4x1xf32>
    %61 = vector.broadcast %49 : vector<4x1xf32> to vector<4x768xf32>
    %62 = arith.subf %34, %61 : vector<4x768xf32>
    %63 = vector.broadcast %60 : vector<4x1xf32> to vector<4x768xf32>
    %64 = arith.mulf %62, %63 : vector<4x768xf32>
    %65 = vector.broadcast %36 : vector<4x1xf32> to vector<4x768xf32>
    %66 = arith.addf %64, %65 : vector<4x768xf32>
    %cst_36 = arith.constant 0.000000e+00 : f32
    %67 = vector.broadcast %cst_36 : f32 to vector<4x768xf32>
    %68 = arith.subf %67, %66 : vector<4x768xf32>
    %69 = math.exp %68 : vector<4x768xf32>
    %cst_37 = arith.constant 1.000000e+00 : f32
    %70 = vector.broadcast %cst_37 : f32 to vector<4x768xf32>
    %71 = arith.addf %70, %69 : vector<4x768xf32>
    %cst_38 = arith.constant 1.000000e+00 : f32
    %72 = vector.broadcast %cst_38 : f32 to vector<4x768xf32>
    %73 = arith.divf %72, %71 : vector<4x768xf32>
    %74 = arith.mulf %66, %73 : vector<4x768xf32>
    %75 = vector.broadcast %2 : vector<1x768xf32> to vector<4x768xf32>
    %76 = arith.mulf %74, %75 : vector<4x768xf32>
    %cst_39 = arith.constant dense<0.000000e+00> : vector<72x768xf32>
    %77 = tpu.matmul %39, %76, %cst_39 {dimension_numbers = #tpu.dot_dimension_numbers<[1], [0], [0], [1], [0, 0, 1, 1], [], []>} : vector<72x4xf32>, vector<4x768xf32>, vector<72x768xf32> -> vector<72x768xf32>
    %78 = vector.extract_strided_slice %77 {offsets = [0, 0], sizes = [4, 768], strides = [1, 1]} : vector<72x768xf32> to vector<4x768xf32>
    %c19_i32_40 = arith.constant 19 : i32
    %79 = tpu.dynamic_rotate %78 by %c19_i32_40 dim 1 : vector<4x768xf32>, i32 -> vector<4x768xf32>
    %80 = vector.extract_strided_slice %77 {offsets = [8, 0], sizes = [4, 768], strides = [1, 1]} : vector<72x768xf32> to vector<4x768xf32>
    %c18_i32_41 = arith.constant 18 : i32
    %81 = tpu.dynamic_rotate %80 by %c18_i32_41 dim 1 : vector<4x768xf32>, i32 -> vector<4x768xf32>
    %82 = arith.addf %79, %81 : vector<4x768xf32>
    %83 = vector.extract_strided_slice %77 {offsets = [16, 0], sizes = [4, 768], strides = [1, 1]} : vector<72x768xf32> to vector<4x768xf32>
    %c17_i32_42 = arith.constant 17 : i32
    %84 = tpu.dynamic_rotate %83 by %c17_i32_42 dim 1 : vector<4x768xf32>, i32 -> vector<4x768xf32>
    %85 = arith.addf %82, %84 : vector<4x768xf32>
    %86 = vector.extract_strided_slice %77 {offsets = [24, 0], sizes = [4, 768], strides = [1, 1]} : vector<72x768xf32> to vector<4x768xf32>
    %c1_i32_43 = arith.constant 1 : i32
    %87 = tpu.dynamic_rotate %86 by %c1_i32_43 dim 1 : vector<4x768xf32>, i32 -> vector<4x768xf32>
    %88 = arith.addf %85, %87 : vector<4x768xf32>
    %89 = vector.extract_strided_slice %77 {offsets = [32, 0], sizes = [4, 768], strides = [1, 1]} : vector<72x768xf32> to vector<4x768xf32>
    %90 = arith.addf %88, %89 : vector<4x768xf32>
    %91 = vector.extract_strided_slice %77 {offsets = [40, 0], sizes = [4, 768], strides = [1, 1]} : vector<72x768xf32> to vector<4x768xf32>
    %c767_i32_44 = arith.constant 767 : i32
    %92 = tpu.dynamic_rotate %91 by %c767_i32_44 dim 1 : vector<4x768xf32>, i32 -> vector<4x768xf32>
    %93 = arith.addf %90, %92 : vector<4x768xf32>
    %94 = vector.extract_strided_slice %77 {offsets = [48, 0], sizes = [4, 768], strides = [1, 1]} : vector<72x768xf32> to vector<4x768xf32>
    %c751_i32_45 = arith.constant 751 : i32
    %95 = tpu.dynamic_rotate %94 by %c751_i32_45 dim 1 : vector<4x768xf32>, i32 -> vector<4x768xf32>
    %96 = arith.addf %93, %95 : vector<4x768xf32>
    %97 = vector.extract_strided_slice %77 {offsets = [56, 0], sizes = [4, 768], strides = [1, 1]} : vector<72x768xf32> to vector<4x768xf32>
    %c750_i32_46 = arith.constant 750 : i32
    %98 = tpu.dynamic_rotate %97 by %c750_i32_46 dim 1 : vector<4x768xf32>, i32 -> vector<4x768xf32>
    %99 = arith.addf %96, %98 : vector<4x768xf32>
    %100 = vector.extract_strided_slice %77 {offsets = [64, 0], sizes = [4, 768], strides = [1, 1]} : vector<72x768xf32> to vector<4x768xf32>
    %c749_i32_47 = arith.constant 749 : i32
    %101 = tpu.dynamic_rotate %100 by %c749_i32_47 dim 1 : vector<4x768xf32>, i32 -> vector<4x768xf32>
    %102 = arith.addf %99, %101 : vector<4x768xf32>
    %cst_48 = arith.constant dense<0.000000e+00> : vector<4xf32>
    %103 = vector.multi_reduction <add>, %1, %cst_48 [1] : vector<4x768xf32> to vector<4xf32>
    %104 = vector.shape_cast %103 : vector<4xf32> to vector<4x1xf32>
    %cst_49 = arith.constant 0.001953125 : f32
    %105 = vector.broadcast %cst_49 : f32 to vector<4x1xf32>
    %106 = arith.mulf %104, %105 : vector<4x1xf32>
    %107 = arith.mulf %1, %1 : vector<4x768xf32>
    %cst_50 = arith.constant dense<0.000000e+00> : vector<4xf32>
    %108 = vector.multi_reduction <add>, %107, %cst_50 [1] : vector<4x768xf32> to vector<4xf32>
    %109 = vector.shape_cast %108 : vector<4xf32> to vector<4x1xf32>
    %cst_51 = arith.constant 0.001953125 : f32
    %110 = vector.broadcast %cst_51 : f32 to vector<4x1xf32>
    %111 = arith.mulf %109, %110 : vector<4x1xf32>
    %112 = arith.mulf %106, %106 : vector<4x1xf32>
    %113 = arith.subf %111, %112 : vector<4x1xf32>
    %cst_52 = arith.constant 9.99999974E-6 : f32
    %114 = vector.broadcast %cst_52 : f32 to vector<4x1xf32>
    %115 = arith.addf %113, %114 : vector<4x1xf32>
    %116 = math.rsqrt %115 : vector<4x1xf32>
    %117 = arith.mulf %37, %116 : vector<4x1xf32>
    %118 = vector.broadcast %106 : vector<4x1xf32> to vector<4x768xf32>
    %119 = arith.subf %1, %118 : vector<4x768xf32>
    %120 = vector.broadcast %117 : vector<4x1xf32> to vector<4x768xf32>
    %121 = arith.mulf %119, %120 : vector<4x768xf32>
    %122 = vector.broadcast %38 : vector<4x1xf32> to vector<4x768xf32>
    %123 = arith.addf %121, %122 : vector<4x768xf32>
    %cst_53 = arith.constant 0.000000e+00 : f32
    %124 = vector.broadcast %cst_53 : f32 to vector<4x768xf32>
    %125 = arith.subf %124, %123 : vector<4x768xf32>
    %126 = math.exp %125 : vector<4x768xf32>
    %cst_54 = arith.constant 1.000000e+00 : f32
    %127 = vector.broadcast %cst_54 : f32 to vector<4x768xf32>
    %128 = arith.addf %127, %126 : vector<4x768xf32>
    %cst_55 = arith.constant 1.000000e+00 : f32
    %129 = vector.broadcast %cst_55 : f32 to vector<4x768xf32>
    %130 = arith.divf %129, %128 : vector<4x768xf32>
    %131 = arith.mulf %123, %130 : vector<4x768xf32>
    %132 = vector.broadcast %2 : vector<1x768xf32> to vector<4x768xf32>
    %133 = arith.mulf %131, %132 : vector<4x768xf32>
    %cst_56 = arith.constant dense<0.000000e+00> : vector<72x768xf32>
    %134 = tpu.matmul %40, %133, %cst_56 {dimension_numbers = #tpu.dot_dimension_numbers<[1], [0], [0], [1], [0, 0, 1, 1], [], []>} : vector<72x4xf32>, vector<4x768xf32>, vector<72x768xf32> -> vector<72x768xf32>
    %135 = vector.extract_strided_slice %134 {offsets = [0, 0], sizes = [4, 768], strides = [1, 1]} : vector<72x768xf32> to vector<4x768xf32>
    %c19_i32_57 = arith.constant 19 : i32
    %136 = tpu.dynamic_rotate %135 by %c19_i32_57 dim 1 : vector<4x768xf32>, i32 -> vector<4x768xf32>
    %137 = vector.extract_strided_slice %134 {offsets = [8, 0], sizes = [4, 768], strides = [1, 1]} : vector<72x768xf32> to vector<4x768xf32>
    %c18_i32_58 = arith.constant 18 : i32
    %138 = tpu.dynamic_rotate %137 by %c18_i32_58 dim 1 : vector<4x768xf32>, i32 -> vector<4x768xf32>
    %139 = arith.addf %136, %138 : vector<4x768xf32>
    %140 = vector.extract_strided_slice %134 {offsets = [16, 0], sizes = [4, 768], strides = [1, 1]} : vector<72x768xf32> to vector<4x768xf32>
    %c17_i32_59 = arith.constant 17 : i32
    %141 = tpu.dynamic_rotate %140 by %c17_i32_59 dim 1 : vector<4x768xf32>, i32 -> vector<4x768xf32>
    %142 = arith.addf %139, %141 : vector<4x768xf32>
    %143 = vector.extract_strided_slice %134 {offsets = [24, 0], sizes = [4, 768], strides = [1, 1]} : vector<72x768xf32> to vector<4x768xf32>
    %c1_i32_60 = arith.constant 1 : i32
    %144 = tpu.dynamic_rotate %143 by %c1_i32_60 dim 1 : vector<4x768xf32>, i32 -> vector<4x768xf32>
    %145 = arith.addf %142, %144 : vector<4x768xf32>
    %146 = vector.extract_strided_slice %134 {offsets = [32, 0], sizes = [4, 768], strides = [1, 1]} : vector<72x768xf32> to vector<4x768xf32>
    %147 = arith.addf %145, %146 : vector<4x768xf32>
    %148 = vector.extract_strided_slice %134 {offsets = [40, 0], sizes = [4, 768], strides = [1, 1]} : vector<72x768xf32> to vector<4x768xf32>
    %c767_i32_61 = arith.constant 767 : i32
    %149 = tpu.dynamic_rotate %148 by %c767_i32_61 dim 1 : vector<4x768xf32>, i32 -> vector<4x768xf32>
    %150 = arith.addf %147, %149 : vector<4x768xf32>
    %151 = vector.extract_strided_slice %134 {offsets = [48, 0], sizes = [4, 768], strides = [1, 1]} : vector<72x768xf32> to vector<4x768xf32>
    %c751_i32_62 = arith.constant 751 : i32
    %152 = tpu.dynamic_rotate %151 by %c751_i32_62 dim 1 : vector<4x768xf32>, i32 -> vector<4x768xf32>
    %153 = arith.addf %150, %152 : vector<4x768xf32>
    %154 = vector.extract_strided_slice %134 {offsets = [56, 0], sizes = [4, 768], strides = [1, 1]} : vector<72x768xf32> to vector<4x768xf32>
    %c750_i32_63 = arith.constant 750 : i32
    %155 = tpu.dynamic_rotate %154 by %c750_i32_63 dim 1 : vector<4x768xf32>, i32 -> vector<4x768xf32>
    %156 = arith.addf %153, %155 : vector<4x768xf32>
    %157 = vector.extract_strided_slice %134 {offsets = [64, 0], sizes = [4, 768], strides = [1, 1]} : vector<72x768xf32> to vector<4x768xf32>
    %c749_i32_64 = arith.constant 749 : i32
    %158 = tpu.dynamic_rotate %157 by %c749_i32_64 dim 1 : vector<4x768xf32>, i32 -> vector<4x768xf32>
    %159 = arith.addf %156, %158 : vector<4x768xf32>
    %160 = arith.addf %102, %159 : vector<4x768xf32>
    %161 = vector.broadcast %41 : vector<4x1xf32> to vector<4x768xf32>
    %162 = arith.addf %160, %161 : vector<4x768xf32>
    %163 = vector.broadcast %2 : vector<1x768xf32> to vector<4x768xf32>
    %164 = arith.mulf %162, %163 : vector<4x768xf32>
    %cst_65 = arith.constant dense<0.000000e+00> : vector<4xf32>
    %165 = vector.multi_reduction <add>, %164, %cst_65 [1] : vector<4x768xf32> to vector<4xf32>
    %166 = vector.shape_cast %165 : vector<4xf32> to vector<4x1xf32>
    %cst_66 = arith.constant 0.001953125 : f32
    %167 = vector.broadcast %cst_66 : f32 to vector<4x1xf32>
    %168 = arith.mulf %166, %167 : vector<4x1xf32>
    %169 = arith.mulf %164, %164 : vector<4x768xf32>
    %cst_67 = arith.constant dense<0.000000e+00> : vector<4xf32>
    %170 = vector.multi_reduction <add>, %169, %cst_67 [1] : vector<4x768xf32> to vector<4xf32>
    %171 = vector.shape_cast %170 : vector<4xf32> to vector<4x1xf32>
    %cst_68 = arith.constant 0.001953125 : f32
    %172 = vector.broadcast %cst_68 : f32 to vector<4x1xf32>
    %173 = arith.mulf %171, %172 : vector<4x1xf32>
    %174 = arith.mulf %168, %168 : vector<4x1xf32>
    %175 = arith.subf %173, %174 : vector<4x1xf32>
    %cst_69 = arith.constant 9.99999974E-6 : f32
    %176 = vector.broadcast %cst_69 : f32 to vector<4x1xf32>
    %177 = arith.addf %175, %176 : vector<4x1xf32>
    %178 = math.rsqrt %177 : vector<4x1xf32>
    %179 = arith.mulf %42, %178 : vector<4x1xf32>
    %180 = vector.broadcast %168 : vector<4x1xf32> to vector<4x768xf32>
    %181 = arith.subf %164, %180 : vector<4x768xf32>
    %182 = vector.broadcast %179 : vector<4x1xf32> to vector<4x768xf32>
    %183 = arith.mulf %181, %182 : vector<4x768xf32>
    %184 = vector.broadcast %43 : vector<4x1xf32> to vector<4x768xf32>
    %185 = arith.addf %183, %184 : vector<4x768xf32>
    %cst_70 = arith.constant 0.000000e+00 : f32
    %186 = vector.broadcast %cst_70 : f32 to vector<4x768xf32>
    %187 = arith.subf %186, %185 : vector<4x768xf32>
    %188 = math.exp %187 : vector<4x768xf32>
    %cst_71 = arith.constant 1.000000e+00 : f32
    %189 = vector.broadcast %cst_71 : f32 to vector<4x768xf32>
    %190 = arith.addf %189, %188 : vector<4x768xf32>
    %cst_72 = arith.constant 1.000000e+00 : f32
    %191 = vector.broadcast %cst_72 : f32 to vector<4x768xf32>
    %192 = arith.divf %191, %190 : vector<4x768xf32>
    %193 = arith.mulf %185, %192 : vector<4x768xf32>
    %194 = vector.broadcast %2 : vector<1x768xf32> to vector<4x768xf32>
    %195 = arith.mulf %193, %194 : vector<4x768xf32>
    %cst_73 = arith.constant dense<0.000000e+00> : vector<72x768xf32>
    %196 = tpu.matmul %44, %195, %cst_73 {dimension_numbers = #tpu.dot_dimension_numbers<[1], [0], [0], [1], [0, 0, 1, 1], [], []>} : vector<72x4xf32>, vector<4x768xf32>, vector<72x768xf32> -> vector<72x768xf32>
    %197 = vector.extract_strided_slice %196 {offsets = [0, 0], sizes = [4, 768], strides = [1, 1]} : vector<72x768xf32> to vector<4x768xf32>
    %c19_i32_74 = arith.constant 19 : i32
    %198 = tpu.dynamic_rotate %197 by %c19_i32_74 dim 1 : vector<4x768xf32>, i32 -> vector<4x768xf32>
    %199 = vector.extract_strided_slice %196 {offsets = [8, 0], sizes = [4, 768], strides = [1, 1]} : vector<72x768xf32> to vector<4x768xf32>
    %c18_i32_75 = arith.constant 18 : i32
    %200 = tpu.dynamic_rotate %199 by %c18_i32_75 dim 1 : vector<4x768xf32>, i32 -> vector<4x768xf32>
    %201 = arith.addf %198, %200 : vector<4x768xf32>
    %202 = vector.extract_strided_slice %196 {offsets = [16, 0], sizes = [4, 768], strides = [1, 1]} : vector<72x768xf32> to vector<4x768xf32>
    %c17_i32_76 = arith.constant 17 : i32
    %203 = tpu.dynamic_rotate %202 by %c17_i32_76 dim 1 : vector<4x768xf32>, i32 -> vector<4x768xf32>
    %204 = arith.addf %201, %203 : vector<4x768xf32>
    %205 = vector.extract_strided_slice %196 {offsets = [24, 0], sizes = [4, 768], strides = [1, 1]} : vector<72x768xf32> to vector<4x768xf32>
    %c1_i32_77 = arith.constant 1 : i32
    %206 = tpu.dynamic_rotate %205 by %c1_i32_77 dim 1 : vector<4x768xf32>, i32 -> vector<4x768xf32>
    %207 = arith.addf %204, %206 : vector<4x768xf32>
    %208 = vector.extract_strided_slice %196 {offsets = [32, 0], sizes = [4, 768], strides = [1, 1]} : vector<72x768xf32> to vector<4x768xf32>
    %209 = arith.addf %207, %208 : vector<4x768xf32>
    %210 = vector.extract_strided_slice %196 {offsets = [40, 0], sizes = [4, 768], strides = [1, 1]} : vector<72x768xf32> to vector<4x768xf32>
    %c767_i32_78 = arith.constant 767 : i32
    %211 = tpu.dynamic_rotate %210 by %c767_i32_78 dim 1 : vector<4x768xf32>, i32 -> vector<4x768xf32>
    %212 = arith.addf %209, %211 : vector<4x768xf32>
    %213 = vector.extract_strided_slice %196 {offsets = [48, 0], sizes = [4, 768], strides = [1, 1]} : vector<72x768xf32> to vector<4x768xf32>
    %c751_i32_79 = arith.constant 751 : i32
    %214 = tpu.dynamic_rotate %213 by %c751_i32_79 dim 1 : vector<4x768xf32>, i32 -> vector<4x768xf32>
    %215 = arith.addf %212, %214 : vector<4x768xf32>
    %216 = vector.extract_strided_slice %196 {offsets = [56, 0], sizes = [4, 768], strides = [1, 1]} : vector<72x768xf32> to vector<4x768xf32>
    %c750_i32_80 = arith.constant 750 : i32
    %217 = tpu.dynamic_rotate %216 by %c750_i32_80 dim 1 : vector<4x768xf32>, i32 -> vector<4x768xf32>
    %218 = arith.addf %215, %217 : vector<4x768xf32>
    %219 = vector.extract_strided_slice %196 {offsets = [64, 0], sizes = [4, 768], strides = [1, 1]} : vector<72x768xf32> to vector<4x768xf32>
    %c749_i32_81 = arith.constant 749 : i32
    %220 = tpu.dynamic_rotate %219 by %c749_i32_81 dim 1 : vector<4x768xf32>, i32 -> vector<4x768xf32>
    %221 = arith.addf %218, %220 : vector<4x768xf32>
    %222 = vector.broadcast %45 : vector<4x1xf32> to vector<4x768xf32>
    %223 = arith.addf %221, %222 : vector<4x768xf32>
    %c0_82 = arith.constant 0 : index
    %c0_83 = arith.constant 0 : index
    %224 = vector.load %arg16[%c0_82, %c0_83] : memref<4x4xf32, #tpu.memory_space<vmem>>, vector<4x4xf32>
    %cst_84 = arith.constant dense<0.000000e+00> : vector<4x768xf32>
    %225 = tpu.matmul %224, %34, %cst_84 {dimension_numbers = #tpu.dot_dimension_numbers<[1], [0], [0], [1], [0, 0, 1, 1], [], []>} : vector<4x4xf32>, vector<4x768xf32>, vector<4x768xf32> -> vector<4x768xf32>
    %c0_85 = arith.constant 0 : index
    %c0_86 = arith.constant 0 : index
    %226 = vector.load %arg17[%c0_85, %c0_86] : memref<4x4xf32, #tpu.memory_space<vmem>>, vector<4x4xf32>
    %cst_87 = arith.constant dense<0.000000e+00> : vector<4x768xf32>
    %227 = tpu.matmul %226, %1, %cst_87 {dimension_numbers = #tpu.dot_dimension_numbers<[1], [0], [0], [1], [0, 0, 1, 1], [], []>} : vector<4x4xf32>, vector<4x768xf32>, vector<4x768xf32> -> vector<4x768xf32>
    %228 = arith.addf %225, %227 : vector<4x768xf32>
    %c0_88 = arith.constant 0 : index
    %c0_89 = arith.constant 0 : index
    %229 = vector.load %arg18[%c0_88, %c0_89] : memref<4x1xf32, #tpu.memory_space<vmem>>, vector<4x1xf32>
    %230 = vector.broadcast %229 : vector<4x1xf32> to vector<4x768xf32>
    %231 = arith.addf %228, %230 : vector<4x768xf32>
    %232 = arith.addf %223, %231 : vector<4x768xf32>
    %233 = vector.broadcast %2 : vector<1x768xf32> to vector<4x768xf32>
    %234 = arith.mulf %232, %233 : vector<4x768xf32>
    %c0_90 = arith.constant 0 : index
    %c0_91 = arith.constant 0 : index
    %235 = vector.load %arg19[%c0_90, %c0_91] : memref<4x1xf32, #tpu.memory_space<vmem>>, vector<4x1xf32>
    %c0_92 = arith.constant 0 : index
    %c0_93 = arith.constant 0 : index
    %236 = vector.load %arg20[%c0_92, %c0_93] : memref<4x1xf32, #tpu.memory_space<vmem>>, vector<4x1xf32>
    %c0_94 = arith.constant 0 : index
    %c0_95 = arith.constant 0 : index
    %237 = vector.load %arg21[%c0_94, %c0_95] : memref<72x4xf32, #tpu.memory_space<vmem>>, vector<72x4xf32>
    %c0_96 = arith.constant 0 : index
    %c0_97 = arith.constant 0 : index
    %238 = vector.load %arg22[%c0_96, %c0_97] : memref<4x1xf32, #tpu.memory_space<vmem>>, vector<4x1xf32>
    %c0_98 = arith.constant 0 : index
    %c0_99 = arith.constant 0 : index
    %239 = vector.load %arg23[%c0_98, %c0_99] : memref<4x1xf32, #tpu.memory_space<vmem>>, vector<4x1xf32>
    %c0_100 = arith.constant 0 : index
    %c0_101 = arith.constant 0 : index
    %240 = vector.load %arg24[%c0_100, %c0_101] : memref<4x1xf32, #tpu.memory_space<vmem>>, vector<4x1xf32>
    %c0_102 = arith.constant 0 : index
    %c0_103 = arith.constant 0 : index
    %241 = vector.load %arg25[%c0_102, %c0_103] : memref<72x4xf32, #tpu.memory_space<vmem>>, vector<72x4xf32>
    %c0_104 = arith.constant 0 : index
    %c0_105 = arith.constant 0 : index
    %242 = vector.load %arg26[%c0_104, %c0_105] : memref<4x1xf32, #tpu.memory_space<vmem>>, vector<4x1xf32>
    %cst_106 = arith.constant dense<0.000000e+00> : vector<4xf32>
    %243 = vector.multi_reduction <add>, %234, %cst_106 [1] : vector<4x768xf32> to vector<4xf32>
    %244 = vector.shape_cast %243 : vector<4xf32> to vector<4x1xf32>
    %cst_107 = arith.constant 0.001953125 : f32
    %245 = vector.broadcast %cst_107 : f32 to vector<4x1xf32>
    %246 = arith.mulf %244, %245 : vector<4x1xf32>
    %247 = arith.mulf %234, %234 : vector<4x768xf32>
    %cst_108 = arith.constant dense<0.000000e+00> : vector<4xf32>
    %248 = vector.multi_reduction <add>, %247, %cst_108 [1] : vector<4x768xf32> to vector<4xf32>
    %249 = vector.shape_cast %248 : vector<4xf32> to vector<4x1xf32>
    %cst_109 = arith.constant 0.001953125 : f32
    %250 = vector.broadcast %cst_109 : f32 to vector<4x1xf32>
    %251 = arith.mulf %249, %250 : vector<4x1xf32>
    %252 = arith.mulf %246, %246 : vector<4x1xf32>
    %253 = arith.subf %251, %252 : vector<4x1xf32>
    %cst_110 = arith.constant 9.99999974E-6 : f32
    %254 = vector.broadcast %cst_110 : f32 to vector<4x1xf32>
    %255 = arith.addf %253, %254 : vector<4x1xf32>
    %256 = math.rsqrt %255 : vector<4x1xf32>
    %257 = arith.mulf %235, %256 : vector<4x1xf32>
    %258 = vector.broadcast %246 : vector<4x1xf32> to vector<4x768xf32>
    %259 = arith.subf %234, %258 : vector<4x768xf32>
    %260 = vector.broadcast %257 : vector<4x1xf32> to vector<4x768xf32>
    %261 = arith.mulf %259, %260 : vector<4x768xf32>
    %262 = vector.broadcast %236 : vector<4x1xf32> to vector<4x768xf32>
    %263 = arith.addf %261, %262 : vector<4x768xf32>
    %cst_111 = arith.constant 0.000000e+00 : f32
    %264 = vector.broadcast %cst_111 : f32 to vector<4x768xf32>
    %265 = arith.subf %264, %263 : vector<4x768xf32>
    %266 = math.exp %265 : vector<4x768xf32>
    %cst_112 = arith.constant 1.000000e+00 : f32
    %267 = vector.broadcast %cst_112 : f32 to vector<4x768xf32>
    %268 = arith.addf %267, %266 : vector<4x768xf32>
    %cst_113 = arith.constant 1.000000e+00 : f32
    %269 = vector.broadcast %cst_113 : f32 to vector<4x768xf32>
    %270 = arith.divf %269, %268 : vector<4x768xf32>
    %271 = arith.mulf %263, %270 : vector<4x768xf32>
    %272 = vector.broadcast %2 : vector<1x768xf32> to vector<4x768xf32>
    %273 = arith.mulf %271, %272 : vector<4x768xf32>
    %cst_114 = arith.constant dense<0.000000e+00> : vector<72x768xf32>
    %274 = tpu.matmul %237, %273, %cst_114 {dimension_numbers = #tpu.dot_dimension_numbers<[1], [0], [0], [1], [0, 0, 1, 1], [], []>} : vector<72x4xf32>, vector<4x768xf32>, vector<72x768xf32> -> vector<72x768xf32>
    %275 = vector.extract_strided_slice %274 {offsets = [0, 0], sizes = [4, 768], strides = [1, 1]} : vector<72x768xf32> to vector<4x768xf32>
    %c19_i32_115 = arith.constant 19 : i32
    %276 = tpu.dynamic_rotate %275 by %c19_i32_115 dim 1 : vector<4x768xf32>, i32 -> vector<4x768xf32>
    %277 = vector.extract_strided_slice %274 {offsets = [8, 0], sizes = [4, 768], strides = [1, 1]} : vector<72x768xf32> to vector<4x768xf32>
    %c18_i32_116 = arith.constant 18 : i32
    %278 = tpu.dynamic_rotate %277 by %c18_i32_116 dim 1 : vector<4x768xf32>, i32 -> vector<4x768xf32>
    %279 = arith.addf %276, %278 : vector<4x768xf32>
    %280 = vector.extract_strided_slice %274 {offsets = [16, 0], sizes = [4, 768], strides = [1, 1]} : vector<72x768xf32> to vector<4x768xf32>
    %c17_i32_117 = arith.constant 17 : i32
    %281 = tpu.dynamic_rotate %280 by %c17_i32_117 dim 1 : vector<4x768xf32>, i32 -> vector<4x768xf32>
    %282 = arith.addf %279, %281 : vector<4x768xf32>
    %283 = vector.extract_strided_slice %274 {offsets = [24, 0], sizes = [4, 768], strides = [1, 1]} : vector<72x768xf32> to vector<4x768xf32>
    %c1_i32_118 = arith.constant 1 : i32
    %284 = tpu.dynamic_rotate %283 by %c1_i32_118 dim 1 : vector<4x768xf32>, i32 -> vector<4x768xf32>
    %285 = arith.addf %282, %284 : vector<4x768xf32>
    %286 = vector.extract_strided_slice %274 {offsets = [32, 0], sizes = [4, 768], strides = [1, 1]} : vector<72x768xf32> to vector<4x768xf32>
    %287 = arith.addf %285, %286 : vector<4x768xf32>
    %288 = vector.extract_strided_slice %274 {offsets = [40, 0], sizes = [4, 768], strides = [1, 1]} : vector<72x768xf32> to vector<4x768xf32>
    %c767_i32_119 = arith.constant 767 : i32
    %289 = tpu.dynamic_rotate %288 by %c767_i32_119 dim 1 : vector<4x768xf32>, i32 -> vector<4x768xf32>
    %290 = arith.addf %287, %289 : vector<4x768xf32>
    %291 = vector.extract_strided_slice %274 {offsets = [48, 0], sizes = [4, 768], strides = [1, 1]} : vector<72x768xf32> to vector<4x768xf32>
    %c751_i32_120 = arith.constant 751 : i32
    %292 = tpu.dynamic_rotate %291 by %c751_i32_120 dim 1 : vector<4x768xf32>, i32 -> vector<4x768xf32>
    %293 = arith.addf %290, %292 : vector<4x768xf32>
    %294 = vector.extract_strided_slice %274 {offsets = [56, 0], sizes = [4, 768], strides = [1, 1]} : vector<72x768xf32> to vector<4x768xf32>
    %c750_i32_121 = arith.constant 750 : i32
    %295 = tpu.dynamic_rotate %294 by %c750_i32_121 dim 1 : vector<4x768xf32>, i32 -> vector<4x768xf32>
    %296 = arith.addf %293, %295 : vector<4x768xf32>
    %297 = vector.extract_strided_slice %274 {offsets = [64, 0], sizes = [4, 768], strides = [1, 1]} : vector<72x768xf32> to vector<4x768xf32>
    %c749_i32_122 = arith.constant 749 : i32
    %298 = tpu.dynamic_rotate %297 by %c749_i32_122 dim 1 : vector<4x768xf32>, i32 -> vector<4x768xf32>
    %299 = arith.addf %296, %298 : vector<4x768xf32>
    %300 = vector.broadcast %238 : vector<4x1xf32> to vector<4x768xf32>
    %301 = arith.addf %299, %300 : vector<4x768xf32>
    %302 = vector.broadcast %2 : vector<1x768xf32> to vector<4x768xf32>
    %303 = arith.mulf %301, %302 : vector<4x768xf32>
    %cst_123 = arith.constant dense<0.000000e+00> : vector<4xf32>
    %304 = vector.multi_reduction <add>, %303, %cst_123 [1] : vector<4x768xf32> to vector<4xf32>
    %305 = vector.shape_cast %304 : vector<4xf32> to vector<4x1xf32>
    %cst_124 = arith.constant 0.001953125 : f32
    %306 = vector.broadcast %cst_124 : f32 to vector<4x1xf32>
    %307 = arith.mulf %305, %306 : vector<4x1xf32>
    %308 = arith.mulf %303, %303 : vector<4x768xf32>
    %cst_125 = arith.constant dense<0.000000e+00> : vector<4xf32>
    %309 = vector.multi_reduction <add>, %308, %cst_125 [1] : vector<4x768xf32> to vector<4xf32>
    %310 = vector.shape_cast %309 : vector<4xf32> to vector<4x1xf32>
    %cst_126 = arith.constant 0.001953125 : f32
    %311 = vector.broadcast %cst_126 : f32 to vector<4x1xf32>
    %312 = arith.mulf %310, %311 : vector<4x1xf32>
    %313 = arith.mulf %307, %307 : vector<4x1xf32>
    %314 = arith.subf %312, %313 : vector<4x1xf32>
    %cst_127 = arith.constant 9.99999974E-6 : f32
    %315 = vector.broadcast %cst_127 : f32 to vector<4x1xf32>
    %316 = arith.addf %314, %315 : vector<4x1xf32>
    %317 = math.rsqrt %316 : vector<4x1xf32>
    %318 = arith.mulf %239, %317 : vector<4x1xf32>
    %319 = vector.broadcast %307 : vector<4x1xf32> to vector<4x768xf32>
    %320 = arith.subf %303, %319 : vector<4x768xf32>
    %321 = vector.broadcast %318 : vector<4x1xf32> to vector<4x768xf32>
    %322 = arith.mulf %320, %321 : vector<4x768xf32>
    %323 = vector.broadcast %240 : vector<4x1xf32> to vector<4x768xf32>
    %324 = arith.addf %322, %323 : vector<4x768xf32>
    %cst_128 = arith.constant 0.000000e+00 : f32
    %325 = vector.broadcast %cst_128 : f32 to vector<4x768xf32>
    %326 = arith.subf %325, %324 : vector<4x768xf32>
    %327 = math.exp %326 : vector<4x768xf32>
    %cst_129 = arith.constant 1.000000e+00 : f32
    %328 = vector.broadcast %cst_129 : f32 to vector<4x768xf32>
    %329 = arith.addf %328, %327 : vector<4x768xf32>
    %cst_130 = arith.constant 1.000000e+00 : f32
    %330 = vector.broadcast %cst_130 : f32 to vector<4x768xf32>
    %331 = arith.divf %330, %329 : vector<4x768xf32>
    %332 = arith.mulf %324, %331 : vector<4x768xf32>
    %333 = vector.broadcast %2 : vector<1x768xf32> to vector<4x768xf32>
    %334 = arith.mulf %332, %333 : vector<4x768xf32>
    %cst_131 = arith.constant dense<0.000000e+00> : vector<72x768xf32>
    %335 = tpu.matmul %241, %334, %cst_131 {dimension_numbers = #tpu.dot_dimension_numbers<[1], [0], [0], [1], [0, 0, 1, 1], [], []>} : vector<72x4xf32>, vector<4x768xf32>, vector<72x768xf32> -> vector<72x768xf32>
    %336 = vector.extract_strided_slice %335 {offsets = [0, 0], sizes = [4, 768], strides = [1, 1]} : vector<72x768xf32> to vector<4x768xf32>
    %c19_i32_132 = arith.constant 19 : i32
    %337 = tpu.dynamic_rotate %336 by %c19_i32_132 dim 1 : vector<4x768xf32>, i32 -> vector<4x768xf32>
    %338 = vector.extract_strided_slice %335 {offsets = [8, 0], sizes = [4, 768], strides = [1, 1]} : vector<72x768xf32> to vector<4x768xf32>
    %c18_i32_133 = arith.constant 18 : i32
    %339 = tpu.dynamic_rotate %338 by %c18_i32_133 dim 1 : vector<4x768xf32>, i32 -> vector<4x768xf32>
    %340 = arith.addf %337, %339 : vector<4x768xf32>
    %341 = vector.extract_strided_slice %335 {offsets = [16, 0], sizes = [4, 768], strides = [1, 1]} : vector<72x768xf32> to vector<4x768xf32>
    %c17_i32_134 = arith.constant 17 : i32
    %342 = tpu.dynamic_rotate %341 by %c17_i32_134 dim 1 : vector<4x768xf32>, i32 -> vector<4x768xf32>
    %343 = arith.addf %340, %342 : vector<4x768xf32>
    %344 = vector.extract_strided_slice %335 {offsets = [24, 0], sizes = [4, 768], strides = [1, 1]} : vector<72x768xf32> to vector<4x768xf32>
    %c1_i32_135 = arith.constant 1 : i32
    %345 = tpu.dynamic_rotate %344 by %c1_i32_135 dim 1 : vector<4x768xf32>, i32 -> vector<4x768xf32>
    %346 = arith.addf %343, %345 : vector<4x768xf32>
    %347 = vector.extract_strided_slice %335 {offsets = [32, 0], sizes = [4, 768], strides = [1, 1]} : vector<72x768xf32> to vector<4x768xf32>
    %348 = arith.addf %346, %347 : vector<4x768xf32>
    %349 = vector.extract_strided_slice %335 {offsets = [40, 0], sizes = [4, 768], strides = [1, 1]} : vector<72x768xf32> to vector<4x768xf32>
    %c767_i32_136 = arith.constant 767 : i32
    %350 = tpu.dynamic_rotate %349 by %c767_i32_136 dim 1 : vector<4x768xf32>, i32 -> vector<4x768xf32>
    %351 = arith.addf %348, %350 : vector<4x768xf32>
    %352 = vector.extract_strided_slice %335 {offsets = [48, 0], sizes = [4, 768], strides = [1, 1]} : vector<72x768xf32> to vector<4x768xf32>
    %c751_i32_137 = arith.constant 751 : i32
    %353 = tpu.dynamic_rotate %352 by %c751_i32_137 dim 1 : vector<4x768xf32>, i32 -> vector<4x768xf32>
    %354 = arith.addf %351, %353 : vector<4x768xf32>
    %355 = vector.extract_strided_slice %335 {offsets = [56, 0], sizes = [4, 768], strides = [1, 1]} : vector<72x768xf32> to vector<4x768xf32>
    %c750_i32_138 = arith.constant 750 : i32
    %356 = tpu.dynamic_rotate %355 by %c750_i32_138 dim 1 : vector<4x768xf32>, i32 -> vector<4x768xf32>
    %357 = arith.addf %354, %356 : vector<4x768xf32>
    %358 = vector.extract_strided_slice %335 {offsets = [64, 0], sizes = [4, 768], strides = [1, 1]} : vector<72x768xf32> to vector<4x768xf32>
    %c749_i32_139 = arith.constant 749 : i32
    %359 = tpu.dynamic_rotate %358 by %c749_i32_139 dim 1 : vector<4x768xf32>, i32 -> vector<4x768xf32>
    %360 = arith.addf %357, %359 : vector<4x768xf32>
    %361 = vector.broadcast %242 : vector<4x1xf32> to vector<4x768xf32>
    %362 = arith.addf %360, %361 : vector<4x768xf32>
    %363 = arith.addf %362, %234 : vector<4x768xf32>
    %364 = vector.broadcast %2 : vector<1x768xf32> to vector<4x768xf32>
    %365 = arith.mulf %363, %364 : vector<4x768xf32>
    %c0_140 = arith.constant 0 : index
    %c0_141 = arith.constant 0 : index
    %366 = vector.load %arg27[%c0_140, %c0_141] : memref<4x768xf32, #tpu.memory_space<vmem>>, vector<4x768xf32>
    tpu.vector_store %arg27[%c0_140, %c0_141], %365 {strides = array<i32>} : memref<4x768xf32, #tpu.memory_space<vmem>>, vector<4x768xf32>,
    return
  }
}

</mosaic_0001>

<llo_original>
// kernel: tile.13
$region0: #{tile.13}
  #allocation0 [shape = 's32[1]{0}', space=sflag, size = 0x4, scoped, tag = 'scoped memory for tile.13']
  %s0 = inlined_call_operand.vmem [shape: f32[128], index: 0, kind: input, shape index: {}]
  %s1 = inlined_call_operand.vmem [shape: f32[2,128], index: 1, kind: output, shape index: {}]
  // Predicated region
  $region2: #{tile.13} parent=0 // pred_check
    _
  $region3: #{tile.13} parent=0 // pred_check_branch
    %3 = sbr.rel (0) target = $region5
  $region4: #{tile.13} parent=0 // pred_region
    _
  $region5: #{tile.13} parent=0 // pred_fallthru
    _
  %v4 = vld [vmem:[%s0] ss:$0 sm:$0xff]
  %5 = vst [vmem:[%s1] sm:$0x3] %v4

// kernel: _lambda_.2
$region0: #{_lambda_.2}
  #allocation0 [shape = 'u32[]', space=smem, size = 0x4, offset = 0x4, fixed_abs, tag = 'smem constant byte address 0x4 - core index']
  #allocation1 [shape = 'u32[144,128]{1,0:T(1,128)}', space=vmem, size = 0x12000, scoped, tag = 'internal scratch']
  %s0 = inlined_call_operand.vmem [shape: f32[8,256], index: 0, kind: input, shape index: {}]
  %s1 = inlined_call_operand.vmem [shape: f32[8,256], index: 1, kind: input, shape index: {}]
  %s2 = inlined_call_operand.vmem [shape: f32[1,256], index: 2, kind: input, shape index: {}]
  %s3 = inlined_call_operand.vmem [shape: f32[8,1], index: 3, kind: input, shape index: {}, may-alias: {3,5}]
  %s4 = inlined_call_operand.vmem [shape: f32[8,1], index: 4, kind: input, shape index: {}, may-alias: {4,6}]
  %s5 = inlined_call_operand.vmem [shape: f32[8,1], index: 5, kind: input, shape index: {}, may-alias: {3,5}]
  %s6 = inlined_call_operand.vmem [shape: f32[8,1], index: 6, kind: input, shape index: {}, may-alias: {4,6}]
  %s7 = inlined_call_operand.vmem [shape: f32[72,8], index: 7, kind: input, shape index: {}]
  %s8 = inlined_call_operand.vmem [shape: f32[72,8], index: 8, kind: input, shape index: {}]
  %s9 = inlined_call_operand.vmem [shape: f32[4,1], index: 9, kind: input, shape index: {}]
  %s10 = inlined_call_operand.vmem [shape: f32[4,1], index: 10, kind: input, shape index: {}, may-alias: {10,17,21}]
  %s11 = inlined_call_operand.vmem [shape: f32[4,1], index: 11, kind: input, shape index: {}, may-alias: {11,18,22}]
  %s12 = inlined_call_operand.vmem [shape: f32[72,4], index: 12, kind: input, shape index: {}]
  %s13 = inlined_call_operand.vmem [shape: f32[4,1], index: 13, kind: input, shape index: {}]
  %s14 = inlined_call_operand.vmem [shape: f32[4,8], index: 14, kind: input, shape index: {}]
  %s15 = inlined_call_operand.vmem [shape: f32[4,8], index: 15, kind: input, shape index: {}]
  %s16 = inlined_call_operand.vmem [shape: f32[4,1], index: 16, kind: input, shape index: {}]
  %s17 = inlined_call_operand.vmem [shape: f32[4,1], index: 17, kind: input, shape index: {}, may-alias: {10,17,21}]
  %s18 = inlined_call_operand.vmem [shape: f32[4,1], index: 18, kind: input, shape index: {}, may-alias: {11,18,22}]
  %s19 = inlined_call_operand.vmem [shape: f32[72,4], index: 19, kind: input, shape index: {}]
  %s20 = inlined_call_operand.vmem [shape: f32[4,1], index: 20, kind: input, shape index: {}]
  %s21 = inlined_call_operand.vmem [shape: f32[4,1], index: 21, kind: input, shape index: {}, may-alias: {10,17,21}]
  %s22 = inlined_call_operand.vmem [shape: f32[4,1], index: 22, kind: input, shape index: {}, may-alias: {11,18,22}]
  %s23 = inlined_call_operand.vmem [shape: f32[72,4], index: 23, kind: input, shape index: {}]
  %s24 = inlined_call_operand.vmem [shape: f32[4,1], index: 24, kind: input, shape index: {}]
  %s25 = inlined_call_operand.vmem [shape: f32[4,256], index: 25, kind: output, shape index: {}]
  %s26 = sld [smem:[#allocation0]]
  $region110: #{_lambda_.2} parent=0
    _
  %s28 = ssub.s32 1, %s26
  %s29 = scalar_select 0, %s28, %s26
  // Predicated region
  $region2: #{_lambda_.2} parent=0 // pred_check
    _
  $region3: #{_lambda_.2} parent=0 // pred_check_branch
    %31 = sbr.rel (0) target = $region5
  $region4: #{_lambda_.2} parent=0 // pred_region
    _
  $region5: #{_lambda_.2} parent=0 // pred_fallthru
    _
  // Predicated region
  $region6: #{_lambda_.2} parent=0 // pred_check
    _
  $region7: #{_lambda_.2} parent=0 // pred_check_branch
    %33 = sbr.rel (0) target = $region9
  $region8: #{_lambda_.2} parent=0 // pred_region
    _
  $region9: #{_lambda_.2} parent=0 // pred_fallthru
    _
  // Predicated region
  $region10: #{_lambda_.2} parent=0 // pred_check
    _
  $region11: #{_lambda_.2} parent=0 // pred_check_branch
    %35 = sbr.rel (0) target = $region13
  $region12: #{_lambda_.2} parent=0 // pred_region
    _
  $region13: #{_lambda_.2} parent=0 // pred_fallthru
    _
  // Predicated region
  $region14: #{_lambda_.2} parent=0 // pred_check
    _
  $region15: #{_lambda_.2} parent=0 // pred_check_branch
    %37 = sbr.rel (0) target = $region17
  $region16: #{_lambda_.2} parent=0 // pred_region
    _
  $region17: #{_lambda_.2} parent=0 // pred_fallthru
    _
  // Predicated region
  $region18: #{_lambda_.2} parent=0 // pred_check
    _
  $region19: #{_lambda_.2} parent=0 // pred_check_branch
    %39 = sbr.rel (0) target = $region21
  $region20: #{_lambda_.2} parent=0 // pred_region
    _
  $region21: #{_lambda_.2} parent=0 // pred_fallthru
    _
  // Predicated region
  $region22: #{_lambda_.2} parent=0 // pred_check
    _
  $region23: #{_lambda_.2} parent=0 // pred_check_branch
    %41 = sbr.rel (0) target = $region25
  $region24: #{_lambda_.2} parent=0 // pred_region
    _
  $region25: #{_lambda_.2} parent=0 // pred_fallthru
    _
  // Predicated region
  $region26: #{_lambda_.2} parent=0 // pred_check
    _
  $region27: #{_lambda_.2} parent=0 // pred_check_branch
    %43 = sbr.rel (0) target = $region29
  $region28: #{_lambda_.2} parent=0 // pred_region
    _
  $region29: #{_lambda_.2} parent=0 // pred_fallthru
    _
  // Predicated region
  $region30: #{_lambda_.2} parent=0 // pred_check
    _
  $region31: #{_lambda_.2} parent=0 // pred_check_branch
    %45 = sbr.rel (0) target = $region33
  $region32: #{_lambda_.2} parent=0 // pred_region
    _
  $region33: #{_lambda_.2} parent=0 // pred_fallthru
    _
  // Predicated region
  $region34: #{_lambda_.2} parent=0 // pred_check
    _
  $region35: #{_lambda_.2} parent=0 // pred_check_branch
    %47 = sbr.rel (0) target = $region37
  $region36: #{_lambda_.2} parent=0 // pred_region
    _
  $region37: #{_lambda_.2} parent=0 // pred_fallthru
    _
  // Predicated region
  $region38: #{_lambda_.2} parent=0 // pred_check
    _
  $region39: #{_lambda_.2} parent=0 // pred_check_branch
    %49 = sbr.rel (0) target = $region41
  $region40: #{_lambda_.2} parent=0 // pred_region
    _
  $region41: #{_lambda_.2} parent=0 // pred_fallthru
    _
  // Predicated region
  $region42: #{_lambda_.2} parent=0 // pred_check
    _
  $region43: #{_lambda_.2} parent=0 // pred_check_branch
    %51 = sbr.rel (0) target = $region45
  $region44: #{_lambda_.2} parent=0 // pred_region
    _
  $region45: #{_lambda_.2} parent=0 // pred_fallthru
    _
  // Predicated region
  $region46: #{_lambda_.2} parent=0 // pred_check
    _
  $region47: #{_lambda_.2} parent=0 // pred_check_branch
    %53 = sbr.rel (0) target = $region49
  $region48: #{_lambda_.2} parent=0 // pred_region
    _
  $region49: #{_lambda_.2} parent=0 // pred_fallthru
    _
  // Predicated region
  $region50: #{_lambda_.2} parent=0 // pred_check
    _
  $region51: #{_lambda_.2} parent=0 // pred_check_branch
    %55 = sbr.rel (0) target = $region53
  $region52: #{_lambda_.2} parent=0 // pred_region
    _
  $region53: #{_lambda_.2} parent=0 // pred_fallthru
    _
  // Predicated region
  $region54: #{_lambda_.2} parent=0 // pred_check
    _
  $region55: #{_lambda_.2} parent=0 // pred_check_branch
    %57 = sbr.rel (0) target = $region57
  $region56: #{_lambda_.2} parent=0 // pred_region
    _
  $region57: #{_lambda_.2} parent=0 // pred_fallthru
    _
  // Predicated region
  $region58: #{_lambda_.2} parent=0 // pred_check
    _
  $region59: #{_lambda_.2} parent=0 // pred_check_branch
    %59 = sbr.rel (0) target = $region61
  $region60: #{_lambda_.2} parent=0 // pred_region
    _
  $region61: #{_lambda_.2} parent=0 // pred_fallthru
    _
  // Predicated region
  $region62: #{_lambda_.2} parent=0 // pred_check
    _
  $region63: #{_lambda_.2} parent=0 // pred_check_branch
    %61 = sbr.rel (0) target = $region65
  $region64: #{_lambda_.2} parent=0 // pred_region
    _
  $region65: #{_lambda_.2} parent=0 // pred_fallthru
    _
  // Predicated region
  $region66: #{_lambda_.2} parent=0 // pred_check
    _
  $region67: #{_lambda_.2} parent=0 // pred_check_branch
    %63 = sbr.rel (0) target = $region69
  $region68: #{_lambda_.2} parent=0 // pred_region
    _
  $region69: #{_lambda_.2} parent=0 // pred_fallthru
    _
  // Predicated region
  $region70: #{_lambda_.2} parent=0 // pred_check
    _
  $region71: #{_lambda_.2} parent=0 // pred_check_branch
    %65 = sbr.rel (0) target = $region73
  $region72: #{_lambda_.2} parent=0 // pred_region
    _
  $region73: #{_lambda_.2} parent=0 // pred_fallthru
    _
  // Predicated region
  $region74: #{_lambda_.2} parent=0 // pred_check
    _
  $region75: #{_lambda_.2} parent=0 // pred_check_branch
    %67 = sbr.rel (0) target = $region77
  $region76: #{_lambda_.2} parent=0 // pred_region
    _
  $region77: #{_lambda_.2} parent=0 // pred_fallthru
    _
  // Predicated region
  $region78: #{_lambda_.2} parent=0 // pred_check
    _
  $region79: #{_lambda_.2} parent=0 // pred_check_branch
    %69 = sbr.rel (0) target = $region81
  $region80: #{_lambda_.2} parent=0 // pred_region
    _
  $region81: #{_lambda_.2} parent=0 // pred_fallthru
    _
  // Predicated region
  $region82: #{_lambda_.2} parent=0 // pred_check
    _
  $region83: #{_lambda_.2} parent=0 // pred_check_branch
    %71 = sbr.rel (0) target = $region85
  $region84: #{_lambda_.2} parent=0 // pred_region
    _
  $region85: #{_lambda_.2} parent=0 // pred_fallthru
    _
  // Predicated region
  $region86: #{_lambda_.2} parent=0 // pred_check
    _
  $region87: #{_lambda_.2} parent=0 // pred_check_branch
    %73 = sbr.rel (0) target = $region89
  $region88: #{_lambda_.2} parent=0 // pred_region
    _
  $region89: #{_lambda_.2} parent=0 // pred_fallthru
    _
  // Predicated region
  $region90: #{_lambda_.2} parent=0 // pred_check
    _
  $region91: #{_lambda_.2} parent=0 // pred_check_branch
    %75 = sbr.rel (0) target = $region93
  $region92: #{_lambda_.2} parent=0 // pred_region
    _
  $region93: #{_lambda_.2} parent=0 // pred_fallthru
    _
  // Predicated region
  $region94: #{_lambda_.2} parent=0 // pred_check
    _
  $region95: #{_lambda_.2} parent=0 // pred_check_branch
    %77 = sbr.rel (0) target = $region97
  $region96: #{_lambda_.2} parent=0 // pred_region
    _
  $region97: #{_lambda_.2} parent=0 // pred_fallthru
    _
  // Predicated region
  $region98: #{_lambda_.2} parent=0 // pred_check
    _
  $region99: #{_lambda_.2} parent=0 // pred_check_branch
    %79 = sbr.rel (0) target = $region101
  $region100: #{_lambda_.2} parent=0 // pred_region
    _
  $region101: #{_lambda_.2} parent=0 // pred_fallthru
    _
  %v80 = vld [vmem:[%s0] sm:$0xff]
  %v81 = vld [vmem:[%s0 + $0x8] sm:$0xff]
  %v82 = vld [vmem:[%s1] sm:$0xff]
  %v83 = vld [vmem:[%s1 + $0x8] sm:$0xff]
  %v84 = vld [vmem:[%s2] sm:$0x3]
  %v85 = vld [vmem:[%s3] sm:$0xff]
  %v86 = vld [vmem:[%s4] sm:$0xff]
  %v87 = vld [vmem:[%s5] sm:$0xff]
  %v88 = vld [vmem:[%s6] sm:$0xff]
  %v89 = vld [vmem:[%s7] sm:$0xff]
  %v90 = vld [vmem:[%s7 + $0x8] sm:$0xff]
  %v91 = vld [vmem:[%s7 + $0x10] sm:$0xff]
  %v92 = vld [vmem:[%s7 + $0x18] sm:$0xff]
  %v93 = vld [vmem:[%s7 + $0x20] sm:$0xff]
  %v94 = vld [vmem:[%s7 + $0x28] sm:$0xff]
  %v95 = vld [vmem:[%s7 + $0x30] sm:$0xff]
  %v96 = vld [vmem:[%s7 + $0x38] sm:$0xff]
  %v97 = vld [vmem:[%s7 + $0x40] sm:$0xff]
  %v98 = vld [vmem:[%s8] sm:$0xff]
  %v99 = vld [vmem:[%s8 + $0x8] sm:$0xff]
  %v100 = vld [vmem:[%s8 + $0x10] sm:$0xff]
  %v101 = vld [vmem:[%s8 + $0x18] sm:$0xff]
  %v102 = vld [vmem:[%s8 + $0x20] sm:$0xff]
  %v103 = vld [vmem:[%s8 + $0x28] sm:$0xff]
  %v104 = vld [vmem:[%s8 + $0x30] sm:$0xff]
  %v105 = vld [vmem:[%s8 + $0x38] sm:$0xff]
  %v106 = vld [vmem:[%s8 + $0x40] sm:$0xff]
  %v107 = vld [vmem:[%s9] sm:$0xf]
  %v108 = vld [vmem:[%s10] sm:$0xf]
  %v109 = vld [vmem:[%s11] sm:$0xf]
  %v110 = vld [vmem:[%s12] sm:$0xff]
  %v111 = vld [vmem:[%s12 + $0x8] sm:$0xff]
  %v112 = vld [vmem:[%s12 + $0x10] sm:$0xff]
  %v113 = vld [vmem:[%s12 + $0x18] sm:$0xff]
  %v114 = vld [vmem:[%s12 + $0x20] sm:$0xff]
  %v115 = vld [vmem:[%s12 + $0x28] sm:$0xff]
  %v116 = vld [vmem:[%s12 + $0x30] sm:$0xff]
  %v117 = vld [vmem:[%s12 + $0x38] sm:$0xff]
  %v118 = vld [vmem:[%s12 + $0x40] sm:$0xff]
  %v119 = vld [vmem:[%s13] sm:$0xf]
  %v120 = vadd.f32 %v80, %v81
  %121 = vadd.xlane.f32.xlu0 %v120
  %v122 = vpop.xlane.xlu0 %121
  %v123 = vmul.f32 %v122, 0.0078125
  %v124 = vmul.f32 %v80, %v80
  %v125 = vmul.f32 %v81, %v81
  %v126 = vadd.f32 %v124, %v125
  %127 = vadd.xlane.f32.xlu0 %v126
  %v128 = vpop.xlane.xlu0 %127
  %v129 = vmul.f32 %v128, 0.0078125
  %v130 = vmul.f32 %v123, %v123
  %v131 = vsub.f32 %v129, %v130
  %v132 = vadd.f32 %v131, 1e-05
  %v133 = vrsqrt.pop %v132
  %v134 = vmul.f32 %v85, %v133
  %v135 = vsub.f32 %v80, %v123
  %v136 = vsub.f32 %v81, %v123
  %138 = vset.pattern.permute.xlu0 0
  %139 = vperm.xlu0 %138, %v134
  %v140 = vpop.permute.xlu0 %139
  %v142 = vmul.f32 %v135, %v140
  %v143 = vmul.f32 %v136, %v140
  %145 = vset.pattern.permute.xlu0 0
  %146 = vperm.xlu0 %145, %v86
  %v147 = vpop.permute.xlu0 %146
  %v149 = vadd.f32 %v142, %v147
  %v150 = vadd.f32 %v143, %v147
  %v151 = vsub.f32 0.0, %v149
  %v152 = vsub.f32 0.0, %v150
  %v153 = vmul.f32 %v151, 1.442695
  %v154 = vpow.pop %v153
  %v155 = vmul.f32 %v152, 1.442695
  %v156 = vpow.pop %v155
  %v157 = vadd.f32 %v154, 1.0
  %v158 = vadd.f32 %v156, 1.0
  %v159 = vrcp.pop %v157
  %v160 = vmul.f32 1.0, %v159
  %v161 = vrcp.pop %v158
  %v162 = vmul.f32 1.0, %v161
  %v163 = vmul.f32 %v149, %v160
  %v164 = vmul.f32 %v150, %v162
  %v166 = vlaneseq
  %v167 = vshrl.u32 %v166, 7
  %v168 = vsub.s32 0, %v167
  %v169 = vrot.slane %v84, %v168
  %v170 = vlaneseq
  %v171 = vshrl.u32 %v170, 7
  %v172 = vsub.s32 1, %v171
  %v173 = vrot.slane %v84, %v172
  %v176 = vmul.f32 %v163, %v169
  %v177 = vmul.f32 %v164, %v173
  %vm178 = vcmask 64512
  %v180 = vsel %vm178, %v89, 0
  %v183 = vsel %vm178, %v90, 0
  %v186 = vsel %vm178, %v91, 0
  %v189 = vsel %vm178, %v92, 0
  %v192 = vsel %vm178, %v93, 0
  %v195 = vsel %vm178, %v94, 0
  %v198 = vsel %vm178, %v95, 0
  %v201 = vsel %vm178, %v96, 0
  %v204 = vsel %vm178, %v97, 0
  %206 = vmatprep.subr.mxu0 0.0
  %207 = vmatpush1.msra.mxu0 0.0
  %208 = vmatprep.subr.mxu0 0.0
  %209 = vmatpush1.msra.mxu0 0.0
  %210 = vmatprep.subr.mxu0 0.0
  %211 = vmatpush1.msra.mxu0 0.0
  %212 = vmatprep.subr.mxu0 0.0
  %213 = vmatpush1.msra.mxu0 0.0
  %214 = vmatprep.subr.mxu0 0.0
  %215 = vmatpush1.msra.mxu0 0.0
  %216 = vmatprep.subr.mxu0 0.0
  %217 = vmatpush1.msra.mxu0 0.0
  %218 = vmatprep.subr.mxu0 0.0
  %219 = vmatpush1.msra.mxu0 0.0
  %220 = vmatprep.subr.mxu0 0.0
  %221 = vmatpush1.msra.mxu0 0.0
  %222 = vmatprep.subr.mxu0 0.0
  %223 = vmatpush1.msra.mxu0 0.0
  %224 = vmatprep.subr.mxu0 0.0
  %225 = vmatpush1.msra.mxu0 0.0
  %226 = vmatprep.subr.mxu0 0.0
  %227 = vmatpush1.msra.mxu0 0.0
  %228 = vmatprep.subr.mxu0 0.0
  %229 = vmatpush1.msra.mxu0 0.0
  %230 = vmatprep.subr.mxu0 0.0
  %231 = vmatpush1.msra.mxu0 0.0
  %232 = vmatprep.subr.mxu0 0.0
  %233 = vmatpush1.msra.mxu0 0.0
  %234 = vmatprep.subr.mxu0 0.0
  %235 = vmatpush1.msra.mxu0 0.0
  %236 = vmatprep.subr.mxu0 %v177
  %237 = vmatpush1.msra.mxu0 %v176
  %238 = vmatprep.subr.mxu0 0.0
  %239 = vmatpush2.msra.mxu0 0.0
  %240 = vmatprep.subr.mxu0 0.0
  %241 = vmatpush2.msra.mxu0 0.0
  %242 = vmatprep.subr.mxu0 0.0
  %243 = vmatpush2.msra.mxu0 0.0
  %244 = vmatprep.subr.mxu0 0.0
  %245 = vmatpush2.msra.mxu0 0.0
  %246 = vmatprep.subr.mxu0 0.0
  %247 = vmatpush2.msra.mxu0 0.0
  %248 = vmatprep.subr.mxu0 0.0
  %249 = vmatpush2.msra.mxu0 0.0
  %250 = vmatprep.subr.mxu0 0.0
  %251 = vmatpush2.msra.mxu0 0.0
  %252 = vmatprep.subr.mxu0 0.0
  %253 = vmatpush2.msra.mxu0 0.0
  %254 = vmatprep.subr.mxu0 0.0
  %255 = vmatpush2.msra.mxu0 0.0
  %256 = vmatprep.subr.mxu0 0.0
  %257 = vmatpush2.msra.mxu0 0.0
  %258 = vmatprep.subr.mxu0 0.0
  %259 = vmatpush2.msra.mxu0 0.0
  %260 = vmatprep.subr.mxu0 0.0
  %261 = vmatpush2.msra.mxu0 0.0
  %262 = vmatprep.subr.mxu0 0.0
  %263 = vmatpush2.msra.mxu0 0.0
  %264 = vmatprep.subr.mxu0 0.0
  %265 = vmatpush2.msra.mxu0 0.0
  %266 = vmatprep.subr.mxu0 0.0
  %267 = vmatpush2.msra.mxu0 0.0
  %268 = vmatprep.subr.mxu0 0.0
  %269 = vmatpush2.msra.mxu0 0.0
  %270 = vmatprep.mubr.f32.mxu0 0.0
  %271 = vmatmul.mubr.f32.gmra.mxu0 %v180
  %v272 = vpop.f32.mrf.mxu0
  %v273 = vadd.f32 0.0, %v272
  %v274 = vpop.f32.mrf.mxu0
  %v275 = vadd.f32 0.0, %v274
  %276 = vmatprep.mubr.f32.mxu0 0.0
  %277 = vmatmul.mubr.f32.gmra.mxu0 %v183
  %v278 = vpop.f32.mrf.mxu0
  %v279 = vadd.f32 0.0, %v278
  %v280 = vpop.f32.mrf.mxu0
  %v281 = vadd.f32 0.0, %v280
  %282 = vmatprep.mubr.f32.mxu0 0.0
  %283 = vmatmul.mubr.f32.gmra.mxu0 %v186
  %v284 = vpop.f32.mrf.mxu0
  %v285 = vadd.f32 0.0, %v284
  %v286 = vpop.f32.mrf.mxu0
  %v287 = vadd.f32 0.0, %v286
  %288 = vmatprep.mubr.f32.mxu0 0.0
  %289 = vmatmul.mubr.f32.gmra.mxu0 %v189
  %v290 = vpop.f32.mrf.mxu0
  %v291 = vadd.f32 0.0, %v290
  %v292 = vpop.f32.mrf.mxu0
  %v293 = vadd.f32 0.0, %v292
  %294 = vmatprep.mubr.f32.mxu0 0.0
  %295 = vmatmul.mubr.f32.gmra.mxu0 %v192
  %v296 = vpop.f32.mrf.mxu0
  %v297 = vadd.f32 0.0, %v296
  %v298 = vpop.f32.mrf.mxu0
  %v299 = vadd.f32 0.0, %v298
  %300 = vmatprep.mubr.f32.mxu0 0.0
  %301 = vmatmul.mubr.f32.gmra.mxu0 %v195
  %v302 = vpop.f32.mrf.mxu0
  %v303 = vadd.f32 0.0, %v302
  %v304 = vpop.f32.mrf.mxu0
  %v305 = vadd.f32 0.0, %v304
  %306 = vmatprep.mubr.f32.mxu0 0.0
  %307 = vmatmul.mubr.f32.gmra.mxu0 %v198
  %v308 = vpop.f32.mrf.mxu0
  %v309 = vadd.f32 0.0, %v308
  %v310 = vpop.f32.mrf.mxu0
  %v311 = vadd.f32 0.0, %v310
  %312 = vmatprep.mubr.f32.mxu0 0.0
  %313 = vmatmul.mubr.f32.gmra.mxu0 %v201
  %v314 = vpop.f32.mrf.mxu0
  %v315 = vadd.f32 0.0, %v314
  %v316 = vpop.f32.mrf.mxu0
  %v317 = vadd.f32 0.0, %v316
  %318 = vmatprep.mubr.f32.mxu0 0.0
  %319 = vmatmul.mubr.f32.gmra.mxu0 %v204
  %v320 = vpop.f32.mrf.mxu0
  %v321 = vadd.f32 0.0, %v320
  %v322 = vpop.f32.mrf.mxu0
  %v323 = vadd.f32 0.0, %v322
  %324 = vdwg.mxu0
  %325 = vrot.lane.b32.xlu0 %v273, 11
  %v326 = vpop.permute.xlu0 %325
  %327 = vrot.lane.b32.xlu0 %v275, 11
  %v328 = vpop.permute.xlu0 %327
  %v329 = vlaneseq
  %v330 = vand.u32 %v329, 127
  %vm331 = vcmp.lt.s32.totalorder %v330, 11
  %v332 = vsel %vm331, %v326, %v328
  %v333 = vsel %vm331, %v328, %v326
  %334 = vrot.lane.b32.xlu0 %v279, 10
  %v335 = vpop.permute.xlu0 %334
  %336 = vrot.lane.b32.xlu0 %v281, 10
  %v337 = vpop.permute.xlu0 %336
  %vm338 = vcmp.lt.s32.totalorder %v330, 10
  %v339 = vsel %vm338, %v335, %v337
  %v340 = vsel %vm338, %v337, %v335
  %v341 = vadd.f32 %v333, %v340
  %v342 = vadd.f32 %v332, %v339
  %343 = vrot.lane.b32.xlu0 %v285, 9
  %v344 = vpop.permute.xlu0 %343
  %345 = vrot.lane.b32.xlu0 %v287, 9
  %v346 = vpop.permute.xlu0 %345
  %vm347 = vcmp.lt.s32.totalorder %v330, 9
  %v348 = vsel %vm347, %v344, %v346
  %v349 = vsel %vm347, %v346, %v344
  %v350 = vadd.f32 %v341, %v349
  %v351 = vadd.f32 %v342, %v348
  %352 = vrot.lane.b32.xlu0 %v291, 1
  %v353 = vpop.permute.xlu0 %352
  %354 = vrot.lane.b32.xlu0 %v293, 1
  %v355 = vpop.permute.xlu0 %354
  %vm356 = vcmp.lt.s32.totalorder %v330, 1
  %v357 = vsel %vm356, %v353, %v355
  %v358 = vsel %vm356, %v355, %v353
  %v359 = vadd.f32 %v350, %v358
  %v360 = vadd.f32 %v351, %v357
  %v361 = vadd.f32 %v359, %v297
  %v362 = vadd.f32 %v360, %v299
  %363 = vrot.lane.b32.xlu0 %v303, 127
  %v364 = vpop.permute.xlu0 %363
  %365 = vrot.lane.b32.xlu0 %v305, 127
  %v366 = vpop.permute.xlu0 %365
  %vm367 = vcmp.lt.s32.totalorder %v330, 127
  %v368 = vsel %vm367, %v364, %v366
  %v369 = vsel %vm367, %v366, %v364
  %v370 = vadd.f32 %v361, %v368
  %v371 = vadd.f32 %v362, %v369
  %372 = vrot.lane.b32.xlu0 %v309, 119
  %v373 = vpop.permute.xlu0 %372
  %374 = vrot.lane.b32.xlu0 %v311, 119
  %v375 = vpop.permute.xlu0 %374
  %vm376 = vcmp.lt.s32.totalorder %v330, 119
  %v377 = vsel %vm376, %v373, %v375
  %v378 = vsel %vm376, %v375, %v373
  %v379 = vadd.f32 %v370, %v377
  %v380 = vadd.f32 %v371, %v378
  %381 = vrot.lane.b32.xlu0 %v315, 118
  %v382 = vpop.permute.xlu0 %381
  %383 = vrot.lane.b32.xlu0 %v317, 118
  %v384 = vpop.permute.xlu0 %383
  %vm385 = vcmp.lt.s32.totalorder %v330, 118
  %v386 = vsel %vm385, %v382, %v384
  %v387 = vsel %vm385, %v384, %v382
  %v388 = vadd.f32 %v379, %v386
  %v389 = vadd.f32 %v380, %v387
  %390 = vrot.lane.b32.xlu0 %v321, 117
  %v391 = vpop.permute.xlu0 %390
  %392 = vrot.lane.b32.xlu0 %v323, 117
  %v393 = vpop.permute.xlu0 %392
  %vm394 = vcmp.lt.s32.totalorder %v330, 117
  %v395 = vsel %vm394, %v391, %v393
  %v396 = vsel %vm394, %v393, %v391
  %v397 = vadd.f32 %v388, %v395
  %v398 = vadd.f32 %v389, %v396
  %v399 = vadd.f32 %v82, %v83
  %400 = vadd.xlane.f32.xlu0 %v399
  %v401 = vpop.xlane.xlu0 %400
  %v402 = vmul.f32 %v401, 0.0078125
  %v403 = vmul.f32 %v82, %v82
  %v404 = vmul.f32 %v83, %v83
  %v405 = vadd.f32 %v403, %v404
  %406 = vadd.xlane.f32.xlu0 %v405
  %v407 = vpop.xlane.xlu0 %406
  %v408 = vmul.f32 %v407, 0.0078125
  %v409 = vmul.f32 %v402, %v402
  %v410 = vsub.f32 %v408, %v409
  %v411 = vadd.f32 %v410, 1e-05
  %v412 = vrsqrt.pop %v411
  %v413 = vmul.f32 %v87, %v412
  %v414 = vsub.f32 %v82, %v402
  %v415 = vsub.f32 %v83, %v402
  %417 = vset.pattern.permute.xlu0 0
  %418 = vperm.xlu0 %417, %v413
  %v419 = vpop.permute.xlu0 %418
  %v421 = vmul.f32 %v414, %v419
  %v422 = vmul.f32 %v415, %v419
  %424 = vset.pattern.permute.xlu0 0
  %425 = vperm.xlu0 %424, %v88
  %v426 = vpop.permute.xlu0 %425
  %v428 = vadd.f32 %v421, %v426
  %v429 = vadd.f32 %v422, %v426
  %v430 = vsub.f32 0.0, %v428
  %v431 = vsub.f32 0.0, %v429
  %v432 = vmul.f32 %v430, 1.442695
  %v433 = vpow.pop %v432
  %v434 = vmul.f32 %v431, 1.442695
  %v435 = vpow.pop %v434
  %v436 = vadd.f32 %v433, 1.0
  %v437 = vadd.f32 %v435, 1.0
  %v438 = vrcp.pop %v436
  %v439 = vmul.f32 1.0, %v438
  %v440 = vrcp.pop %v437
  %v441 = vmul.f32 1.0, %v440
  %v442 = vmul.f32 %v428, %v439
  %v443 = vmul.f32 %v429, %v441
  %v444 = vmul.f32 %v442, %v169
  %v445 = vmul.f32 %v443, %v173
  %v447 = vsel %vm178, %v98, 0
  %v450 = vsel %vm178, %v99, 0
  %v453 = vsel %vm178, %v100, 0
  %v456 = vsel %vm178, %v101, 0
  %v459 = vsel %vm178, %v102, 0
  %v462 = vsel %vm178, %v103, 0
  %v465 = vsel %vm178, %v104, 0
  %v468 = vsel %vm178, %v105, 0
  %v471 = vsel %vm178, %v106, 0
  %473 = vmatprep.subr.mxu0 0.0
  %474 = vmatpush1.msra.mxu0 0.0
  %475 = vmatprep.subr.mxu0 0.0
  %476 = vmatpush1.msra.mxu0 0.0
  %477 = vmatprep.subr.mxu0 0.0
  %478 = vmatpush1.msra.mxu0 0.0
  %479 = vmatprep.subr.mxu0 0.0
  %480 = vmatpush1.msra.mxu0 0.0
  %481 = vmatprep.subr.mxu0 0.0
  %482 = vmatpush1.msra.mxu0 0.0
  %483 = vmatprep.subr.mxu0 0.0
  %484 = vmatpush1.msra.mxu0 0.0
  %485 = vmatprep.subr.mxu0 0.0
  %486 = vmatpush1.msra.mxu0 0.0
  %487 = vmatprep.subr.mxu0 0.0
  %488 = vmatpush1.msra.mxu0 0.0
  %489 = vmatprep.subr.mxu0 0.0
  %490 = vmatpush1.msra.mxu0 0.0
  %491 = vmatprep.subr.mxu0 0.0
  %492 = vmatpush1.msra.mxu0 0.0
  %493 = vmatprep.subr.mxu0 0.0
  %494 = vmatpush1.msra.mxu0 0.0
  %495 = vmatprep.subr.mxu0 0.0
  %496 = vmatpush1.msra.mxu0 0.0
  %497 = vmatprep.subr.mxu0 0.0
  %498 = vmatpush1.msra.mxu0 0.0
  %499 = vmatprep.subr.mxu0 0.0
  %500 = vmatpush1.msra.mxu0 0.0
  %501 = vmatprep.subr.mxu0 0.0
  %502 = vmatpush1.msra.mxu0 0.0
  %503 = vmatprep.subr.mxu0 %v445
  %504 = vmatpush1.msra.mxu0 %v444
  %505 = vmatprep.subr.mxu0 0.0
  %506 = vmatpush2.msra.mxu0 0.0
  %507 = vmatprep.subr.mxu0 0.0
  %508 = vmatpush2.msra.mxu0 0.0
  %509 = vmatprep.subr.mxu0 0.0
  %510 = vmatpush2.msra.mxu0 0.0
  %511 = vmatprep.subr.mxu0 0.0
  %512 = vmatpush2.msra.mxu0 0.0
  %513 = vmatprep.subr.mxu0 0.0
  %514 = vmatpush2.msra.mxu0 0.0
  %515 = vmatprep.subr.mxu0 0.0
  %516 = vmatpush2.msra.mxu0 0.0
  %517 = vmatprep.subr.mxu0 0.0
  %518 = vmatpush2.msra.mxu0 0.0
  %519 = vmatprep.subr.mxu0 0.0
  %520 = vmatpush2.msra.mxu0 0.0
  %521 = vmatprep.subr.mxu0 0.0
  %522 = vmatpush2.msra.mxu0 0.0
  %523 = vmatprep.subr.mxu0 0.0
  %524 = vmatpush2.msra.mxu0 0.0
  %525 = vmatprep.subr.mxu0 0.0
  %526 = vmatpush2.msra.mxu0 0.0
  %527 = vmatprep.subr.mxu0 0.0
  %528 = vmatpush2.msra.mxu0 0.0
  %529 = vmatprep.subr.mxu0 0.0
  %530 = vmatpush2.msra.mxu0 0.0
  %531 = vmatprep.subr.mxu0 0.0
  %532 = vmatpush2.msra.mxu0 0.0
  %533 = vmatprep.subr.mxu0 0.0
  %534 = vmatpush2.msra.mxu0 0.0
  %535 = vmatprep.subr.mxu0 0.0
  %536 = vmatpush2.msra.mxu0 0.0
  %537 = vmatprep.mubr.f32.mxu0 0.0
  %538 = vmatmul.mubr.f32.gmra.mxu0 %v447
  %v539 = vpop.f32.mrf.mxu0
  %v540 = vadd.f32 0.0, %v539
  %v541 = vpop.f32.mrf.mxu0
  %v542 = vadd.f32 0.0, %v541
  %543 = vmatprep.mubr.f32.mxu0 0.0
  %544 = vmatmul.mubr.f32.gmra.mxu0 %v450
  %v545 = vpop.f32.mrf.mxu0
  %v546 = vadd.f32 0.0, %v545
  %v547 = vpop.f32.mrf.mxu0
  %v548 = vadd.f32 0.0, %v547
  %549 = vmatprep.mubr.f32.mxu0 0.0
  %550 = vmatmul.mubr.f32.gmra.mxu0 %v453
  %v551 = vpop.f32.mrf.mxu0
  %v552 = vadd.f32 0.0, %v551
  %v553 = vpop.f32.mrf.mxu0
  %v554 = vadd.f32 0.0, %v553
  %555 = vmatprep.mubr.f32.mxu0 0.0
  %556 = vmatmul.mubr.f32.gmra.mxu0 %v456
  %v557 = vpop.f32.mrf.mxu0
  %v558 = vadd.f32 0.0, %v557
  %v559 = vpop.f32.mrf.mxu0
  %v560 = vadd.f32 0.0, %v559
  %561 = vmatprep.mubr.f32.mxu0 0.0
  %562 = vmatmul.mubr.f32.gmra.mxu0 %v459
  %v563 = vpop.f32.mrf.mxu0
  %v564 = vadd.f32 0.0, %v563
  %v565 = vpop.f32.mrf.mxu0
  %v566 = vadd.f32 0.0, %v565
  %567 = vmatprep.mubr.f32.mxu0 0.0
  %568 = vmatmul.mubr.f32.gmra.mxu0 %v462
  %v569 = vpop.f32.mrf.mxu0
  %v570 = vadd.f32 0.0, %v569
  %v571 = vpop.f32.mrf.mxu0
  %v572 = vadd.f32 0.0, %v571
  %573 = vmatprep.mubr.f32.mxu0 0.0
  %574 = vmatmul.mubr.f32.gmra.mxu0 %v465
  %v575 = vpop.f32.mrf.mxu0
  %v576 = vadd.f32 0.0, %v575
  %v577 = vpop.f32.mrf.mxu0
  %v578 = vadd.f32 0.0, %v577
  %579 = vmatprep.mubr.f32.mxu0 0.0
  %580 = vmatmul.mubr.f32.gmra.mxu0 %v468
  %v581 = vpop.f32.mrf.mxu0
  %v582 = vadd.f32 0.0, %v581
  %v583 = vpop.f32.mrf.mxu0
  %v584 = vadd.f32 0.0, %v583
  %585 = vmatprep.mubr.f32.mxu0 0.0
  %586 = vmatmul.mubr.f32.gmra.mxu0 %v471
  %v587 = vpop.f32.mrf.mxu0
  %v588 = vadd.f32 0.0, %v587
  %v589 = vpop.f32.mrf.mxu0
  %v590 = vadd.f32 0.0, %v589
  %591 = vdwg.mxu0
  %592 = vrot.lane.b32.xlu0 %v540, 11
  %v593 = vpop.permute.xlu0 %592
  %594 = vrot.lane.b32.xlu0 %v542, 11
  %v595 = vpop.permute.xlu0 %594
  %v596 = vsel %vm331, %v593, %v595
  %v597 = vsel %vm331, %v595, %v593
  %598 = vrot.lane.b32.xlu0 %v546, 10
  %v599 = vpop.permute.xlu0 %598
  %600 = vrot.lane.b32.xlu0 %v548, 10
  %v601 = vpop.permute.xlu0 %600
  %v602 = vsel %vm338, %v599, %v601
  %v603 = vsel %vm338, %v601, %v599
  %v604 = vadd.f32 %v597, %v603
  %v605 = vadd.f32 %v596, %v602
  %606 = vrot.lane.b32.xlu0 %v552, 9
  %v607 = vpop.permute.xlu0 %606
  %608 = vrot.lane.b32.xlu0 %v554, 9
  %v609 = vpop.permute.xlu0 %608
  %v610 = vsel %vm347, %v607, %v609
  %v611 = vsel %vm347, %v609, %v607
  %v612 = vadd.f32 %v604, %v611
  %v613 = vadd.f32 %v605, %v610
  %614 = vrot.lane.b32.xlu0 %v558, 1
  %v615 = vpop.permute.xlu0 %614
  %616 = vrot.lane.b32.xlu0 %v560, 1
  %v617 = vpop.permute.xlu0 %616
  %v618 = vsel %vm356, %v615, %v617
  %v619 = vsel %vm356, %v617, %v615
  %v620 = vadd.f32 %v612, %v619
  %v621 = vadd.f32 %v613, %v618
  %v622 = vadd.f32 %v620, %v564
  %v623 = vadd.f32 %v621, %v566
  %624 = vrot.lane.b32.xlu0 %v570, 127
  %v625 = vpop.permute.xlu0 %624
  %626 = vrot.lane.b32.xlu0 %v572, 127
  %v627 = vpop.permute.xlu0 %626
  %v628 = vsel %vm367, %v625, %v627
  %v629 = vsel %vm367, %v627, %v625
  %v630 = vadd.f32 %v622, %v628
  %v631 = vadd.f32 %v623, %v629
  %632 = vrot.lane.b32.xlu0 %v576, 119
  %v633 = vpop.permute.xlu0 %632
  %634 = vrot.lane.b32.xlu0 %v578, 119
  %v635 = vpop.permute.xlu0 %634
  %v636 = vsel %vm376, %v633, %v635
  %v637 = vsel %vm376, %v635, %v633
  %v638 = vadd.f32 %v630, %v636
  %v639 = vadd.f32 %v631, %v637
  %640 = vrot.lane.b32.xlu0 %v582, 118
  %v641 = vpop.permute.xlu0 %640
  %642 = vrot.lane.b32.xlu0 %v584, 118
  %v643 = vpop.permute.xlu0 %642
  %v644 = vsel %vm385, %v641, %v643
  %v645 = vsel %vm385, %v643, %v641
  %v646 = vadd.f32 %v638, %v644
  %v647 = vadd.f32 %v639, %v645
  %648 = vrot.lane.b32.xlu0 %v588, 117
  %v649 = vpop.permute.xlu0 %648
  %650 = vrot.lane.b32.xlu0 %v590, 117
  %v651 = vpop.permute.xlu0 %650
  %v652 = vsel %vm394, %v649, %v651
  %v653 = vsel %vm394, %v651, %v649
  %v654 = vadd.f32 %v646, %v652
  %v655 = vadd.f32 %v647, %v653
  %v656 = vadd.f32 %v397, %v654
  %v657 = vadd.f32 %v398, %v655
  %659 = vset.pattern.permute.xlu0 0
  %660 = vperm.xlu0 %659, %v107
  %v661 = vpop.permute.xlu0 %660
  %v663 = vadd.f32 %v656, %v661
  %v664 = vadd.f32 %v657, %v661
  %v665 = vmul.f32 %v663, %v169
  %v666 = vmul.f32 %v664, %v173
  %vm667 = vcmask 1043456
  %v668 = vsel %vm667, %v665, 0.0
  %v669 = vsel %vm667, %v666, 0.0
  %v670 = vadd.f32 %v668, %v669
  %671 = vadd.xlane.f32.xlu0 %v670
  %v672 = vpop.xlane.xlu0 %671
  %v673 = vmul.f32 %v672, 0.0078125
  %v674 = vmul.f32 %v665, %v665
  %v675 = vmul.f32 %v666, %v666
  %v676 = vsel %vm667, %v674, 0.0
  %v677 = vsel %vm667, %v675, 0.0
  %v678 = vadd.f32 %v676, %v677
  %679 = vadd.xlane.f32.xlu0 %v678
  %v680 = vpop.xlane.xlu0 %679
  %v681 = vmul.f32 %v680, 0.0078125
  %v682 = vmul.f32 %v673, %v673
  %v683 = vsub.f32 %v681, %v682
  %v684 = vadd.f32 %v683, 1e-05
  %v685 = vrsqrt.pop %v684
  %v686 = vmul.f32 %v108, %v685
  %v687 = vsub.f32 %v665, %v673
  %v688 = vsub.f32 %v666, %v673
  %690 = vset.pattern.permute.xlu0 0
  %691 = vperm.xlu0 %690, %v686
  %v692 = vpop.permute.xlu0 %691
  %v694 = vmul.f32 %v687, %v692
  %v695 = vmul.f32 %v688, %v692
  %697 = vset.pattern.permute.xlu0 0
  %698 = vperm.xlu0 %697, %v109
  %v699 = vpop.permute.xlu0 %698
  %v701 = vadd.f32 %v694, %v699
  %v702 = vadd.f32 %v695, %v699
  %v703 = vsub.f32 0.0, %v701
  %v704 = vsub.f32 0.0, %v702
  %v705 = vmul.f32 %v703, 1.442695
  %v706 = vpow.pop %v705
  %v707 = vmul.f32 %v704, 1.442695
  %v708 = vpow.pop %v707
  %v709 = vadd.f32 %v706, 1.0
  %v710 = vadd.f32 %v708, 1.0
  %v711 = vrcp.pop %v709
  %v712 = vmul.f32 1.0, %v711
  %v713 = vrcp.pop %v710
  %v714 = vmul.f32 1.0, %v713
  %v715 = vmul.f32 %v701, %v712
  %v716 = vmul.f32 %v702, %v714
  %v717 = vmul.f32 %v715, %v169
  %v718 = vmul.f32 %v716, %v173
  %vm719 = vcmask 31744
  %v721 = vsel %vm719, %v110, 0
  %v724 = vsel %vm719, %v111, 0
  %v727 = vsel %vm719, %v112, 0
  %v730 = vsel %vm719, %v113, 0
  %v733 = vsel %vm719, %v114, 0
  %v736 = vsel %vm719, %v115, 0
  %v739 = vsel %vm719, %v116, 0
  %v742 = vsel %vm719, %v117, 0
  %v745 = vsel %vm719, %v118, 0
  %v748 = vsel %vm667, %v717, 0
  %v751 = vsel %vm667, %v718, 0
  %753 = vmatprep.subr.mxu0 0.0
  %754 = vmatpush1.msra.mxu0 0.0
  %755 = vmatprep.subr.mxu0 0.0
  %756 = vmatpush1.msra.mxu0 0.0
  %757 = vmatprep.subr.mxu0 0.0
  %758 = vmatpush1.msra.mxu0 0.0
  %759 = vmatprep.subr.mxu0 0.0
  %760 = vmatpush1.msra.mxu0 0.0
  %761 = vmatprep.subr.mxu0 0.0
  %762 = vmatpush1.msra.mxu0 0.0
  %763 = vmatprep.subr.mxu0 0.0
  %764 = vmatpush1.msra.mxu0 0.0
  %765 = vmatprep.subr.mxu0 0.0
  %766 = vmatpush1.msra.mxu0 0.0
  %767 = vmatprep.subr.mxu0 0.0
  %768 = vmatpush1.msra.mxu0 0.0
  %769 = vmatprep.subr.mxu0 0.0
  %770 = vmatpush1.msra.mxu0 0.0
  %771 = vmatprep.subr.mxu0 0.0
  %772 = vmatpush1.msra.mxu0 0.0
  %773 = vmatprep.subr.mxu0 0.0
  %774 = vmatpush1.msra.mxu0 0.0
  %775 = vmatprep.subr.mxu0 0.0
  %776 = vmatpush1.msra.mxu0 0.0
  %777 = vmatprep.subr.mxu0 0.0
  %778 = vmatpush1.msra.mxu0 0.0
  %779 = vmatprep.subr.mxu0 0.0
  %780 = vmatpush1.msra.mxu0 0.0
  %781 = vmatprep.subr.mxu0 0.0
  %782 = vmatpush1.msra.mxu0 0.0
  %783 = vmatprep.subr.mxu0 %v751
  %784 = vmatpush1.msra.mxu0 %v748
  %785 = vmatprep.subr.mxu0 0.0
  %786 = vmatpush2.msra.mxu0 0.0
  %787 = vmatprep.subr.mxu0 0.0
  %788 = vmatpush2.msra.mxu0 0.0
  %789 = vmatprep.subr.mxu0 0.0
  %790 = vmatpush2.msra.mxu0 0.0
  %791 = vmatprep.subr.mxu0 0.0
  %792 = vmatpush2.msra.mxu0 0.0
  %793 = vmatprep.subr.mxu0 0.0
  %794 = vmatpush2.msra.mxu0 0.0
  %795 = vmatprep.subr.mxu0 0.0
  %796 = vmatpush2.msra.mxu0 0.0
  %797 = vmatprep.subr.mxu0 0.0
  %798 = vmatpush2.msra.mxu0 0.0
  %799 = vmatprep.subr.mxu0 0.0
  %800 = vmatpush2.msra.mxu0 0.0
  %801 = vmatprep.subr.mxu0 0.0
  %802 = vmatpush2.msra.mxu0 0.0
  %803 = vmatprep.subr.mxu0 0.0
  %804 = vmatpush2.msra.mxu0 0.0
  %805 = vmatprep.subr.mxu0 0.0
  %806 = vmatpush2.msra.mxu0 0.0
  %807 = vmatprep.subr.mxu0 0.0
  %808 = vmatpush2.msra.mxu0 0.0
  %809 = vmatprep.subr.mxu0 0.0
  %810 = vmatpush2.msra.mxu0 0.0
  %811 = vmatprep.subr.mxu0 0.0
  %812 = vmatpush2.msra.mxu0 0.0
  %813 = vmatprep.subr.mxu0 0.0
  %814 = vmatpush2.msra.mxu0 0.0
  %815 = vmatprep.subr.mxu0 0.0
  %816 = vmatpush2.msra.mxu0 0.0
  %817 = vmatprep.mubr.f32.mxu0 0.0
  %818 = vmatmul.mubr.f32.gmra.mxu0 %v721
  %v819 = vpop.f32.mrf.mxu0
  %v820 = vadd.f32 0.0, %v819
  %v821 = vpop.f32.mrf.mxu0
  %v822 = vadd.f32 0.0, %v821
  %823 = vmatprep.mubr.f32.mxu0 0.0
  %824 = vmatmul.mubr.f32.gmra.mxu0 %v724
  %v825 = vpop.f32.mrf.mxu0
  %v826 = vadd.f32 0.0, %v825
  %v827 = vpop.f32.mrf.mxu0
  %v828 = vadd.f32 0.0, %v827
  %829 = vmatprep.mubr.f32.mxu0 0.0
  %830 = vmatmul.mubr.f32.gmra.mxu0 %v727
  %v831 = vpop.f32.mrf.mxu0
  %v832 = vadd.f32 0.0, %v831
  %v833 = vpop.f32.mrf.mxu0
  %v834 = vadd.f32 0.0, %v833
  %835 = vmatprep.mubr.f32.mxu0 0.0
  %836 = vmatmul.mubr.f32.gmra.mxu0 %v730
  %v837 = vpop.f32.mrf.mxu0
  %v838 = vadd.f32 0.0, %v837
  %v839 = vpop.f32.mrf.mxu0
  %v840 = vadd.f32 0.0, %v839
  %841 = vmatprep.mubr.f32.mxu0 0.0
  %842 = vmatmul.mubr.f32.gmra.mxu0 %v733
  %v843 = vpop.f32.mrf.mxu0
  %v844 = vadd.f32 0.0, %v843
  %v845 = vpop.f32.mrf.mxu0
  %v846 = vadd.f32 0.0, %v845
  %847 = vmatprep.mubr.f32.mxu0 0.0
  %848 = vmatmul.mubr.f32.gmra.mxu0 %v736
  %v849 = vpop.f32.mrf.mxu0
  %v850 = vadd.f32 0.0, %v849
  %v851 = vpop.f32.mrf.mxu0
  %v852 = vadd.f32 0.0, %v851
  %853 = vmatprep.mubr.f32.mxu0 0.0
  %854 = vmatmul.mubr.f32.gmra.mxu0 %v739
  %v855 = vpop.f32.mrf.mxu0
  %v856 = vadd.f32 0.0, %v855
  %v857 = vpop.f32.mrf.mxu0
  %v858 = vadd.f32 0.0, %v857
  %859 = vmatprep.mubr.f32.mxu0 0.0
  %860 = vmatmul.mubr.f32.gmra.mxu0 %v742
  %v861 = vpop.f32.mrf.mxu0
  %v862 = vadd.f32 0.0, %v861
  %v863 = vpop.f32.mrf.mxu0
  %v864 = vadd.f32 0.0, %v863
  %865 = vmatprep.mubr.f32.mxu0 0.0
  %866 = vmatmul.mubr.f32.gmra.mxu0 %v745
  %v867 = vpop.f32.mrf.mxu0
  %v868 = vadd.f32 0.0, %v867
  %v869 = vpop.f32.mrf.mxu0
  %v870 = vadd.f32 0.0, %v869
  %871 = vdwg.mxu0
  %872 = vrot.lane.b32.xlu0 %v820, 11
  %v873 = vpop.permute.xlu0 %872
  %874 = vrot.lane.b32.xlu0 %v822, 11
  %v875 = vpop.permute.xlu0 %874
  %v876 = vsel %vm331, %v873, %v875
  %v877 = vsel %vm331, %v875, %v873
  %878 = vrot.lane.b32.xlu0 %v826, 10
  %v879 = vpop.permute.xlu0 %878
  %880 = vrot.lane.b32.xlu0 %v828, 10
  %v881 = vpop.permute.xlu0 %880
  %v882 = vsel %vm338, %v879, %v881
  %v883 = vsel %vm338, %v881, %v879
  %v884 = vadd.f32 %v877, %v883
  %v885 = vadd.f32 %v876, %v882
  %886 = vrot.lane.b32.xlu0 %v832, 9
  %v887 = vpop.permute.xlu0 %886
  %888 = vrot.lane.b32.xlu0 %v834, 9
  %v889 = vpop.permute.xlu0 %888
  %v890 = vsel %vm347, %v887, %v889
  %v891 = vsel %vm347, %v889, %v887
  %v892 = vadd.f32 %v884, %v891
  %v893 = vadd.f32 %v885, %v890
  %894 = vrot.lane.b32.xlu0 %v838, 1
  %v895 = vpop.permute.xlu0 %894
  %896 = vrot.lane.b32.xlu0 %v840, 1
  %v897 = vpop.permute.xlu0 %896
  %v898 = vsel %vm356, %v895, %v897
  %v899 = vsel %vm356, %v897, %v895
  %v900 = vadd.f32 %v892, %v899
  %v901 = vadd.f32 %v893, %v898
  %v902 = vadd.f32 %v900, %v844
  %v903 = vadd.f32 %v901, %v846
  %904 = vrot.lane.b32.xlu0 %v850, 127
  %v905 = vpop.permute.xlu0 %904
  %906 = vrot.lane.b32.xlu0 %v852, 127
  %v907 = vpop.permute.xlu0 %906
  %v908 = vsel %vm367, %v905, %v907
  %v909 = vsel %vm367, %v907, %v905
  %v910 = vadd.f32 %v902, %v908
  %v911 = vadd.f32 %v903, %v909
  %912 = vrot.lane.b32.xlu0 %v856, 119
  %v913 = vpop.permute.xlu0 %912
  %914 = vrot.lane.b32.xlu0 %v858, 119
  %v915 = vpop.permute.xlu0 %914
  %v916 = vsel %vm376, %v913, %v915
  %v917 = vsel %vm376, %v915, %v913
  %v918 = vadd.f32 %v910, %v916
  %v919 = vadd.f32 %v911, %v917
  %920 = vrot.lane.b32.xlu0 %v862, 118
  %v921 = vpop.permute.xlu0 %920
  %922 = vrot.lane.b32.xlu0 %v864, 118
  %v923 = vpop.permute.xlu0 %922
  %v924 = vsel %vm385, %v921, %v923
  %v925 = vsel %vm385, %v923, %v921
  %v926 = vadd.f32 %v918, %v924
  %v927 = vadd.f32 %v919, %v925
  %928 = vrot.lane.b32.xlu0 %v868, 117
  %v929 = vpop.permute.xlu0 %928
  %930 = vrot.lane.b32.xlu0 %v870, 117
  %v931 = vpop.permute.xlu0 %930
  %v932 = vsel %vm394, %v929, %v931
  %v933 = vsel %vm394, %v931, %v929
  %v934 = vadd.f32 %v926, %v932
  %v935 = vadd.f32 %v927, %v933
  %937 = vset.pattern.permute.xlu0 0
  %938 = vperm.xlu0 %937, %v119
  %v939 = vpop.permute.xlu0 %938
  %v941 = vadd.f32 %v934, %v939
  %v942 = vadd.f32 %v935, %v939
  %v943 = vld [vmem:[%s14] sm:$0xf]
  %v944 = vld [vmem:[%s15] sm:$0xf]
  %v946 = vsel %vm178, %v944, 0
  %948 = vmatprep.subr.mxu0 0.0
  %949 = vmatpush1.msra.mxu0 0.0
  %950 = vmatprep.subr.mxu0 0.0
  %951 = vmatpush1.msra.mxu0 0.0
  %952 = vmatprep.subr.mxu0 0.0
  %953 = vmatpush1.msra.mxu0 0.0
  %954 = vmatprep.subr.mxu0 0.0
  %955 = vmatpush1.msra.mxu0 0.0
  %956 = vmatprep.subr.mxu0 0.0
  %957 = vmatpush1.msra.mxu0 0.0
  %958 = vmatprep.subr.mxu0 0.0
  %959 = vmatpush1.msra.mxu0 0.0
  %960 = vmatprep.subr.mxu0 0.0
  %961 = vmatpush1.msra.mxu0 0.0
  %962 = vmatprep.subr.mxu0 0.0
  %963 = vmatpush1.msra.mxu0 0.0
  %964 = vmatprep.subr.mxu0 0.0
  %965 = vmatpush1.msra.mxu0 0.0
  %966 = vmatprep.subr.mxu0 0.0
  %967 = vmatpush1.msra.mxu0 0.0
  %968 = vmatprep.subr.mxu0 0.0
  %969 = vmatpush1.msra.mxu0 0.0
  %970 = vmatprep.subr.mxu0 0.0
  %971 = vmatpush1.msra.mxu0 0.0
  %972 = vmatprep.subr.mxu0 0.0
  %973 = vmatpush1.msra.mxu0 0.0
  %974 = vmatprep.subr.mxu0 0.0
  %975 = vmatpush1.msra.mxu0 0.0
  %976 = vmatprep.subr.mxu0 0.0
  %977 = vmatpush1.msra.mxu0 0.0
  %978 = vmatprep.subr.mxu0 %v83
  %979 = vmatpush1.msra.mxu0 %v82
  %980 = vmatprep.subr.mxu0 0.0
  %981 = vmatpush2.msra.mxu0 0.0
  %982 = vmatprep.subr.mxu0 0.0
  %983 = vmatpush2.msra.mxu0 0.0
  %984 = vmatprep.subr.mxu0 0.0
  %985 = vmatpush2.msra.mxu0 0.0
  %986 = vmatprep.subr.mxu0 0.0
  %987 = vmatpush2.msra.mxu0 0.0
  %988 = vmatprep.subr.mxu0 0.0
  %989 = vmatpush2.msra.mxu0 0.0
  %990 = vmatprep.subr.mxu0 0.0
  %991 = vmatpush2.msra.mxu0 0.0
  %992 = vmatprep.subr.mxu0 0.0
  %993 = vmatpush2.msra.mxu0 0.0
  %994 = vmatprep.subr.mxu0 0.0
  %995 = vmatpush2.msra.mxu0 0.0
  %996 = vmatprep.subr.mxu0 0.0
  %997 = vmatpush2.msra.mxu0 0.0
  %998 = vmatprep.subr.mxu0 0.0
  %999 = vmatpush2.msra.mxu0 0.0
  %1000 = vmatprep.subr.mxu0 0.0
  %1001 = vmatpush2.msra.mxu0 0.0
  %1002 = vmatprep.subr.mxu0 0.0
  %1003 = vmatpush2.msra.mxu0 0.0
  %1004 = vmatprep.subr.mxu0 0.0
  %1005 = vmatpush2.msra.mxu0 0.0
  %1006 = vmatprep.subr.mxu0 0.0
  %1007 = vmatpush2.msra.mxu0 0.0
  %1008 = vmatprep.subr.mxu0 0.0
  %1009 = vmatpush2.msra.mxu0 0.0
  %1010 = vmatprep.subr.mxu0 0.0
  %1011 = vmatpush2.msra.mxu0 0.0
  %1012 = vmatprep.mubr.f32.mxu0 0.0
  %1013 = vmatmul.mubr.f32.gmra.mxu0 %v946
  %v1014 = vpop.f32.mrf.mxu0
  %v1015 = vadd.f32 0.0, %v1014
  %v1016 = vpop.f32.mrf.mxu0
  %v1017 = vadd.f32 0.0, %v1016
  %1018 = vdwg.mxu0
  %v1020 = vsel %vm178, %v943, 0
  %1022 = vmatprep.subr.mxu0 0.0
  %1023 = vmatpush1.msra.mxu0 0.0
  %1024 = vmatprep.subr.mxu0 0.0
  %1025 = vmatpush1.msra.mxu0 0.0
  %1026 = vmatprep.subr.mxu0 0.0
  %1027 = vmatpush1.msra.mxu0 0.0
  %1028 = vmatprep.subr.mxu0 0.0
  %1029 = vmatpush1.msra.mxu0 0.0
  %1030 = vmatprep.subr.mxu0 0.0
  %1031 = vmatpush1.msra.mxu0 0.0
  %1032 = vmatprep.subr.mxu0 0.0
  %1033 = vmatpush1.msra.mxu0 0.0
  %1034 = vmatprep.subr.mxu0 0.0
  %1035 = vmatpush1.msra.mxu0 0.0
  %1036 = vmatprep.subr.mxu0 0.0
  %1037 = vmatpush1.msra.mxu0 0.0
  %1038 = vmatprep.subr.mxu0 0.0
  %1039 = vmatpush1.msra.mxu0 0.0
  %1040 = vmatprep.subr.mxu0 0.0
  %1041 = vmatpush1.msra.mxu0 0.0
  %1042 = vmatprep.subr.mxu0 0.0
  %1043 = vmatpush1.msra.mxu0 0.0
  %1044 = vmatprep.subr.mxu0 0.0
  %1045 = vmatpush1.msra.mxu0 0.0
  %1046 = vmatprep.subr.mxu0 0.0
  %1047 = vmatpush1.msra.mxu0 0.0
  %1048 = vmatprep.subr.mxu0 0.0
  %1049 = vmatpush1.msra.mxu0 0.0
  %1050 = vmatprep.subr.mxu0 0.0
  %1051 = vmatpush1.msra.mxu0 0.0
  %1052 = vmatprep.subr.mxu0 %v81
  %1053 = vmatpush1.msra.mxu0 %v80
  %1054 = vmatprep.subr.mxu0 0.0
  %1055 = vmatpush2.msra.mxu0 0.0
  %1056 = vmatprep.subr.mxu0 0.0
  %1057 = vmatpush2.msra.mxu0 0.0
  %1058 = vmatprep.subr.mxu0 0.0
  %1059 = vmatpush2.msra.mxu0 0.0
  %1060 = vmatprep.subr.mxu0 0.0
  %1061 = vmatpush2.msra.mxu0 0.0
  %1062 = vmatprep.subr.mxu0 0.0
  %1063 = vmatpush2.msra.mxu0 0.0
  %1064 = vmatprep.subr.mxu0 0.0
  %1065 = vmatpush2.msra.mxu0 0.0
  %1066 = vmatprep.subr.mxu0 0.0
  %1067 = vmatpush2.msra.mxu0 0.0
  %1068 = vmatprep.subr.mxu0 0.0
  %1069 = vmatpush2.msra.mxu0 0.0
  %1070 = vmatprep.subr.mxu0 0.0
  %1071 = vmatpush2.msra.mxu0 0.0
  %1072 = vmatprep.subr.mxu0 0.0
  %1073 = vmatpush2.msra.mxu0 0.0
  %1074 = vmatprep.subr.mxu0 0.0
  %1075 = vmatpush2.msra.mxu0 0.0
  %1076 = vmatprep.subr.mxu0 0.0
  %1077 = vmatpush2.msra.mxu0 0.0
  %1078 = vmatprep.subr.mxu0 0.0
  %1079 = vmatpush2.msra.mxu0 0.0
  %1080 = vmatprep.subr.mxu0 0.0
  %1081 = vmatpush2.msra.mxu0 0.0
  %1082 = vmatprep.subr.mxu0 0.0
  %1083 = vmatpush2.msra.mxu0 0.0
  %1084 = vmatprep.subr.mxu0 0.0
  %1085 = vmatpush2.msra.mxu0 0.0
  %1086 = vmatprep.mubr.f32.mxu0 0.0
  %1087 = vmatmul.mubr.f32.gmra.mxu0 %v1020
  %v1088 = vpop.f32.mrf.mxu0
  %v1089 = vadd.f32 %v1015, %v1088
  %v1090 = vpop.f32.mrf.mxu0
  %v1091 = vadd.f32 %v1017, %v1090
  %1092 = vdwg.mxu0
  %v1093 = vld [vmem:[%s16] sm:$0xf]
  %1095 = vset.pattern.permute.xlu0 0
  %1096 = vperm.xlu0 %1095, %v1093
  %v1097 = vpop.permute.xlu0 %1096
  %v1099 = vadd.f32 %v1089, %v1097
  %v1100 = vadd.f32 %v1091, %v1097
  %v1101 = vadd.f32 %v941, %v1099
  %v1102 = vadd.f32 %v942, %v1100
  %v1103 = vmul.f32 %v1101, %v169
  %v1104 = vmul.f32 %v1102, %v173
  %v1105 = vld [vmem:[%s17] sm:$0xf]
  %v1106 = vld [vmem:[%s18] sm:$0xf]
  %v1107 = vld [vmem:[%s19] sm:$0xff]
  %v1108 = vld [vmem:[%s19 + $0x8] sm:$0xff]
  %v1109 = vld [vmem:[%s19 + $0x10] sm:$0xff]
  %v1110 = vld [vmem:[%s19 + $0x18] sm:$0xff]
  %v1111 = vld [vmem:[%s19 + $0x20] sm:$0xff]
  %v1112 = vld [vmem:[%s19 + $0x28] sm:$0xff]
  %v1113 = vld [vmem:[%s19 + $0x30] sm:$0xff]
  %v1114 = vld [vmem:[%s19 + $0x38] sm:$0xff]
  %v1115 = vld [vmem:[%s19 + $0x40] sm:$0xff]
  %v1116 = vld [vmem:[%s20] sm:$0xf]
  %v1117 = vld [vmem:[%s21] sm:$0xf]
  %v1118 = vld [vmem:[%s22] sm:$0xf]
  %v1119 = vld [vmem:[%s23] sm:$0xff]
  %v1120 = vld [vmem:[%s23 + $0x8] sm:$0xff]
  %v1121 = vld [vmem:[%s23 + $0x10] sm:$0xff]
  %v1122 = vld [vmem:[%s23 + $0x18] sm:$0xff]
  %v1123 = vld [vmem:[%s23 + $0x20] sm:$0xff]
  %v1124 = vld [vmem:[%s23 + $0x28] sm:$0xff]
  %v1125 = vld [vmem:[%s23 + $0x30] sm:$0xff]
  %v1126 = vld [vmem:[%s23 + $0x38] sm:$0xff]
  %v1127 = vld [vmem:[%s23 + $0x40] sm:$0xff]
  %v1128 = vld [vmem:[%s24] sm:$0xf]
  %v1129 = vsel %vm667, %v1103, 0.0
  %v1130 = vsel %vm667, %v1104, 0.0
  %v1131 = vadd.f32 %v1129, %v1130
  %1132 = vadd.xlane.f32.xlu0 %v1131
  %v1133 = vpop.xlane.xlu0 %1132
  %v1134 = vmul.f32 %v1133, 0.0078125
  %v1135 = vmul.f32 %v1103, %v1103
  %v1136 = vmul.f32 %v1104, %v1104
  %v1137 = vsel %vm667, %v1135, 0.0
  %v1138 = vsel %vm667, %v1136, 0.0
  %v1139 = vadd.f32 %v1137, %v1138
  %1140 = vadd.xlane.f32.xlu0 %v1139
  %v1141 = vpop.xlane.xlu0 %1140
  %v1142 = vmul.f32 %v1141, 0.0078125
  %v1143 = vmul.f32 %v1134, %v1134
  %v1144 = vsub.f32 %v1142, %v1143
  %v1145 = vadd.f32 %v1144, 1e-05
  %v1146 = vrsqrt.pop %v1145
  %v1147 = vmul.f32 %v1105, %v1146
  %v1148 = vsub.f32 %v1103, %v1134
  %v1149 = vsub.f32 %v1104, %v1134
  %1151 = vset.pattern.permute.xlu0 0
  %1152 = vperm.xlu0 %1151, %v1147
  %v1153 = vpop.permute.xlu0 %1152
  %v1155 = vmul.f32 %v1148, %v1153
  %v1156 = vmul.f32 %v1149, %v1153
  %1158 = vset.pattern.permute.xlu0 0
  %1159 = vperm.xlu0 %1158, %v1106
  %v1160 = vpop.permute.xlu0 %1159
  %v1162 = vadd.f32 %v1155, %v1160
  %v1163 = vadd.f32 %v1156, %v1160
  %v1164 = vsub.f32 0.0, %v1162
  %v1165 = vsub.f32 0.0, %v1163
  %v1166 = vmul.f32 %v1164, 1.442695
  %v1167 = vpow.pop %v1166
  %v1168 = vmul.f32 %v1165, 1.442695
  %v1169 = vpow.pop %v1168
  %v1170 = vadd.f32 %v1167, 1.0
  %v1171 = vadd.f32 %v1169, 1.0
  %v1172 = vrcp.pop %v1170
  %v1173 = vmul.f32 1.0, %v1172
  %v1174 = vrcp.pop %v1171
  %v1175 = vmul.f32 1.0, %v1174
  %v1176 = vmul.f32 %v1162, %v1173
  %v1177 = vmul.f32 %v1163, %v1175
  %v1178 = vmul.f32 %v1176, %v169
  %v1179 = vmul.f32 %v1177, %v173
  %v1181 = vsel %vm719, %v1107, 0
  %v1184 = vsel %vm719, %v1108, 0
  %v1187 = vsel %vm719, %v1109, 0
  %v1190 = vsel %vm719, %v1110, 0
  %v1193 = vsel %vm719, %v1111, 0
  %v1196 = vsel %vm719, %v1112, 0
  %v1199 = vsel %vm719, %v1113, 0
  %v1202 = vsel %vm719, %v1114, 0
  %v1205 = vsel %vm719, %v1115, 0
  %v1208 = vsel %vm667, %v1178, 0
  %v1211 = vsel %vm667, %v1179, 0
  %1213 = vmatprep.subr.mxu0 0.0
  %1214 = vmatpush1.msra.mxu0 0.0
  %1215 = vmatprep.subr.mxu0 0.0
  %1216 = vmatpush1.msra.mxu0 0.0
  %1217 = vmatprep.subr.mxu0 0.0
  %1218 = vmatpush1.msra.mxu0 0.0
  %1219 = vmatprep.subr.mxu0 0.0
  %1220 = vmatpush1.msra.mxu0 0.0
  %1221 = vmatprep.subr.mxu0 0.0
  %1222 = vmatpush1.msra.mxu0 0.0
  %1223 = vmatprep.subr.mxu0 0.0
  %1224 = vmatpush1.msra.mxu0 0.0
  %1225 = vmatprep.subr.mxu0 0.0
  %1226 = vmatpush1.msra.mxu0 0.0
  %1227 = vmatprep.subr.mxu0 0.0
  %1228 = vmatpush1.msra.mxu0 0.0
  %1229 = vmatprep.subr.mxu0 0.0
  %1230 = vmatpush1.msra.mxu0 0.0
  %1231 = vmatprep.subr.mxu0 0.0
  %1232 = vmatpush1.msra.mxu0 0.0
  %1233 = vmatprep.subr.mxu0 0.0
  %1234 = vmatpush1.msra.mxu0 0.0
  %1235 = vmatprep.subr.mxu0 0.0
  %1236 = vmatpush1.msra.mxu0 0.0
  %1237 = vmatprep.subr.mxu0 0.0
  %1238 = vmatpush1.msra.mxu0 0.0
  %1239 = vmatprep.subr.mxu0 0.0
  %1240 = vmatpush1.msra.mxu0 0.0
  %1241 = vmatprep.subr.mxu0 0.0
  %1242 = vmatpush1.msra.mxu0 0.0
  %1243 = vmatprep.subr.mxu0 %v1211
  %1244 = vmatpush1.msra.mxu0 %v1208
  %1245 = vmatprep.subr.mxu0 0.0
  %1246 = vmatpush2.msra.mxu0 0.0
  %1247 = vmatprep.subr.mxu0 0.0
  %1248 = vmatpush2.msra.mxu0 0.0
  %1249 = vmatprep.subr.mxu0 0.0
  %1250 = vmatpush2.msra.mxu0 0.0
  %1251 = vmatprep.subr.mxu0 0.0
  %1252 = vmatpush2.msra.mxu0 0.0
  %1253 = vmatprep.subr.mxu0 0.0
  %1254 = vmatpush2.msra.mxu0 0.0
  %1255 = vmatprep.subr.mxu0 0.0
  %1256 = vmatpush2.msra.mxu0 0.0
  %1257 = vmatprep.subr.mxu0 0.0
  %1258 = vmatpush2.msra.mxu0 0.0
  %1259 = vmatprep.subr.mxu0 0.0
  %1260 = vmatpush2.msra.mxu0 0.0
  %1261 = vmatprep.subr.mxu0 0.0
  %1262 = vmatpush2.msra.mxu0 0.0
  %1263 = vmatprep.subr.mxu0 0.0
  %1264 = vmatpush2.msra.mxu0 0.0
  %1265 = vmatprep.subr.mxu0 0.0
  %1266 = vmatpush2.msra.mxu0 0.0
  %1267 = vmatprep.subr.mxu0 0.0
  %1268 = vmatpush2.msra.mxu0 0.0
  %1269 = vmatprep.subr.mxu0 0.0
  %1270 = vmatpush2.msra.mxu0 0.0
  %1271 = vmatprep.subr.mxu0 0.0
  %1272 = vmatpush2.msra.mxu0 0.0
  %1273 = vmatprep.subr.mxu0 0.0
  %1274 = vmatpush2.msra.mxu0 0.0
  %1275 = vmatprep.subr.mxu0 0.0
  %1276 = vmatpush2.msra.mxu0 0.0
  %1277 = vmatprep.mubr.f32.mxu0 0.0
  %1278 = vmatmul.mubr.f32.gmra.mxu0 %v1181
  %v1279 = vpop.f32.mrf.mxu0
  %v1280 = vadd.f32 0.0, %v1279
  %v1281 = vpop.f32.mrf.mxu0
  %v1282 = vadd.f32 0.0, %v1281
  %1283 = vmatprep.mubr.f32.mxu0 0.0
  %1284 = vmatmul.mubr.f32.gmra.mxu0 %v1184
  %v1285 = vpop.f32.mrf.mxu0
  %v1286 = vadd.f32 0.0, %v1285
  %v1287 = vpop.f32.mrf.mxu0
  %v1288 = vadd.f32 0.0, %v1287
  %1289 = vmatprep.mubr.f32.mxu0 0.0
  %1290 = vmatmul.mubr.f32.gmra.mxu0 %v1187
  %v1291 = vpop.f32.mrf.mxu0
  %v1292 = vadd.f32 0.0, %v1291
  %v1293 = vpop.f32.mrf.mxu0
  %v1294 = vadd.f32 0.0, %v1293
  %1295 = vmatprep.mubr.f32.mxu0 0.0
  %1296 = vmatmul.mubr.f32.gmra.mxu0 %v1190
  %v1297 = vpop.f32.mrf.mxu0
  %v1298 = vadd.f32 0.0, %v1297
  %v1299 = vpop.f32.mrf.mxu0
  %v1300 = vadd.f32 0.0, %v1299
  %1301 = vmatprep.mubr.f32.mxu0 0.0
  %1302 = vmatmul.mubr.f32.gmra.mxu0 %v1193
  %v1303 = vpop.f32.mrf.mxu0
  %v1304 = vadd.f32 0.0, %v1303
  %v1305 = vpop.f32.mrf.mxu0
  %v1306 = vadd.f32 0.0, %v1305
  %1307 = vmatprep.mubr.f32.mxu0 0.0
  %1308 = vmatmul.mubr.f32.gmra.mxu0 %v1196
  %v1309 = vpop.f32.mrf.mxu0
  %v1310 = vadd.f32 0.0, %v1309
  %v1311 = vpop.f32.mrf.mxu0
  %v1312 = vadd.f32 0.0, %v1311
  %1313 = vmatprep.mubr.f32.mxu0 0.0
  %1314 = vmatmul.mubr.f32.gmra.mxu0 %v1199
  %v1315 = vpop.f32.mrf.mxu0
  %v1316 = vadd.f32 0.0, %v1315
  %v1317 = vpop.f32.mrf.mxu0
  %v1318 = vadd.f32 0.0, %v1317
  %1319 = vmatprep.mubr.f32.mxu0 0.0
  %1320 = vmatmul.mubr.f32.gmra.mxu0 %v1202
  %v1321 = vpop.f32.mrf.mxu0
  %v1322 = vadd.f32 0.0, %v1321
  %v1323 = vpop.f32.mrf.mxu0
  %v1324 = vadd.f32 0.0, %v1323
  %1325 = vmatprep.mubr.f32.mxu0 0.0
  %1326 = vmatmul.mubr.f32.gmra.mxu0 %v1205
  %v1327 = vpop.f32.mrf.mxu0
  %v1328 = vadd.f32 0.0, %v1327
  %v1329 = vpop.f32.mrf.mxu0
  %v1330 = vadd.f32 0.0, %v1329
  %1331 = vdwg.mxu0
  %1332 = vrot.lane.b32.xlu0 %v1280, 11
  %v1333 = vpop.permute.xlu0 %1332
  %1334 = vrot.lane.b32.xlu0 %v1282, 11
  %v1335 = vpop.permute.xlu0 %1334
  %v1336 = vsel %vm331, %v1333, %v1335
  %v1337 = vsel %vm331, %v1335, %v1333
  %1338 = vrot.lane.b32.xlu0 %v1286, 10
  %v1339 = vpop.permute.xlu0 %1338
  %1340 = vrot.lane.b32.xlu0 %v1288, 10
  %v1341 = vpop.permute.xlu0 %1340
  %v1342 = vsel %vm338, %v1339, %v1341
  %v1343 = vsel %vm338, %v1341, %v1339
  %v1344 = vadd.f32 %v1337, %v1343
  %v1345 = vadd.f32 %v1336, %v1342
  %1346 = vrot.lane.b32.xlu0 %v1292, 9
  %v1347 = vpop.permute.xlu0 %1346
  %1348 = vrot.lane.b32.xlu0 %v1294, 9
  %v1349 = vpop.permute.xlu0 %1348
  %v1350 = vsel %vm347, %v1347, %v1349
  %v1351 = vsel %vm347, %v1349, %v1347
  %v1352 = vadd.f32 %v1344, %v1351
  %v1353 = vadd.f32 %v1345, %v1350
  %1354 = vrot.lane.b32.xlu0 %v1298, 1
  %v1355 = vpop.permute.xlu0 %1354
  %1356 = vrot.lane.b32.xlu0 %v1300, 1
  %v1357 = vpop.permute.xlu0 %1356
  %v1358 = vsel %vm356, %v1355, %v1357
  %v1359 = vsel %vm356, %v1357, %v1355
  %v1360 = vadd.f32 %v1352, %v1359
  %v1361 = vadd.f32 %v1353, %v1358
  %v1362 = vadd.f32 %v1360, %v1304
  %v1363 = vadd.f32 %v1361, %v1306
  %1364 = vrot.lane.b32.xlu0 %v1310, 127
  %v1365 = vpop.permute.xlu0 %1364
  %1366 = vrot.lane.b32.xlu0 %v1312, 127
  %v1367 = vpop.permute.xlu0 %1366
  %v1368 = vsel %vm367, %v1365, %v1367
  %v1369 = vsel %vm367, %v1367, %v1365
  %v1370 = vadd.f32 %v1362, %v1368
  %v1371 = vadd.f32 %v1363, %v1369
  %1372 = vrot.lane.b32.xlu0 %v1316, 119
  %v1373 = vpop.permute.xlu0 %1372
  %1374 = vrot.lane.b32.xlu0 %v1318, 119
  %v1375 = vpop.permute.xlu0 %1374
  %v1376 = vsel %vm376, %v1373, %v1375
  %v1377 = vsel %vm376, %v1375, %v1373
  %v1378 = vadd.f32 %v1370, %v1376
  %v1379 = vadd.f32 %v1371, %v1377
  %1380 = vrot.lane.b32.xlu0 %v1322, 118
  %v1381 = vpop.permute.xlu0 %1380
  %1382 = vrot.lane.b32.xlu0 %v1324, 118
  %v1383 = vpop.permute.xlu0 %1382
  %v1384 = vsel %vm385, %v1381, %v1383
  %v1385 = vsel %vm385, %v1383, %v1381
  %v1386 = vadd.f32 %v1378, %v1384
  %v1387 = vadd.f32 %v1379, %v1385
  %1388 = vrot.lane.b32.xlu0 %v1328, 117
  %v1389 = vpop.permute.xlu0 %1388
  %1390 = vrot.lane.b32.xlu0 %v1330, 117
  %v1391 = vpop.permute.xlu0 %1390
  %v1392 = vsel %vm394, %v1389, %v1391
  %v1393 = vsel %vm394, %v1391, %v1389
  %v1394 = vadd.f32 %v1386, %v1392
  %v1395 = vadd.f32 %v1387, %v1393
  %1397 = vset.pattern.permute.xlu0 0
  %1398 = vperm.xlu0 %1397, %v1116
  %v1399 = vpop.permute.xlu0 %1398
  %v1401 = vadd.f32 %v1394, %v1399
  %v1402 = vadd.f32 %v1395, %v1399
  %v1403 = vmul.f32 %v1401, %v169
  %v1404 = vmul.f32 %v1402, %v173
  %v1405 = vsel %vm667, %v1403, 0.0
  %v1406 = vsel %vm667, %v1404, 0.0
  %v1407 = vadd.f32 %v1405, %v1406
  %1408 = vadd.xlane.f32.xlu0 %v1407
  %v1409 = vpop.xlane.xlu0 %1408
  %v1410 = vmul.f32 %v1409, 0.0078125
  %v1411 = vmul.f32 %v1403, %v1403
  %v1412 = vmul.f32 %v1404, %v1404
  %v1413 = vsel %vm667, %v1411, 0.0
  %v1414 = vsel %vm667, %v1412, 0.0
  %v1415 = vadd.f32 %v1413, %v1414
  %1416 = vadd.xlane.f32.xlu0 %v1415
  %v1417 = vpop.xlane.xlu0 %1416
  %v1418 = vmul.f32 %v1417, 0.0078125
  %v1419 = vmul.f32 %v1410, %v1410
  %v1420 = vsub.f32 %v1418, %v1419
  %v1421 = vadd.f32 %v1420, 1e-05
  %v1422 = vrsqrt.pop %v1421
  %v1423 = vmul.f32 %v1117, %v1422
  %v1424 = vsub.f32 %v1403, %v1410
  %v1425 = vsub.f32 %v1404, %v1410
  %1427 = vset.pattern.permute.xlu0 0
  %1428 = vperm.xlu0 %1427, %v1423
  %v1429 = vpop.permute.xlu0 %1428
  %v1431 = vmul.f32 %v1424, %v1429
  %v1432 = vmul.f32 %v1425, %v1429
  %1434 = vset.pattern.permute.xlu0 0
  %1435 = vperm.xlu0 %1434, %v1118
  %v1436 = vpop.permute.xlu0 %1435
  %v1438 = vadd.f32 %v1431, %v1436
  %v1439 = vadd.f32 %v1432, %v1436
  %v1440 = vsub.f32 0.0, %v1438
  %v1441 = vsub.f32 0.0, %v1439
  %v1442 = vmul.f32 %v1440, 1.442695
  %v1443 = vpow.pop %v1442
  %v1444 = vmul.f32 %v1441, 1.442695
  %v1445 = vpow.pop %v1444
  %v1446 = vadd.f32 %v1443, 1.0
  %v1447 = vadd.f32 %v1445, 1.0
  %v1448 = vrcp.pop %v1446
  %v1449 = vmul.f32 1.0, %v1448
  %v1450 = vrcp.pop %v1447
  %v1451 = vmul.f32 1.0, %v1450
  %v1452 = vmul.f32 %v1438, %v1449
  %v1453 = vmul.f32 %v1439, %v1451
  %v1454 = vmul.f32 %v1452, %v169
  %v1455 = vmul.f32 %v1453, %v173
  %v1457 = vsel %vm719, %v1119, 0
  %v1460 = vsel %vm719, %v1120, 0
  %v1463 = vsel %vm719, %v1121, 0
  %v1466 = vsel %vm719, %v1122, 0
  %v1469 = vsel %vm719, %v1123, 0
  %v1472 = vsel %vm719, %v1124, 0
  %v1475 = vsel %vm719, %v1125, 0
  %v1478 = vsel %vm719, %v1126, 0
  %v1481 = vsel %vm719, %v1127, 0
  %v1484 = vsel %vm667, %v1454, 0
  %v1487 = vsel %vm667, %v1455, 0
  %1489 = vmatprep.subr.mxu0 0.0
  %1490 = vmatpush1.msra.mxu0 0.0
  %1491 = vmatprep.subr.mxu0 0.0
  %1492 = vmatpush1.msra.mxu0 0.0
  %1493 = vmatprep.subr.mxu0 0.0
  %1494 = vmatpush1.msra.mxu0 0.0
  %1495 = vmatprep.subr.mxu0 0.0
  %1496 = vmatpush1.msra.mxu0 0.0
  %1497 = vmatprep.subr.mxu0 0.0
  %1498 = vmatpush1.msra.mxu0 0.0
  %1499 = vmatprep.subr.mxu0 0.0
  %1500 = vmatpush1.msra.mxu0 0.0
  %1501 = vmatprep.subr.mxu0 0.0
  %1502 = vmatpush1.msra.mxu0 0.0
  %1503 = vmatprep.subr.mxu0 0.0
  %1504 = vmatpush1.msra.mxu0 0.0
  %1505 = vmatprep.subr.mxu0 0.0
  %1506 = vmatpush1.msra.mxu0 0.0
  %1507 = vmatprep.subr.mxu0 0.0
  %1508 = vmatpush1.msra.mxu0 0.0
  %1509 = vmatprep.subr.mxu0 0.0
  %1510 = vmatpush1.msra.mxu0 0.0
  %1511 = vmatprep.subr.mxu0 0.0
  %1512 = vmatpush1.msra.mxu0 0.0
  %1513 = vmatprep.subr.mxu0 0.0
  %1514 = vmatpush1.msra.mxu0 0.0
  %1515 = vmatprep.subr.mxu0 0.0
  %1516 = vmatpush1.msra.mxu0 0.0
  %1517 = vmatprep.subr.mxu0 0.0
  %1518 = vmatpush1.msra.mxu0 0.0
  %1519 = vmatprep.subr.mxu0 %v1487
  %1520 = vmatpush1.msra.mxu0 %v1484
  %1521 = vmatprep.subr.mxu0 0.0
  %1522 = vmatpush2.msra.mxu0 0.0
  %1523 = vmatprep.subr.mxu0 0.0
  %1524 = vmatpush2.msra.mxu0 0.0
  %1525 = vmatprep.subr.mxu0 0.0
  %1526 = vmatpush2.msra.mxu0 0.0
  %1527 = vmatprep.subr.mxu0 0.0
  %1528 = vmatpush2.msra.mxu0 0.0
  %1529 = vmatprep.subr.mxu0 0.0
  %1530 = vmatpush2.msra.mxu0 0.0
  %1531 = vmatprep.subr.mxu0 0.0
  %1532 = vmatpush2.msra.mxu0 0.0
  %1533 = vmatprep.subr.mxu0 0.0
  %1534 = vmatpush2.msra.mxu0 0.0
  %1535 = vmatprep.subr.mxu0 0.0
  %1536 = vmatpush2.msra.mxu0 0.0
  %1537 = vmatprep.subr.mxu0 0.0
  %1538 = vmatpush2.msra.mxu0 0.0
  %1539 = vmatprep.subr.mxu0 0.0
  %1540 = vmatpush2.msra.mxu0 0.0
  %1541 = vmatprep.subr.mxu0 0.0
  %1542 = vmatpush2.msra.mxu0 0.0
  %1543 = vmatprep.subr.mxu0 0.0
  %1544 = vmatpush2.msra.mxu0 0.0
  %1545 = vmatprep.subr.mxu0 0.0
  %1546 = vmatpush2.msra.mxu0 0.0
  %1547 = vmatprep.subr.mxu0 0.0
  %1548 = vmatpush2.msra.mxu0 0.0
  %1549 = vmatprep.subr.mxu0 0.0
  %1550 = vmatpush2.msra.mxu0 0.0
  %1551 = vmatprep.subr.mxu0 0.0
  %1552 = vmatpush2.msra.mxu0 0.0
  %1553 = vmatprep.mubr.f32.mxu0 0.0
  %1554 = vmatmul.mubr.f32.gmra.mxu0 %v1457
  %v1555 = vpop.f32.mrf.mxu0
  %v1556 = vadd.f32 0.0, %v1555
  %v1557 = vpop.f32.mrf.mxu0
  %v1558 = vadd.f32 0.0, %v1557
  %1559 = vmatprep.mubr.f32.mxu0 0.0
  %1560 = vmatmul.mubr.f32.gmra.mxu0 %v1460
  %v1561 = vpop.f32.mrf.mxu0
  %v1562 = vadd.f32 0.0, %v1561
  %v1563 = vpop.f32.mrf.mxu0
  %v1564 = vadd.f32 0.0, %v1563
  %1565 = vmatprep.mubr.f32.mxu0 0.0
  %1566 = vmatmul.mubr.f32.gmra.mxu0 %v1463
  %v1567 = vpop.f32.mrf.mxu0
  %v1568 = vadd.f32 0.0, %v1567
  %v1569 = vpop.f32.mrf.mxu0
  %v1570 = vadd.f32 0.0, %v1569
  %1571 = vmatprep.mubr.f32.mxu0 0.0
  %1572 = vmatmul.mubr.f32.gmra.mxu0 %v1466
  %v1573 = vpop.f32.mrf.mxu0
  %v1574 = vadd.f32 0.0, %v1573
  %v1575 = vpop.f32.mrf.mxu0
  %v1576 = vadd.f32 0.0, %v1575
  %1577 = vmatprep.mubr.f32.mxu0 0.0
  %1578 = vmatmul.mubr.f32.gmra.mxu0 %v1469
  %v1579 = vpop.f32.mrf.mxu0
  %v1580 = vadd.f32 0.0, %v1579
  %v1581 = vpop.f32.mrf.mxu0
  %v1582 = vadd.f32 0.0, %v1581
  %1583 = vmatprep.mubr.f32.mxu0 0.0
  %1584 = vmatmul.mubr.f32.gmra.mxu0 %v1472
  %v1585 = vpop.f32.mrf.mxu0
  %v1586 = vadd.f32 0.0, %v1585
  %v1587 = vpop.f32.mrf.mxu0
  %v1588 = vadd.f32 0.0, %v1587
  %1589 = vmatprep.mubr.f32.mxu0 0.0
  %1590 = vmatmul.mubr.f32.gmra.mxu0 %v1475
  %v1591 = vpop.f32.mrf.mxu0
  %v1592 = vadd.f32 0.0, %v1591
  %v1593 = vpop.f32.mrf.mxu0
  %v1594 = vadd.f32 0.0, %v1593
  %1595 = vmatprep.mubr.f32.mxu0 0.0
  %1596 = vmatmul.mubr.f32.gmra.mxu0 %v1478
  %v1597 = vpop.f32.mrf.mxu0
  %v1598 = vadd.f32 0.0, %v1597
  %v1599 = vpop.f32.mrf.mxu0
  %v1600 = vadd.f32 0.0, %v1599
  %1601 = vmatprep.mubr.f32.mxu0 0.0
  %1602 = vmatmul.mubr.f32.gmra.mxu0 %v1481
  %v1603 = vpop.f32.mrf.mxu0
  %v1604 = vadd.f32 0.0, %v1603
  %v1605 = vpop.f32.mrf.mxu0
  %v1606 = vadd.f32 0.0, %v1605
  %1607 = vdwg.mxu0
  %1608 = vrot.lane.b32.xlu0 %v1556, 11
  %v1609 = vpop.permute.xlu0 %1608
  %1610 = vrot.lane.b32.xlu0 %v1558, 11
  %v1611 = vpop.permute.xlu0 %1610
  %v1612 = vsel %vm331, %v1609, %v1611
  %v1613 = vsel %vm331, %v1611, %v1609
  %1614 = vrot.lane.b32.xlu0 %v1562, 10
  %v1615 = vpop.permute.xlu0 %1614
  %1616 = vrot.lane.b32.xlu0 %v1564, 10
  %v1617 = vpop.permute.xlu0 %1616
  %v1618 = vsel %vm338, %v1615, %v1617
  %v1619 = vsel %vm338, %v1617, %v1615
  %v1620 = vadd.f32 %v1613, %v1619
  %v1621 = vadd.f32 %v1612, %v1618
  %1622 = vrot.lane.b32.xlu0 %v1568, 9
  %v1623 = vpop.permute.xlu0 %1622
  %1624 = vrot.lane.b32.xlu0 %v1570, 9
  %v1625 = vpop.permute.xlu0 %1624
  %v1626 = vsel %vm347, %v1623, %v1625
  %v1627 = vsel %vm347, %v1625, %v1623
  %v1628 = vadd.f32 %v1620, %v1627
  %v1629 = vadd.f32 %v1621, %v1626
  %1630 = vrot.lane.b32.xlu0 %v1574, 1
  %v1631 = vpop.permute.xlu0 %1630
  %1632 = vrot.lane.b32.xlu0 %v1576, 1
  %v1633 = vpop.permute.xlu0 %1632
  %v1634 = vsel %vm356, %v1631, %v1633
  %v1635 = vsel %vm356, %v1633, %v1631
  %v1636 = vadd.f32 %v1628, %v1635
  %v1637 = vadd.f32 %v1629, %v1634
  %v1638 = vadd.f32 %v1636, %v1580
  %v1639 = vadd.f32 %v1637, %v1582
  %1640 = vrot.lane.b32.xlu0 %v1586, 127
  %v1641 = vpop.permute.xlu0 %1640
  %1642 = vrot.lane.b32.xlu0 %v1588, 127
  %v1643 = vpop.permute.xlu0 %1642
  %v1644 = vsel %vm367, %v1641, %v1643
  %v1645 = vsel %vm367, %v1643, %v1641
  %v1646 = vadd.f32 %v1638, %v1644
  %v1647 = vadd.f32 %v1639, %v1645
  %1648 = vrot.lane.b32.xlu0 %v1592, 119
  %v1649 = vpop.permute.xlu0 %1648
  %1650 = vrot.lane.b32.xlu0 %v1594, 119
  %v1651 = vpop.permute.xlu0 %1650
  %v1652 = vsel %vm376, %v1649, %v1651
  %v1653 = vsel %vm376, %v1651, %v1649
  %v1654 = vadd.f32 %v1646, %v1652
  %v1655 = vadd.f32 %v1647, %v1653
  %1656 = vrot.lane.b32.xlu0 %v1598, 118
  %v1657 = vpop.permute.xlu0 %1656
  %1658 = vrot.lane.b32.xlu0 %v1600, 118
  %v1659 = vpop.permute.xlu0 %1658
  %v1660 = vsel %vm385, %v1657, %v1659
  %v1661 = vsel %vm385, %v1659, %v1657
  %v1662 = vadd.f32 %v1654, %v1660
  %v1663 = vadd.f32 %v1655, %v1661
  %1664 = vrot.lane.b32.xlu0 %v1604, 117
  %v1665 = vpop.permute.xlu0 %1664
  %1666 = vrot.lane.b32.xlu0 %v1606, 117
  %v1667 = vpop.permute.xlu0 %1666
  %v1668 = vsel %vm394, %v1665, %v1667
  %v1669 = vsel %vm394, %v1667, %v1665
  %v1670 = vadd.f32 %v1662, %v1668
  %v1671 = vadd.f32 %v1663, %v1669
  %1673 = vset.pattern.permute.xlu0 0
  %1674 = vperm.xlu0 %1673, %v1128
  %v1675 = vpop.permute.xlu0 %1674
  %v1677 = vadd.f32 %v1670, %v1675
  %v1678 = vadd.f32 %v1671, %v1675
  %v1679 = vadd.f32 %v1677, %v1103
  %v1680 = vadd.f32 %v1678, %v1104
  %v1681 = vmul.f32 %v1679, %v169
  %v1682 = vmul.f32 %v1680, %v173
  %v1685 = vcombine.low %v1681, %v1682
  %1687 = vst [vmem:[%s25] sm:$0xff] %v1685
  // Predicated region
  $region102: #{_lambda_.2} parent=0 // pred_check
    _
  $region103: #{_lambda_.2} parent=0 // pred_check_branch
    %1689 = sbr.rel (0) target = $region105
  $region104: #{_lambda_.2} parent=0 // pred_region
    _
  $region105: #{_lambda_.2} parent=0 // pred_fallthru
    _
  // Predicated region
  $region106: #{_lambda_.2} parent=0 // pred_check
    _
  $region107: #{_lambda_.2} parent=0 // pred_check_branch
    %1691 = sbr.rel (0) target = $region109
  $region108: #{_lambda_.2} parent=0 // pred_region
    _
  $region109: #{_lambda_.2} parent=0 // pred_fallthru
    _

// kernel: _lambda_.3
$region0: #{_lambda_.3}
  #allocation0 [shape = 'u32[]', space=smem, size = 0x4, offset = 0x4, fixed_abs, tag = 'smem constant byte address 0x4 - core index']
  #allocation1 [shape = 'u32[144,128]{1,0:T(1,128)}', space=vmem, size = 0x12000, scoped, tag = 'internal scratch']
  %s0 = inlined_call_operand.vmem [shape: f32[4,768], index: 0, kind: input, shape index: {}]
  %s1 = inlined_call_operand.vmem [shape: f32[4,768], index: 1, kind: input, shape index: {}]
  %s2 = inlined_call_operand.vmem [shape: f32[1,768], index: 2, kind: input, shape index: {}]
  %s3 = inlined_call_operand.vmem [shape: f32[72,4], index: 3, kind: input, shape index: {}]
  %s4 = inlined_call_operand.vmem [shape: f32[4,1], index: 4, kind: input, shape index: {}]
  %s5 = inlined_call_operand.vmem [shape: f32[4,1], index: 5, kind: input, shape index: {}, may-alias: {5,7,12,19,23}]
  %s6 = inlined_call_operand.vmem [shape: f32[4,1], index: 6, kind: input, shape index: {}, may-alias: {6,8,13,20,24}]
  %s7 = inlined_call_operand.vmem [shape: f32[4,1], index: 7, kind: input, shape index: {}, may-alias: {5,7,12,19,23}]
  %s8 = inlined_call_operand.vmem [shape: f32[4,1], index: 8, kind: input, shape index: {}, may-alias: {6,8,13,20,24}]
  %s9 = inlined_call_operand.vmem [shape: f32[72,4], index: 9, kind: input, shape index: {}]
  %s10 = inlined_call_operand.vmem [shape: f32[72,4], index: 10, kind: input, shape index: {}]
  %s11 = inlined_call_operand.vmem [shape: f32[4,1], index: 11, kind: input, shape index: {}]
  %s12 = inlined_call_operand.vmem [shape: f32[4,1], index: 12, kind: input, shape index: {}, may-alias: {5,7,12,19,23}]
  %s13 = inlined_call_operand.vmem [shape: f32[4,1], index: 13, kind: input, shape index: {}, may-alias: {6,8,13,20,24}]
  %s14 = inlined_call_operand.vmem [shape: f32[72,4], index: 14, kind: input, shape index: {}]
  %s15 = inlined_call_operand.vmem [shape: f32[4,1], index: 15, kind: input, shape index: {}]
  %s16 = inlined_call_operand.vmem [shape: f32[4,4], index: 16, kind: input, shape index: {}]
  %s17 = inlined_call_operand.vmem [shape: f32[4,4], index: 17, kind: input, shape index: {}]
  %s18 = inlined_call_operand.vmem [shape: f32[4,1], index: 18, kind: input, shape index: {}]
  %s19 = inlined_call_operand.vmem [shape: f32[4,1], index: 19, kind: input, shape index: {}, may-alias: {5,7,12,19,23}]
  %s20 = inlined_call_operand.vmem [shape: f32[4,1], index: 20, kind: input, shape index: {}, may-alias: {6,8,13,20,24}]
  %s21 = inlined_call_operand.vmem [shape: f32[72,4], index: 21, kind: input, shape index: {}]
  %s22 = inlined_call_operand.vmem [shape: f32[4,1], index: 22, kind: input, shape index: {}]
  %s23 = inlined_call_operand.vmem [shape: f32[4,1], index: 23, kind: input, shape index: {}, may-alias: {5,7,12,19,23}]
  %s24 = inlined_call_operand.vmem [shape: f32[4,1], index: 24, kind: input, shape index: {}, may-alias: {6,8,13,20,24}]
  %s25 = inlined_call_operand.vmem [shape: f32[72,4], index: 25, kind: input, shape index: {}]
  %s26 = inlined_call_operand.vmem [shape: f32[4,1], index: 26, kind: input, shape index: {}]
  %s27 = inlined_call_operand.vmem [shape: f32[4,768], index: 27, kind: output, shape index: {}]
  %s28 = sld [smem:[#allocation0]]
  $region118: #{_lambda_.3} parent=0
    _
  %s30 = ssub.s32 1, %s28
  %s31 = scalar_select 0, %s30, %s28
  // Predicated region
  $region2: #{_lambda_.3} parent=0 // pred_check
    _
  $region3: #{_lambda_.3} parent=0 // pred_check_branch
    %33 = sbr.rel (0) target = $region5
  $region4: #{_lambda_.3} parent=0 // pred_region
    _
  $region5: #{_lambda_.3} parent=0 // pred_fallthru
    _
  // Predicated region
  $region6: #{_lambda_.3} parent=0 // pred_check
    _
  $region7: #{_lambda_.3} parent=0 // pred_check_branch
    %35 = sbr.rel (0) target = $region9
  $region8: #{_lambda_.3} parent=0 // pred_region
    _
  $region9: #{_lambda_.3} parent=0 // pred_fallthru
    _
  // Predicated region
  $region10: #{_lambda_.3} parent=0 // pred_check
    _
  $region11: #{_lambda_.3} parent=0 // pred_check_branch
    %37 = sbr.rel (0) target = $region13
  $region12: #{_lambda_.3} parent=0 // pred_region
    _
  $region13: #{_lambda_.3} parent=0 // pred_fallthru
    _
  // Predicated region
  $region14: #{_lambda_.3} parent=0 // pred_check
    _
  $region15: #{_lambda_.3} parent=0 // pred_check_branch
    %39 = sbr.rel (0) target = $region17
  $region16: #{_lambda_.3} parent=0 // pred_region
    _
  $region17: #{_lambda_.3} parent=0 // pred_fallthru
    _
  // Predicated region
  $region18: #{_lambda_.3} parent=0 // pred_check
    _
  $region19: #{_lambda_.3} parent=0 // pred_check_branch
    %41 = sbr.rel (0) target = $region21
  $region20: #{_lambda_.3} parent=0 // pred_region
    _
  $region21: #{_lambda_.3} parent=0 // pred_fallthru
    _
  // Predicated region
  $region22: #{_lambda_.3} parent=0 // pred_check
    _
  $region23: #{_lambda_.3} parent=0 // pred_check_branch
    %43 = sbr.rel (0) target = $region25
  $region24: #{_lambda_.3} parent=0 // pred_region
    _
  $region25: #{_lambda_.3} parent=0 // pred_fallthru
    _
  // Predicated region
  $region26: #{_lambda_.3} parent=0 // pred_check
    _
  $region27: #{_lambda_.3} parent=0 // pred_check_branch
    %45 = sbr.rel (0) target = $region29
  $region28: #{_lambda_.3} parent=0 // pred_region
    _
  $region29: #{_lambda_.3} parent=0 // pred_fallthru
    _
  // Predicated region
  $region30: #{_lambda_.3} parent=0 // pred_check
    _
  $region31: #{_lambda_.3} parent=0 // pred_check_branch
    %47 = sbr.rel (0) target = $region33
  $region32: #{_lambda_.3} parent=0 // pred_region
    _
  $region33: #{_lambda_.3} parent=0 // pred_fallthru
    _
  // Predicated region
  $region34: #{_lambda_.3} parent=0 // pred_check
    _
  $region35: #{_lambda_.3} parent=0 // pred_check_branch
    %49 = sbr.rel (0) target = $region37
  $region36: #{_lambda_.3} parent=0 // pred_region
    _
  $region37: #{_lambda_.3} parent=0 // pred_fallthru
    _
  // Predicated region
  $region38: #{_lambda_.3} parent=0 // pred_check
    _
  $region39: #{_lambda_.3} parent=0 // pred_check_branch
    %51 = sbr.rel (0) target = $region41
  $region40: #{_lambda_.3} parent=0 // pred_region
    _
  $region41: #{_lambda_.3} parent=0 // pred_fallthru
    _
  // Predicated region
  $region42: #{_lambda_.3} parent=0 // pred_check
    _
  $region43: #{_lambda_.3} parent=0 // pred_check_branch
    %53 = sbr.rel (0) target = $region45
  $region44: #{_lambda_.3} parent=0 // pred_region
    _
  $region45: #{_lambda_.3} parent=0 // pred_fallthru
    _
  // Predicated region
  $region46: #{_lambda_.3} parent=0 // pred_check
    _
  $region47: #{_lambda_.3} parent=0 // pred_check_branch
    %55 = sbr.rel (0) target = $region49
  $region48: #{_lambda_.3} parent=0 // pred_region
    _
  $region49: #{_lambda_.3} parent=0 // pred_fallthru
    _
  // Predicated region
  $region50: #{_lambda_.3} parent=0 // pred_check
    _
  $region51: #{_lambda_.3} parent=0 // pred_check_branch
    %57 = sbr.rel (0) target = $region53
  $region52: #{_lambda_.3} parent=0 // pred_region
    _
  $region53: #{_lambda_.3} parent=0 // pred_fallthru
    _
  // Predicated region
  $region54: #{_lambda_.3} parent=0 // pred_check
    _
  $region55: #{_lambda_.3} parent=0 // pred_check_branch
    %59 = sbr.rel (0) target = $region57
  $region56: #{_lambda_.3} parent=0 // pred_region
    _
  $region57: #{_lambda_.3} parent=0 // pred_fallthru
    _
  // Predicated region
  $region58: #{_lambda_.3} parent=0 // pred_check
    _
  $region59: #{_lambda_.3} parent=0 // pred_check_branch
    %61 = sbr.rel (0) target = $region61
  $region60: #{_lambda_.3} parent=0 // pred_region
    _
  $region61: #{_lambda_.3} parent=0 // pred_fallthru
    _
  // Predicated region
  $region62: #{_lambda_.3} parent=0 // pred_check
    _
  $region63: #{_lambda_.3} parent=0 // pred_check_branch
    %63 = sbr.rel (0) target = $region65
  $region64: #{_lambda_.3} parent=0 // pred_region
    _
  $region65: #{_lambda_.3} parent=0 // pred_fallthru
    _
  // Predicated region
  $region66: #{_lambda_.3} parent=0 // pred_check
    _
  $region67: #{_lambda_.3} parent=0 // pred_check_branch
    %65 = sbr.rel (0) target = $region69
  $region68: #{_lambda_.3} parent=0 // pred_region
    _
  $region69: #{_lambda_.3} parent=0 // pred_fallthru
    _
  // Predicated region
  $region70: #{_lambda_.3} parent=0 // pred_check
    _
  $region71: #{_lambda_.3} parent=0 // pred_check_branch
    %67 = sbr.rel (0) target = $region73
  $region72: #{_lambda_.3} parent=0 // pred_region
    _
  $region73: #{_lambda_.3} parent=0 // pred_fallthru
    _
  // Predicated region
  $region74: #{_lambda_.3} parent=0 // pred_check
    _
  $region75: #{_lambda_.3} parent=0 // pred_check_branch
    %69 = sbr.rel (0) target = $region77
  $region76: #{_lambda_.3} parent=0 // pred_region
    _
  $region77: #{_lambda_.3} parent=0 // pred_fallthru
    _
  // Predicated region
  $region78: #{_lambda_.3} parent=0 // pred_check
    _
  $region79: #{_lambda_.3} parent=0 // pred_check_branch
    %71 = sbr.rel (0) target = $region81
  $region80: #{_lambda_.3} parent=0 // pred_region
    _
  $region81: #{_lambda_.3} parent=0 // pred_fallthru
    _
  // Predicated region
  $region82: #{_lambda_.3} parent=0 // pred_check
    _
  $region83: #{_lambda_.3} parent=0 // pred_check_branch
    %73 = sbr.rel (0) target = $region85
  $region84: #{_lambda_.3} parent=0 // pred_region
    _
  $region85: #{_lambda_.3} parent=0 // pred_fallthru
    _
  // Predicated region
  $region86: #{_lambda_.3} parent=0 // pred_check
    _
  $region87: #{_lambda_.3} parent=0 // pred_check_branch
    %75 = sbr.rel (0) target = $region89
  $region88: #{_lambda_.3} parent=0 // pred_region
    _
  $region89: #{_lambda_.3} parent=0 // pred_fallthru
    _
  // Predicated region
  $region90: #{_lambda_.3} parent=0 // pred_check
    _
  $region91: #{_lambda_.3} parent=0 // pred_check_branch
    %77 = sbr.rel (0) target = $region93
  $region92: #{_lambda_.3} parent=0 // pred_region
    _
  $region93: #{_lambda_.3} parent=0 // pred_fallthru
    _
  // Predicated region
  $region94: #{_lambda_.3} parent=0 // pred_check
    _
  $region95: #{_lambda_.3} parent=0 // pred_check_branch
    %79 = sbr.rel (0) target = $region97
  $region96: #{_lambda_.3} parent=0 // pred_region
    _
  $region97: #{_lambda_.3} parent=0 // pred_fallthru
    _
  // Predicated region
  $region98: #{_lambda_.3} parent=0 // pred_check
    _
  $region99: #{_lambda_.3} parent=0 // pred_check_branch
    %81 = sbr.rel (0) target = $region101
  $region100: #{_lambda_.3} parent=0 // pred_region
    _
  $region101: #{_lambda_.3} parent=0 // pred_fallthru
    _
  // Predicated region
  $region102: #{_lambda_.3} parent=0 // pred_check
    _
  $region103: #{_lambda_.3} parent=0 // pred_check_branch
    %83 = sbr.rel (0) target = $region105
  $region104: #{_lambda_.3} parent=0 // pred_region
    _
  $region105: #{_lambda_.3} parent=0 // pred_fallthru
    _
  // Predicated region
  $region106: #{_lambda_.3} parent=0 // pred_check
    _
  $region107: #{_lambda_.3} parent=0 // pred_check_branch
    %85 = sbr.rel (0) target = $region109
  $region108: #{_lambda_.3} parent=0 // pred_region
    _
  $region109: #{_lambda_.3} parent=0 // pred_fallthru
    _
  %v86 = vld [vmem:[%s0] sm:$0xff]
  %v87 = vld [vmem:[%s0 + $0x8] sm:$0xff]
  %v88 = vld [vmem:[%s0 + $0x10] sm:$0xff]
  %v89 = vld [vmem:[%s1] sm:$0xff]
  %v90 = vld [vmem:[%s1 + $0x8] sm:$0xff]
  %v91 = vld [vmem:[%s1 + $0x10] sm:$0xff]
  %v92 = vld [vmem:[%s2] sm:$0x3f]
  %v93 = vld [vmem:[%s3] sm:$0xff]
  %v94 = vld [vmem:[%s3 + $0x8] sm:$0xff]
  %v95 = vld [vmem:[%s3 + $0x10] sm:$0xff]
  %v96 = vld [vmem:[%s3 + $0x18] sm:$0xff]
  %v97 = vld [vmem:[%s3 + $0x20] sm:$0xff]
  %v98 = vld [vmem:[%s3 + $0x28] sm:$0xff]
  %v99 = vld [vmem:[%s3 + $0x30] sm:$0xff]
  %v100 = vld [vmem:[%s3 + $0x38] sm:$0xff]
  %v101 = vld [vmem:[%s3 + $0x40] sm:$0xff]
  %v102 = vld [vmem:[%s4] sm:$0xf]
  %v106 = vcombine.high %v86, %v86
  %v107 = vcombine.high %v87, %v87
  %v108 = vcombine.high %v88, %v88
  %vm109 = vcmask 31744
  %v111 = vsel %vm109, %v93, 0
  %v114 = vsel %vm109, %v94, 0
  %v117 = vsel %vm109, %v95, 0
  %v120 = vsel %vm109, %v96, 0
  %v123 = vsel %vm109, %v97, 0
  %v126 = vsel %vm109, %v98, 0
  %v129 = vsel %vm109, %v99, 0
  %v132 = vsel %vm109, %v100, 0
  %v135 = vsel %vm109, %v101, 0
  %vm137 = vcmask 1043456
  %v138 = vsel %vm137, %v86, 0
  %v140 = vsel %vm137, %v106, 0
  %v142 = vsel %vm137, %v87, 0
  %v144 = vsel %vm137, %v107, 0
  %v146 = vsel %vm137, %v88, 0
  %v148 = vsel %vm137, %v108, 0
  %150 = vmatprep.subr.mxu0 0.0
  %151 = vmatpush1.msra.mxu0 0.0
  %152 = vmatprep.subr.mxu0 0.0
  %153 = vmatpush1.msra.mxu0 0.0
  %154 = vmatprep.subr.mxu0 0.0
  %155 = vmatpush1.msra.mxu0 0.0
  %156 = vmatprep.subr.mxu0 0.0
  %157 = vmatpush1.msra.mxu0 0.0
  %158 = vmatprep.subr.mxu0 0.0
  %159 = vmatpush1.msra.mxu0 0.0
  %160 = vmatprep.subr.mxu0 0.0
  %161 = vmatpush1.msra.mxu0 0.0
  %162 = vmatprep.subr.mxu0 0.0
  %163 = vmatpush1.msra.mxu0 0.0
  %164 = vmatprep.subr.mxu0 0.0
  %165 = vmatpush1.msra.mxu0 0.0
  %166 = vmatprep.subr.mxu0 0.0
  %167 = vmatpush1.msra.mxu0 0.0
  %168 = vmatprep.subr.mxu0 0.0
  %169 = vmatpush1.msra.mxu0 0.0
  %170 = vmatprep.subr.mxu0 0.0
  %171 = vmatpush1.msra.mxu0 0.0
  %172 = vmatprep.subr.mxu0 0.0
  %173 = vmatpush1.msra.mxu0 0.0
  %174 = vmatprep.subr.mxu0 0.0
  %175 = vmatpush1.msra.mxu0 0.0
  %176 = vmatprep.subr.mxu0 0.0
  %177 = vmatpush1.msra.mxu0 0.0
  %178 = vmatprep.subr.mxu0 0.0
  %179 = vmatpush1.msra.mxu0 0.0
  %180 = vmatprep.subr.mxu0 %v140
  %181 = vmatpush1.msra.mxu0 %v138
  %182 = vmatprep.subr.mxu0 0.0
  %183 = vmatpush2.msra.mxu0 0.0
  %184 = vmatprep.subr.mxu0 0.0
  %185 = vmatpush2.msra.mxu0 0.0
  %186 = vmatprep.subr.mxu0 0.0
  %187 = vmatpush2.msra.mxu0 0.0
  %188 = vmatprep.subr.mxu0 0.0
  %189 = vmatpush2.msra.mxu0 0.0
  %190 = vmatprep.subr.mxu0 0.0
  %191 = vmatpush2.msra.mxu0 0.0
  %192 = vmatprep.subr.mxu0 0.0
  %193 = vmatpush2.msra.mxu0 0.0
  %194 = vmatprep.subr.mxu0 0.0
  %195 = vmatpush2.msra.mxu0 0.0
  %196 = vmatprep.subr.mxu0 0.0
  %197 = vmatpush2.msra.mxu0 0.0
  %198 = vmatprep.subr.mxu0 0.0
  %199 = vmatpush2.msra.mxu0 0.0
  %200 = vmatprep.subr.mxu0 0.0
  %201 = vmatpush2.msra.mxu0 0.0
  %202 = vmatprep.subr.mxu0 0.0
  %203 = vmatpush2.msra.mxu0 0.0
  %204 = vmatprep.subr.mxu0 0.0
  %205 = vmatpush2.msra.mxu0 0.0
  %206 = vmatprep.subr.mxu0 0.0
  %207 = vmatpush2.msra.mxu0 0.0
  %208 = vmatprep.subr.mxu0 0.0
  %209 = vmatpush2.msra.mxu0 0.0
  %210 = vmatprep.subr.mxu0 0.0
  %211 = vmatpush2.msra.mxu0 0.0
  %212 = vmatprep.subr.mxu0 0.0
  %213 = vmatpush2.msra.mxu0 0.0
  %214 = vmatprep.mubr.f32.mxu0 0.0
  %215 = vmatmul.mubr.f32.gmra.mxu0 %v111
  %v216 = vpop.f32.mrf.mxu0
  %v217 = vadd.f32 0.0, %v216
  %v218 = vpop.f32.mrf.mxu0
  %v219 = vadd.f32 0.0, %v218
  %220 = vmatprep.mubr.f32.mxu0 0.0
  %221 = vmatmul.mubr.f32.gmra.mxu0 %v114
  %v222 = vpop.f32.mrf.mxu0
  %v223 = vadd.f32 0.0, %v222
  %v224 = vpop.f32.mrf.mxu0
  %v225 = vadd.f32 0.0, %v224
  %226 = vmatprep.mubr.f32.mxu0 0.0
  %227 = vmatmul.mubr.f32.gmra.mxu0 %v117
  %v228 = vpop.f32.mrf.mxu0
  %v229 = vadd.f32 0.0, %v228
  %v230 = vpop.f32.mrf.mxu0
  %v231 = vadd.f32 0.0, %v230
  %232 = vmatprep.mubr.f32.mxu0 0.0
  %233 = vmatmul.mubr.f32.gmra.mxu0 %v120
  %v234 = vpop.f32.mrf.mxu0
  %v235 = vadd.f32 0.0, %v234
  %v236 = vpop.f32.mrf.mxu0
  %v237 = vadd.f32 0.0, %v236
  %238 = vmatprep.mubr.f32.mxu0 0.0
  %239 = vmatmul.mubr.f32.gmra.mxu0 %v123
  %v240 = vpop.f32.mrf.mxu0
  %v241 = vadd.f32 0.0, %v240
  %v242 = vpop.f32.mrf.mxu0
  %v243 = vadd.f32 0.0, %v242
  %244 = vmatprep.mubr.f32.mxu0 0.0
  %245 = vmatmul.mubr.f32.gmra.mxu0 %v126
  %v246 = vpop.f32.mrf.mxu0
  %v247 = vadd.f32 0.0, %v246
  %v248 = vpop.f32.mrf.mxu0
  %v249 = vadd.f32 0.0, %v248
  %250 = vmatprep.mubr.f32.mxu0 0.0
  %251 = vmatmul.mubr.f32.gmra.mxu0 %v129
  %v252 = vpop.f32.mrf.mxu0
  %v253 = vadd.f32 0.0, %v252
  %v254 = vpop.f32.mrf.mxu0
  %v255 = vadd.f32 0.0, %v254
  %256 = vmatprep.mubr.f32.mxu0 0.0
  %257 = vmatmul.mubr.f32.gmra.mxu0 %v132
  %v258 = vpop.f32.mrf.mxu0
  %v259 = vadd.f32 0.0, %v258
  %v260 = vpop.f32.mrf.mxu0
  %v261 = vadd.f32 0.0, %v260
  %262 = vmatprep.mubr.f32.mxu0 0.0
  %263 = vmatmul.mubr.f32.gmra.mxu0 %v135
  %v264 = vpop.f32.mrf.mxu0
  %v265 = vadd.f32 0.0, %v264
  %v266 = vpop.f32.mrf.mxu0
  %v267 = vadd.f32 0.0, %v266
  %268 = vdwg.mxu0
  %269 = vmatprep.subr.mxu0 0.0
  %270 = vmatpush1.msra.mxu0 0.0
  %271 = vmatprep.subr.mxu0 0.0
  %272 = vmatpush1.msra.mxu0 0.0
  %273 = vmatprep.subr.mxu0 0.0
  %274 = vmatpush1.msra.mxu0 0.0
  %275 = vmatprep.subr.mxu0 0.0
  %276 = vmatpush1.msra.mxu0 0.0
  %277 = vmatprep.subr.mxu0 0.0
  %278 = vmatpush1.msra.mxu0 0.0
  %279 = vmatprep.subr.mxu0 0.0
  %280 = vmatpush1.msra.mxu0 0.0
  %281 = vmatprep.subr.mxu0 0.0
  %282 = vmatpush1.msra.mxu0 0.0
  %283 = vmatprep.subr.mxu0 0.0
  %284 = vmatpush1.msra.mxu0 0.0
  %285 = vmatprep.subr.mxu0 0.0
  %286 = vmatpush1.msra.mxu0 0.0
  %287 = vmatprep.subr.mxu0 0.0
  %288 = vmatpush1.msra.mxu0 0.0
  %289 = vmatprep.subr.mxu0 0.0
  %290 = vmatpush1.msra.mxu0 0.0
  %291 = vmatprep.subr.mxu0 0.0
  %292 = vmatpush1.msra.mxu0 0.0
  %293 = vmatprep.subr.mxu0 0.0
  %294 = vmatpush1.msra.mxu0 0.0
  %295 = vmatprep.subr.mxu0 0.0
  %296 = vmatpush1.msra.mxu0 0.0
  %297 = vmatprep.subr.mxu0 0.0
  %298 = vmatpush1.msra.mxu0 0.0
  %299 = vmatprep.subr.mxu0 %v144
  %300 = vmatpush1.msra.mxu0 %v142
  %301 = vmatprep.subr.mxu0 0.0
  %302 = vmatpush2.msra.mxu0 0.0
  %303 = vmatprep.subr.mxu0 0.0
  %304 = vmatpush2.msra.mxu0 0.0
  %305 = vmatprep.subr.mxu0 0.0
  %306 = vmatpush2.msra.mxu0 0.0
  %307 = vmatprep.subr.mxu0 0.0
  %308 = vmatpush2.msra.mxu0 0.0
  %309 = vmatprep.subr.mxu0 0.0
  %310 = vmatpush2.msra.mxu0 0.0
  %311 = vmatprep.subr.mxu0 0.0
  %312 = vmatpush2.msra.mxu0 0.0
  %313 = vmatprep.subr.mxu0 0.0
  %314 = vmatpush2.msra.mxu0 0.0
  %315 = vmatprep.subr.mxu0 0.0
  %316 = vmatpush2.msra.mxu0 0.0
  %317 = vmatprep.subr.mxu0 0.0
  %318 = vmatpush2.msra.mxu0 0.0
  %319 = vmatprep.subr.mxu0 0.0
  %320 = vmatpush2.msra.mxu0 0.0
  %321 = vmatprep.subr.mxu0 0.0
  %322 = vmatpush2.msra.mxu0 0.0
  %323 = vmatprep.subr.mxu0 0.0
  %324 = vmatpush2.msra.mxu0 0.0
  %325 = vmatprep.subr.mxu0 0.0
  %326 = vmatpush2.msra.mxu0 0.0
  %327 = vmatprep.subr.mxu0 0.0
  %328 = vmatpush2.msra.mxu0 0.0
  %329 = vmatprep.subr.mxu0 0.0
  %330 = vmatpush2.msra.mxu0 0.0
  %331 = vmatprep.subr.mxu0 0.0
  %332 = vmatpush2.msra.mxu0 0.0
  %333 = vmatprep.mubr.f32.mxu0 0.0
  %334 = vmatmul.mubr.f32.gmra.mxu0 %v111
  %v335 = vpop.f32.mrf.mxu0
  %v336 = vadd.f32 0.0, %v335
  %v337 = vpop.f32.mrf.mxu0
  %v338 = vadd.f32 0.0, %v337
  %339 = vmatprep.mubr.f32.mxu0 0.0
  %340 = vmatmul.mubr.f32.gmra.mxu0 %v114
  %v341 = vpop.f32.mrf.mxu0
  %v342 = vadd.f32 0.0, %v341
  %v343 = vpop.f32.mrf.mxu0
  %v344 = vadd.f32 0.0, %v343
  %345 = vmatprep.mubr.f32.mxu0 0.0
  %346 = vmatmul.mubr.f32.gmra.mxu0 %v117
  %v347 = vpop.f32.mrf.mxu0
  %v348 = vadd.f32 0.0, %v347
  %v349 = vpop.f32.mrf.mxu0
  %v350 = vadd.f32 0.0, %v349
  %351 = vmatprep.mubr.f32.mxu0 0.0
  %352 = vmatmul.mubr.f32.gmra.mxu0 %v120
  %v353 = vpop.f32.mrf.mxu0
  %v354 = vadd.f32 0.0, %v353
  %v355 = vpop.f32.mrf.mxu0
  %v356 = vadd.f32 0.0, %v355
  %357 = vmatprep.mubr.f32.mxu0 0.0
  %358 = vmatmul.mubr.f32.gmra.mxu0 %v123
  %v359 = vpop.f32.mrf.mxu0
  %v360 = vadd.f32 0.0, %v359
  %v361 = vpop.f32.mrf.mxu0
  %v362 = vadd.f32 0.0, %v361
  %363 = vmatprep.mubr.f32.mxu0 0.0
  %364 = vmatmul.mubr.f32.gmra.mxu0 %v126
  %v365 = vpop.f32.mrf.mxu0
  %v366 = vadd.f32 0.0, %v365
  %v367 = vpop.f32.mrf.mxu0
  %v368 = vadd.f32 0.0, %v367
  %369 = vmatprep.mubr.f32.mxu0 0.0
  %370 = vmatmul.mubr.f32.gmra.mxu0 %v129
  %v371 = vpop.f32.mrf.mxu0
  %v372 = vadd.f32 0.0, %v371
  %v373 = vpop.f32.mrf.mxu0
  %v374 = vadd.f32 0.0, %v373
  %375 = vmatprep.mubr.f32.mxu0 0.0
  %376 = vmatmul.mubr.f32.gmra.mxu0 %v132
  %v377 = vpop.f32.mrf.mxu0
  %v378 = vadd.f32 0.0, %v377
  %v379 = vpop.f32.mrf.mxu0
  %v380 = vadd.f32 0.0, %v379
  %381 = vmatprep.mubr.f32.mxu0 0.0
  %382 = vmatmul.mubr.f32.gmra.mxu0 %v135
  %v383 = vpop.f32.mrf.mxu0
  %v384 = vadd.f32 0.0, %v383
  %v385 = vpop.f32.mrf.mxu0
  %v386 = vadd.f32 0.0, %v385
  %387 = vdwg.mxu0
  %388 = vmatprep.subr.mxu0 0.0
  %389 = vmatpush1.msra.mxu0 0.0
  %390 = vmatprep.subr.mxu0 0.0
  %391 = vmatpush1.msra.mxu0 0.0
  %392 = vmatprep.subr.mxu0 0.0
  %393 = vmatpush1.msra.mxu0 0.0
  %394 = vmatprep.subr.mxu0 0.0
  %395 = vmatpush1.msra.mxu0 0.0
  %396 = vmatprep.subr.mxu0 0.0
  %397 = vmatpush1.msra.mxu0 0.0
  %398 = vmatprep.subr.mxu0 0.0
  %399 = vmatpush1.msra.mxu0 0.0
  %400 = vmatprep.subr.mxu0 0.0
  %401 = vmatpush1.msra.mxu0 0.0
  %402 = vmatprep.subr.mxu0 0.0
  %403 = vmatpush1.msra.mxu0 0.0
  %404 = vmatprep.subr.mxu0 0.0
  %405 = vmatpush1.msra.mxu0 0.0
  %406 = vmatprep.subr.mxu0 0.0
  %407 = vmatpush1.msra.mxu0 0.0
  %408 = vmatprep.subr.mxu0 0.0
  %409 = vmatpush1.msra.mxu0 0.0
  %410 = vmatprep.subr.mxu0 0.0
  %411 = vmatpush1.msra.mxu0 0.0
  %412 = vmatprep.subr.mxu0 0.0
  %413 = vmatpush1.msra.mxu0 0.0
  %414 = vmatprep.subr.mxu0 0.0
  %415 = vmatpush1.msra.mxu0 0.0
  %416 = vmatprep.subr.mxu0 0.0
  %417 = vmatpush1.msra.mxu0 0.0
  %418 = vmatprep.subr.mxu0 %v148
  %419 = vmatpush1.msra.mxu0 %v146
  %420 = vmatprep.subr.mxu0 0.0
  %421 = vmatpush2.msra.mxu0 0.0
  %422 = vmatprep.subr.mxu0 0.0
  %423 = vmatpush2.msra.mxu0 0.0
  %424 = vmatprep.subr.mxu0 0.0
  %425 = vmatpush2.msra.mxu0 0.0
  %426 = vmatprep.subr.mxu0 0.0
  %427 = vmatpush2.msra.mxu0 0.0
  %428 = vmatprep.subr.mxu0 0.0
  %429 = vmatpush2.msra.mxu0 0.0
  %430 = vmatprep.subr.mxu0 0.0
  %431 = vmatpush2.msra.mxu0 0.0
  %432 = vmatprep.subr.mxu0 0.0
  %433 = vmatpush2.msra.mxu0 0.0
  %434 = vmatprep.subr.mxu0 0.0
  %435 = vmatpush2.msra.mxu0 0.0
  %436 = vmatprep.subr.mxu0 0.0
  %437 = vmatpush2.msra.mxu0 0.0
  %438 = vmatprep.subr.mxu0 0.0
  %439 = vmatpush2.msra.mxu0 0.0
  %440 = vmatprep.subr.mxu0 0.0
  %441 = vmatpush2.msra.mxu0 0.0
  %442 = vmatprep.subr.mxu0 0.0
  %443 = vmatpush2.msra.mxu0 0.0
  %444 = vmatprep.subr.mxu0 0.0
  %445 = vmatpush2.msra.mxu0 0.0
  %446 = vmatprep.subr.mxu0 0.0
  %447 = vmatpush2.msra.mxu0 0.0
  %448 = vmatprep.subr.mxu0 0.0
  %449 = vmatpush2.msra.mxu0 0.0
  %450 = vmatprep.subr.mxu0 0.0
  %451 = vmatpush2.msra.mxu0 0.0
  %452 = vmatprep.mubr.f32.mxu0 0.0
  %453 = vmatmul.mubr.f32.gmra.mxu0 %v111
  %v454 = vpop.f32.mrf.mxu0
  %v455 = vadd.f32 0.0, %v454
  %v456 = vpop.f32.mrf.mxu0
  %v457 = vadd.f32 0.0, %v456
  %458 = vmatprep.mubr.f32.mxu0 0.0
  %459 = vmatmul.mubr.f32.gmra.mxu0 %v114
  %v460 = vpop.f32.mrf.mxu0
  %v461 = vadd.f32 0.0, %v460
  %v462 = vpop.f32.mrf.mxu0
  %v463 = vadd.f32 0.0, %v462
  %464 = vmatprep.mubr.f32.mxu0 0.0
  %465 = vmatmul.mubr.f32.gmra.mxu0 %v117
  %v466 = vpop.f32.mrf.mxu0
  %v467 = vadd.f32 0.0, %v466
  %v468 = vpop.f32.mrf.mxu0
  %v469 = vadd.f32 0.0, %v468
  %470 = vmatprep.mubr.f32.mxu0 0.0
  %471 = vmatmul.mubr.f32.gmra.mxu0 %v120
  %v472 = vpop.f32.mrf.mxu0
  %v473 = vadd.f32 0.0, %v472
  %v474 = vpop.f32.mrf.mxu0
  %v475 = vadd.f32 0.0, %v474
  %476 = vmatprep.mubr.f32.mxu0 0.0
  %477 = vmatmul.mubr.f32.gmra.mxu0 %v123
  %v478 = vpop.f32.mrf.mxu0
  %v479 = vadd.f32 0.0, %v478
  %v480 = vpop.f32.mrf.mxu0
  %v481 = vadd.f32 0.0, %v480
  %482 = vmatprep.mubr.f32.mxu0 0.0
  %483 = vmatmul.mubr.f32.gmra.mxu0 %v126
  %v484 = vpop.f32.mrf.mxu0
  %v485 = vadd.f32 0.0, %v484
  %v486 = vpop.f32.mrf.mxu0
  %v487 = vadd.f32 0.0, %v486
  %488 = vmatprep.mubr.f32.mxu0 0.0
  %489 = vmatmul.mubr.f32.gmra.mxu0 %v129
  %v490 = vpop.f32.mrf.mxu0
  %v491 = vadd.f32 0.0, %v490
  %v492 = vpop.f32.mrf.mxu0
  %v493 = vadd.f32 0.0, %v492
  %494 = vmatprep.mubr.f32.mxu0 0.0
  %495 = vmatmul.mubr.f32.gmra.mxu0 %v132
  %v496 = vpop.f32.mrf.mxu0
  %v497 = vadd.f32 0.0, %v496
  %v498 = vpop.f32.mrf.mxu0
  %v499 = vadd.f32 0.0, %v498
  %500 = vmatprep.mubr.f32.mxu0 0.0
  %501 = vmatmul.mubr.f32.gmra.mxu0 %v135
  %v502 = vpop.f32.mrf.mxu0
  %v503 = vadd.f32 0.0, %v502
  %v504 = vpop.f32.mrf.mxu0
  %v505 = vadd.f32 0.0, %v504
  %506 = vdwg.mxu0
  %507 = vrot.lane.b32.xlu0 %v217, 19
  %v508 = vpop.permute.xlu0 %507
  %509 = vrot.lane.b32.xlu0 %v219, 19
  %v510 = vpop.permute.xlu0 %509
  %511 = vrot.lane.b32.xlu0 %v336, 19
  %v512 = vpop.permute.xlu0 %511
  %513 = vrot.lane.b32.xlu0 %v338, 19
  %v514 = vpop.permute.xlu0 %513
  %515 = vrot.lane.b32.xlu0 %v455, 19
  %v516 = vpop.permute.xlu0 %515
  %517 = vrot.lane.b32.xlu0 %v457, 19
  %v518 = vpop.permute.xlu0 %517
  %v519 = vlaneseq
  %v520 = vand.u32 %v519, 127
  %vm521 = vcmp.lt.s32.totalorder %v520, 19
  %v522 = vsel %vm521, %v516, %v518
  %v523 = vsel %vm521, %v514, %v516
  %v524 = vsel %vm521, %v512, %v514
  %v525 = vsel %vm521, %v510, %v512
  %v526 = vsel %vm521, %v508, %v510
  %v527 = vsel %vm521, %v518, %v508
  %528 = vrot.lane.b32.xlu0 %v223, 18
  %v529 = vpop.permute.xlu0 %528
  %530 = vrot.lane.b32.xlu0 %v225, 18
  %v531 = vpop.permute.xlu0 %530
  %532 = vrot.lane.b32.xlu0 %v342, 18
  %v533 = vpop.permute.xlu0 %532
  %534 = vrot.lane.b32.xlu0 %v344, 18
  %v535 = vpop.permute.xlu0 %534
  %536 = vrot.lane.b32.xlu0 %v461, 18
  %v537 = vpop.permute.xlu0 %536
  %538 = vrot.lane.b32.xlu0 %v463, 18
  %v539 = vpop.permute.xlu0 %538
  %vm540 = vcmp.lt.s32.totalorder %v520, 18
  %v541 = vsel %vm540, %v537, %v539
  %v542 = vsel %vm540, %v535, %v537
  %v543 = vsel %vm540, %v533, %v535
  %v544 = vsel %vm540, %v531, %v533
  %v545 = vsel %vm540, %v529, %v531
  %v546 = vsel %vm540, %v539, %v529
  %v547 = vadd.f32 %v527, %v546
  %v548 = vadd.f32 %v526, %v545
  %v549 = vadd.f32 %v525, %v544
  %v550 = vadd.f32 %v524, %v543
  %v551 = vadd.f32 %v523, %v542
  %v552 = vadd.f32 %v522, %v541
  %553 = vrot.lane.b32.xlu0 %v229, 17
  %v554 = vpop.permute.xlu0 %553
  %555 = vrot.lane.b32.xlu0 %v231, 17
  %v556 = vpop.permute.xlu0 %555
  %557 = vrot.lane.b32.xlu0 %v348, 17
  %v558 = vpop.permute.xlu0 %557
  %559 = vrot.lane.b32.xlu0 %v350, 17
  %v560 = vpop.permute.xlu0 %559
  %561 = vrot.lane.b32.xlu0 %v467, 17
  %v562 = vpop.permute.xlu0 %561
  %563 = vrot.lane.b32.xlu0 %v469, 17
  %v564 = vpop.permute.xlu0 %563
  %vm565 = vcmp.lt.s32.totalorder %v520, 17
  %v566 = vsel %vm565, %v562, %v564
  %v567 = vsel %vm565, %v560, %v562
  %v568 = vsel %vm565, %v558, %v560
  %v569 = vsel %vm565, %v556, %v558
  %v570 = vsel %vm565, %v554, %v556
  %v571 = vsel %vm565, %v564, %v554
  %v572 = vadd.f32 %v547, %v571
  %v573 = vadd.f32 %v548, %v570
  %v574 = vadd.f32 %v549, %v569
  %v575 = vadd.f32 %v550, %v568
  %v576 = vadd.f32 %v551, %v567
  %v577 = vadd.f32 %v552, %v566
  %578 = vrot.lane.b32.xlu0 %v235, 1
  %v579 = vpop.permute.xlu0 %578
  %580 = vrot.lane.b32.xlu0 %v237, 1
  %v581 = vpop.permute.xlu0 %580
  %582 = vrot.lane.b32.xlu0 %v354, 1
  %v583 = vpop.permute.xlu0 %582
  %584 = vrot.lane.b32.xlu0 %v356, 1
  %v585 = vpop.permute.xlu0 %584
  %586 = vrot.lane.b32.xlu0 %v473, 1
  %v587 = vpop.permute.xlu0 %586
  %588 = vrot.lane.b32.xlu0 %v475, 1
  %v589 = vpop.permute.xlu0 %588
  %vm590 = vcmp.lt.s32.totalorder %v520, 1
  %v591 = vsel %vm590, %v587, %v589
  %v592 = vsel %vm590, %v585, %v587
  %v593 = vsel %vm590, %v583, %v585
  %v594 = vsel %vm590, %v581, %v583
  %v595 = vsel %vm590, %v579, %v581
  %v596 = vsel %vm590, %v589, %v579
  %v597 = vadd.f32 %v572, %v596
  %v598 = vadd.f32 %v573, %v595
  %v599 = vadd.f32 %v574, %v594
  %v600 = vadd.f32 %v575, %v593
  %v601 = vadd.f32 %v576, %v592
  %v602 = vadd.f32 %v577, %v591
  %v603 = vadd.f32 %v597, %v241
  %v604 = vadd.f32 %v598, %v243
  %v605 = vadd.f32 %v599, %v360
  %v606 = vadd.f32 %v600, %v362
  %v607 = vadd.f32 %v601, %v479
  %v608 = vadd.f32 %v602, %v481
  %609 = vrot.lane.b32.xlu0 %v247, 127
  %v610 = vpop.permute.xlu0 %609
  %611 = vrot.lane.b32.xlu0 %v249, 127
  %v612 = vpop.permute.xlu0 %611
  %613 = vrot.lane.b32.xlu0 %v366, 127
  %v614 = vpop.permute.xlu0 %613
  %615 = vrot.lane.b32.xlu0 %v368, 127
  %v616 = vpop.permute.xlu0 %615
  %617 = vrot.lane.b32.xlu0 %v485, 127
  %v618 = vpop.permute.xlu0 %617
  %619 = vrot.lane.b32.xlu0 %v487, 127
  %v620 = vpop.permute.xlu0 %619
  %vm621 = vcmp.lt.s32.totalorder %v520, 127
  %v622 = vsel %vm621, %v618, %v620
  %v623 = vsel %vm621, %v616, %v618
  %v624 = vsel %vm621, %v614, %v616
  %v625 = vsel %vm621, %v612, %v614
  %v626 = vsel %vm621, %v610, %v612
  %v627 = vsel %vm621, %v620, %v610
  %v628 = vadd.f32 %v603, %v626
  %v629 = vadd.f32 %v604, %v625
  %v630 = vadd.f32 %v605, %v624
  %v631 = vadd.f32 %v606, %v623
  %v632 = vadd.f32 %v607, %v622
  %v633 = vadd.f32 %v608, %v627
  %634 = vrot.lane.b32.xlu0 %v253, 111
  %v635 = vpop.permute.xlu0 %634
  %636 = vrot.lane.b32.xlu0 %v255, 111
  %v637 = vpop.permute.xlu0 %636
  %638 = vrot.lane.b32.xlu0 %v372, 111
  %v639 = vpop.permute.xlu0 %638
  %640 = vrot.lane.b32.xlu0 %v374, 111
  %v641 = vpop.permute.xlu0 %640
  %642 = vrot.lane.b32.xlu0 %v491, 111
  %v643 = vpop.permute.xlu0 %642
  %644 = vrot.lane.b32.xlu0 %v493, 111
  %v645 = vpop.permute.xlu0 %644
  %vm646 = vcmp.lt.s32.totalorder %v520, 111
  %v647 = vsel %vm646, %v643, %v645
  %v648 = vsel %vm646, %v641, %v643
  %v649 = vsel %vm646, %v639, %v641
  %v650 = vsel %vm646, %v637, %v639
  %v651 = vsel %vm646, %v635, %v637
  %v652 = vsel %vm646, %v645, %v635
  %v653 = vadd.f32 %v628, %v651
  %v654 = vadd.f32 %v629, %v650
  %v655 = vadd.f32 %v630, %v649
  %v656 = vadd.f32 %v631, %v648
  %v657 = vadd.f32 %v632, %v647
  %v658 = vadd.f32 %v633, %v652
  %659 = vrot.lane.b32.xlu0 %v259, 110
  %v660 = vpop.permute.xlu0 %659
  %661 = vrot.lane.b32.xlu0 %v261, 110
  %v662 = vpop.permute.xlu0 %661
  %663 = vrot.lane.b32.xlu0 %v378, 110
  %v664 = vpop.permute.xlu0 %663
  %665 = vrot.lane.b32.xlu0 %v380, 110
  %v666 = vpop.permute.xlu0 %665
  %667 = vrot.lane.b32.xlu0 %v497, 110
  %v668 = vpop.permute.xlu0 %667
  %669 = vrot.lane.b32.xlu0 %v499, 110
  %v670 = vpop.permute.xlu0 %669
  %vm671 = vcmp.lt.s32.totalorder %v520, 110
  %v672 = vsel %vm671, %v668, %v670
  %v673 = vsel %vm671, %v666, %v668
  %v674 = vsel %vm671, %v664, %v666
  %v675 = vsel %vm671, %v662, %v664
  %v676 = vsel %vm671, %v660, %v662
  %v677 = vsel %vm671, %v670, %v660
  %v678 = vadd.f32 %v653, %v676
  %v679 = vadd.f32 %v654, %v675
  %v680 = vadd.f32 %v655, %v674
  %v681 = vadd.f32 %v656, %v673
  %v682 = vadd.f32 %v657, %v672
  %v683 = vadd.f32 %v658, %v677
  %684 = vrot.lane.b32.xlu0 %v265, 109
  %v685 = vpop.permute.xlu0 %684
  %686 = vrot.lane.b32.xlu0 %v267, 109
  %v687 = vpop.permute.xlu0 %686
  %688 = vrot.lane.b32.xlu0 %v384, 109
  %v689 = vpop.permute.xlu0 %688
  %690 = vrot.lane.b32.xlu0 %v386, 109
  %v691 = vpop.permute.xlu0 %690
  %692 = vrot.lane.b32.xlu0 %v503, 109
  %v693 = vpop.permute.xlu0 %692
  %694 = vrot.lane.b32.xlu0 %v505, 109
  %v695 = vpop.permute.xlu0 %694
  %vm696 = vcmp.lt.s32.totalorder %v520, 109
  %v697 = vsel %vm696, %v693, %v695
  %v698 = vsel %vm696, %v691, %v693
  %v699 = vsel %vm696, %v689, %v691
  %v700 = vsel %vm696, %v687, %v689
  %v701 = vsel %vm696, %v685, %v687
  %v702 = vsel %vm696, %v695, %v685
  %v703 = vadd.f32 %v678, %v701
  %v704 = vadd.f32 %v679, %v700
  %v705 = vadd.f32 %v680, %v699
  %v706 = vadd.f32 %v681, %v698
  %v707 = vadd.f32 %v682, %v697
  %v708 = vadd.f32 %v683, %v702
  %710 = vset.pattern.permute.xlu0 0
  %711 = vperm.xlu0 %710, %v102
  %v712 = vpop.permute.xlu0 %711
  %v714 = vadd.f32 %v703, %v712
  %v715 = vadd.f32 %v704, %v712
  %v716 = vadd.f32 %v705, %v712
  %v717 = vadd.f32 %v706, %v712
  %v718 = vadd.f32 %v707, %v712
  %v719 = vadd.f32 %v708, %v712
  %v721 = vlaneseq
  %v722 = vshrl.u32 %v721, 7
  %v723 = vsub.s32 0, %v722
  %v724 = vrot.slane %v92, %v723
  %v725 = vlaneseq
  %v726 = vshrl.u32 %v725, 7
  %v727 = vsub.s32 1, %v726
  %v728 = vrot.slane %v92, %v727
  %v729 = vlaneseq
  %v730 = vshrl.u32 %v729, 7
  %v731 = vsub.s32 2, %v730
  %v732 = vrot.slane %v92, %v731
  %v733 = vlaneseq
  %v734 = vshrl.u32 %v733, 7
  %v735 = vsub.s32 3, %v734
  %v736 = vrot.slane %v92, %v735
  %v737 = vlaneseq
  %v738 = vshrl.u32 %v737, 7
  %v739 = vsub.s32 4, %v738
  %v740 = vrot.slane %v92, %v739
  %v741 = vlaneseq
  %v742 = vshrl.u32 %v741, 7
  %v743 = vsub.s32 5, %v742
  %v744 = vrot.slane %v92, %v743
  %v751 = vmul.f32 %v714, %v724
  %v752 = vmul.f32 %v715, %v728
  %v753 = vmul.f32 %v716, %v732
  %v754 = vmul.f32 %v717, %v736
  %v755 = vmul.f32 %v718, %v740
  %v756 = vmul.f32 %v719, %v744
  %v757 = vld [vmem:[%s5] sm:$0xf]
  %v758 = vld [vmem:[%s6] sm:$0xf]
  %v759 = vld [vmem:[%s7] sm:$0xf]
  %v760 = vld [vmem:[%s8] sm:$0xf]
  %v761 = vld [vmem:[%s9] sm:$0xff]
  %v762 = vld [vmem:[%s9 + $0x8] sm:$0xff]
  %v763 = vld [vmem:[%s9 + $0x10] sm:$0xff]
  %v764 = vld [vmem:[%s9 + $0x18] sm:$0xff]
  %v765 = vld [vmem:[%s9 + $0x20] sm:$0xff]
  %v766 = vld [vmem:[%s9 + $0x28] sm:$0xff]
  %v767 = vld [vmem:[%s9 + $0x30] sm:$0xff]
  %v768 = vld [vmem:[%s9 + $0x38] sm:$0xff]
  %v769 = vld [vmem:[%s9 + $0x40] sm:$0xff]
  %v770 = vld [vmem:[%s10] sm:$0xff]
  %v771 = vld [vmem:[%s10 + $0x8] sm:$0xff]
  %v772 = vld [vmem:[%s10 + $0x10] sm:$0xff]
  %v773 = vld [vmem:[%s10 + $0x18] sm:$0xff]
  %v774 = vld [vmem:[%s10 + $0x20] sm:$0xff]
  %v775 = vld [vmem:[%s10 + $0x28] sm:$0xff]
  %v776 = vld [vmem:[%s10 + $0x30] sm:$0xff]
  %v777 = vld [vmem:[%s10 + $0x38] sm:$0xff]
  %v778 = vld [vmem:[%s10 + $0x40] sm:$0xff]
  %v779 = vld [vmem:[%s11] sm:$0xf]
  %v780 = vld [vmem:[%s12] sm:$0xf]
  %v781 = vld [vmem:[%s13] sm:$0xf]
  %v782 = vld [vmem:[%s14] sm:$0xff]
  %v783 = vld [vmem:[%s14 + $0x8] sm:$0xff]
  %v784 = vld [vmem:[%s14 + $0x10] sm:$0xff]
  %v785 = vld [vmem:[%s14 + $0x18] sm:$0xff]
  %v786 = vld [vmem:[%s14 + $0x20] sm:$0xff]
  %v787 = vld [vmem:[%s14 + $0x28] sm:$0xff]
  %v788 = vld [vmem:[%s14 + $0x30] sm:$0xff]
  %v789 = vld [vmem:[%s14 + $0x38] sm:$0xff]
  %v790 = vld [vmem:[%s14 + $0x40] sm:$0xff]
  %v791 = vld [vmem:[%s15] sm:$0xf]
  %v792 = vsel %vm137, %v751, 0.0
  %v793 = vsel %vm137, %v752, 0.0
  %v794 = vadd.f32 %v792, %v793
  %v795 = vsel %vm137, %v753, 0.0
  %v796 = vadd.f32 %v794, %v795
  %v797 = vsel %vm137, %v754, 0.0
  %v798 = vadd.f32 %v796, %v797
  %v799 = vsel %vm137, %v755, 0.0
  %v800 = vadd.f32 %v798, %v799
  %v801 = vsel %vm137, %v756, 0.0
  %v802 = vadd.f32 %v800, %v801
  %803 = vadd.xlane.f32.xlu0 %v802
  %v804 = vpop.xlane.xlu0 %803
  %v805 = vmul.f32 %v804, 0.001953125
  %v806 = vmul.f32 %v751, %v751
  %v807 = vmul.f32 %v752, %v752
  %v808 = vmul.f32 %v753, %v753
  %v809 = vmul.f32 %v754, %v754
  %v810 = vmul.f32 %v755, %v755
  %v811 = vmul.f32 %v756, %v756
  %v812 = vsel %vm137, %v806, 0.0
  %v813 = vsel %vm137, %v807, 0.0
  %v814 = vadd.f32 %v812, %v813
  %v815 = vsel %vm137, %v808, 0.0
  %v816 = vadd.f32 %v814, %v815
  %v817 = vsel %vm137, %v809, 0.0
  %v818 = vadd.f32 %v816, %v817
  %v819 = vsel %vm137, %v810, 0.0
  %v820 = vadd.f32 %v818, %v819
  %v821 = vsel %vm137, %v811, 0.0
  %v822 = vadd.f32 %v820, %v821
  %823 = vadd.xlane.f32.xlu0 %v822
  %v824 = vpop.xlane.xlu0 %823
  %v825 = vmul.f32 %v824, 0.001953125
  %v826 = vmul.f32 %v805, %v805
  %v827 = vsub.f32 %v825, %v826
  %v828 = vadd.f32 %v827, 1e-05
  %v829 = vrsqrt.pop %v828
  %v830 = vmul.f32 %v757, %v829
  %v831 = vsub.f32 %v751, %v805
  %v832 = vsub.f32 %v752, %v805
  %v833 = vsub.f32 %v753, %v805
  %v834 = vsub.f32 %v754, %v805
  %v835 = vsub.f32 %v755, %v805
  %v836 = vsub.f32 %v756, %v805
  %838 = vset.pattern.permute.xlu0 0
  %839 = vperm.xlu0 %838, %v830
  %v840 = vpop.permute.xlu0 %839
  %v842 = vmul.f32 %v831, %v840
  %v843 = vmul.f32 %v832, %v840
  %v844 = vmul.f32 %v833, %v840
  %v845 = vmul.f32 %v834, %v840
  %v846 = vmul.f32 %v835, %v840
  %v847 = vmul.f32 %v836, %v840
  %849 = vset.pattern.permute.xlu0 0
  %850 = vperm.xlu0 %849, %v758
  %v851 = vpop.permute.xlu0 %850
  %v853 = vadd.f32 %v842, %v851
  %v854 = vadd.f32 %v843, %v851
  %v855 = vadd.f32 %v844, %v851
  %v856 = vadd.f32 %v845, %v851
  %v857 = vadd.f32 %v846, %v851
  %v858 = vadd.f32 %v847, %v851
  %v859 = vsub.f32 0.0, %v853
  %v860 = vsub.f32 0.0, %v854
  %v861 = vsub.f32 0.0, %v855
  %v862 = vsub.f32 0.0, %v856
  %v863 = vsub.f32 0.0, %v857
  %v864 = vsub.f32 0.0, %v858
  %v865 = vmul.f32 %v859, 1.442695
  %v866 = vpow.pop %v865
  %v867 = vmul.f32 %v860, 1.442695
  %v868 = vpow.pop %v867
  %v869 = vmul.f32 %v861, 1.442695
  %v870 = vpow.pop %v869
  %v871 = vmul.f32 %v862, 1.442695
  %v872 = vpow.pop %v871
  %v873 = vmul.f32 %v863, 1.442695
  %v874 = vpow.pop %v873
  %v875 = vmul.f32 %v864, 1.442695
  %v876 = vpow.pop %v875
  %v877 = vadd.f32 %v866, 1.0
  %v878 = vadd.f32 %v868, 1.0
  %v879 = vadd.f32 %v870, 1.0
  %v880 = vadd.f32 %v872, 1.0
  %v881 = vadd.f32 %v874, 1.0
  %v882 = vadd.f32 %v876, 1.0
  %v883 = vrcp.pop %v877
  %v884 = vmul.f32 1.0, %v883
  %v885 = vrcp.pop %v878
  %v886 = vmul.f32 1.0, %v885
  %v887 = vrcp.pop %v879
  %v888 = vmul.f32 1.0, %v887
  %v889 = vrcp.pop %v880
  %v890 = vmul.f32 1.0, %v889
  %v891 = vrcp.pop %v881
  %v892 = vmul.f32 1.0, %v891
  %v893 = vrcp.pop %v882
  %v894 = vmul.f32 1.0, %v893
  %v895 = vmul.f32 %v853, %v884
  %v896 = vmul.f32 %v854, %v886
  %v897 = vmul.f32 %v855, %v888
  %v898 = vmul.f32 %v856, %v890
  %v899 = vmul.f32 %v857, %v892
  %v900 = vmul.f32 %v858, %v894
  %v901 = vmul.f32 %v895, %v724
  %v902 = vmul.f32 %v896, %v728
  %v903 = vmul.f32 %v897, %v732
  %v904 = vmul.f32 %v898, %v736
  %v905 = vmul.f32 %v899, %v740
  %v906 = vmul.f32 %v900, %v744
  %v908 = vsel %vm109, %v761, 0
  %v911 = vsel %vm109, %v762, 0
  %v914 = vsel %vm109, %v763, 0
  %v917 = vsel %vm109, %v764, 0
  %v920 = vsel %vm109, %v765, 0
  %v923 = vsel %vm109, %v766, 0
  %v926 = vsel %vm109, %v767, 0
  %v929 = vsel %vm109, %v768, 0
  %v932 = vsel %vm109, %v769, 0
  %v935 = vsel %vm137, %v901, 0
  %v938 = vsel %vm137, %v902, 0
  %v941 = vsel %vm137, %v903, 0
  %v944 = vsel %vm137, %v904, 0
  %v947 = vsel %vm137, %v905, 0
  %v950 = vsel %vm137, %v906, 0
  %952 = vmatprep.subr.mxu0 0.0
  %953 = vmatpush1.msra.mxu0 0.0
  %954 = vmatprep.subr.mxu0 0.0
  %955 = vmatpush1.msra.mxu0 0.0
  %956 = vmatprep.subr.mxu0 0.0
  %957 = vmatpush1.msra.mxu0 0.0
  %958 = vmatprep.subr.mxu0 0.0
  %959 = vmatpush1.msra.mxu0 0.0
  %960 = vmatprep.subr.mxu0 0.0
  %961 = vmatpush1.msra.mxu0 0.0
  %962 = vmatprep.subr.mxu0 0.0
  %963 = vmatpush1.msra.mxu0 0.0
  %964 = vmatprep.subr.mxu0 0.0
  %965 = vmatpush1.msra.mxu0 0.0
  %966 = vmatprep.subr.mxu0 0.0
  %967 = vmatpush1.msra.mxu0 0.0
  %968 = vmatprep.subr.mxu0 0.0
  %969 = vmatpush1.msra.mxu0 0.0
  %970 = vmatprep.subr.mxu0 0.0
  %971 = vmatpush1.msra.mxu0 0.0
  %972 = vmatprep.subr.mxu0 0.0
  %973 = vmatpush1.msra.mxu0 0.0
  %974 = vmatprep.subr.mxu0 0.0
  %975 = vmatpush1.msra.mxu0 0.0
  %976 = vmatprep.subr.mxu0 0.0
  %977 = vmatpush1.msra.mxu0 0.0
  %978 = vmatprep.subr.mxu0 0.0
  %979 = vmatpush1.msra.mxu0 0.0
  %980 = vmatprep.subr.mxu0 0.0
  %981 = vmatpush1.msra.mxu0 0.0
  %982 = vmatprep.subr.mxu0 %v938
  %983 = vmatpush1.msra.mxu0 %v935
  %984 = vmatprep.subr.mxu0 0.0
  %985 = vmatpush2.msra.mxu0 0.0
  %986 = vmatprep.subr.mxu0 0.0
  %987 = vmatpush2.msra.mxu0 0.0
  %988 = vmatprep.subr.mxu0 0.0
  %989 = vmatpush2.msra.mxu0 0.0
  %990 = vmatprep.subr.mxu0 0.0
  %991 = vmatpush2.msra.mxu0 0.0
  %992 = vmatprep.subr.mxu0 0.0
  %993 = vmatpush2.msra.mxu0 0.0
  %994 = vmatprep.subr.mxu0 0.0
  %995 = vmatpush2.msra.mxu0 0.0
  %996 = vmatprep.subr.mxu0 0.0
  %997 = vmatpush2.msra.mxu0 0.0
  %998 = vmatprep.subr.mxu0 0.0
  %999 = vmatpush2.msra.mxu0 0.0
  %1000 = vmatprep.subr.mxu0 0.0
  %1001 = vmatpush2.msra.mxu0 0.0
  %1002 = vmatprep.subr.mxu0 0.0
  %1003 = vmatpush2.msra.mxu0 0.0
  %1004 = vmatprep.subr.mxu0 0.0
  %1005 = vmatpush2.msra.mxu0 0.0
  %1006 = vmatprep.subr.mxu0 0.0
  %1007 = vmatpush2.msra.mxu0 0.0
  %1008 = vmatprep.subr.mxu0 0.0
  %1009 = vmatpush2.msra.mxu0 0.0
  %1010 = vmatprep.subr.mxu0 0.0
  %1011 = vmatpush2.msra.mxu0 0.0
  %1012 = vmatprep.subr.mxu0 0.0
  %1013 = vmatpush2.msra.mxu0 0.0
  %1014 = vmatprep.subr.mxu0 0.0
  %1015 = vmatpush2.msra.mxu0 0.0
  %1016 = vmatprep.mubr.f32.mxu0 0.0
  %1017 = vmatmul.mubr.f32.gmra.mxu0 %v908
  %v1018 = vpop.f32.mrf.mxu0
  %v1019 = vadd.f32 0.0, %v1018
  %v1020 = vpop.f32.mrf.mxu0
  %v1021 = vadd.f32 0.0, %v1020
  %1022 = vmatprep.mubr.f32.mxu0 0.0
  %1023 = vmatmul.mubr.f32.gmra.mxu0 %v911
  %v1024 = vpop.f32.mrf.mxu0
  %v1025 = vadd.f32 0.0, %v1024
  %v1026 = vpop.f32.mrf.mxu0
  %v1027 = vadd.f32 0.0, %v1026
  %1028 = vmatprep.mubr.f32.mxu0 0.0
  %1029 = vmatmul.mubr.f32.gmra.mxu0 %v914
  %v1030 = vpop.f32.mrf.mxu0
  %v1031 = vadd.f32 0.0, %v1030
  %v1032 = vpop.f32.mrf.mxu0
  %v1033 = vadd.f32 0.0, %v1032
  %1034 = vmatprep.mubr.f32.mxu0 0.0
  %1035 = vmatmul.mubr.f32.gmra.mxu0 %v917
  %v1036 = vpop.f32.mrf.mxu0
  %v1037 = vadd.f32 0.0, %v1036
  %v1038 = vpop.f32.mrf.mxu0
  %v1039 = vadd.f32 0.0, %v1038
  %1040 = vmatprep.mubr.f32.mxu0 0.0
  %1041 = vmatmul.mubr.f32.gmra.mxu0 %v920
  %v1042 = vpop.f32.mrf.mxu0
  %v1043 = vadd.f32 0.0, %v1042
  %v1044 = vpop.f32.mrf.mxu0
  %v1045 = vadd.f32 0.0, %v1044
  %1046 = vmatprep.mubr.f32.mxu0 0.0
  %1047 = vmatmul.mubr.f32.gmra.mxu0 %v923
  %v1048 = vpop.f32.mrf.mxu0
  %v1049 = vadd.f32 0.0, %v1048
  %v1050 = vpop.f32.mrf.mxu0
  %v1051 = vadd.f32 0.0, %v1050
  %1052 = vmatprep.mubr.f32.mxu0 0.0
  %1053 = vmatmul.mubr.f32.gmra.mxu0 %v926
  %v1054 = vpop.f32.mrf.mxu0
  %v1055 = vadd.f32 0.0, %v1054
  %v1056 = vpop.f32.mrf.mxu0
  %v1057 = vadd.f32 0.0, %v1056
  %1058 = vmatprep.mubr.f32.mxu0 0.0
  %1059 = vmatmul.mubr.f32.gmra.mxu0 %v929
  %v1060 = vpop.f32.mrf.mxu0
  %v1061 = vadd.f32 0.0, %v1060
  %v1062 = vpop.f32.mrf.mxu0
  %v1063 = vadd.f32 0.0, %v1062
  %1064 = vmatprep.mubr.f32.mxu0 0.0
  %1065 = vmatmul.mubr.f32.gmra.mxu0 %v932
  %v1066 = vpop.f32.mrf.mxu0
  %v1067 = vadd.f32 0.0, %v1066
  %v1068 = vpop.f32.mrf.mxu0
  %v1069 = vadd.f32 0.0, %v1068
  %1070 = vdwg.mxu0
  %1071 = vmatprep.subr.mxu0 0.0
  %1072 = vmatpush1.msra.mxu0 0.0
  %1073 = vmatprep.subr.mxu0 0.0
  %1074 = vmatpush1.msra.mxu0 0.0
  %1075 = vmatprep.subr.mxu0 0.0
  %1076 = vmatpush1.msra.mxu0 0.0
  %1077 = vmatprep.subr.mxu0 0.0
  %1078 = vmatpush1.msra.mxu0 0.0
  %1079 = vmatprep.subr.mxu0 0.0
  %1080 = vmatpush1.msra.mxu0 0.0
  %1081 = vmatprep.subr.mxu0 0.0
  %1082 = vmatpush1.msra.mxu0 0.0
  %1083 = vmatprep.subr.mxu0 0.0
  %1084 = vmatpush1.msra.mxu0 0.0
  %1085 = vmatprep.subr.mxu0 0.0
  %1086 = vmatpush1.msra.mxu0 0.0
  %1087 = vmatprep.subr.mxu0 0.0
  %1088 = vmatpush1.msra.mxu0 0.0
  %1089 = vmatprep.subr.mxu0 0.0
  %1090 = vmatpush1.msra.mxu0 0.0
  %1091 = vmatprep.subr.mxu0 0.0
  %1092 = vmatpush1.msra.mxu0 0.0
  %1093 = vmatprep.subr.mxu0 0.0
  %1094 = vmatpush1.msra.mxu0 0.0
  %1095 = vmatprep.subr.mxu0 0.0
  %1096 = vmatpush1.msra.mxu0 0.0
  %1097 = vmatprep.subr.mxu0 0.0
  %1098 = vmatpush1.msra.mxu0 0.0
  %1099 = vmatprep.subr.mxu0 0.0
  %1100 = vmatpush1.msra.mxu0 0.0
  %1101 = vmatprep.subr.mxu0 %v944
  %1102 = vmatpush1.msra.mxu0 %v941
  %1103 = vmatprep.subr.mxu0 0.0
  %1104 = vmatpush2.msra.mxu0 0.0
  %1105 = vmatprep.subr.mxu0 0.0
  %1106 = vmatpush2.msra.mxu0 0.0
  %1107 = vmatprep.subr.mxu0 0.0
  %1108 = vmatpush2.msra.mxu0 0.0
  %1109 = vmatprep.subr.mxu0 0.0
  %1110 = vmatpush2.msra.mxu0 0.0
  %1111 = vmatprep.subr.mxu0 0.0
  %1112 = vmatpush2.msra.mxu0 0.0
  %1113 = vmatprep.subr.mxu0 0.0
  %1114 = vmatpush2.msra.mxu0 0.0
  %1115 = vmatprep.subr.mxu0 0.0
  %1116 = vmatpush2.msra.mxu0 0.0
  %1117 = vmatprep.subr.mxu0 0.0
  %1118 = vmatpush2.msra.mxu0 0.0
  %1119 = vmatprep.subr.mxu0 0.0
  %1120 = vmatpush2.msra.mxu0 0.0
  %1121 = vmatprep.subr.mxu0 0.0
  %1122 = vmatpush2.msra.mxu0 0.0
  %1123 = vmatprep.subr.mxu0 0.0
  %1124 = vmatpush2.msra.mxu0 0.0
  %1125 = vmatprep.subr.mxu0 0.0
  %1126 = vmatpush2.msra.mxu0 0.0
  %1127 = vmatprep.subr.mxu0 0.0
  %1128 = vmatpush2.msra.mxu0 0.0
  %1129 = vmatprep.subr.mxu0 0.0
  %1130 = vmatpush2.msra.mxu0 0.0
  %1131 = vmatprep.subr.mxu0 0.0
  %1132 = vmatpush2.msra.mxu0 0.0
  %1133 = vmatprep.subr.mxu0 0.0
  %1134 = vmatpush2.msra.mxu0 0.0
  %1135 = vmatprep.mubr.f32.mxu0 0.0
  %1136 = vmatmul.mubr.f32.gmra.mxu0 %v908
  %v1137 = vpop.f32.mrf.mxu0
  %v1138 = vadd.f32 0.0, %v1137
  %v1139 = vpop.f32.mrf.mxu0
  %v1140 = vadd.f32 0.0, %v1139
  %1141 = vmatprep.mubr.f32.mxu0 0.0
  %1142 = vmatmul.mubr.f32.gmra.mxu0 %v911
  %v1143 = vpop.f32.mrf.mxu0
  %v1144 = vadd.f32 0.0, %v1143
  %v1145 = vpop.f32.mrf.mxu0
  %v1146 = vadd.f32 0.0, %v1145
  %1147 = vmatprep.mubr.f32.mxu0 0.0
  %1148 = vmatmul.mubr.f32.gmra.mxu0 %v914
  %v1149 = vpop.f32.mrf.mxu0
  %v1150 = vadd.f32 0.0, %v1149
  %v1151 = vpop.f32.mrf.mxu0
  %v1152 = vadd.f32 0.0, %v1151
  %1153 = vmatprep.mubr.f32.mxu0 0.0
  %1154 = vmatmul.mubr.f32.gmra.mxu0 %v917
  %v1155 = vpop.f32.mrf.mxu0
  %v1156 = vadd.f32 0.0, %v1155
  %v1157 = vpop.f32.mrf.mxu0
  %v1158 = vadd.f32 0.0, %v1157
  %1159 = vmatprep.mubr.f32.mxu0 0.0
  %1160 = vmatmul.mubr.f32.gmra.mxu0 %v920
  %v1161 = vpop.f32.mrf.mxu0
  %v1162 = vadd.f32 0.0, %v1161
  %v1163 = vpop.f32.mrf.mxu0
  %v1164 = vadd.f32 0.0, %v1163
  %1165 = vmatprep.mubr.f32.mxu0 0.0
  %1166 = vmatmul.mubr.f32.gmra.mxu0 %v923
  %v1167 = vpop.f32.mrf.mxu0
  %v1168 = vadd.f32 0.0, %v1167
  %v1169 = vpop.f32.mrf.mxu0
  %v1170 = vadd.f32 0.0, %v1169
  %1171 = vmatprep.mubr.f32.mxu0 0.0
  %1172 = vmatmul.mubr.f32.gmra.mxu0 %v926
  %v1173 = vpop.f32.mrf.mxu0
  %v1174 = vadd.f32 0.0, %v1173
  %v1175 = vpop.f32.mrf.mxu0
  %v1176 = vadd.f32 0.0, %v1175
  %1177 = vmatprep.mubr.f32.mxu0 0.0
  %1178 = vmatmul.mubr.f32.gmra.mxu0 %v929
  %v1179 = vpop.f32.mrf.mxu0
  %v1180 = vadd.f32 0.0, %v1179
  %v1181 = vpop.f32.mrf.mxu0
  %v1182 = vadd.f32 0.0, %v1181
  %1183 = vmatprep.mubr.f32.mxu0 0.0
  %1184 = vmatmul.mubr.f32.gmra.mxu0 %v932
  %v1185 = vpop.f32.mrf.mxu0
  %v1186 = vadd.f32 0.0, %v1185
  %v1187 = vpop.f32.mrf.mxu0
  %v1188 = vadd.f32 0.0, %v1187
  %1189 = vdwg.mxu0
  %1190 = vmatprep.subr.mxu0 0.0
  %1191 = vmatpush1.msra.mxu0 0.0
  %1192 = vmatprep.subr.mxu0 0.0
  %1193 = vmatpush1.msra.mxu0 0.0
  %1194 = vmatprep.subr.mxu0 0.0
  %1195 = vmatpush1.msra.mxu0 0.0
  %1196 = vmatprep.subr.mxu0 0.0
  %1197 = vmatpush1.msra.mxu0 0.0
  %1198 = vmatprep.subr.mxu0 0.0
  %1199 = vmatpush1.msra.mxu0 0.0
  %1200 = vmatprep.subr.mxu0 0.0
  %1201 = vmatpush1.msra.mxu0 0.0
  %1202 = vmatprep.subr.mxu0 0.0
  %1203 = vmatpush1.msra.mxu0 0.0
  %1204 = vmatprep.subr.mxu0 0.0
  %1205 = vmatpush1.msra.mxu0 0.0
  %1206 = vmatprep.subr.mxu0 0.0
  %1207 = vmatpush1.msra.mxu0 0.0
  %1208 = vmatprep.subr.mxu0 0.0
  %1209 = vmatpush1.msra.mxu0 0.0
  %1210 = vmatprep.subr.mxu0 0.0
  %1211 = vmatpush1.msra.mxu0 0.0
  %1212 = vmatprep.subr.mxu0 0.0
  %1213 = vmatpush1.msra.mxu0 0.0
  %1214 = vmatprep.subr.mxu0 0.0
  %1215 = vmatpush1.msra.mxu0 0.0
  %1216 = vmatprep.subr.mxu0 0.0
  %1217 = vmatpush1.msra.mxu0 0.0
  %1218 = vmatprep.subr.mxu0 0.0
  %1219 = vmatpush1.msra.mxu0 0.0
  %1220 = vmatprep.subr.mxu0 %v950
  %1221 = vmatpush1.msra.mxu0 %v947
  %1222 = vmatprep.subr.mxu0 0.0
  %1223 = vmatpush2.msra.mxu0 0.0
  %1224 = vmatprep.subr.mxu0 0.0
  %1225 = vmatpush2.msra.mxu0 0.0
  %1226 = vmatprep.subr.mxu0 0.0
  %1227 = vmatpush2.msra.mxu0 0.0
  %1228 = vmatprep.subr.mxu0 0.0
  %1229 = vmatpush2.msra.mxu0 0.0
  %1230 = vmatprep.subr.mxu0 0.0
  %1231 = vmatpush2.msra.mxu0 0.0
  %1232 = vmatprep.subr.mxu0 0.0
  %1233 = vmatpush2.msra.mxu0 0.0
  %1234 = vmatprep.subr.mxu0 0.0
  %1235 = vmatpush2.msra.mxu0 0.0
  %1236 = vmatprep.subr.mxu0 0.0
  %1237 = vmatpush2.msra.mxu0 0.0
  %1238 = vmatprep.subr.mxu0 0.0
  %1239 = vmatpush2.msra.mxu0 0.0
  %1240 = vmatprep.subr.mxu0 0.0
  %1241 = vmatpush2.msra.mxu0 0.0
  %1242 = vmatprep.subr.mxu0 0.0
  %1243 = vmatpush2.msra.mxu0 0.0
  %1244 = vmatprep.subr.mxu0 0.0
  %1245 = vmatpush2.msra.mxu0 0.0
  %1246 = vmatprep.subr.mxu0 0.0
  %1247 = vmatpush2.msra.mxu0 0.0
  %1248 = vmatprep.subr.mxu0 0.0
  %1249 = vmatpush2.msra.mxu0 0.0
  %1250 = vmatprep.subr.mxu0 0.0
  %1251 = vmatpush2.msra.mxu0 0.0
  %1252 = vmatprep.subr.mxu0 0.0
  %1253 = vmatpush2.msra.mxu0 0.0
  %1254 = vmatprep.mubr.f32.mxu0 0.0
  %1255 = vmatmul.mubr.f32.gmra.mxu0 %v908
  %v1256 = vpop.f32.mrf.mxu0
  %v1257 = vadd.f32 0.0, %v1256
  %v1258 = vpop.f32.mrf.mxu0
  %v1259 = vadd.f32 0.0, %v1258
  %1260 = vmatprep.mubr.f32.mxu0 0.0
  %1261 = vmatmul.mubr.f32.gmra.mxu0 %v911
  %v1262 = vpop.f32.mrf.mxu0
  %v1263 = vadd.f32 0.0, %v1262
  %v1264 = vpop.f32.mrf.mxu0
  %v1265 = vadd.f32 0.0, %v1264
  %1266 = vmatprep.mubr.f32.mxu0 0.0
  %1267 = vmatmul.mubr.f32.gmra.mxu0 %v914
  %v1268 = vpop.f32.mrf.mxu0
  %v1269 = vadd.f32 0.0, %v1268
  %v1270 = vpop.f32.mrf.mxu0
  %v1271 = vadd.f32 0.0, %v1270
  %1272 = vmatprep.mubr.f32.mxu0 0.0
  %1273 = vmatmul.mubr.f32.gmra.mxu0 %v917
  %v1274 = vpop.f32.mrf.mxu0
  %v1275 = vadd.f32 0.0, %v1274
  %v1276 = vpop.f32.mrf.mxu0
  %v1277 = vadd.f32 0.0, %v1276
  %1278 = vmatprep.mubr.f32.mxu0 0.0
  %1279 = vmatmul.mubr.f32.gmra.mxu0 %v920
  %v1280 = vpop.f32.mrf.mxu0
  %v1281 = vadd.f32 0.0, %v1280
  %v1282 = vpop.f32.mrf.mxu0
  %v1283 = vadd.f32 0.0, %v1282
  %1284 = vmatprep.mubr.f32.mxu0 0.0
  %1285 = vmatmul.mubr.f32.gmra.mxu0 %v923
  %v1286 = vpop.f32.mrf.mxu0
  %v1287 = vadd.f32 0.0, %v1286
  %v1288 = vpop.f32.mrf.mxu0
  %v1289 = vadd.f32 0.0, %v1288
  %1290 = vmatprep.mubr.f32.mxu0 0.0
  %1291 = vmatmul.mubr.f32.gmra.mxu0 %v926
  %v1292 = vpop.f32.mrf.mxu0
  %v1293 = vadd.f32 0.0, %v1292
  %v1294 = vpop.f32.mrf.mxu0
  %v1295 = vadd.f32 0.0, %v1294
  %1296 = vmatprep.mubr.f32.mxu0 0.0
  %1297 = vmatmul.mubr.f32.gmra.mxu0 %v929
  %v1298 = vpop.f32.mrf.mxu0
  %v1299 = vadd.f32 0.0, %v1298
  %v1300 = vpop.f32.mrf.mxu0
  %v1301 = vadd.f32 0.0, %v1300
  %1302 = vmatprep.mubr.f32.mxu0 0.0
  %1303 = vmatmul.mubr.f32.gmra.mxu0 %v932
  %v1304 = vpop.f32.mrf.mxu0
  %v1305 = vadd.f32 0.0, %v1304
  %v1306 = vpop.f32.mrf.mxu0
  %v1307 = vadd.f32 0.0, %v1306
  %1308 = vdwg.mxu0
  %1309 = vrot.lane.b32.xlu0 %v1019, 19
  %v1310 = vpop.permute.xlu0 %1309
  %1311 = vrot.lane.b32.xlu0 %v1021, 19
  %v1312 = vpop.permute.xlu0 %1311
  %1313 = vrot.lane.b32.xlu0 %v1138, 19
  %v1314 = vpop.permute.xlu0 %1313
  %1315 = vrot.lane.b32.xlu0 %v1140, 19
  %v1316 = vpop.permute.xlu0 %1315
  %1317 = vrot.lane.b32.xlu0 %v1257, 19
  %v1318 = vpop.permute.xlu0 %1317
  %1319 = vrot.lane.b32.xlu0 %v1259, 19
  %v1320 = vpop.permute.xlu0 %1319
  %v1321 = vsel %vm521, %v1318, %v1320
  %v1322 = vsel %vm521, %v1316, %v1318
  %v1323 = vsel %vm521, %v1314, %v1316
  %v1324 = vsel %vm521, %v1312, %v1314
  %v1325 = vsel %vm521, %v1310, %v1312
  %v1326 = vsel %vm521, %v1320, %v1310
  %1327 = vrot.lane.b32.xlu0 %v1025, 18
  %v1328 = vpop.permute.xlu0 %1327
  %1329 = vrot.lane.b32.xlu0 %v1027, 18
  %v1330 = vpop.permute.xlu0 %1329
  %1331 = vrot.lane.b32.xlu0 %v1144, 18
  %v1332 = vpop.permute.xlu0 %1331
  %1333 = vrot.lane.b32.xlu0 %v1146, 18
  %v1334 = vpop.permute.xlu0 %1333
  %1335 = vrot.lane.b32.xlu0 %v1263, 18
  %v1336 = vpop.permute.xlu0 %1335
  %1337 = vrot.lane.b32.xlu0 %v1265, 18
  %v1338 = vpop.permute.xlu0 %1337
  %v1339 = vsel %vm540, %v1336, %v1338
  %v1340 = vsel %vm540, %v1334, %v1336
  %v1341 = vsel %vm540, %v1332, %v1334
  %v1342 = vsel %vm540, %v1330, %v1332
  %v1343 = vsel %vm540, %v1328, %v1330
  %v1344 = vsel %vm540, %v1338, %v1328
  %v1345 = vadd.f32 %v1326, %v1344
  %v1346 = vadd.f32 %v1325, %v1343
  %v1347 = vadd.f32 %v1324, %v1342
  %v1348 = vadd.f32 %v1323, %v1341
  %v1349 = vadd.f32 %v1322, %v1340
  %v1350 = vadd.f32 %v1321, %v1339
  %1351 = vrot.lane.b32.xlu0 %v1031, 17
  %v1352 = vpop.permute.xlu0 %1351
  %1353 = vrot.lane.b32.xlu0 %v1033, 17
  %v1354 = vpop.permute.xlu0 %1353
  %1355 = vrot.lane.b32.xlu0 %v1150, 17
  %v1356 = vpop.permute.xlu0 %1355
  %1357 = vrot.lane.b32.xlu0 %v1152, 17
  %v1358 = vpop.permute.xlu0 %1357
  %1359 = vrot.lane.b32.xlu0 %v1269, 17
  %v1360 = vpop.permute.xlu0 %1359
  %1361 = vrot.lane.b32.xlu0 %v1271, 17
  %v1362 = vpop.permute.xlu0 %1361
  %v1363 = vsel %vm565, %v1360, %v1362
  %v1364 = vsel %vm565, %v1358, %v1360
  %v1365 = vsel %vm565, %v1356, %v1358
  %v1366 = vsel %vm565, %v1354, %v1356
  %v1367 = vsel %vm565, %v1352, %v1354
  %v1368 = vsel %vm565, %v1362, %v1352
  %v1369 = vadd.f32 %v1345, %v1368
  %v1370 = vadd.f32 %v1346, %v1367
  %v1371 = vadd.f32 %v1347, %v1366
  %v1372 = vadd.f32 %v1348, %v1365
  %v1373 = vadd.f32 %v1349, %v1364
  %v1374 = vadd.f32 %v1350, %v1363
  %1375 = vrot.lane.b32.xlu0 %v1037, 1
  %v1376 = vpop.permute.xlu0 %1375
  %1377 = vrot.lane.b32.xlu0 %v1039, 1
  %v1378 = vpop.permute.xlu0 %1377
  %1379 = vrot.lane.b32.xlu0 %v1156, 1
  %v1380 = vpop.permute.xlu0 %1379
  %1381 = vrot.lane.b32.xlu0 %v1158, 1
  %v1382 = vpop.permute.xlu0 %1381
  %1383 = vrot.lane.b32.xlu0 %v1275, 1
  %v1384 = vpop.permute.xlu0 %1383
  %1385 = vrot.lane.b32.xlu0 %v1277, 1
  %v1386 = vpop.permute.xlu0 %1385
  %v1387 = vsel %vm590, %v1384, %v1386
  %v1388 = vsel %vm590, %v1382, %v1384
  %v1389 = vsel %vm590, %v1380, %v1382
  %v1390 = vsel %vm590, %v1378, %v1380
  %v1391 = vsel %vm590, %v1376, %v1378
  %v1392 = vsel %vm590, %v1386, %v1376
  %v1393 = vadd.f32 %v1369, %v1392
  %v1394 = vadd.f32 %v1370, %v1391
  %v1395 = vadd.f32 %v1371, %v1390
  %v1396 = vadd.f32 %v1372, %v1389
  %v1397 = vadd.f32 %v1373, %v1388
  %v1398 = vadd.f32 %v1374, %v1387
  %v1399 = vadd.f32 %v1393, %v1043
  %v1400 = vadd.f32 %v1394, %v1045
  %v1401 = vadd.f32 %v1395, %v1162
  %v1402 = vadd.f32 %v1396, %v1164
  %v1403 = vadd.f32 %v1397, %v1281
  %v1404 = vadd.f32 %v1398, %v1283
  %1405 = vrot.lane.b32.xlu0 %v1049, 127
  %v1406 = vpop.permute.xlu0 %1405
  %1407 = vrot.lane.b32.xlu0 %v1051, 127
  %v1408 = vpop.permute.xlu0 %1407
  %1409 = vrot.lane.b32.xlu0 %v1168, 127
  %v1410 = vpop.permute.xlu0 %1409
  %1411 = vrot.lane.b32.xlu0 %v1170, 127
  %v1412 = vpop.permute.xlu0 %1411
  %1413 = vrot.lane.b32.xlu0 %v1287, 127
  %v1414 = vpop.permute.xlu0 %1413
  %1415 = vrot.lane.b32.xlu0 %v1289, 127
  %v1416 = vpop.permute.xlu0 %1415
  %v1417 = vsel %vm621, %v1414, %v1416
  %v1418 = vsel %vm621, %v1412, %v1414
  %v1419 = vsel %vm621, %v1410, %v1412
  %v1420 = vsel %vm621, %v1408, %v1410
  %v1421 = vsel %vm621, %v1406, %v1408
  %v1422 = vsel %vm621, %v1416, %v1406
  %v1423 = vadd.f32 %v1399, %v1421
  %v1424 = vadd.f32 %v1400, %v1420
  %v1425 = vadd.f32 %v1401, %v1419
  %v1426 = vadd.f32 %v1402, %v1418
  %v1427 = vadd.f32 %v1403, %v1417
  %v1428 = vadd.f32 %v1404, %v1422
  %1429 = vrot.lane.b32.xlu0 %v1055, 111
  %v1430 = vpop.permute.xlu0 %1429
  %1431 = vrot.lane.b32.xlu0 %v1057, 111
  %v1432 = vpop.permute.xlu0 %1431
  %1433 = vrot.lane.b32.xlu0 %v1174, 111
  %v1434 = vpop.permute.xlu0 %1433
  %1435 = vrot.lane.b32.xlu0 %v1176, 111
  %v1436 = vpop.permute.xlu0 %1435
  %1437 = vrot.lane.b32.xlu0 %v1293, 111
  %v1438 = vpop.permute.xlu0 %1437
  %1439 = vrot.lane.b32.xlu0 %v1295, 111
  %v1440 = vpop.permute.xlu0 %1439
  %v1441 = vsel %vm646, %v1438, %v1440
  %v1442 = vsel %vm646, %v1436, %v1438
  %v1443 = vsel %vm646, %v1434, %v1436
  %v1444 = vsel %vm646, %v1432, %v1434
  %v1445 = vsel %vm646, %v1430, %v1432
  %v1446 = vsel %vm646, %v1440, %v1430
  %v1447 = vadd.f32 %v1423, %v1445
  %v1448 = vadd.f32 %v1424, %v1444
  %v1449 = vadd.f32 %v1425, %v1443
  %v1450 = vadd.f32 %v1426, %v1442
  %v1451 = vadd.f32 %v1427, %v1441
  %v1452 = vadd.f32 %v1428, %v1446
  %1453 = vrot.lane.b32.xlu0 %v1061, 110
  %v1454 = vpop.permute.xlu0 %1453
  %1455 = vrot.lane.b32.xlu0 %v1063, 110
  %v1456 = vpop.permute.xlu0 %1455
  %1457 = vrot.lane.b32.xlu0 %v1180, 110
  %v1458 = vpop.permute.xlu0 %1457
  %1459 = vrot.lane.b32.xlu0 %v1182, 110
  %v1460 = vpop.permute.xlu0 %1459
  %1461 = vrot.lane.b32.xlu0 %v1299, 110
  %v1462 = vpop.permute.xlu0 %1461
  %1463 = vrot.lane.b32.xlu0 %v1301, 110
  %v1464 = vpop.permute.xlu0 %1463
  %v1465 = vsel %vm671, %v1462, %v1464
  %v1466 = vsel %vm671, %v1460, %v1462
  %v1467 = vsel %vm671, %v1458, %v1460
  %v1468 = vsel %vm671, %v1456, %v1458
  %v1469 = vsel %vm671, %v1454, %v1456
  %v1470 = vsel %vm671, %v1464, %v1454
  %v1471 = vadd.f32 %v1447, %v1469
  %v1472 = vadd.f32 %v1448, %v1468
  %v1473 = vadd.f32 %v1449, %v1467
  %v1474 = vadd.f32 %v1450, %v1466
  %v1475 = vadd.f32 %v1451, %v1465
  %v1476 = vadd.f32 %v1452, %v1470
  %1477 = vrot.lane.b32.xlu0 %v1067, 109
  %v1478 = vpop.permute.xlu0 %1477
  %1479 = vrot.lane.b32.xlu0 %v1069, 109
  %v1480 = vpop.permute.xlu0 %1479
  %1481 = vrot.lane.b32.xlu0 %v1186, 109
  %v1482 = vpop.permute.xlu0 %1481
  %1483 = vrot.lane.b32.xlu0 %v1188, 109
  %v1484 = vpop.permute.xlu0 %1483
  %1485 = vrot.lane.b32.xlu0 %v1305, 109
  %v1486 = vpop.permute.xlu0 %1485
  %1487 = vrot.lane.b32.xlu0 %v1307, 109
  %v1488 = vpop.permute.xlu0 %1487
  %v1489 = vsel %vm696, %v1486, %v1488
  %v1490 = vsel %vm696, %v1484, %v1486
  %v1491 = vsel %vm696, %v1482, %v1484
  %v1492 = vsel %vm696, %v1480, %v1482
  %v1493 = vsel %vm696, %v1478, %v1480
  %v1494 = vsel %vm696, %v1488, %v1478
  %v1495 = vadd.f32 %v1471, %v1493
  %v1496 = vadd.f32 %v1472, %v1492
  %v1497 = vadd.f32 %v1473, %v1491
  %v1498 = vadd.f32 %v1474, %v1490
  %v1499 = vadd.f32 %v1475, %v1489
  %v1500 = vadd.f32 %v1476, %v1494
  %v1504 = vcombine.high %v89, %v89
  %v1505 = vcombine.high %v90, %v90
  %v1506 = vcombine.high %v91, %v91
  %v1510 = vsel %vm137, %v89, 0.0
  %v1511 = vsel %vm137, %v1504, 0.0
  %v1512 = vadd.f32 %v1510, %v1511
  %v1513 = vsel %vm137, %v90, 0.0
  %v1514 = vadd.f32 %v1512, %v1513
  %v1515 = vsel %vm137, %v1505, 0.0
  %v1516 = vadd.f32 %v1514, %v1515
  %v1517 = vsel %vm137, %v91, 0.0
  %v1518 = vadd.f32 %v1516, %v1517
  %v1519 = vsel %vm137, %v1506, 0.0
  %v1520 = vadd.f32 %v1518, %v1519
  %1521 = vadd.xlane.f32.xlu0 %v1520
  %v1522 = vpop.xlane.xlu0 %1521
  %v1523 = vmul.f32 %v1522, 0.001953125
  %v1524 = vmul.f32 %v89, %v89
  %v1525 = vmul.f32 %v90, %v90
  %v1526 = vmul.f32 %v91, %v91
  %v1530 = vcombine.high %v1524, %v1524
  %v1531 = vcombine.high %v1525, %v1525
  %v1532 = vcombine.high %v1526, %v1526
  %v1536 = vsel %vm137, %v1524, 0.0
  %v1537 = vsel %vm137, %v1530, 0.0
  %v1538 = vadd.f32 %v1536, %v1537
  %v1539 = vsel %vm137, %v1525, 0.0
  %v1540 = vadd.f32 %v1538, %v1539
  %v1541 = vsel %vm137, %v1531, 0.0
  %v1542 = vadd.f32 %v1540, %v1541
  %v1543 = vsel %vm137, %v1526, 0.0
  %v1544 = vadd.f32 %v1542, %v1543
  %v1545 = vsel %vm137, %v1532, 0.0
  %v1546 = vadd.f32 %v1544, %v1545
  %1547 = vadd.xlane.f32.xlu0 %v1546
  %v1548 = vpop.xlane.xlu0 %1547
  %v1549 = vmul.f32 %v1548, 0.001953125
  %v1550 = vmul.f32 %v1523, %v1523
  %v1551 = vsub.f32 %v1549, %v1550
  %v1552 = vadd.f32 %v1551, 1e-05
  %v1553 = vrsqrt.pop %v1552
  %v1554 = vmul.f32 %v759, %v1553
  %v1557 = vunpack.c.l.s4 839922192
  %v1558 = vunpack.c.0.s8 %v1557
  %v1559 = vlaneseq
  %v1560 = vshrl.u32 %v1559, 7
  %v1561 = vsub.s32 %v1558, %v1560
  %v1562 = vrot.slane %v1523, %v1561
  %v1564 = vsub.f32 %v89, %v1562
  %v1565 = vsub.f32 %v90, %v1562
  %v1566 = vsub.f32 %v91, %v1562
  %1568 = vset.pattern.permute.xlu0 0
  %1569 = vperm.xlu0 %1568, %v1554
  %v1570 = vpop.permute.xlu0 %1569
  %v1572 = vunpack.c.l.s4 839922192
  %v1573 = vunpack.c.0.s8 %v1572
  %v1574 = vlaneseq
  %v1575 = vshrl.u32 %v1574, 7
  %v1576 = vsub.s32 %v1573, %v1575
  %v1577 = vrot.slane %v1570, %v1576
  %v1579 = vmul.f32 %v1564, %v1577
  %v1580 = vmul.f32 %v1565, %v1577
  %v1581 = vmul.f32 %v1566, %v1577
  %1583 = vset.pattern.permute.xlu0 0
  %1584 = vperm.xlu0 %1583, %v760
  %v1585 = vpop.permute.xlu0 %1584
  %v1587 = vunpack.c.l.s4 839922192
  %v1588 = vunpack.c.0.s8 %v1587
  %v1589 = vlaneseq
  %v1590 = vshrl.u32 %v1589, 7
  %v1591 = vsub.s32 %v1588, %v1590
  %v1592 = vrot.slane %v1585, %v1591
  %v1594 = vadd.f32 %v1579, %v1592
  %v1595 = vadd.f32 %v1580, %v1592
  %v1596 = vadd.f32 %v1581, %v1592
  %v1597 = vsub.f32 0.0, %v1594
  %v1598 = vsub.f32 0.0, %v1595
  %v1599 = vsub.f32 0.0, %v1596
  %v1600 = vmul.f32 %v1597, 1.442695
  %v1601 = vpow.pop %v1600
  %v1602 = vmul.f32 %v1598, 1.442695
  %v1603 = vpow.pop %v1602
  %v1604 = vmul.f32 %v1599, 1.442695
  %v1605 = vpow.pop %v1604
  %v1606 = vadd.f32 %v1601, 1.0
  %v1607 = vadd.f32 %v1603, 1.0
  %v1608 = vadd.f32 %v1605, 1.0
  %v1609 = vrcp.pop %v1606
  %v1610 = vmul.f32 1.0, %v1609
  %v1611 = vrcp.pop %v1607
  %v1612 = vmul.f32 1.0, %v1611
  %v1613 = vrcp.pop %v1608
  %v1614 = vmul.f32 1.0, %v1613
  %v1615 = vmul.f32 %v1594, %v1610
  %v1616 = vmul.f32 %v1595, %v1612
  %v1617 = vmul.f32 %v1596, %v1614
  %v1618 = vcombine.low %v724, %v728
  %v1619 = vcombine.low %v732, %v736
  %v1620 = vcombine.low %v740, %v744
  %v1624 = vmul.f32 %v1615, %v1618
  %v1625 = vmul.f32 %v1616, %v1619
  %v1626 = vmul.f32 %v1617, %v1620
  %v1630 = vcombine.high %v1624, %v1624
  %v1631 = vcombine.high %v1625, %v1625
  %v1632 = vcombine.high %v1626, %v1626
  %v1634 = vsel %vm109, %v770, 0
  %v1637 = vsel %vm109, %v771, 0
  %v1640 = vsel %vm109, %v772, 0
  %v1643 = vsel %vm109, %v773, 0
  %v1646 = vsel %vm109, %v774, 0
  %v1649 = vsel %vm109, %v775, 0
  %v1652 = vsel %vm109, %v776, 0
  %v1655 = vsel %vm109, %v777, 0
  %v1658 = vsel %vm109, %v778, 0
  %v1660 = vsel %vm137, %v1624, 0
  %v1662 = vsel %vm137, %v1630, 0
  %v1664 = vsel %vm137, %v1625, 0
  %v1666 = vsel %vm137, %v1631, 0
  %v1668 = vsel %vm137, %v1626, 0
  %v1670 = vsel %vm137, %v1632, 0
  %1672 = vmatprep.subr.mxu0 0.0
  %1673 = vmatpush1.msra.mxu0 0.0
  %1674 = vmatprep.subr.mxu0 0.0
  %1675 = vmatpush1.msra.mxu0 0.0
  %1676 = vmatprep.subr.mxu0 0.0
  %1677 = vmatpush1.msra.mxu0 0.0
  %1678 = vmatprep.subr.mxu0 0.0
  %1679 = vmatpush1.msra.mxu0 0.0
  %1680 = vmatprep.subr.mxu0 0.0
  %1681 = vmatpush1.msra.mxu0 0.0
  %1682 = vmatprep.subr.mxu0 0.0
  %1683 = vmatpush1.msra.mxu0 0.0
  %1684 = vmatprep.subr.mxu0 0.0
  %1685 = vmatpush1.msra.mxu0 0.0
  %1686 = vmatprep.subr.mxu0 0.0
  %1687 = vmatpush1.msra.mxu0 0.0
  %1688 = vmatprep.subr.mxu0 0.0
  %1689 = vmatpush1.msra.mxu0 0.0
  %1690 = vmatprep.subr.mxu0 0.0
  %1691 = vmatpush1.msra.mxu0 0.0
  %1692 = vmatprep.subr.mxu0 0.0
  %1693 = vmatpush1.msra.mxu0 0.0
  %1694 = vmatprep.subr.mxu0 0.0
  %1695 = vmatpush1.msra.mxu0 0.0
  %1696 = vmatprep.subr.mxu0 0.0
  %1697 = vmatpush1.msra.mxu0 0.0
  %1698 = vmatprep.subr.mxu0 0.0
  %1699 = vmatpush1.msra.mxu0 0.0
  %1700 = vmatprep.subr.mxu0 0.0
  %1701 = vmatpush1.msra.mxu0 0.0
  %1702 = vmatprep.subr.mxu0 %v1662
  %1703 = vmatpush1.msra.mxu0 %v1660
  %1704 = vmatprep.subr.mxu0 0.0
  %1705 = vmatpush2.msra.mxu0 0.0
  %1706 = vmatprep.subr.mxu0 0.0
  %1707 = vmatpush2.msra.mxu0 0.0
  %1708 = vmatprep.subr.mxu0 0.0
  %1709 = vmatpush2.msra.mxu0 0.0
  %1710 = vmatprep.subr.mxu0 0.0
  %1711 = vmatpush2.msra.mxu0 0.0
  %1712 = vmatprep.subr.mxu0 0.0
  %1713 = vmatpush2.msra.mxu0 0.0
  %1714 = vmatprep.subr.mxu0 0.0
  %1715 = vmatpush2.msra.mxu0 0.0
  %1716 = vmatprep.subr.mxu0 0.0
  %1717 = vmatpush2.msra.mxu0 0.0
  %1718 = vmatprep.subr.mxu0 0.0
  %1719 = vmatpush2.msra.mxu0 0.0
  %1720 = vmatprep.subr.mxu0 0.0
  %1721 = vmatpush2.msra.mxu0 0.0
  %1722 = vmatprep.subr.mxu0 0.0
  %1723 = vmatpush2.msra.mxu0 0.0
  %1724 = vmatprep.subr.mxu0 0.0
  %1725 = vmatpush2.msra.mxu0 0.0
  %1726 = vmatprep.subr.mxu0 0.0
  %1727 = vmatpush2.msra.mxu0 0.0
  %1728 = vmatprep.subr.mxu0 0.0
  %1729 = vmatpush2.msra.mxu0 0.0
  %1730 = vmatprep.subr.mxu0 0.0
  %1731 = vmatpush2.msra.mxu0 0.0
  %1732 = vmatprep.subr.mxu0 0.0
  %1733 = vmatpush2.msra.mxu0 0.0
  %1734 = vmatprep.subr.mxu0 0.0
  %1735 = vmatpush2.msra.mxu0 0.0
  %1736 = vmatprep.mubr.f32.mxu0 0.0
  %1737 = vmatmul.mubr.f32.gmra.mxu0 %v1634
  %v1738 = vpop.f32.mrf.mxu0
  %v1739 = vadd.f32 0.0, %v1738
  %v1740 = vpop.f32.mrf.mxu0
  %v1741 = vadd.f32 0.0, %v1740
  %1742 = vmatprep.mubr.f32.mxu0 0.0
  %1743 = vmatmul.mubr.f32.gmra.mxu0 %v1637
  %v1744 = vpop.f32.mrf.mxu0
  %v1745 = vadd.f32 0.0, %v1744
  %v1746 = vpop.f32.mrf.mxu0
  %v1747 = vadd.f32 0.0, %v1746
  %1748 = vmatprep.mubr.f32.mxu0 0.0
  %1749 = vmatmul.mubr.f32.gmra.mxu0 %v1640
  %v1750 = vpop.f32.mrf.mxu0
  %v1751 = vadd.f32 0.0, %v1750
  %v1752 = vpop.f32.mrf.mxu0
  %v1753 = vadd.f32 0.0, %v1752
  %1754 = vmatprep.mubr.f32.mxu0 0.0
  %1755 = vmatmul.mubr.f32.gmra.mxu0 %v1643
  %v1756 = vpop.f32.mrf.mxu0
  %v1757 = vadd.f32 0.0, %v1756
  %v1758 = vpop.f32.mrf.mxu0
  %v1759 = vadd.f32 0.0, %v1758
  %1760 = vmatprep.mubr.f32.mxu0 0.0
  %1761 = vmatmul.mubr.f32.gmra.mxu0 %v1646
  %v1762 = vpop.f32.mrf.mxu0
  %v1763 = vadd.f32 0.0, %v1762
  %v1764 = vpop.f32.mrf.mxu0
  %v1765 = vadd.f32 0.0, %v1764
  %1766 = vmatprep.mubr.f32.mxu0 0.0
  %1767 = vmatmul.mubr.f32.gmra.mxu0 %v1649
  %v1768 = vpop.f32.mrf.mxu0
  %v1769 = vadd.f32 0.0, %v1768
  %v1770 = vpop.f32.mrf.mxu0
  %v1771 = vadd.f32 0.0, %v1770
  %1772 = vmatprep.mubr.f32.mxu0 0.0
  %1773 = vmatmul.mubr.f32.gmra.mxu0 %v1652
  %v1774 = vpop.f32.mrf.mxu0
  %v1775 = vadd.f32 0.0, %v1774
  %v1776 = vpop.f32.mrf.mxu0
  %v1777 = vadd.f32 0.0, %v1776
  %1778 = vmatprep.mubr.f32.mxu0 0.0
  %1779 = vmatmul.mubr.f32.gmra.mxu0 %v1655
  %v1780 = vpop.f32.mrf.mxu0
  %v1781 = vadd.f32 0.0, %v1780
  %v1782 = vpop.f32.mrf.mxu0
  %v1783 = vadd.f32 0.0, %v1782
  %1784 = vmatprep.mubr.f32.mxu0 0.0
  %1785 = vmatmul.mubr.f32.gmra.mxu0 %v1658
  %v1786 = vpop.f32.mrf.mxu0
  %v1787 = vadd.f32 0.0, %v1786
  %v1788 = vpop.f32.mrf.mxu0
  %v1789 = vadd.f32 0.0, %v1788
  %1790 = vdwg.mxu0
  %1791 = vmatprep.subr.mxu0 0.0
  %1792 = vmatpush1.msra.mxu0 0.0
  %1793 = vmatprep.subr.mxu0 0.0
  %1794 = vmatpush1.msra.mxu0 0.0
  %1795 = vmatprep.subr.mxu0 0.0
  %1796 = vmatpush1.msra.mxu0 0.0
  %1797 = vmatprep.subr.mxu0 0.0
  %1798 = vmatpush1.msra.mxu0 0.0
  %1799 = vmatprep.subr.mxu0 0.0
  %1800 = vmatpush1.msra.mxu0 0.0
  %1801 = vmatprep.subr.mxu0 0.0
  %1802 = vmatpush1.msra.mxu0 0.0
  %1803 = vmatprep.subr.mxu0 0.0
  %1804 = vmatpush1.msra.mxu0 0.0
  %1805 = vmatprep.subr.mxu0 0.0
  %1806 = vmatpush1.msra.mxu0 0.0
  %1807 = vmatprep.subr.mxu0 0.0
  %1808 = vmatpush1.msra.mxu0 0.0
  %1809 = vmatprep.subr.mxu0 0.0
  %1810 = vmatpush1.msra.mxu0 0.0
  %1811 = vmatprep.subr.mxu0 0.0
  %1812 = vmatpush1.msra.mxu0 0.0
  %1813 = vmatprep.subr.mxu0 0.0
  %1814 = vmatpush1.msra.mxu0 0.0
  %1815 = vmatprep.subr.mxu0 0.0
  %1816 = vmatpush1.msra.mxu0 0.0
  %1817 = vmatprep.subr.mxu0 0.0
  %1818 = vmatpush1.msra.mxu0 0.0
  %1819 = vmatprep.subr.mxu0 0.0
  %1820 = vmatpush1.msra.mxu0 0.0
  %1821 = vmatprep.subr.mxu0 %v1666
  %1822 = vmatpush1.msra.mxu0 %v1664
  %1823 = vmatprep.subr.mxu0 0.0
  %1824 = vmatpush2.msra.mxu0 0.0
  %1825 = vmatprep.subr.mxu0 0.0
  %1826 = vmatpush2.msra.mxu0 0.0
  %1827 = vmatprep.subr.mxu0 0.0
  %1828 = vmatpush2.msra.mxu0 0.0
  %1829 = vmatprep.subr.mxu0 0.0
  %1830 = vmatpush2.msra.mxu0 0.0
  %1831 = vmatprep.subr.mxu0 0.0
  %1832 = vmatpush2.msra.mxu0 0.0
  %1833 = vmatprep.subr.mxu0 0.0
  %1834 = vmatpush2.msra.mxu0 0.0
  %1835 = vmatprep.subr.mxu0 0.0
  %1836 = vmatpush2.msra.mxu0 0.0
  %1837 = vmatprep.subr.mxu0 0.0
  %1838 = vmatpush2.msra.mxu0 0.0
  %1839 = vmatprep.subr.mxu0 0.0
  %1840 = vmatpush2.msra.mxu0 0.0
  %1841 = vmatprep.subr.mxu0 0.0
  %1842 = vmatpush2.msra.mxu0 0.0
  %1843 = vmatprep.subr.mxu0 0.0
  %1844 = vmatpush2.msra.mxu0 0.0
  %1845 = vmatprep.subr.mxu0 0.0
  %1846 = vmatpush2.msra.mxu0 0.0
  %1847 = vmatprep.subr.mxu0 0.0
  %1848 = vmatpush2.msra.mxu0 0.0
  %1849 = vmatprep.subr.mxu0 0.0
  %1850 = vmatpush2.msra.mxu0 0.0
  %1851 = vmatprep.subr.mxu0 0.0
  %1852 = vmatpush2.msra.mxu0 0.0
  %1853 = vmatprep.subr.mxu0 0.0
  %1854 = vmatpush2.msra.mxu0 0.0
  %1855 = vmatprep.mubr.f32.mxu0 0.0
  %1856 = vmatmul.mubr.f32.gmra.mxu0 %v1634
  %v1857 = vpop.f32.mrf.mxu0
  %v1858 = vadd.f32 0.0, %v1857
  %v1859 = vpop.f32.mrf.mxu0
  %v1860 = vadd.f32 0.0, %v1859
  %1861 = vmatprep.mubr.f32.mxu0 0.0
  %1862 = vmatmul.mubr.f32.gmra.mxu0 %v1637
  %v1863 = vpop.f32.mrf.mxu0
  %v1864 = vadd.f32 0.0, %v1863
  %v1865 = vpop.f32.mrf.mxu0
  %v1866 = vadd.f32 0.0, %v1865
  %1867 = vmatprep.mubr.f32.mxu0 0.0
  %1868 = vmatmul.mubr.f32.gmra.mxu0 %v1640
  %v1869 = vpop.f32.mrf.mxu0
  %v1870 = vadd.f32 0.0, %v1869
  %v1871 = vpop.f32.mrf.mxu0
  %v1872 = vadd.f32 0.0, %v1871
  %1873 = vmatprep.mubr.f32.mxu0 0.0
  %1874 = vmatmul.mubr.f32.gmra.mxu0 %v1643
  %v1875 = vpop.f32.mrf.mxu0
  %v1876 = vadd.f32 0.0, %v1875
  %v1877 = vpop.f32.mrf.mxu0
  %v1878 = vadd.f32 0.0, %v1877
  %1879 = vmatprep.mubr.f32.mxu0 0.0
  %1880 = vmatmul.mubr.f32.gmra.mxu0 %v1646
  %v1881 = vpop.f32.mrf.mxu0
  %v1882 = vadd.f32 0.0, %v1881
  %v1883 = vpop.f32.mrf.mxu0
  %v1884 = vadd.f32 0.0, %v1883
  %1885 = vmatprep.mubr.f32.mxu0 0.0
  %1886 = vmatmul.mubr.f32.gmra.mxu0 %v1649
  %v1887 = vpop.f32.mrf.mxu0
  %v1888 = vadd.f32 0.0, %v1887
  %v1889 = vpop.f32.mrf.mxu0
  %v1890 = vadd.f32 0.0, %v1889
  %1891 = vmatprep.mubr.f32.mxu0 0.0
  %1892 = vmatmul.mubr.f32.gmra.mxu0 %v1652
  %v1893 = vpop.f32.mrf.mxu0
  %v1894 = vadd.f32 0.0, %v1893
  %v1895 = vpop.f32.mrf.mxu0
  %v1896 = vadd.f32 0.0, %v1895
  %1897 = vmatprep.mubr.f32.mxu0 0.0
  %1898 = vmatmul.mubr.f32.gmra.mxu0 %v1655
  %v1899 = vpop.f32.mrf.mxu0
  %v1900 = vadd.f32 0.0, %v1899
  %v1901 = vpop.f32.mrf.mxu0
  %v1902 = vadd.f32 0.0, %v1901
  %1903 = vmatprep.mubr.f32.mxu0 0.0
  %1904 = vmatmul.mubr.f32.gmra.mxu0 %v1658
  %v1905 = vpop.f32.mrf.mxu0
  %v1906 = vadd.f32 0.0, %v1905
  %v1907 = vpop.f32.mrf.mxu0
  %v1908 = vadd.f32 0.0, %v1907
  %1909 = vdwg.mxu0
  %1910 = vmatprep.subr.mxu0 0.0
  %1911 = vmatpush1.msra.mxu0 0.0
  %1912 = vmatprep.subr.mxu0 0.0
  %1913 = vmatpush1.msra.mxu0 0.0
  %1914 = vmatprep.subr.mxu0 0.0
  %1915 = vmatpush1.msra.mxu0 0.0
  %1916 = vmatprep.subr.mxu0 0.0
  %1917 = vmatpush1.msra.mxu0 0.0
  %1918 = vmatprep.subr.mxu0 0.0
  %1919 = vmatpush1.msra.mxu0 0.0
  %1920 = vmatprep.subr.mxu0 0.0
  %1921 = vmatpush1.msra.mxu0 0.0
  %1922 = vmatprep.subr.mxu0 0.0
  %1923 = vmatpush1.msra.mxu0 0.0
  %1924 = vmatprep.subr.mxu0 0.0
  %1925 = vmatpush1.msra.mxu0 0.0
  %1926 = vmatprep.subr.mxu0 0.0
  %1927 = vmatpush1.msra.mxu0 0.0
  %1928 = vmatprep.subr.mxu0 0.0
  %1929 = vmatpush1.msra.mxu0 0.0
  %1930 = vmatprep.subr.mxu0 0.0
  %1931 = vmatpush1.msra.mxu0 0.0
  %1932 = vmatprep.subr.mxu0 0.0
  %1933 = vmatpush1.msra.mxu0 0.0
  %1934 = vmatprep.subr.mxu0 0.0
  %1935 = vmatpush1.msra.mxu0 0.0
  %1936 = vmatprep.subr.mxu0 0.0
  %1937 = vmatpush1.msra.mxu0 0.0
  %1938 = vmatprep.subr.mxu0 0.0
  %1939 = vmatpush1.msra.mxu0 0.0
  %1940 = vmatprep.subr.mxu0 %v1670
  %1941 = vmatpush1.msra.mxu0 %v1668
  %1942 = vmatprep.subr.mxu0 0.0
  %1943 = vmatpush2.msra.mxu0 0.0
  %1944 = vmatprep.subr.mxu0 0.0
  %1945 = vmatpush2.msra.mxu0 0.0
  %1946 = vmatprep.subr.mxu0 0.0
  %1947 = vmatpush2.msra.mxu0 0.0
  %1948 = vmatprep.subr.mxu0 0.0
  %1949 = vmatpush2.msra.mxu0 0.0
  %1950 = vmatprep.subr.mxu0 0.0
  %1951 = vmatpush2.msra.mxu0 0.0
  %1952 = vmatprep.subr.mxu0 0.0
  %1953 = vmatpush2.msra.mxu0 0.0
  %1954 = vmatprep.subr.mxu0 0.0
  %1955 = vmatpush2.msra.mxu0 0.0
  %1956 = vmatprep.subr.mxu0 0.0
  %1957 = vmatpush2.msra.mxu0 0.0
  %1958 = vmatprep.subr.mxu0 0.0
  %1959 = vmatpush2.msra.mxu0 0.0
  %1960 = vmatprep.subr.mxu0 0.0
  %1961 = vmatpush2.msra.mxu0 0.0
  %1962 = vmatprep.subr.mxu0 0.0
  %1963 = vmatpush2.msra.mxu0 0.0
  %1964 = vmatprep.subr.mxu0 0.0
  %1965 = vmatpush2.msra.mxu0 0.0
  %1966 = vmatprep.subr.mxu0 0.0
  %1967 = vmatpush2.msra.mxu0 0.0
  %1968 = vmatprep.subr.mxu0 0.0
  %1969 = vmatpush2.msra.mxu0 0.0
  %1970 = vmatprep.subr.mxu0 0.0
  %1971 = vmatpush2.msra.mxu0 0.0
  %1972 = vmatprep.subr.mxu0 0.0
  %1973 = vmatpush2.msra.mxu0 0.0
  %1974 = vmatprep.mubr.f32.mxu0 0.0
  %1975 = vmatmul.mubr.f32.gmra.mxu0 %v1634
  %v1976 = vpop.f32.mrf.mxu0
  %v1977 = vadd.f32 0.0, %v1976
  %v1978 = vpop.f32.mrf.mxu0
  %v1979 = vadd.f32 0.0, %v1978
  %1980 = vmatprep.mubr.f32.mxu0 0.0
  %1981 = vmatmul.mubr.f32.gmra.mxu0 %v1637
  %v1982 = vpop.f32.mrf.mxu0
  %v1983 = vadd.f32 0.0, %v1982
  %v1984 = vpop.f32.mrf.mxu0
  %v1985 = vadd.f32 0.0, %v1984
  %1986 = vmatprep.mubr.f32.mxu0 0.0
  %1987 = vmatmul.mubr.f32.gmra.mxu0 %v1640
  %v1988 = vpop.f32.mrf.mxu0
  %v1989 = vadd.f32 0.0, %v1988
  %v1990 = vpop.f32.mrf.mxu0
  %v1991 = vadd.f32 0.0, %v1990
  %1992 = vmatprep.mubr.f32.mxu0 0.0
  %1993 = vmatmul.mubr.f32.gmra.mxu0 %v1643
  %v1994 = vpop.f32.mrf.mxu0
  %v1995 = vadd.f32 0.0, %v1994
  %v1996 = vpop.f32.mrf.mxu0
  %v1997 = vadd.f32 0.0, %v1996
  %1998 = vmatprep.mubr.f32.mxu0 0.0
  %1999 = vmatmul.mubr.f32.gmra.mxu0 %v1646
  %v2000 = vpop.f32.mrf.mxu0
  %v2001 = vadd.f32 0.0, %v2000
  %v2002 = vpop.f32.mrf.mxu0
  %v2003 = vadd.f32 0.0, %v2002
  %2004 = vmatprep.mubr.f32.mxu0 0.0
  %2005 = vmatmul.mubr.f32.gmra.mxu0 %v1649
  %v2006 = vpop.f32.mrf.mxu0
  %v2007 = vadd.f32 0.0, %v2006
  %v2008 = vpop.f32.mrf.mxu0
  %v2009 = vadd.f32 0.0, %v2008
  %2010 = vmatprep.mubr.f32.mxu0 0.0
  %2011 = vmatmul.mubr.f32.gmra.mxu0 %v1652
  %v2012 = vpop.f32.mrf.mxu0
  %v2013 = vadd.f32 0.0, %v2012
  %v2014 = vpop.f32.mrf.mxu0
  %v2015 = vadd.f32 0.0, %v2014
  %2016 = vmatprep.mubr.f32.mxu0 0.0
  %2017 = vmatmul.mubr.f32.gmra.mxu0 %v1655
  %v2018 = vpop.f32.mrf.mxu0
  %v2019 = vadd.f32 0.0, %v2018
  %v2020 = vpop.f32.mrf.mxu0
  %v2021 = vadd.f32 0.0, %v2020
  %2022 = vmatprep.mubr.f32.mxu0 0.0
  %2023 = vmatmul.mubr.f32.gmra.mxu0 %v1658
  %v2024 = vpop.f32.mrf.mxu0
  %v2025 = vadd.f32 0.0, %v2024
  %v2026 = vpop.f32.mrf.mxu0
  %v2027 = vadd.f32 0.0, %v2026
  %2028 = vdwg.mxu0
  %2029 = vrot.lane.b32.xlu0 %v1739, 19
  %v2030 = vpop.permute.xlu0 %2029
  %2031 = vrot.lane.b32.xlu0 %v1741, 19
  %v2032 = vpop.permute.xlu0 %2031
  %2033 = vrot.lane.b32.xlu0 %v1858, 19
  %v2034 = vpop.permute.xlu0 %2033
  %2035 = vrot.lane.b32.xlu0 %v1860, 19
  %v2036 = vpop.permute.xlu0 %2035
  %2037 = vrot.lane.b32.xlu0 %v1977, 19
  %v2038 = vpop.permute.xlu0 %2037
  %2039 = vrot.lane.b32.xlu0 %v1979, 19
  %v2040 = vpop.permute.xlu0 %2039
  %v2041 = vsel %vm521, %v2038, %v2040
  %v2042 = vsel %vm521, %v2036, %v2038
  %v2043 = vsel %vm521, %v2034, %v2036
  %v2044 = vsel %vm521, %v2032, %v2034
  %v2045 = vsel %vm521, %v2030, %v2032
  %v2046 = vsel %vm521, %v2040, %v2030
  %2047 = vrot.lane.b32.xlu0 %v1745, 18
  %v2048 = vpop.permute.xlu0 %2047
  %2049 = vrot.lane.b32.xlu0 %v1747, 18
  %v2050 = vpop.permute.xlu0 %2049
  %2051 = vrot.lane.b32.xlu0 %v1864, 18
  %v2052 = vpop.permute.xlu0 %2051
  %2053 = vrot.lane.b32.xlu0 %v1866, 18
  %v2054 = vpop.permute.xlu0 %2053
  %2055 = vrot.lane.b32.xlu0 %v1983, 18
  %v2056 = vpop.permute.xlu0 %2055
  %2057 = vrot.lane.b32.xlu0 %v1985, 18
  %v2058 = vpop.permute.xlu0 %2057
  %v2059 = vsel %vm540, %v2056, %v2058
  %v2060 = vsel %vm540, %v2054, %v2056
  %v2061 = vsel %vm540, %v2052, %v2054
  %v2062 = vsel %vm540, %v2050, %v2052
  %v2063 = vsel %vm540, %v2048, %v2050
  %v2064 = vsel %vm540, %v2058, %v2048
  %v2065 = vadd.f32 %v2046, %v2064
  %v2066 = vadd.f32 %v2045, %v2063
  %v2067 = vadd.f32 %v2044, %v2062
  %v2068 = vadd.f32 %v2043, %v2061
  %v2069 = vadd.f32 %v2042, %v2060
  %v2070 = vadd.f32 %v2041, %v2059
  %2071 = vrot.lane.b32.xlu0 %v1751, 17
  %v2072 = vpop.permute.xlu0 %2071
  %2073 = vrot.lane.b32.xlu0 %v1753, 17
  %v2074 = vpop.permute.xlu0 %2073
  %2075 = vrot.lane.b32.xlu0 %v1870, 17
  %v2076 = vpop.permute.xlu0 %2075
  %2077 = vrot.lane.b32.xlu0 %v1872, 17
  %v2078 = vpop.permute.xlu0 %2077
  %2079 = vrot.lane.b32.xlu0 %v1989, 17
  %v2080 = vpop.permute.xlu0 %2079
  %2081 = vrot.lane.b32.xlu0 %v1991, 17
  %v2082 = vpop.permute.xlu0 %2081
  %v2083 = vsel %vm565, %v2080, %v2082
  %v2084 = vsel %vm565, %v2078, %v2080
  %v2085 = vsel %vm565, %v2076, %v2078
  %v2086 = vsel %vm565, %v2074, %v2076
  %v2087 = vsel %vm565, %v2072, %v2074
  %v2088 = vsel %vm565, %v2082, %v2072
  %v2089 = vadd.f32 %v2065, %v2088
  %v2090 = vadd.f32 %v2066, %v2087
  %v2091 = vadd.f32 %v2067, %v2086
  %v2092 = vadd.f32 %v2068, %v2085
  %v2093 = vadd.f32 %v2069, %v2084
  %v2094 = vadd.f32 %v2070, %v2083
  %2095 = vrot.lane.b32.xlu0 %v1757, 1
  %v2096 = vpop.permute.xlu0 %2095
  %2097 = vrot.lane.b32.xlu0 %v1759, 1
  %v2098 = vpop.permute.xlu0 %2097
  %2099 = vrot.lane.b32.xlu0 %v1876, 1
  %v2100 = vpop.permute.xlu0 %2099
  %2101 = vrot.lane.b32.xlu0 %v1878, 1
  %v2102 = vpop.permute.xlu0 %2101
  %2103 = vrot.lane.b32.xlu0 %v1995, 1
  %v2104 = vpop.permute.xlu0 %2103
  %2105 = vrot.lane.b32.xlu0 %v1997, 1
  %v2106 = vpop.permute.xlu0 %2105
  %v2107 = vsel %vm590, %v2104, %v2106
  %v2108 = vsel %vm590, %v2102, %v2104
  %v2109 = vsel %vm590, %v2100, %v2102
  %v2110 = vsel %vm590, %v2098, %v2100
  %v2111 = vsel %vm590, %v2096, %v2098
  %v2112 = vsel %vm590, %v2106, %v2096
  %v2113 = vadd.f32 %v2089, %v2112
  %v2114 = vadd.f32 %v2090, %v2111
  %v2115 = vadd.f32 %v2091, %v2110
  %v2116 = vadd.f32 %v2092, %v2109
  %v2117 = vadd.f32 %v2093, %v2108
  %v2118 = vadd.f32 %v2094, %v2107
  %v2119 = vadd.f32 %v2113, %v1763
  %v2120 = vadd.f32 %v2114, %v1765
  %v2121 = vadd.f32 %v2115, %v1882
  %v2122 = vadd.f32 %v2116, %v1884
  %v2123 = vadd.f32 %v2117, %v2001
  %v2124 = vadd.f32 %v2118, %v2003
  %2125 = vrot.lane.b32.xlu0 %v1769, 127
  %v2126 = vpop.permute.xlu0 %2125
  %2127 = vrot.lane.b32.xlu0 %v1771, 127
  %v2128 = vpop.permute.xlu0 %2127
  %2129 = vrot.lane.b32.xlu0 %v1888, 127
  %v2130 = vpop.permute.xlu0 %2129
  %2131 = vrot.lane.b32.xlu0 %v1890, 127
  %v2132 = vpop.permute.xlu0 %2131
  %2133 = vrot.lane.b32.xlu0 %v2007, 127
  %v2134 = vpop.permute.xlu0 %2133
  %2135 = vrot.lane.b32.xlu0 %v2009, 127
  %v2136 = vpop.permute.xlu0 %2135
  %v2137 = vsel %vm621, %v2134, %v2136
  %v2138 = vsel %vm621, %v2132, %v2134
  %v2139 = vsel %vm621, %v2130, %v2132
  %v2140 = vsel %vm621, %v2128, %v2130
  %v2141 = vsel %vm621, %v2126, %v2128
  %v2142 = vsel %vm621, %v2136, %v2126
  %v2143 = vadd.f32 %v2119, %v2141
  %v2144 = vadd.f32 %v2120, %v2140
  %v2145 = vadd.f32 %v2121, %v2139
  %v2146 = vadd.f32 %v2122, %v2138
  %v2147 = vadd.f32 %v2123, %v2137
  %v2148 = vadd.f32 %v2124, %v2142
  %2149 = vrot.lane.b32.xlu0 %v1775, 111
  %v2150 = vpop.permute.xlu0 %2149
  %2151 = vrot.lane.b32.xlu0 %v1777, 111
  %v2152 = vpop.permute.xlu0 %2151
  %2153 = vrot.lane.b32.xlu0 %v1894, 111
  %v2154 = vpop.permute.xlu0 %2153
  %2155 = vrot.lane.b32.xlu0 %v1896, 111
  %v2156 = vpop.permute.xlu0 %2155
  %2157 = vrot.lane.b32.xlu0 %v2013, 111
  %v2158 = vpop.permute.xlu0 %2157
  %2159 = vrot.lane.b32.xlu0 %v2015, 111
  %v2160 = vpop.permute.xlu0 %2159
  %v2161 = vsel %vm646, %v2158, %v2160
  %v2162 = vsel %vm646, %v2156, %v2158
  %v2163 = vsel %vm646, %v2154, %v2156
  %v2164 = vsel %vm646, %v2152, %v2154
  %v2165 = vsel %vm646, %v2150, %v2152
  %v2166 = vsel %vm646, %v2160, %v2150
  %v2167 = vadd.f32 %v2143, %v2165
  %v2168 = vadd.f32 %v2144, %v2164
  %v2169 = vadd.f32 %v2145, %v2163
  %v2170 = vadd.f32 %v2146, %v2162
  %v2171 = vadd.f32 %v2147, %v2161
  %v2172 = vadd.f32 %v2148, %v2166
  %2173 = vrot.lane.b32.xlu0 %v1781, 110
  %v2174 = vpop.permute.xlu0 %2173
  %2175 = vrot.lane.b32.xlu0 %v1783, 110
  %v2176 = vpop.permute.xlu0 %2175
  %2177 = vrot.lane.b32.xlu0 %v1900, 110
  %v2178 = vpop.permute.xlu0 %2177
  %2179 = vrot.lane.b32.xlu0 %v1902, 110
  %v2180 = vpop.permute.xlu0 %2179
  %2181 = vrot.lane.b32.xlu0 %v2019, 110
  %v2182 = vpop.permute.xlu0 %2181
  %2183 = vrot.lane.b32.xlu0 %v2021, 110
  %v2184 = vpop.permute.xlu0 %2183
  %v2185 = vsel %vm671, %v2182, %v2184
  %v2186 = vsel %vm671, %v2180, %v2182
  %v2187 = vsel %vm671, %v2178, %v2180
  %v2188 = vsel %vm671, %v2176, %v2178
  %v2189 = vsel %vm671, %v2174, %v2176
  %v2190 = vsel %vm671, %v2184, %v2174
  %v2191 = vadd.f32 %v2167, %v2189
  %v2192 = vadd.f32 %v2168, %v2188
  %v2193 = vadd.f32 %v2169, %v2187
  %v2194 = vadd.f32 %v2170, %v2186
  %v2195 = vadd.f32 %v2171, %v2185
  %v2196 = vadd.f32 %v2172, %v2190
  %2197 = vrot.lane.b32.xlu0 %v1787, 109
  %v2198 = vpop.permute.xlu0 %2197
  %2199 = vrot.lane.b32.xlu0 %v1789, 109
  %v2200 = vpop.permute.xlu0 %2199
  %2201 = vrot.lane.b32.xlu0 %v1906, 109
  %v2202 = vpop.permute.xlu0 %2201
  %2203 = vrot.lane.b32.xlu0 %v1908, 109
  %v2204 = vpop.permute.xlu0 %2203
  %2205 = vrot.lane.b32.xlu0 %v2025, 109
  %v2206 = vpop.permute.xlu0 %2205
  %2207 = vrot.lane.b32.xlu0 %v2027, 109
  %v2208 = vpop.permute.xlu0 %2207
  %v2209 = vsel %vm696, %v2206, %v2208
  %v2210 = vsel %vm696, %v2204, %v2206
  %v2211 = vsel %vm696, %v2202, %v2204
  %v2212 = vsel %vm696, %v2200, %v2202
  %v2213 = vsel %vm696, %v2198, %v2200
  %v2214 = vsel %vm696, %v2208, %v2198
  %v2215 = vadd.f32 %v2191, %v2213
  %v2216 = vadd.f32 %v2192, %v2212
  %v2217 = vadd.f32 %v2193, %v2211
  %v2218 = vadd.f32 %v2194, %v2210
  %v2219 = vadd.f32 %v2195, %v2209
  %v2220 = vadd.f32 %v2196, %v2214
  %v2221 = vadd.f32 %v1495, %v2215
  %v2222 = vadd.f32 %v1496, %v2216
  %v2223 = vadd.f32 %v1497, %v2217
  %v2224 = vadd.f32 %v1498, %v2218
  %v2225 = vadd.f32 %v1499, %v2219
  %v2226 = vadd.f32 %v1500, %v2220
  %2228 = vset.pattern.permute.xlu0 0
  %2229 = vperm.xlu0 %2228, %v779
  %v2230 = vpop.permute.xlu0 %2229
  %v2232 = vadd.f32 %v2221, %v2230
  %v2233 = vadd.f32 %v2222, %v2230
  %v2234 = vadd.f32 %v2223, %v2230
  %v2235 = vadd.f32 %v2224, %v2230
  %v2236 = vadd.f32 %v2225, %v2230
  %v2237 = vadd.f32 %v2226, %v2230
  %v2238 = vmul.f32 %v2232, %v724
  %v2239 = vmul.f32 %v2233, %v728
  %v2240 = vmul.f32 %v2234, %v732
  %v2241 = vmul.f32 %v2235, %v736
  %v2242 = vmul.f32 %v2236, %v740
  %v2243 = vmul.f32 %v2237, %v744
  %v2244 = vsel %vm137, %v2238, 0.0
  %v2245 = vsel %vm137, %v2239, 0.0
  %v2246 = vadd.f32 %v2244, %v2245
  %v2247 = vsel %vm137, %v2240, 0.0
  %v2248 = vadd.f32 %v2246, %v2247
  %v2249 = vsel %vm137, %v2241, 0.0
  %v2250 = vadd.f32 %v2248, %v2249
  %v2251 = vsel %vm137, %v2242, 0.0
  %v2252 = vadd.f32 %v2250, %v2251
  %v2253 = vsel %vm137, %v2243, 0.0
  %v2254 = vadd.f32 %v2252, %v2253
  %2255 = vadd.xlane.f32.xlu0 %v2254
  %v2256 = vpop.xlane.xlu0 %2255
  %v2257 = vmul.f32 %v2256, 0.001953125
  %v2258 = vmul.f32 %v2238, %v2238
  %v2259 = vmul.f32 %v2239, %v2239
  %v2260 = vmul.f32 %v2240, %v2240
  %v2261 = vmul.f32 %v2241, %v2241
  %v2262 = vmul.f32 %v2242, %v2242
  %v2263 = vmul.f32 %v2243, %v2243
  %v2264 = vsel %vm137, %v2258, 0.0
  %v2265 = vsel %vm137, %v2259, 0.0
  %v2266 = vadd.f32 %v2264, %v2265
  %v2267 = vsel %vm137, %v2260, 0.0
  %v2268 = vadd.f32 %v2266, %v2267
  %v2269 = vsel %vm137, %v2261, 0.0
  %v2270 = vadd.f32 %v2268, %v2269
  %v2271 = vsel %vm137, %v2262, 0.0
  %v2272 = vadd.f32 %v2270, %v2271
  %v2273 = vsel %vm137, %v2263, 0.0
  %v2274 = vadd.f32 %v2272, %v2273
  %2275 = vadd.xlane.f32.xlu0 %v2274
  %v2276 = vpop.xlane.xlu0 %2275
  %v2277 = vmul.f32 %v2276, 0.001953125
  %v2278 = vmul.f32 %v2257, %v2257
  %v2279 = vsub.f32 %v2277, %v2278
  %v2280 = vadd.f32 %v2279, 1e-05
  %v2281 = vrsqrt.pop %v2280
  %v2282 = vmul.f32 %v780, %v2281
  %v2283 = vsub.f32 %v2238, %v2257
  %v2284 = vsub.f32 %v2239, %v2257
  %v2285 = vsub.f32 %v2240, %v2257
  %v2286 = vsub.f32 %v2241, %v2257
  %v2287 = vsub.f32 %v2242, %v2257
  %v2288 = vsub.f32 %v2243, %v2257
  %2290 = vset.pattern.permute.xlu0 0
  %2291 = vperm.xlu0 %2290, %v2282
  %v2292 = vpop.permute.xlu0 %2291
  %v2294 = vmul.f32 %v2283, %v2292
  %v2295 = vmul.f32 %v2284, %v2292
  %v2296 = vmul.f32 %v2285, %v2292
  %v2297 = vmul.f32 %v2286, %v2292
  %v2298 = vmul.f32 %v2287, %v2292
  %v2299 = vmul.f32 %v2288, %v2292
  %2301 = vset.pattern.permute.xlu0 0
  %2302 = vperm.xlu0 %2301, %v781
  %v2303 = vpop.permute.xlu0 %2302
  %v2305 = vadd.f32 %v2294, %v2303
  %v2306 = vadd.f32 %v2295, %v2303
  %v2307 = vadd.f32 %v2296, %v2303
  %v2308 = vadd.f32 %v2297, %v2303
  %v2309 = vadd.f32 %v2298, %v2303
  %v2310 = vadd.f32 %v2299, %v2303
  %v2311 = vsub.f32 0.0, %v2305
  %v2312 = vsub.f32 0.0, %v2306
  %v2313 = vsub.f32 0.0, %v2307
  %v2314 = vsub.f32 0.0, %v2308
  %v2315 = vsub.f32 0.0, %v2309
  %v2316 = vsub.f32 0.0, %v2310
  %v2317 = vmul.f32 %v2311, 1.442695
  %v2318 = vpow.pop %v2317
  %v2319 = vmul.f32 %v2312, 1.442695
  %v2320 = vpow.pop %v2319
  %v2321 = vmul.f32 %v2313, 1.442695
  %v2322 = vpow.pop %v2321
  %v2323 = vmul.f32 %v2314, 1.442695
  %v2324 = vpow.pop %v2323
  %v2325 = vmul.f32 %v2315, 1.442695
  %v2326 = vpow.pop %v2325
  %v2327 = vmul.f32 %v2316, 1.442695
  %v2328 = vpow.pop %v2327
  %v2329 = vadd.f32 %v2318, 1.0
  %v2330 = vadd.f32 %v2320, 1.0
  %v2331 = vadd.f32 %v2322, 1.0
  %v2332 = vadd.f32 %v2324, 1.0
  %v2333 = vadd.f32 %v2326, 1.0
  %v2334 = vadd.f32 %v2328, 1.0
  %v2335 = vrcp.pop %v2329
  %v2336 = vmul.f32 1.0, %v2335
  %v2337 = vrcp.pop %v2330
  %v2338 = vmul.f32 1.0, %v2337
  %v2339 = vrcp.pop %v2331
  %v2340 = vmul.f32 1.0, %v2339
  %v2341 = vrcp.pop %v2332
  %v2342 = vmul.f32 1.0, %v2341
  %v2343 = vrcp.pop %v2333
  %v2344 = vmul.f32 1.0, %v2343
  %v2345 = vrcp.pop %v2334
  %v2346 = vmul.f32 1.0, %v2345
  %v2347 = vmul.f32 %v2305, %v2336
  %v2348 = vmul.f32 %v2306, %v2338
  %v2349 = vmul.f32 %v2307, %v2340
  %v2350 = vmul.f32 %v2308, %v2342
  %v2351 = vmul.f32 %v2309, %v2344
  %v2352 = vmul.f32 %v2310, %v2346
  %v2353 = vmul.f32 %v2347, %v724
  %v2354 = vmul.f32 %v2348, %v728
  %v2355 = vmul.f32 %v2349, %v732
  %v2356 = vmul.f32 %v2350, %v736
  %v2357 = vmul.f32 %v2351, %v740
  %v2358 = vmul.f32 %v2352, %v744
  %v2360 = vsel %vm109, %v782, 0
  %v2363 = vsel %vm109, %v783, 0
  %v2366 = vsel %vm109, %v784, 0
  %v2369 = vsel %vm109, %v785, 0
  %v2372 = vsel %vm109, %v786, 0
  %v2375 = vsel %vm109, %v787, 0
  %v2378 = vsel %vm109, %v788, 0
  %v2381 = vsel %vm109, %v789, 0
  %v2384 = vsel %vm109, %v790, 0
  %v2387 = vsel %vm137, %v2353, 0
  %v2390 = vsel %vm137, %v2354, 0
  %v2393 = vsel %vm137, %v2355, 0
  %v2396 = vsel %vm137, %v2356, 0
  %v2399 = vsel %vm137, %v2357, 0
  %v2402 = vsel %vm137, %v2358, 0
  %2404 = vmatprep.subr.mxu0 0.0
  %2405 = vmatpush1.msra.mxu0 0.0
  %2406 = vmatprep.subr.mxu0 0.0
  %2407 = vmatpush1.msra.mxu0 0.0
  %2408 = vmatprep.subr.mxu0 0.0
  %2409 = vmatpush1.msra.mxu0 0.0
  %2410 = vmatprep.subr.mxu0 0.0
  %2411 = vmatpush1.msra.mxu0 0.0
  %2412 = vmatprep.subr.mxu0 0.0
  %2413 = vmatpush1.msra.mxu0 0.0
  %2414 = vmatprep.subr.mxu0 0.0
  %2415 = vmatpush1.msra.mxu0 0.0
  %2416 = vmatprep.subr.mxu0 0.0
  %2417 = vmatpush1.msra.mxu0 0.0
  %2418 = vmatprep.subr.mxu0 0.0
  %2419 = vmatpush1.msra.mxu0 0.0
  %2420 = vmatprep.subr.mxu0 0.0
  %2421 = vmatpush1.msra.mxu0 0.0
  %2422 = vmatprep.subr.mxu0 0.0
  %2423 = vmatpush1.msra.mxu0 0.0
  %2424 = vmatprep.subr.mxu0 0.0
  %2425 = vmatpush1.msra.mxu0 0.0
  %2426 = vmatprep.subr.mxu0 0.0
  %2427 = vmatpush1.msra.mxu0 0.0
  %2428 = vmatprep.subr.mxu0 0.0
  %2429 = vmatpush1.msra.mxu0 0.0
  %2430 = vmatprep.subr.mxu0 0.0
  %2431 = vmatpush1.msra.mxu0 0.0
  %2432 = vmatprep.subr.mxu0 0.0
  %2433 = vmatpush1.msra.mxu0 0.0
  %2434 = vmatprep.subr.mxu0 %v2390
  %2435 = vmatpush1.msra.mxu0 %v2387
  %2436 = vmatprep.subr.mxu0 0.0
  %2437 = vmatpush2.msra.mxu0 0.0
  %2438 = vmatprep.subr.mxu0 0.0
  %2439 = vmatpush2.msra.mxu0 0.0
  %2440 = vmatprep.subr.mxu0 0.0
  %2441 = vmatpush2.msra.mxu0 0.0
  %2442 = vmatprep.subr.mxu0 0.0
  %2443 = vmatpush2.msra.mxu0 0.0
  %2444 = vmatprep.subr.mxu0 0.0
  %2445 = vmatpush2.msra.mxu0 0.0
  %2446 = vmatprep.subr.mxu0 0.0
  %2447 = vmatpush2.msra.mxu0 0.0
  %2448 = vmatprep.subr.mxu0 0.0
  %2449 = vmatpush2.msra.mxu0 0.0
  %2450 = vmatprep.subr.mxu0 0.0
  %2451 = vmatpush2.msra.mxu0 0.0
  %2452 = vmatprep.subr.mxu0 0.0
  %2453 = vmatpush2.msra.mxu0 0.0
  %2454 = vmatprep.subr.mxu0 0.0
  %2455 = vmatpush2.msra.mxu0 0.0
  %2456 = vmatprep.subr.mxu0 0.0
  %2457 = vmatpush2.msra.mxu0 0.0
  %2458 = vmatprep.subr.mxu0 0.0
  %2459 = vmatpush2.msra.mxu0 0.0
  %2460 = vmatprep.subr.mxu0 0.0
  %2461 = vmatpush2.msra.mxu0 0.0
  %2462 = vmatprep.subr.mxu0 0.0
  %2463 = vmatpush2.msra.mxu0 0.0
  %2464 = vmatprep.subr.mxu0 0.0
  %2465 = vmatpush2.msra.mxu0 0.0
  %2466 = vmatprep.subr.mxu0 0.0
  %2467 = vmatpush2.msra.mxu0 0.0
  %2468 = vmatprep.mubr.f32.mxu0 0.0
  %2469 = vmatmul.mubr.f32.gmra.mxu0 %v2360
  %v2470 = vpop.f32.mrf.mxu0
  %v2471 = vadd.f32 0.0, %v2470
  %v2472 = vpop.f32.mrf.mxu0
  %v2473 = vadd.f32 0.0, %v2472
  %2474 = vmatprep.mubr.f32.mxu0 0.0
  %2475 = vmatmul.mubr.f32.gmra.mxu0 %v2363
  %v2476 = vpop.f32.mrf.mxu0
  %v2477 = vadd.f32 0.0, %v2476
  %v2478 = vpop.f32.mrf.mxu0
  %v2479 = vadd.f32 0.0, %v2478
  %2480 = vmatprep.mubr.f32.mxu0 0.0
  %2481 = vmatmul.mubr.f32.gmra.mxu0 %v2366
  %v2482 = vpop.f32.mrf.mxu0
  %v2483 = vadd.f32 0.0, %v2482
  %v2484 = vpop.f32.mrf.mxu0
  %v2485 = vadd.f32 0.0, %v2484
  %2486 = vmatprep.mubr.f32.mxu0 0.0
  %2487 = vmatmul.mubr.f32.gmra.mxu0 %v2369
  %v2488 = vpop.f32.mrf.mxu0
  %v2489 = vadd.f32 0.0, %v2488
  %v2490 = vpop.f32.mrf.mxu0
  %v2491 = vadd.f32 0.0, %v2490
  %2492 = vmatprep.mubr.f32.mxu0 0.0
  %2493 = vmatmul.mubr.f32.gmra.mxu0 %v2372
  %v2494 = vpop.f32.mrf.mxu0
  %v2495 = vadd.f32 0.0, %v2494
  %v2496 = vpop.f32.mrf.mxu0
  %v2497 = vadd.f32 0.0, %v2496
  %2498 = vmatprep.mubr.f32.mxu0 0.0
  %2499 = vmatmul.mubr.f32.gmra.mxu0 %v2375
  %v2500 = vpop.f32.mrf.mxu0
  %v2501 = vadd.f32 0.0, %v2500
  %v2502 = vpop.f32.mrf.mxu0
  %v2503 = vadd.f32 0.0, %v2502
  %2504 = vmatprep.mubr.f32.mxu0 0.0
  %2505 = vmatmul.mubr.f32.gmra.mxu0 %v2378
  %v2506 = vpop.f32.mrf.mxu0
  %v2507 = vadd.f32 0.0, %v2506
  %v2508 = vpop.f32.mrf.mxu0
  %v2509 = vadd.f32 0.0, %v2508
  %2510 = vmatprep.mubr.f32.mxu0 0.0
  %2511 = vmatmul.mubr.f32.gmra.mxu0 %v2381
  %v2512 = vpop.f32.mrf.mxu0
  %v2513 = vadd.f32 0.0, %v2512
  %v2514 = vpop.f32.mrf.mxu0
  %v2515 = vadd.f32 0.0, %v2514
  %2516 = vmatprep.mubr.f32.mxu0 0.0
  %2517 = vmatmul.mubr.f32.gmra.mxu0 %v2384
  %v2518 = vpop.f32.mrf.mxu0
  %v2519 = vadd.f32 0.0, %v2518
  %v2520 = vpop.f32.mrf.mxu0
  %v2521 = vadd.f32 0.0, %v2520
  %2522 = vdwg.mxu0
  %2523 = vmatprep.subr.mxu0 0.0
  %2524 = vmatpush1.msra.mxu0 0.0
  %2525 = vmatprep.subr.mxu0 0.0
  %2526 = vmatpush1.msra.mxu0 0.0
  %2527 = vmatprep.subr.mxu0 0.0
  %2528 = vmatpush1.msra.mxu0 0.0
  %2529 = vmatprep.subr.mxu0 0.0
  %2530 = vmatpush1.msra.mxu0 0.0
  %2531 = vmatprep.subr.mxu0 0.0
  %2532 = vmatpush1.msra.mxu0 0.0
  %2533 = vmatprep.subr.mxu0 0.0
  %2534 = vmatpush1.msra.mxu0 0.0
  %2535 = vmatprep.subr.mxu0 0.0
  %2536 = vmatpush1.msra.mxu0 0.0
  %2537 = vmatprep.subr.mxu0 0.0
  %2538 = vmatpush1.msra.mxu0 0.0
  %2539 = vmatprep.subr.mxu0 0.0
  %2540 = vmatpush1.msra.mxu0 0.0
  %2541 = vmatprep.subr.mxu0 0.0
  %2542 = vmatpush1.msra.mxu0 0.0
  %2543 = vmatprep.subr.mxu0 0.0
  %2544 = vmatpush1.msra.mxu0 0.0
  %2545 = vmatprep.subr.mxu0 0.0
  %2546 = vmatpush1.msra.mxu0 0.0
  %2547 = vmatprep.subr.mxu0 0.0
  %2548 = vmatpush1.msra.mxu0 0.0
  %2549 = vmatprep.subr.mxu0 0.0
  %2550 = vmatpush1.msra.mxu0 0.0
  %2551 = vmatprep.subr.mxu0 0.0
  %2552 = vmatpush1.msra.mxu0 0.0
  %2553 = vmatprep.subr.mxu0 %v2396
  %2554 = vmatpush1.msra.mxu0 %v2393
  %2555 = vmatprep.subr.mxu0 0.0
  %2556 = vmatpush2.msra.mxu0 0.0
  %2557 = vmatprep.subr.mxu0 0.0
  %2558 = vmatpush2.msra.mxu0 0.0
  %2559 = vmatprep.subr.mxu0 0.0
  %2560 = vmatpush2.msra.mxu0 0.0
  %2561 = vmatprep.subr.mxu0 0.0
  %2562 = vmatpush2.msra.mxu0 0.0
  %2563 = vmatprep.subr.mxu0 0.0
  %2564 = vmatpush2.msra.mxu0 0.0
  %2565 = vmatprep.subr.mxu0 0.0
  %2566 = vmatpush2.msra.mxu0 0.0
  %2567 = vmatprep.subr.mxu0 0.0
  %2568 = vmatpush2.msra.mxu0 0.0
  %2569 = vmatprep.subr.mxu0 0.0
  %2570 = vmatpush2.msra.mxu0 0.0
  %2571 = vmatprep.subr.mxu0 0.0
  %2572 = vmatpush2.msra.mxu0 0.0
  %2573 = vmatprep.subr.mxu0 0.0
  %2574 = vmatpush2.msra.mxu0 0.0
  %2575 = vmatprep.subr.mxu0 0.0
  %2576 = vmatpush2.msra.mxu0 0.0
  %2577 = vmatprep.subr.mxu0 0.0
  %2578 = vmatpush2.msra.mxu0 0.0
  %2579 = vmatprep.subr.mxu0 0.0
  %2580 = vmatpush2.msra.mxu0 0.0
  %2581 = vmatprep.subr.mxu0 0.0
  %2582 = vmatpush2.msra.mxu0 0.0
  %2583 = vmatprep.subr.mxu0 0.0
  %2584 = vmatpush2.msra.mxu0 0.0
  %2585 = vmatprep.subr.mxu0 0.0
  %2586 = vmatpush2.msra.mxu0 0.0
  %2587 = vmatprep.mubr.f32.mxu0 0.0
  %2588 = vmatmul.mubr.f32.gmra.mxu0 %v2360
  %v2589 = vpop.f32.mrf.mxu0
  %v2590 = vadd.f32 0.0, %v2589
  %v2591 = vpop.f32.mrf.mxu0
  %v2592 = vadd.f32 0.0, %v2591
  %2593 = vmatprep.mubr.f32.mxu0 0.0
  %2594 = vmatmul.mubr.f32.gmra.mxu0 %v2363
  %v2595 = vpop.f32.mrf.mxu0
  %v2596 = vadd.f32 0.0, %v2595
  %v2597 = vpop.f32.mrf.mxu0
  %v2598 = vadd.f32 0.0, %v2597
  %2599 = vmatprep.mubr.f32.mxu0 0.0
  %2600 = vmatmul.mubr.f32.gmra.mxu0 %v2366
  %v2601 = vpop.f32.mrf.mxu0
  %v2602 = vadd.f32 0.0, %v2601
  %v2603 = vpop.f32.mrf.mxu0
  %v2604 = vadd.f32 0.0, %v2603
  %2605 = vmatprep.mubr.f32.mxu0 0.0
  %2606 = vmatmul.mubr.f32.gmra.mxu0 %v2369
  %v2607 = vpop.f32.mrf.mxu0
  %v2608 = vadd.f32 0.0, %v2607
  %v2609 = vpop.f32.mrf.mxu0
  %v2610 = vadd.f32 0.0, %v2609
  %2611 = vmatprep.mubr.f32.mxu0 0.0
  %2612 = vmatmul.mubr.f32.gmra.mxu0 %v2372
  %v2613 = vpop.f32.mrf.mxu0
  %v2614 = vadd.f32 0.0, %v2613
  %v2615 = vpop.f32.mrf.mxu0
  %v2616 = vadd.f32 0.0, %v2615
  %2617 = vmatprep.mubr.f32.mxu0 0.0
  %2618 = vmatmul.mubr.f32.gmra.mxu0 %v2375
  %v2619 = vpop.f32.mrf.mxu0
  %v2620 = vadd.f32 0.0, %v2619
  %v2621 = vpop.f32.mrf.mxu0
  %v2622 = vadd.f32 0.0, %v2621
  %2623 = vmatprep.mubr.f32.mxu0 0.0
  %2624 = vmatmul.mubr.f32.gmra.mxu0 %v2378
  %v2625 = vpop.f32.mrf.mxu0
  %v2626 = vadd.f32 0.0, %v2625
  %v2627 = vpop.f32.mrf.mxu0
  %v2628 = vadd.f32 0.0, %v2627
  %2629 = vmatprep.mubr.f32.mxu0 0.0
  %2630 = vmatmul.mubr.f32.gmra.mxu0 %v2381
  %v2631 = vpop.f32.mrf.mxu0
  %v2632 = vadd.f32 0.0, %v2631
  %v2633 = vpop.f32.mrf.mxu0
  %v2634 = vadd.f32 0.0, %v2633
  %2635 = vmatprep.mubr.f32.mxu0 0.0
  %2636 = vmatmul.mubr.f32.gmra.mxu0 %v2384
  %v2637 = vpop.f32.mrf.mxu0
  %v2638 = vadd.f32 0.0, %v2637
  %v2639 = vpop.f32.mrf.mxu0
  %v2640 = vadd.f32 0.0, %v2639
  %2641 = vdwg.mxu0
  %2642 = vmatprep.subr.mxu0 0.0
  %2643 = vmatpush1.msra.mxu0 0.0
  %2644 = vmatprep.subr.mxu0 0.0
  %2645 = vmatpush1.msra.mxu0 0.0
  %2646 = vmatprep.subr.mxu0 0.0
  %2647 = vmatpush1.msra.mxu0 0.0
  %2648 = vmatprep.subr.mxu0 0.0
  %2649 = vmatpush1.msra.mxu0 0.0
  %2650 = vmatprep.subr.mxu0 0.0
  %2651 = vmatpush1.msra.mxu0 0.0
  %2652 = vmatprep.subr.mxu0 0.0
  %2653 = vmatpush1.msra.mxu0 0.0
  %2654 = vmatprep.subr.mxu0 0.0
  %2655 = vmatpush1.msra.mxu0 0.0
  %2656 = vmatprep.subr.mxu0 0.0
  %2657 = vmatpush1.msra.mxu0 0.0
  %2658 = vmatprep.subr.mxu0 0.0
  %2659 = vmatpush1.msra.mxu0 0.0
  %2660 = vmatprep.subr.mxu0 0.0
  %2661 = vmatpush1.msra.mxu0 0.0
  %2662 = vmatprep.subr.mxu0 0.0
  %2663 = vmatpush1.msra.mxu0 0.0
  %2664 = vmatprep.subr.mxu0 0.0
  %2665 = vmatpush1.msra.mxu0 0.0
  %2666 = vmatprep.subr.mxu0 0.0
  %2667 = vmatpush1.msra.mxu0 0.0
  %2668 = vmatprep.subr.mxu0 0.0
  %2669 = vmatpush1.msra.mxu0 0.0
  %2670 = vmatprep.subr.mxu0 0.0
  %2671 = vmatpush1.msra.mxu0 0.0
  %2672 = vmatprep.subr.mxu0 %v2402
  %2673 = vmatpush1.msra.mxu0 %v2399
  %2674 = vmatprep.subr.mxu0 0.0
  %2675 = vmatpush2.msra.mxu0 0.0
  %2676 = vmatprep.subr.mxu0 0.0
  %2677 = vmatpush2.msra.mxu0 0.0
  %2678 = vmatprep.subr.mxu0 0.0
  %2679 = vmatpush2.msra.mxu0 0.0
  %2680 = vmatprep.subr.mxu0 0.0
  %2681 = vmatpush2.msra.mxu0 0.0
  %2682 = vmatprep.subr.mxu0 0.0
  %2683 = vmatpush2.msra.mxu0 0.0
  %2684 = vmatprep.subr.mxu0 0.0
  %2685 = vmatpush2.msra.mxu0 0.0
  %2686 = vmatprep.subr.mxu0 0.0
  %2687 = vmatpush2.msra.mxu0 0.0
  %2688 = vmatprep.subr.mxu0 0.0
  %2689 = vmatpush2.msra.mxu0 0.0
  %2690 = vmatprep.subr.mxu0 0.0
  %2691 = vmatpush2.msra.mxu0 0.0
  %2692 = vmatprep.subr.mxu0 0.0
  %2693 = vmatpush2.msra.mxu0 0.0
  %2694 = vmatprep.subr.mxu0 0.0
  %2695 = vmatpush2.msra.mxu0 0.0
  %2696 = vmatprep.subr.mxu0 0.0
  %2697 = vmatpush2.msra.mxu0 0.0
  %2698 = vmatprep.subr.mxu0 0.0
  %2699 = vmatpush2.msra.mxu0 0.0
  %2700 = vmatprep.subr.mxu0 0.0
  %2701 = vmatpush2.msra.mxu0 0.0
  %2702 = vmatprep.subr.mxu0 0.0
  %2703 = vmatpush2.msra.mxu0 0.0
  %2704 = vmatprep.subr.mxu0 0.0
  %2705 = vmatpush2.msra.mxu0 0.0
  %2706 = vmatprep.mubr.f32.mxu0 0.0
  %2707 = vmatmul.mubr.f32.gmra.mxu0 %v2360
  %v2708 = vpop.f32.mrf.mxu0
  %v2709 = vadd.f32 0.0, %v2708
  %v2710 = vpop.f32.mrf.mxu0
  %v2711 = vadd.f32 0.0, %v2710
  %2712 = vmatprep.mubr.f32.mxu0 0.0
  %2713 = vmatmul.mubr.f32.gmra.mxu0 %v2363
  %v2714 = vpop.f32.mrf.mxu0
  %v2715 = vadd.f32 0.0, %v2714
  %v2716 = vpop.f32.mrf.mxu0
  %v2717 = vadd.f32 0.0, %v2716
  %2718 = vmatprep.mubr.f32.mxu0 0.0
  %2719 = vmatmul.mubr.f32.gmra.mxu0 %v2366
  %v2720 = vpop.f32.mrf.mxu0
  %v2721 = vadd.f32 0.0, %v2720
  %v2722 = vpop.f32.mrf.mxu0
  %v2723 = vadd.f32 0.0, %v2722
  %2724 = vmatprep.mubr.f32.mxu0 0.0
  %2725 = vmatmul.mubr.f32.gmra.mxu0 %v2369
  %v2726 = vpop.f32.mrf.mxu0
  %v2727 = vadd.f32 0.0, %v2726
  %v2728 = vpop.f32.mrf.mxu0
  %v2729 = vadd.f32 0.0, %v2728
  %2730 = vmatprep.mubr.f32.mxu0 0.0
  %2731 = vmatmul.mubr.f32.gmra.mxu0 %v2372
  %v2732 = vpop.f32.mrf.mxu0
  %v2733 = vadd.f32 0.0, %v2732
  %v2734 = vpop.f32.mrf.mxu0
  %v2735 = vadd.f32 0.0, %v2734
  %2736 = vmatprep.mubr.f32.mxu0 0.0
  %2737 = vmatmul.mubr.f32.gmra.mxu0 %v2375
  %v2738 = vpop.f32.mrf.mxu0
  %v2739 = vadd.f32 0.0, %v2738
  %v2740 = vpop.f32.mrf.mxu0
  %v2741 = vadd.f32 0.0, %v2740
  %2742 = vmatprep.mubr.f32.mxu0 0.0
  %2743 = vmatmul.mubr.f32.gmra.mxu0 %v2378
  %v2744 = vpop.f32.mrf.mxu0
  %v2745 = vadd.f32 0.0, %v2744
  %v2746 = vpop.f32.mrf.mxu0
  %v2747 = vadd.f32 0.0, %v2746
  %2748 = vmatprep.mubr.f32.mxu0 0.0
  %2749 = vmatmul.mubr.f32.gmra.mxu0 %v2381
  %v2750 = vpop.f32.mrf.mxu0
  %v2751 = vadd.f32 0.0, %v2750
  %v2752 = vpop.f32.mrf.mxu0
  %v2753 = vadd.f32 0.0, %v2752
  %2754 = vmatprep.mubr.f32.mxu0 0.0
  %2755 = vmatmul.mubr.f32.gmra.mxu0 %v2384
  %v2756 = vpop.f32.mrf.mxu0
  %v2757 = vadd.f32 0.0, %v2756
  %v2758 = vpop.f32.mrf.mxu0
  %v2759 = vadd.f32 0.0, %v2758
  %2760 = vdwg.mxu0
  %2761 = vrot.lane.b32.xlu0 %v2471, 19
  %v2762 = vpop.permute.xlu0 %2761
  %2763 = vrot.lane.b32.xlu0 %v2473, 19
  %v2764 = vpop.permute.xlu0 %2763
  %2765 = vrot.lane.b32.xlu0 %v2590, 19
  %v2766 = vpop.permute.xlu0 %2765
  %2767 = vrot.lane.b32.xlu0 %v2592, 19
  %v2768 = vpop.permute.xlu0 %2767
  %2769 = vrot.lane.b32.xlu0 %v2709, 19
  %v2770 = vpop.permute.xlu0 %2769
  %2771 = vrot.lane.b32.xlu0 %v2711, 19
  %v2772 = vpop.permute.xlu0 %2771
  %v2773 = vsel %vm521, %v2770, %v2772
  %v2774 = vsel %vm521, %v2768, %v2770
  %v2775 = vsel %vm521, %v2766, %v2768
  %v2776 = vsel %vm521, %v2764, %v2766
  %v2777 = vsel %vm521, %v2762, %v2764
  %v2778 = vsel %vm521, %v2772, %v2762
  %2779 = vrot.lane.b32.xlu0 %v2477, 18
  %v2780 = vpop.permute.xlu0 %2779
  %2781 = vrot.lane.b32.xlu0 %v2479, 18
  %v2782 = vpop.permute.xlu0 %2781
  %2783 = vrot.lane.b32.xlu0 %v2596, 18
  %v2784 = vpop.permute.xlu0 %2783
  %2785 = vrot.lane.b32.xlu0 %v2598, 18
  %v2786 = vpop.permute.xlu0 %2785
  %2787 = vrot.lane.b32.xlu0 %v2715, 18
  %v2788 = vpop.permute.xlu0 %2787
  %2789 = vrot.lane.b32.xlu0 %v2717, 18
  %v2790 = vpop.permute.xlu0 %2789
  %v2791 = vsel %vm540, %v2788, %v2790
  %v2792 = vsel %vm540, %v2786, %v2788
  %v2793 = vsel %vm540, %v2784, %v2786
  %v2794 = vsel %vm540, %v2782, %v2784
  %v2795 = vsel %vm540, %v2780, %v2782
  %v2796 = vsel %vm540, %v2790, %v2780
  %v2797 = vadd.f32 %v2778, %v2796
  %v2798 = vadd.f32 %v2777, %v2795
  %v2799 = vadd.f32 %v2776, %v2794
  %v2800 = vadd.f32 %v2775, %v2793
  %v2801 = vadd.f32 %v2774, %v2792
  %v2802 = vadd.f32 %v2773, %v2791
  %2803 = vrot.lane.b32.xlu0 %v2483, 17
  %v2804 = vpop.permute.xlu0 %2803
  %2805 = vrot.lane.b32.xlu0 %v2485, 17
  %v2806 = vpop.permute.xlu0 %2805
  %2807 = vrot.lane.b32.xlu0 %v2602, 17
  %v2808 = vpop.permute.xlu0 %2807
  %2809 = vrot.lane.b32.xlu0 %v2604, 17
  %v2810 = vpop.permute.xlu0 %2809
  %2811 = vrot.lane.b32.xlu0 %v2721, 17
  %v2812 = vpop.permute.xlu0 %2811
  %2813 = vrot.lane.b32.xlu0 %v2723, 17
  %v2814 = vpop.permute.xlu0 %2813
  %v2815 = vsel %vm565, %v2812, %v2814
  %v2816 = vsel %vm565, %v2810, %v2812
  %v2817 = vsel %vm565, %v2808, %v2810
  %v2818 = vsel %vm565, %v2806, %v2808
  %v2819 = vsel %vm565, %v2804, %v2806
  %v2820 = vsel %vm565, %v2814, %v2804
  %v2821 = vadd.f32 %v2797, %v2820
  %v2822 = vadd.f32 %v2798, %v2819
  %v2823 = vadd.f32 %v2799, %v2818
  %v2824 = vadd.f32 %v2800, %v2817
  %v2825 = vadd.f32 %v2801, %v2816
  %v2826 = vadd.f32 %v2802, %v2815
  %2827 = vrot.lane.b32.xlu0 %v2489, 1
  %v2828 = vpop.permute.xlu0 %2827
  %2829 = vrot.lane.b32.xlu0 %v2491, 1
  %v2830 = vpop.permute.xlu0 %2829
  %2831 = vrot.lane.b32.xlu0 %v2608, 1
  %v2832 = vpop.permute.xlu0 %2831
  %2833 = vrot.lane.b32.xlu0 %v2610, 1
  %v2834 = vpop.permute.xlu0 %2833
  %2835 = vrot.lane.b32.xlu0 %v2727, 1
  %v2836 = vpop.permute.xlu0 %2835
  %2837 = vrot.lane.b32.xlu0 %v2729, 1
  %v2838 = vpop.permute.xlu0 %2837
  %v2839 = vsel %vm590, %v2836, %v2838
  %v2840 = vsel %vm590, %v2834, %v2836
  %v2841 = vsel %vm590, %v2832, %v2834
  %v2842 = vsel %vm590, %v2830, %v2832
  %v2843 = vsel %vm590, %v2828, %v2830
  %v2844 = vsel %vm590, %v2838, %v2828
  %v2845 = vadd.f32 %v2821, %v2844
  %v2846 = vadd.f32 %v2822, %v2843
  %v2847 = vadd.f32 %v2823, %v2842
  %v2848 = vadd.f32 %v2824, %v2841
  %v2849 = vadd.f32 %v2825, %v2840
  %v2850 = vadd.f32 %v2826, %v2839
  %v2851 = vadd.f32 %v2845, %v2495
  %v2852 = vadd.f32 %v2846, %v2497
  %v2853 = vadd.f32 %v2847, %v2614
  %v2854 = vadd.f32 %v2848, %v2616
  %v2855 = vadd.f32 %v2849, %v2733
  %v2856 = vadd.f32 %v2850, %v2735
  %2857 = vrot.lane.b32.xlu0 %v2501, 127
  %v2858 = vpop.permute.xlu0 %2857
  %2859 = vrot.lane.b32.xlu0 %v2503, 127
  %v2860 = vpop.permute.xlu0 %2859
  %2861 = vrot.lane.b32.xlu0 %v2620, 127
  %v2862 = vpop.permute.xlu0 %2861
  %2863 = vrot.lane.b32.xlu0 %v2622, 127
  %v2864 = vpop.permute.xlu0 %2863
  %2865 = vrot.lane.b32.xlu0 %v2739, 127
  %v2866 = vpop.permute.xlu0 %2865
  %2867 = vrot.lane.b32.xlu0 %v2741, 127
  %v2868 = vpop.permute.xlu0 %2867
  %v2869 = vsel %vm621, %v2866, %v2868
  %v2870 = vsel %vm621, %v2864, %v2866
  %v2871 = vsel %vm621, %v2862, %v2864
  %v2872 = vsel %vm621, %v2860, %v2862
  %v2873 = vsel %vm621, %v2858, %v2860
  %v2874 = vsel %vm621, %v2868, %v2858
  %v2875 = vadd.f32 %v2851, %v2873
  %v2876 = vadd.f32 %v2852, %v2872
  %v2877 = vadd.f32 %v2853, %v2871
  %v2878 = vadd.f32 %v2854, %v2870
  %v2879 = vadd.f32 %v2855, %v2869
  %v2880 = vadd.f32 %v2856, %v2874
  %2881 = vrot.lane.b32.xlu0 %v2507, 111
  %v2882 = vpop.permute.xlu0 %2881
  %2883 = vrot.lane.b32.xlu0 %v2509, 111
  %v2884 = vpop.permute.xlu0 %2883
  %2885 = vrot.lane.b32.xlu0 %v2626, 111
  %v2886 = vpop.permute.xlu0 %2885
  %2887 = vrot.lane.b32.xlu0 %v2628, 111
  %v2888 = vpop.permute.xlu0 %2887
  %2889 = vrot.lane.b32.xlu0 %v2745, 111
  %v2890 = vpop.permute.xlu0 %2889
  %2891 = vrot.lane.b32.xlu0 %v2747, 111
  %v2892 = vpop.permute.xlu0 %2891
  %v2893 = vsel %vm646, %v2890, %v2892
  %v2894 = vsel %vm646, %v2888, %v2890
  %v2895 = vsel %vm646, %v2886, %v2888
  %v2896 = vsel %vm646, %v2884, %v2886
  %v2897 = vsel %vm646, %v2882, %v2884
  %v2898 = vsel %vm646, %v2892, %v2882
  %v2899 = vadd.f32 %v2875, %v2897
  %v2900 = vadd.f32 %v2876, %v2896
  %v2901 = vadd.f32 %v2877, %v2895
  %v2902 = vadd.f32 %v2878, %v2894
  %v2903 = vadd.f32 %v2879, %v2893
  %v2904 = vadd.f32 %v2880, %v2898
  %2905 = vrot.lane.b32.xlu0 %v2513, 110
  %v2906 = vpop.permute.xlu0 %2905
  %2907 = vrot.lane.b32.xlu0 %v2515, 110
  %v2908 = vpop.permute.xlu0 %2907
  %2909 = vrot.lane.b32.xlu0 %v2632, 110
  %v2910 = vpop.permute.xlu0 %2909
  %2911 = vrot.lane.b32.xlu0 %v2634, 110
  %v2912 = vpop.permute.xlu0 %2911
  %2913 = vrot.lane.b32.xlu0 %v2751, 110
  %v2914 = vpop.permute.xlu0 %2913
  %2915 = vrot.lane.b32.xlu0 %v2753, 110
  %v2916 = vpop.permute.xlu0 %2915
  %v2917 = vsel %vm671, %v2914, %v2916
  %v2918 = vsel %vm671, %v2912, %v2914
  %v2919 = vsel %vm671, %v2910, %v2912
  %v2920 = vsel %vm671, %v2908, %v2910
  %v2921 = vsel %vm671, %v2906, %v2908
  %v2922 = vsel %vm671, %v2916, %v2906
  %v2923 = vadd.f32 %v2899, %v2921
  %v2924 = vadd.f32 %v2900, %v2920
  %v2925 = vadd.f32 %v2901, %v2919
  %v2926 = vadd.f32 %v2902, %v2918
  %v2927 = vadd.f32 %v2903, %v2917
  %v2928 = vadd.f32 %v2904, %v2922
  %2929 = vrot.lane.b32.xlu0 %v2519, 109
  %v2930 = vpop.permute.xlu0 %2929
  %2931 = vrot.lane.b32.xlu0 %v2521, 109
  %v2932 = vpop.permute.xlu0 %2931
  %2933 = vrot.lane.b32.xlu0 %v2638, 109
  %v2934 = vpop.permute.xlu0 %2933
  %2935 = vrot.lane.b32.xlu0 %v2640, 109
  %v2936 = vpop.permute.xlu0 %2935
  %2937 = vrot.lane.b32.xlu0 %v2757, 109
  %v2938 = vpop.permute.xlu0 %2937
  %2939 = vrot.lane.b32.xlu0 %v2759, 109
  %v2940 = vpop.permute.xlu0 %2939
  %v2941 = vsel %vm696, %v2938, %v2940
  %v2942 = vsel %vm696, %v2936, %v2938
  %v2943 = vsel %vm696, %v2934, %v2936
  %v2944 = vsel %vm696, %v2932, %v2934
  %v2945 = vsel %vm696, %v2930, %v2932
  %v2946 = vsel %vm696, %v2940, %v2930
  %v2947 = vadd.f32 %v2923, %v2945
  %v2948 = vadd.f32 %v2924, %v2944
  %v2949 = vadd.f32 %v2925, %v2943
  %v2950 = vadd.f32 %v2926, %v2942
  %v2951 = vadd.f32 %v2927, %v2941
  %v2952 = vadd.f32 %v2928, %v2946
  %2954 = vset.pattern.permute.xlu0 0
  %2955 = vperm.xlu0 %2954, %v791
  %v2956 = vpop.permute.xlu0 %2955
  %v2958 = vadd.f32 %v2947, %v2956
  %v2959 = vadd.f32 %v2948, %v2956
  %v2960 = vadd.f32 %v2949, %v2956
  %v2961 = vadd.f32 %v2950, %v2956
  %v2962 = vadd.f32 %v2951, %v2956
  %v2963 = vadd.f32 %v2952, %v2956
  %v2964 = vld [vmem:[%s16] sm:$0xf]
  %v2965 = vld [vmem:[%s17] sm:$0xf]
  %v2967 = vsel %vm109, %v2965, 0
  %v2969 = vsel %vm137, %v89, 0
  %v2971 = vsel %vm137, %v1504, 0
  %v2973 = vsel %vm137, %v90, 0
  %v2975 = vsel %vm137, %v1505, 0
  %v2977 = vsel %vm137, %v91, 0
  %v2979 = vsel %vm137, %v1506, 0
  %2981 = vmatprep.subr.mxu0 0.0
  %2982 = vmatpush1.msra.mxu0 0.0
  %2983 = vmatprep.subr.mxu0 0.0
  %2984 = vmatpush1.msra.mxu0 0.0
  %2985 = vmatprep.subr.mxu0 0.0
  %2986 = vmatpush1.msra.mxu0 0.0
  %2987 = vmatprep.subr.mxu0 0.0
  %2988 = vmatpush1.msra.mxu0 0.0
  %2989 = vmatprep.subr.mxu0 0.0
  %2990 = vmatpush1.msra.mxu0 0.0
  %2991 = vmatprep.subr.mxu0 0.0
  %2992 = vmatpush1.msra.mxu0 0.0
  %2993 = vmatprep.subr.mxu0 0.0
  %2994 = vmatpush1.msra.mxu0 0.0
  %2995 = vmatprep.subr.mxu0 0.0
  %2996 = vmatpush1.msra.mxu0 0.0
  %2997 = vmatprep.subr.mxu0 0.0
  %2998 = vmatpush1.msra.mxu0 0.0
  %2999 = vmatprep.subr.mxu0 0.0
  %3000 = vmatpush1.msra.mxu0 0.0
  %3001 = vmatprep.subr.mxu0 0.0
  %3002 = vmatpush1.msra.mxu0 0.0
  %3003 = vmatprep.subr.mxu0 0.0
  %3004 = vmatpush1.msra.mxu0 0.0
  %3005 = vmatprep.subr.mxu0 0.0
  %3006 = vmatpush1.msra.mxu0 0.0
  %3007 = vmatprep.subr.mxu0 0.0
  %3008 = vmatpush1.msra.mxu0 0.0
  %3009 = vmatprep.subr.mxu0 0.0
  %3010 = vmatpush1.msra.mxu0 0.0
  %3011 = vmatprep.subr.mxu0 %v2971
  %3012 = vmatpush1.msra.mxu0 %v2969
  %3013 = vmatprep.subr.mxu0 0.0
  %3014 = vmatpush2.msra.mxu0 0.0
  %3015 = vmatprep.subr.mxu0 0.0
  %3016 = vmatpush2.msra.mxu0 0.0
  %3017 = vmatprep.subr.mxu0 0.0
  %3018 = vmatpush2.msra.mxu0 0.0
  %3019 = vmatprep.subr.mxu0 0.0
  %3020 = vmatpush2.msra.mxu0 0.0
  %3021 = vmatprep.subr.mxu0 0.0
  %3022 = vmatpush2.msra.mxu0 0.0
  %3023 = vmatprep.subr.mxu0 0.0
  %3024 = vmatpush2.msra.mxu0 0.0
  %3025 = vmatprep.subr.mxu0 0.0
  %3026 = vmatpush2.msra.mxu0 0.0
  %3027 = vmatprep.subr.mxu0 0.0
  %3028 = vmatpush2.msra.mxu0 0.0
  %3029 = vmatprep.subr.mxu0 0.0
  %3030 = vmatpush2.msra.mxu0 0.0
  %3031 = vmatprep.subr.mxu0 0.0
  %3032 = vmatpush2.msra.mxu0 0.0
  %3033 = vmatprep.subr.mxu0 0.0
  %3034 = vmatpush2.msra.mxu0 0.0
  %3035 = vmatprep.subr.mxu0 0.0
  %3036 = vmatpush2.msra.mxu0 0.0
  %3037 = vmatprep.subr.mxu0 0.0
  %3038 = vmatpush2.msra.mxu0 0.0
  %3039 = vmatprep.subr.mxu0 0.0
  %3040 = vmatpush2.msra.mxu0 0.0
  %3041 = vmatprep.subr.mxu0 0.0
  %3042 = vmatpush2.msra.mxu0 0.0
  %3043 = vmatprep.subr.mxu0 0.0
  %3044 = vmatpush2.msra.mxu0 0.0
  %3045 = vmatprep.mubr.f32.mxu0 0.0
  %3046 = vmatmul.mubr.f32.gmra.mxu0 %v2967
  %v3047 = vpop.f32.mrf.mxu0
  %v3048 = vadd.f32 0.0, %v3047
  %v3049 = vpop.f32.mrf.mxu0
  %v3050 = vadd.f32 0.0, %v3049
  %3051 = vdwg.mxu0
  %3052 = vmatprep.subr.mxu0 0.0
  %3053 = vmatpush1.msra.mxu0 0.0
  %3054 = vmatprep.subr.mxu0 0.0
  %3055 = vmatpush1.msra.mxu0 0.0
  %3056 = vmatprep.subr.mxu0 0.0
  %3057 = vmatpush1.msra.mxu0 0.0
  %3058 = vmatprep.subr.mxu0 0.0
  %3059 = vmatpush1.msra.mxu0 0.0
  %3060 = vmatprep.subr.mxu0 0.0
  %3061 = vmatpush1.msra.mxu0 0.0
  %3062 = vmatprep.subr.mxu0 0.0
  %3063 = vmatpush1.msra.mxu0 0.0
  %3064 = vmatprep.subr.mxu0 0.0
  %3065 = vmatpush1.msra.mxu0 0.0
  %3066 = vmatprep.subr.mxu0 0.0
  %3067 = vmatpush1.msra.mxu0 0.0
  %3068 = vmatprep.subr.mxu0 0.0
  %3069 = vmatpush1.msra.mxu0 0.0
  %3070 = vmatprep.subr.mxu0 0.0
  %3071 = vmatpush1.msra.mxu0 0.0
  %3072 = vmatprep.subr.mxu0 0.0
  %3073 = vmatpush1.msra.mxu0 0.0
  %3074 = vmatprep.subr.mxu0 0.0
  %3075 = vmatpush1.msra.mxu0 0.0
  %3076 = vmatprep.subr.mxu0 0.0
  %3077 = vmatpush1.msra.mxu0 0.0
  %3078 = vmatprep.subr.mxu0 0.0
  %3079 = vmatpush1.msra.mxu0 0.0
  %3080 = vmatprep.subr.mxu0 0.0
  %3081 = vmatpush1.msra.mxu0 0.0
  %3082 = vmatprep.subr.mxu0 %v2975
  %3083 = vmatpush1.msra.mxu0 %v2973
  %3084 = vmatprep.subr.mxu0 0.0
  %3085 = vmatpush2.msra.mxu0 0.0
  %3086 = vmatprep.subr.mxu0 0.0
  %3087 = vmatpush2.msra.mxu0 0.0
  %3088 = vmatprep.subr.mxu0 0.0
  %3089 = vmatpush2.msra.mxu0 0.0
  %3090 = vmatprep.subr.mxu0 0.0
  %3091 = vmatpush2.msra.mxu0 0.0
  %3092 = vmatprep.subr.mxu0 0.0
  %3093 = vmatpush2.msra.mxu0 0.0
  %3094 = vmatprep.subr.mxu0 0.0
  %3095 = vmatpush2.msra.mxu0 0.0
  %3096 = vmatprep.subr.mxu0 0.0
  %3097 = vmatpush2.msra.mxu0 0.0
  %3098 = vmatprep.subr.mxu0 0.0
  %3099 = vmatpush2.msra.mxu0 0.0
  %3100 = vmatprep.subr.mxu0 0.0
  %3101 = vmatpush2.msra.mxu0 0.0
  %3102 = vmatprep.subr.mxu0 0.0
  %3103 = vmatpush2.msra.mxu0 0.0
  %3104 = vmatprep.subr.mxu0 0.0
  %3105 = vmatpush2.msra.mxu0 0.0
  %3106 = vmatprep.subr.mxu0 0.0
  %3107 = vmatpush2.msra.mxu0 0.0
  %3108 = vmatprep.subr.mxu0 0.0
  %3109 = vmatpush2.msra.mxu0 0.0
  %3110 = vmatprep.subr.mxu0 0.0
  %3111 = vmatpush2.msra.mxu0 0.0
  %3112 = vmatprep.subr.mxu0 0.0
  %3113 = vmatpush2.msra.mxu0 0.0
  %3114 = vmatprep.subr.mxu0 0.0
  %3115 = vmatpush2.msra.mxu0 0.0
  %3116 = vmatprep.mubr.f32.mxu0 0.0
  %3117 = vmatmul.mubr.f32.gmra.mxu0 %v2967
  %v3118 = vpop.f32.mrf.mxu0
  %v3119 = vadd.f32 0.0, %v3118
  %v3120 = vpop.f32.mrf.mxu0
  %v3121 = vadd.f32 0.0, %v3120
  %3122 = vdwg.mxu0
  %3123 = vmatprep.subr.mxu0 0.0
  %3124 = vmatpush1.msra.mxu0 0.0
  %3125 = vmatprep.subr.mxu0 0.0
  %3126 = vmatpush1.msra.mxu0 0.0
  %3127 = vmatprep.subr.mxu0 0.0
  %3128 = vmatpush1.msra.mxu0 0.0
  %3129 = vmatprep.subr.mxu0 0.0
  %3130 = vmatpush1.msra.mxu0 0.0
  %3131 = vmatprep.subr.mxu0 0.0
  %3132 = vmatpush1.msra.mxu0 0.0
  %3133 = vmatprep.subr.mxu0 0.0
  %3134 = vmatpush1.msra.mxu0 0.0
  %3135 = vmatprep.subr.mxu0 0.0
  %3136 = vmatpush1.msra.mxu0 0.0
  %3137 = vmatprep.subr.mxu0 0.0
  %3138 = vmatpush1.msra.mxu0 0.0
  %3139 = vmatprep.subr.mxu0 0.0
  %3140 = vmatpush1.msra.mxu0 0.0
  %3141 = vmatprep.subr.mxu0 0.0
  %3142 = vmatpush1.msra.mxu0 0.0
  %3143 = vmatprep.subr.mxu0 0.0
  %3144 = vmatpush1.msra.mxu0 0.0
  %3145 = vmatprep.subr.mxu0 0.0
  %3146 = vmatpush1.msra.mxu0 0.0
  %3147 = vmatprep.subr.mxu0 0.0
  %3148 = vmatpush1.msra.mxu0 0.0
  %3149 = vmatprep.subr.mxu0 0.0
  %3150 = vmatpush1.msra.mxu0 0.0
  %3151 = vmatprep.subr.mxu0 0.0
  %3152 = vmatpush1.msra.mxu0 0.0
  %3153 = vmatprep.subr.mxu0 %v2979
  %3154 = vmatpush1.msra.mxu0 %v2977
  %3155 = vmatprep.subr.mxu0 0.0
  %3156 = vmatpush2.msra.mxu0 0.0
  %3157 = vmatprep.subr.mxu0 0.0
  %3158 = vmatpush2.msra.mxu0 0.0
  %3159 = vmatprep.subr.mxu0 0.0
  %3160 = vmatpush2.msra.mxu0 0.0
  %3161 = vmatprep.subr.mxu0 0.0
  %3162 = vmatpush2.msra.mxu0 0.0
  %3163 = vmatprep.subr.mxu0 0.0
  %3164 = vmatpush2.msra.mxu0 0.0
  %3165 = vmatprep.subr.mxu0 0.0
  %3166 = vmatpush2.msra.mxu0 0.0
  %3167 = vmatprep.subr.mxu0 0.0
  %3168 = vmatpush2.msra.mxu0 0.0
  %3169 = vmatprep.subr.mxu0 0.0
  %3170 = vmatpush2.msra.mxu0 0.0
  %3171 = vmatprep.subr.mxu0 0.0
  %3172 = vmatpush2.msra.mxu0 0.0
  %3173 = vmatprep.subr.mxu0 0.0
  %3174 = vmatpush2.msra.mxu0 0.0
  %3175 = vmatprep.subr.mxu0 0.0
  %3176 = vmatpush2.msra.mxu0 0.0
  %3177 = vmatprep.subr.mxu0 0.0
  %3178 = vmatpush2.msra.mxu0 0.0
  %3179 = vmatprep.subr.mxu0 0.0
  %3180 = vmatpush2.msra.mxu0 0.0
  %3181 = vmatprep.subr.mxu0 0.0
  %3182 = vmatpush2.msra.mxu0 0.0
  %3183 = vmatprep.subr.mxu0 0.0
  %3184 = vmatpush2.msra.mxu0 0.0
  %3185 = vmatprep.subr.mxu0 0.0
  %3186 = vmatpush2.msra.mxu0 0.0
  %3187 = vmatprep.mubr.f32.mxu0 0.0
  %3188 = vmatmul.mubr.f32.gmra.mxu0 %v2967
  %v3189 = vpop.f32.mrf.mxu0
  %v3190 = vadd.f32 0.0, %v3189
  %v3191 = vpop.f32.mrf.mxu0
  %v3192 = vadd.f32 0.0, %v3191
  %3193 = vdwg.mxu0
  %v3195 = vsel %vm109, %v2964, 0
  %v3198 = vsel %vm137, %v751, 0
  %v3201 = vsel %vm137, %v752, 0
  %v3204 = vsel %vm137, %v753, 0
  %v3207 = vsel %vm137, %v754, 0
  %v3210 = vsel %vm137, %v755, 0
  %v3213 = vsel %vm137, %v756, 0
  %3215 = vmatprep.subr.mxu0 0.0
  %3216 = vmatpush1.msra.mxu0 0.0
  %3217 = vmatprep.subr.mxu0 0.0
  %3218 = vmatpush1.msra.mxu0 0.0
  %3219 = vmatprep.subr.mxu0 0.0
  %3220 = vmatpush1.msra.mxu0 0.0
  %3221 = vmatprep.subr.mxu0 0.0
  %3222 = vmatpush1.msra.mxu0 0.0
  %3223 = vmatprep.subr.mxu0 0.0
  %3224 = vmatpush1.msra.mxu0 0.0
  %3225 = vmatprep.subr.mxu0 0.0
  %3226 = vmatpush1.msra.mxu0 0.0
  %3227 = vmatprep.subr.mxu0 0.0
  %3228 = vmatpush1.msra.mxu0 0.0
  %3229 = vmatprep.subr.mxu0 0.0
  %3230 = vmatpush1.msra.mxu0 0.0
  %3231 = vmatprep.subr.mxu0 0.0
  %3232 = vmatpush1.msra.mxu0 0.0
  %3233 = vmatprep.subr.mxu0 0.0
  %3234 = vmatpush1.msra.mxu0 0.0
  %3235 = vmatprep.subr.mxu0 0.0
  %3236 = vmatpush1.msra.mxu0 0.0
  %3237 = vmatprep.subr.mxu0 0.0
  %3238 = vmatpush1.msra.mxu0 0.0
  %3239 = vmatprep.subr.mxu0 0.0
  %3240 = vmatpush1.msra.mxu0 0.0
  %3241 = vmatprep.subr.mxu0 0.0
  %3242 = vmatpush1.msra.mxu0 0.0
  %3243 = vmatprep.subr.mxu0 0.0
  %3244 = vmatpush1.msra.mxu0 0.0
  %3245 = vmatprep.subr.mxu0 %v3201
  %3246 = vmatpush1.msra.mxu0 %v3198
  %3247 = vmatprep.subr.mxu0 0.0
  %3248 = vmatpush2.msra.mxu0 0.0
  %3249 = vmatprep.subr.mxu0 0.0
  %3250 = vmatpush2.msra.mxu0 0.0
  %3251 = vmatprep.subr.mxu0 0.0
  %3252 = vmatpush2.msra.mxu0 0.0
  %3253 = vmatprep.subr.mxu0 0.0
  %3254 = vmatpush2.msra.mxu0 0.0
  %3255 = vmatprep.subr.mxu0 0.0
  %3256 = vmatpush2.msra.mxu0 0.0
  %3257 = vmatprep.subr.mxu0 0.0
  %3258 = vmatpush2.msra.mxu0 0.0
  %3259 = vmatprep.subr.mxu0 0.0
  %3260 = vmatpush2.msra.mxu0 0.0
  %3261 = vmatprep.subr.mxu0 0.0
  %3262 = vmatpush2.msra.mxu0 0.0
  %3263 = vmatprep.subr.mxu0 0.0
  %3264 = vmatpush2.msra.mxu0 0.0
  %3265 = vmatprep.subr.mxu0 0.0
  %3266 = vmatpush2.msra.mxu0 0.0
  %3267 = vmatprep.subr.mxu0 0.0
  %3268 = vmatpush2.msra.mxu0 0.0
  %3269 = vmatprep.subr.mxu0 0.0
  %3270 = vmatpush2.msra.mxu0 0.0
  %3271 = vmatprep.subr.mxu0 0.0
  %3272 = vmatpush2.msra.mxu0 0.0
  %3273 = vmatprep.subr.mxu0 0.0
  %3274 = vmatpush2.msra.mxu0 0.0
  %3275 = vmatprep.subr.mxu0 0.0
  %3276 = vmatpush2.msra.mxu0 0.0
  %3277 = vmatprep.subr.mxu0 0.0
  %3278 = vmatpush2.msra.mxu0 0.0
  %3279 = vmatprep.mubr.f32.mxu0 0.0
  %3280 = vmatmul.mubr.f32.gmra.mxu0 %v3195
  %v3281 = vpop.f32.mrf.mxu0
  %v3282 = vadd.f32 %v3048, %v3281
  %v3283 = vpop.f32.mrf.mxu0
  %v3284 = vadd.f32 %v3050, %v3283
  %3285 = vdwg.mxu0
  %3286 = vmatprep.subr.mxu0 0.0
  %3287 = vmatpush1.msra.mxu0 0.0
  %3288 = vmatprep.subr.mxu0 0.0
  %3289 = vmatpush1.msra.mxu0 0.0
  %3290 = vmatprep.subr.mxu0 0.0
  %3291 = vmatpush1.msra.mxu0 0.0
  %3292 = vmatprep.subr.mxu0 0.0
  %3293 = vmatpush1.msra.mxu0 0.0
  %3294 = vmatprep.subr.mxu0 0.0
  %3295 = vmatpush1.msra.mxu0 0.0
  %3296 = vmatprep.subr.mxu0 0.0
  %3297 = vmatpush1.msra.mxu0 0.0
  %3298 = vmatprep.subr.mxu0 0.0
  %3299 = vmatpush1.msra.mxu0 0.0
  %3300 = vmatprep.subr.mxu0 0.0
  %3301 = vmatpush1.msra.mxu0 0.0
  %3302 = vmatprep.subr.mxu0 0.0
  %3303 = vmatpush1.msra.mxu0 0.0
  %3304 = vmatprep.subr.mxu0 0.0
  %3305 = vmatpush1.msra.mxu0 0.0
  %3306 = vmatprep.subr.mxu0 0.0
  %3307 = vmatpush1.msra.mxu0 0.0
  %3308 = vmatprep.subr.mxu0 0.0
  %3309 = vmatpush1.msra.mxu0 0.0
  %3310 = vmatprep.subr.mxu0 0.0
  %3311 = vmatpush1.msra.mxu0 0.0
  %3312 = vmatprep.subr.mxu0 0.0
  %3313 = vmatpush1.msra.mxu0 0.0
  %3314 = vmatprep.subr.mxu0 0.0
  %3315 = vmatpush1.msra.mxu0 0.0
  %3316 = vmatprep.subr.mxu0 %v3207
  %3317 = vmatpush1.msra.mxu0 %v3204
  %3318 = vmatprep.subr.mxu0 0.0
  %3319 = vmatpush2.msra.mxu0 0.0
  %3320 = vmatprep.subr.mxu0 0.0
  %3321 = vmatpush2.msra.mxu0 0.0
  %3322 = vmatprep.subr.mxu0 0.0
  %3323 = vmatpush2.msra.mxu0 0.0
  %3324 = vmatprep.subr.mxu0 0.0
  %3325 = vmatpush2.msra.mxu0 0.0
  %3326 = vmatprep.subr.mxu0 0.0
  %3327 = vmatpush2.msra.mxu0 0.0
  %3328 = vmatprep.subr.mxu0 0.0
  %3329 = vmatpush2.msra.mxu0 0.0
  %3330 = vmatprep.subr.mxu0 0.0
  %3331 = vmatpush2.msra.mxu0 0.0
  %3332 = vmatprep.subr.mxu0 0.0
  %3333 = vmatpush2.msra.mxu0 0.0
  %3334 = vmatprep.subr.mxu0 0.0
  %3335 = vmatpush2.msra.mxu0 0.0
  %3336 = vmatprep.subr.mxu0 0.0
  %3337 = vmatpush2.msra.mxu0 0.0
  %3338 = vmatprep.subr.mxu0 0.0
  %3339 = vmatpush2.msra.mxu0 0.0
  %3340 = vmatprep.subr.mxu0 0.0
  %3341 = vmatpush2.msra.mxu0 0.0
  %3342 = vmatprep.subr.mxu0 0.0
  %3343 = vmatpush2.msra.mxu0 0.0
  %3344 = vmatprep.subr.mxu0 0.0
  %3345 = vmatpush2.msra.mxu0 0.0
  %3346 = vmatprep.subr.mxu0 0.0
  %3347 = vmatpush2.msra.mxu0 0.0
  %3348 = vmatprep.subr.mxu0 0.0
  %3349 = vmatpush2.msra.mxu0 0.0
  %3350 = vmatprep.mubr.f32.mxu0 0.0
  %3351 = vmatmul.mubr.f32.gmra.mxu0 %v3195
  %v3352 = vpop.f32.mrf.mxu0
  %v3353 = vadd.f32 %v3119, %v3352
  %v3354 = vpop.f32.mrf.mxu0
  %v3355 = vadd.f32 %v3121, %v3354
  %3356 = vdwg.mxu0
  %3357 = vmatprep.subr.mxu0 0.0
  %3358 = vmatpush1.msra.mxu0 0.0
  %3359 = vmatprep.subr.mxu0 0.0
  %3360 = vmatpush1.msra.mxu0 0.0
  %3361 = vmatprep.subr.mxu0 0.0
  %3362 = vmatpush1.msra.mxu0 0.0
  %3363 = vmatprep.subr.mxu0 0.0
  %3364 = vmatpush1.msra.mxu0 0.0
  %3365 = vmatprep.subr.mxu0 0.0
  %3366 = vmatpush1.msra.mxu0 0.0
  %3367 = vmatprep.subr.mxu0 0.0
  %3368 = vmatpush1.msra.mxu0 0.0
  %3369 = vmatprep.subr.mxu0 0.0
  %3370 = vmatpush1.msra.mxu0 0.0
  %3371 = vmatprep.subr.mxu0 0.0
  %3372 = vmatpush1.msra.mxu0 0.0
  %3373 = vmatprep.subr.mxu0 0.0
  %3374 = vmatpush1.msra.mxu0 0.0
  %3375 = vmatprep.subr.mxu0 0.0
  %3376 = vmatpush1.msra.mxu0 0.0
  %3377 = vmatprep.subr.mxu0 0.0
  %3378 = vmatpush1.msra.mxu0 0.0
  %3379 = vmatprep.subr.mxu0 0.0
  %3380 = vmatpush1.msra.mxu0 0.0
  %3381 = vmatprep.subr.mxu0 0.0
  %3382 = vmatpush1.msra.mxu0 0.0
  %3383 = vmatprep.subr.mxu0 0.0
  %3384 = vmatpush1.msra.mxu0 0.0
  %3385 = vmatprep.subr.mxu0 0.0
  %3386 = vmatpush1.msra.mxu0 0.0
  %3387 = vmatprep.subr.mxu0 %v3213
  %3388 = vmatpush1.msra.mxu0 %v3210
  %3389 = vmatprep.subr.mxu0 0.0
  %3390 = vmatpush2.msra.mxu0 0.0
  %3391 = vmatprep.subr.mxu0 0.0
  %3392 = vmatpush2.msra.mxu0 0.0
  %3393 = vmatprep.subr.mxu0 0.0
  %3394 = vmatpush2.msra.mxu0 0.0
  %3395 = vmatprep.subr.mxu0 0.0
  %3396 = vmatpush2.msra.mxu0 0.0
  %3397 = vmatprep.subr.mxu0 0.0
  %3398 = vmatpush2.msra.mxu0 0.0
  %3399 = vmatprep.subr.mxu0 0.0
  %3400 = vmatpush2.msra.mxu0 0.0
  %3401 = vmatprep.subr.mxu0 0.0
  %3402 = vmatpush2.msra.mxu0 0.0
  %3403 = vmatprep.subr.mxu0 0.0
  %3404 = vmatpush2.msra.mxu0 0.0
  %3405 = vmatprep.subr.mxu0 0.0
  %3406 = vmatpush2.msra.mxu0 0.0
  %3407 = vmatprep.subr.mxu0 0.0
  %3408 = vmatpush2.msra.mxu0 0.0
  %3409 = vmatprep.subr.mxu0 0.0
  %3410 = vmatpush2.msra.mxu0 0.0
  %3411 = vmatprep.subr.mxu0 0.0
  %3412 = vmatpush2.msra.mxu0 0.0
  %3413 = vmatprep.subr.mxu0 0.0
  %3414 = vmatpush2.msra.mxu0 0.0
  %3415 = vmatprep.subr.mxu0 0.0
  %3416 = vmatpush2.msra.mxu0 0.0
  %3417 = vmatprep.subr.mxu0 0.0
  %3418 = vmatpush2.msra.mxu0 0.0
  %3419 = vmatprep.subr.mxu0 0.0
  %3420 = vmatpush2.msra.mxu0 0.0
  %3421 = vmatprep.mubr.f32.mxu0 0.0
  %3422 = vmatmul.mubr.f32.gmra.mxu0 %v3195
  %v3423 = vpop.f32.mrf.mxu0
  %v3424 = vadd.f32 %v3190, %v3423
  %v3425 = vpop.f32.mrf.mxu0
  %v3426 = vadd.f32 %v3192, %v3425
  %3427 = vdwg.mxu0
  %v3428 = vld [vmem:[%s18] sm:$0xf]
  %3430 = vset.pattern.permute.xlu0 0
  %3431 = vperm.xlu0 %3430, %v3428
  %v3432 = vpop.permute.xlu0 %3431
  %v3434 = vadd.f32 %v3282, %v3432
  %v3435 = vadd.f32 %v3284, %v3432
  %v3436 = vadd.f32 %v3353, %v3432
  %v3437 = vadd.f32 %v3355, %v3432
  %v3438 = vadd.f32 %v3424, %v3432
  %v3439 = vadd.f32 %v3426, %v3432
  %v3440 = vadd.f32 %v2958, %v3434
  %v3441 = vadd.f32 %v2959, %v3435
  %v3442 = vadd.f32 %v2960, %v3436
  %v3443 = vadd.f32 %v2961, %v3437
  %v3444 = vadd.f32 %v2962, %v3438
  %v3445 = vadd.f32 %v2963, %v3439
  %v3446 = vmul.f32 %v3440, %v724
  %v3447 = vmul.f32 %v3441, %v728
  %v3448 = vmul.f32 %v3442, %v732
  %v3449 = vmul.f32 %v3443, %v736
  %v3450 = vmul.f32 %v3444, %v740
  %v3451 = vmul.f32 %v3445, %v744
  %v3452 = vld [vmem:[%s19] sm:$0xf]
  %v3453 = vld [vmem:[%s20] sm:$0xf]
  %v3454 = vld [vmem:[%s21] sm:$0xff]
  %v3455 = vld [vmem:[%s21 + $0x8] sm:$0xff]
  %v3456 = vld [vmem:[%s21 + $0x10] sm:$0xff]
  %v3457 = vld [vmem:[%s21 + $0x18] sm:$0xff]
  %v3458 = vld [vmem:[%s21 + $0x20] sm:$0xff]
  %v3459 = vld [vmem:[%s21 + $0x28] sm:$0xff]
  %v3460 = vld [vmem:[%s21 + $0x30] sm:$0xff]
  %v3461 = vld [vmem:[%s21 + $0x38] sm:$0xff]
  %v3462 = vld [vmem:[%s21 + $0x40] sm:$0xff]
  %v3463 = vld [vmem:[%s22] sm:$0xf]
  %v3464 = vld [vmem:[%s23] sm:$0xf]
  %v3465 = vld [vmem:[%s24] sm:$0xf]
  %v3466 = vld [vmem:[%s25] sm:$0xff]
  %v3467 = vld [vmem:[%s25 + $0x8] sm:$0xff]
  %v3468 = vld [vmem:[%s25 + $0x10] sm:$0xff]
  %v3469 = vld [vmem:[%s25 + $0x18] sm:$0xff]
  %v3470 = vld [vmem:[%s25 + $0x20] sm:$0xff]
  %v3471 = vld [vmem:[%s25 + $0x28] sm:$0xff]
  %v3472 = vld [vmem:[%s25 + $0x30] sm:$0xff]
  %v3473 = vld [vmem:[%s25 + $0x38] sm:$0xff]
  %v3474 = vld [vmem:[%s25 + $0x40] sm:$0xff]
  %v3475 = vld [vmem:[%s26] sm:$0xf]
  %v3476 = vsel %vm137, %v3446, 0.0
  %v3477 = vsel %vm137, %v3447, 0.0
  %v3478 = vadd.f32 %v3476, %v3477
  %v3479 = vsel %vm137, %v3448, 0.0
  %v3480 = vadd.f32 %v3478, %v3479
  %v3481 = vsel %vm137, %v3449, 0.0
  %v3482 = vadd.f32 %v3480, %v3481
  %v3483 = vsel %vm137, %v3450, 0.0
  %v3484 = vadd.f32 %v3482, %v3483
  %v3485 = vsel %vm137, %v3451, 0.0
  %v3486 = vadd.f32 %v3484, %v3485
  %3487 = vadd.xlane.f32.xlu0 %v3486
  %v3488 = vpop.xlane.xlu0 %3487
  %v3489 = vmul.f32 %v3488, 0.001953125
  %v3490 = vmul.f32 %v3446, %v3446
  %v3491 = vmul.f32 %v3447, %v3447
  %v3492 = vmul.f32 %v3448, %v3448
  %v3493 = vmul.f32 %v3449, %v3449
  %v3494 = vmul.f32 %v3450, %v3450
  %v3495 = vmul.f32 %v3451, %v3451
  %v3496 = vsel %vm137, %v3490, 0.0
  %v3497 = vsel %vm137, %v3491, 0.0
  %v3498 = vadd.f32 %v3496, %v3497
  %v3499 = vsel %vm137, %v3492, 0.0
  %v3500 = vadd.f32 %v3498, %v3499
  %v3501 = vsel %vm137, %v3493, 0.0
  %v3502 = vadd.f32 %v3500, %v3501
  %v3503 = vsel %vm137, %v3494, 0.0
  %v3504 = vadd.f32 %v3502, %v3503
  %v3505 = vsel %vm137, %v3495, 0.0
  %v3506 = vadd.f32 %v3504, %v3505
  %3507 = vadd.xlane.f32.xlu0 %v3506
  %v3508 = vpop.xlane.xlu0 %3507
  %v3509 = vmul.f32 %v3508, 0.001953125
  %v3510 = vmul.f32 %v3489, %v3489
  %v3511 = vsub.f32 %v3509, %v3510
  %v3512 = vadd.f32 %v3511, 1e-05
  %v3513 = vrsqrt.pop %v3512
  %v3514 = vmul.f32 %v3452, %v3513
  %v3515 = vsub.f32 %v3446, %v3489
  %v3516 = vsub.f32 %v3447, %v3489
  %v3517 = vsub.f32 %v3448, %v3489
  %v3518 = vsub.f32 %v3449, %v3489
  %v3519 = vsub.f32 %v3450, %v3489
  %v3520 = vsub.f32 %v3451, %v3489
  %3522 = vset.pattern.permute.xlu0 0
  %3523 = vperm.xlu0 %3522, %v3514
  %v3524 = vpop.permute.xlu0 %3523
  %v3526 = vmul.f32 %v3515, %v3524
  %v3527 = vmul.f32 %v3516, %v3524
  %v3528 = vmul.f32 %v3517, %v3524
  %v3529 = vmul.f32 %v3518, %v3524
  %v3530 = vmul.f32 %v3519, %v3524
  %v3531 = vmul.f32 %v3520, %v3524
  %3533 = vset.pattern.permute.xlu0 0
  %3534 = vperm.xlu0 %3533, %v3453
  %v3535 = vpop.permute.xlu0 %3534
  %v3537 = vadd.f32 %v3526, %v3535
  %v3538 = vadd.f32 %v3527, %v3535
  %v3539 = vadd.f32 %v3528, %v3535
  %v3540 = vadd.f32 %v3529, %v3535
  %v3541 = vadd.f32 %v3530, %v3535
  %v3542 = vadd.f32 %v3531, %v3535
  %v3543 = vsub.f32 0.0, %v3537
  %v3544 = vsub.f32 0.0, %v3538
  %v3545 = vsub.f32 0.0, %v3539
  %v3546 = vsub.f32 0.0, %v3540
  %v3547 = vsub.f32 0.0, %v3541
  %v3548 = vsub.f32 0.0, %v3542
  %v3549 = vmul.f32 %v3543, 1.442695
  %v3550 = vpow.pop %v3549
  %v3551 = vmul.f32 %v3544, 1.442695
  %v3552 = vpow.pop %v3551
  %v3553 = vmul.f32 %v3545, 1.442695
  %v3554 = vpow.pop %v3553
  %v3555 = vmul.f32 %v3546, 1.442695
  %v3556 = vpow.pop %v3555
  %v3557 = vmul.f32 %v3547, 1.442695
  %v3558 = vpow.pop %v3557
  %v3559 = vmul.f32 %v3548, 1.442695
  %v3560 = vpow.pop %v3559
  %v3561 = vadd.f32 %v3550, 1.0
  %v3562 = vadd.f32 %v3552, 1.0
  %v3563 = vadd.f32 %v3554, 1.0
  %v3564 = vadd.f32 %v3556, 1.0
  %v3565 = vadd.f32 %v3558, 1.0
  %v3566 = vadd.f32 %v3560, 1.0
  %v3567 = vrcp.pop %v3561
  %v3568 = vmul.f32 1.0, %v3567
  %v3569 = vrcp.pop %v3562
  %v3570 = vmul.f32 1.0, %v3569
  %v3571 = vrcp.pop %v3563
  %v3572 = vmul.f32 1.0, %v3571
  %v3573 = vrcp.pop %v3564
  %v3574 = vmul.f32 1.0, %v3573
  %v3575 = vrcp.pop %v3565
  %v3576 = vmul.f32 1.0, %v3575
  %v3577 = vrcp.pop %v3566
  %v3578 = vmul.f32 1.0, %v3577
  %v3579 = vmul.f32 %v3537, %v3568
  %v3580 = vmul.f32 %v3538, %v3570
  %v3581 = vmul.f32 %v3539, %v3572
  %v3582 = vmul.f32 %v3540, %v3574
  %v3583 = vmul.f32 %v3541, %v3576
  %v3584 = vmul.f32 %v3542, %v3578
  %v3585 = vmul.f32 %v3579, %v724
  %v3586 = vmul.f32 %v3580, %v728
  %v3587 = vmul.f32 %v3581, %v732
  %v3588 = vmul.f32 %v3582, %v736
  %v3589 = vmul.f32 %v3583, %v740
  %v3590 = vmul.f32 %v3584, %v744
  %v3592 = vsel %vm109, %v3454, 0
  %v3595 = vsel %vm109, %v3455, 0
  %v3598 = vsel %vm109, %v3456, 0
  %v3601 = vsel %vm109, %v3457, 0
  %v3604 = vsel %vm109, %v3458, 0
  %v3607 = vsel %vm109, %v3459, 0
  %v3610 = vsel %vm109, %v3460, 0
  %v3613 = vsel %vm109, %v3461, 0
  %v3616 = vsel %vm109, %v3462, 0
  %v3619 = vsel %vm137, %v3585, 0
  %v3622 = vsel %vm137, %v3586, 0
  %v3625 = vsel %vm137, %v3587, 0
  %v3628 = vsel %vm137, %v3588, 0
  %v3631 = vsel %vm137, %v3589, 0
  %v3634 = vsel %vm137, %v3590, 0
  %3636 = vmatprep.subr.mxu0 0.0
  %3637 = vmatpush1.msra.mxu0 0.0
  %3638 = vmatprep.subr.mxu0 0.0
  %3639 = vmatpush1.msra.mxu0 0.0
  %3640 = vmatprep.subr.mxu0 0.0
  %3641 = vmatpush1.msra.mxu0 0.0
  %3642 = vmatprep.subr.mxu0 0.0
  %3643 = vmatpush1.msra.mxu0 0.0
  %3644 = vmatprep.subr.mxu0 0.0
  %3645 = vmatpush1.msra.mxu0 0.0
  %3646 = vmatprep.subr.mxu0 0.0
  %3647 = vmatpush1.msra.mxu0 0.0
  %3648 = vmatprep.subr.mxu0 0.0
  %3649 = vmatpush1.msra.mxu0 0.0
  %3650 = vmatprep.subr.mxu0 0.0
  %3651 = vmatpush1.msra.mxu0 0.0
  %3652 = vmatprep.subr.mxu0 0.0
  %3653 = vmatpush1.msra.mxu0 0.0
  %3654 = vmatprep.subr.mxu0 0.0
  %3655 = vmatpush1.msra.mxu0 0.0
  %3656 = vmatprep.subr.mxu0 0.0
  %3657 = vmatpush1.msra.mxu0 0.0
  %3658 = vmatprep.subr.mxu0 0.0
  %3659 = vmatpush1.msra.mxu0 0.0
  %3660 = vmatprep.subr.mxu0 0.0
  %3661 = vmatpush1.msra.mxu0 0.0
  %3662 = vmatprep.subr.mxu0 0.0
  %3663 = vmatpush1.msra.mxu0 0.0
  %3664 = vmatprep.subr.mxu0 0.0
  %3665 = vmatpush1.msra.mxu0 0.0
  %3666 = vmatprep.subr.mxu0 %v3622
  %3667 = vmatpush1.msra.mxu0 %v3619
  %3668 = vmatprep.subr.mxu0 0.0
  %3669 = vmatpush2.msra.mxu0 0.0
  %3670 = vmatprep.subr.mxu0 0.0
  %3671 = vmatpush2.msra.mxu0 0.0
  %3672 = vmatprep.subr.mxu0 0.0
  %3673 = vmatpush2.msra.mxu0 0.0
  %3674 = vmatprep.subr.mxu0 0.0
  %3675 = vmatpush2.msra.mxu0 0.0
  %3676 = vmatprep.subr.mxu0 0.0
  %3677 = vmatpush2.msra.mxu0 0.0
  %3678 = vmatprep.subr.mxu0 0.0
  %3679 = vmatpush2.msra.mxu0 0.0
  %3680 = vmatprep.subr.mxu0 0.0
  %3681 = vmatpush2.msra.mxu0 0.0
  %3682 = vmatprep.subr.mxu0 0.0
  %3683 = vmatpush2.msra.mxu0 0.0
  %3684 = vmatprep.subr.mxu0 0.0
  %3685 = vmatpush2.msra.mxu0 0.0
  %3686 = vmatprep.subr.mxu0 0.0
  %3687 = vmatpush2.msra.mxu0 0.0
  %3688 = vmatprep.subr.mxu0 0.0
  %3689 = vmatpush2.msra.mxu0 0.0
  %3690 = vmatprep.subr.mxu0 0.0
  %3691 = vmatpush2.msra.mxu0 0.0
  %3692 = vmatprep.subr.mxu0 0.0
  %3693 = vmatpush2.msra.mxu0 0.0
  %3694 = vmatprep.subr.mxu0 0.0
  %3695 = vmatpush2.msra.mxu0 0.0
  %3696 = vmatprep.subr.mxu0 0.0
  %3697 = vmatpush2.msra.mxu0 0.0
  %3698 = vmatprep.subr.mxu0 0.0
  %3699 = vmatpush2.msra.mxu0 0.0
  %3700 = vmatprep.mubr.f32.mxu0 0.0
  %3701 = vmatmul.mubr.f32.gmra.mxu0 %v3592
  %v3702 = vpop.f32.mrf.mxu0
  %v3703 = vadd.f32 0.0, %v3702
  %v3704 = vpop.f32.mrf.mxu0
  %v3705 = vadd.f32 0.0, %v3704
  %3706 = vmatprep.mubr.f32.mxu0 0.0
  %3707 = vmatmul.mubr.f32.gmra.mxu0 %v3595
  %v3708 = vpop.f32.mrf.mxu0
  %v3709 = vadd.f32 0.0, %v3708
  %v3710 = vpop.f32.mrf.mxu0
  %v3711 = vadd.f32 0.0, %v3710
  %3712 = vmatprep.mubr.f32.mxu0 0.0
  %3713 = vmatmul.mubr.f32.gmra.mxu0 %v3598
  %v3714 = vpop.f32.mrf.mxu0
  %v3715 = vadd.f32 0.0, %v3714
  %v3716 = vpop.f32.mrf.mxu0
  %v3717 = vadd.f32 0.0, %v3716
  %3718 = vmatprep.mubr.f32.mxu0 0.0
  %3719 = vmatmul.mubr.f32.gmra.mxu0 %v3601
  %v3720 = vpop.f32.mrf.mxu0
  %v3721 = vadd.f32 0.0, %v3720
  %v3722 = vpop.f32.mrf.mxu0
  %v3723 = vadd.f32 0.0, %v3722
  %3724 = vmatprep.mubr.f32.mxu0 0.0
  %3725 = vmatmul.mubr.f32.gmra.mxu0 %v3604
  %v3726 = vpop.f32.mrf.mxu0
  %v3727 = vadd.f32 0.0, %v3726
  %v3728 = vpop.f32.mrf.mxu0
  %v3729 = vadd.f32 0.0, %v3728
  %3730 = vmatprep.mubr.f32.mxu0 0.0
  %3731 = vmatmul.mubr.f32.gmra.mxu0 %v3607
  %v3732 = vpop.f32.mrf.mxu0
  %v3733 = vadd.f32 0.0, %v3732
  %v3734 = vpop.f32.mrf.mxu0
  %v3735 = vadd.f32 0.0, %v3734
  %3736 = vmatprep.mubr.f32.mxu0 0.0
  %3737 = vmatmul.mubr.f32.gmra.mxu0 %v3610
  %v3738 = vpop.f32.mrf.mxu0
  %v3739 = vadd.f32 0.0, %v3738
  %v3740 = vpop.f32.mrf.mxu0
  %v3741 = vadd.f32 0.0, %v3740
  %3742 = vmatprep.mubr.f32.mxu0 0.0
  %3743 = vmatmul.mubr.f32.gmra.mxu0 %v3613
  %v3744 = vpop.f32.mrf.mxu0
  %v3745 = vadd.f32 0.0, %v3744
  %v3746 = vpop.f32.mrf.mxu0
  %v3747 = vadd.f32 0.0, %v3746
  %3748 = vmatprep.mubr.f32.mxu0 0.0
  %3749 = vmatmul.mubr.f32.gmra.mxu0 %v3616
  %v3750 = vpop.f32.mrf.mxu0
  %v3751 = vadd.f32 0.0, %v3750
  %v3752 = vpop.f32.mrf.mxu0
  %v3753 = vadd.f32 0.0, %v3752
  %3754 = vdwg.mxu0
  %3755 = vmatprep.subr.mxu0 0.0
  %3756 = vmatpush1.msra.mxu0 0.0
  %3757 = vmatprep.subr.mxu0 0.0
  %3758 = vmatpush1.msra.mxu0 0.0
  %3759 = vmatprep.subr.mxu0 0.0
  %3760 = vmatpush1.msra.mxu0 0.0
  %3761 = vmatprep.subr.mxu0 0.0
  %3762 = vmatpush1.msra.mxu0 0.0
  %3763 = vmatprep.subr.mxu0 0.0
  %3764 = vmatpush1.msra.mxu0 0.0
  %3765 = vmatprep.subr.mxu0 0.0
  %3766 = vmatpush1.msra.mxu0 0.0
  %3767 = vmatprep.subr.mxu0 0.0
  %3768 = vmatpush1.msra.mxu0 0.0
  %3769 = vmatprep.subr.mxu0 0.0
  %3770 = vmatpush1.msra.mxu0 0.0
  %3771 = vmatprep.subr.mxu0 0.0
  %3772 = vmatpush1.msra.mxu0 0.0
  %3773 = vmatprep.subr.mxu0 0.0
  %3774 = vmatpush1.msra.mxu0 0.0
  %3775 = vmatprep.subr.mxu0 0.0
  %3776 = vmatpush1.msra.mxu0 0.0
  %3777 = vmatprep.subr.mxu0 0.0
  %3778 = vmatpush1.msra.mxu0 0.0
  %3779 = vmatprep.subr.mxu0 0.0
  %3780 = vmatpush1.msra.mxu0 0.0
  %3781 = vmatprep.subr.mxu0 0.0
  %3782 = vmatpush1.msra.mxu0 0.0
  %3783 = vmatprep.subr.mxu0 0.0
  %3784 = vmatpush1.msra.mxu0 0.0
  %3785 = vmatprep.subr.mxu0 %v3628
  %3786 = vmatpush1.msra.mxu0 %v3625
  %3787 = vmatprep.subr.mxu0 0.0
  %3788 = vmatpush2.msra.mxu0 0.0
  %3789 = vmatprep.subr.mxu0 0.0
  %3790 = vmatpush2.msra.mxu0 0.0
  %3791 = vmatprep.subr.mxu0 0.0
  %3792 = vmatpush2.msra.mxu0 0.0
  %3793 = vmatprep.subr.mxu0 0.0
  %3794 = vmatpush2.msra.mxu0 0.0
  %3795 = vmatprep.subr.mxu0 0.0
  %3796 = vmatpush2.msra.mxu0 0.0
  %3797 = vmatprep.subr.mxu0 0.0
  %3798 = vmatpush2.msra.mxu0 0.0
  %3799 = vmatprep.subr.mxu0 0.0
  %3800 = vmatpush2.msra.mxu0 0.0
  %3801 = vmatprep.subr.mxu0 0.0
  %3802 = vmatpush2.msra.mxu0 0.0
  %3803 = vmatprep.subr.mxu0 0.0
  %3804 = vmatpush2.msra.mxu0 0.0
  %3805 = vmatprep.subr.mxu0 0.0
  %3806 = vmatpush2.msra.mxu0 0.0
  %3807 = vmatprep.subr.mxu0 0.0
  %3808 = vmatpush2.msra.mxu0 0.0
  %3809 = vmatprep.subr.mxu0 0.0
  %3810 = vmatpush2.msra.mxu0 0.0
  %3811 = vmatprep.subr.mxu0 0.0
  %3812 = vmatpush2.msra.mxu0 0.0
  %3813 = vmatprep.subr.mxu0 0.0
  %3814 = vmatpush2.msra.mxu0 0.0
  %3815 = vmatprep.subr.mxu0 0.0
  %3816 = vmatpush2.msra.mxu0 0.0
  %3817 = vmatprep.subr.mxu0 0.0
  %3818 = vmatpush2.msra.mxu0 0.0
  %3819 = vmatprep.mubr.f32.mxu0 0.0
  %3820 = vmatmul.mubr.f32.gmra.mxu0 %v3592
  %v3821 = vpop.f32.mrf.mxu0
  %v3822 = vadd.f32 0.0, %v3821
  %v3823 = vpop.f32.mrf.mxu0
  %v3824 = vadd.f32 0.0, %v3823
  %3825 = vmatprep.mubr.f32.mxu0 0.0
  %3826 = vmatmul.mubr.f32.gmra.mxu0 %v3595
  %v3827 = vpop.f32.mrf.mxu0
  %v3828 = vadd.f32 0.0, %v3827
  %v3829 = vpop.f32.mrf.mxu0
  %v3830 = vadd.f32 0.0, %v3829
  %3831 = vmatprep.mubr.f32.mxu0 0.0
  %3832 = vmatmul.mubr.f32.gmra.mxu0 %v3598
  %v3833 = vpop.f32.mrf.mxu0
  %v3834 = vadd.f32 0.0, %v3833
  %v3835 = vpop.f32.mrf.mxu0
  %v3836 = vadd.f32 0.0, %v3835
  %3837 = vmatprep.mubr.f32.mxu0 0.0
  %3838 = vmatmul.mubr.f32.gmra.mxu0 %v3601
  %v3839 = vpop.f32.mrf.mxu0
  %v3840 = vadd.f32 0.0, %v3839
  %v3841 = vpop.f32.mrf.mxu0
  %v3842 = vadd.f32 0.0, %v3841
  %3843 = vmatprep.mubr.f32.mxu0 0.0
  %3844 = vmatmul.mubr.f32.gmra.mxu0 %v3604
  %v3845 = vpop.f32.mrf.mxu0
  %v3846 = vadd.f32 0.0, %v3845
  %v3847 = vpop.f32.mrf.mxu0
  %v3848 = vadd.f32 0.0, %v3847
  %3849 = vmatprep.mubr.f32.mxu0 0.0
  %3850 = vmatmul.mubr.f32.gmra.mxu0 %v3607
  %v3851 = vpop.f32.mrf.mxu0
  %v3852 = vadd.f32 0.0, %v3851
  %v3853 = vpop.f32.mrf.mxu0
  %v3854 = vadd.f32 0.0, %v3853
  %3855 = vmatprep.mubr.f32.mxu0 0.0
  %3856 = vmatmul.mubr.f32.gmra.mxu0 %v3610
  %v3857 = vpop.f32.mrf.mxu0
  %v3858 = vadd.f32 0.0, %v3857
  %v3859 = vpop.f32.mrf.mxu0
  %v3860 = vadd.f32 0.0, %v3859
  %3861 = vmatprep.mubr.f32.mxu0 0.0
  %3862 = vmatmul.mubr.f32.gmra.mxu0 %v3613
  %v3863 = vpop.f32.mrf.mxu0
  %v3864 = vadd.f32 0.0, %v3863
  %v3865 = vpop.f32.mrf.mxu0
  %v3866 = vadd.f32 0.0, %v3865
  %3867 = vmatprep.mubr.f32.mxu0 0.0
  %3868 = vmatmul.mubr.f32.gmra.mxu0 %v3616
  %v3869 = vpop.f32.mrf.mxu0
  %v3870 = vadd.f32 0.0, %v3869
  %v3871 = vpop.f32.mrf.mxu0
  %v3872 = vadd.f32 0.0, %v3871
  %3873 = vdwg.mxu0
  %3874 = vmatprep.subr.mxu0 0.0
  %3875 = vmatpush1.msra.mxu0 0.0
  %3876 = vmatprep.subr.mxu0 0.0
  %3877 = vmatpush1.msra.mxu0 0.0
  %3878 = vmatprep.subr.mxu0 0.0
  %3879 = vmatpush1.msra.mxu0 0.0
  %3880 = vmatprep.subr.mxu0 0.0
  %3881 = vmatpush1.msra.mxu0 0.0
  %3882 = vmatprep.subr.mxu0 0.0
  %3883 = vmatpush1.msra.mxu0 0.0
  %3884 = vmatprep.subr.mxu0 0.0
  %3885 = vmatpush1.msra.mxu0 0.0
  %3886 = vmatprep.subr.mxu0 0.0
  %3887 = vmatpush1.msra.mxu0 0.0
  %3888 = vmatprep.subr.mxu0 0.0
  %3889 = vmatpush1.msra.mxu0 0.0
  %3890 = vmatprep.subr.mxu0 0.0
  %3891 = vmatpush1.msra.mxu0 0.0
  %3892 = vmatprep.subr.mxu0 0.0
  %3893 = vmatpush1.msra.mxu0 0.0
  %3894 = vmatprep.subr.mxu0 0.0
  %3895 = vmatpush1.msra.mxu0 0.0
  %3896 = vmatprep.subr.mxu0 0.0
  %3897 = vmatpush1.msra.mxu0 0.0
  %3898 = vmatprep.subr.mxu0 0.0
  %3899 = vmatpush1.msra.mxu0 0.0
  %3900 = vmatprep.subr.mxu0 0.0
  %3901 = vmatpush1.msra.mxu0 0.0
  %3902 = vmatprep.subr.mxu0 0.0
  %3903 = vmatpush1.msra.mxu0 0.0
  %3904 = vmatprep.subr.mxu0 %v3634
  %3905 = vmatpush1.msra.mxu0 %v3631
  %3906 = vmatprep.subr.mxu0 0.0
  %3907 = vmatpush2.msra.mxu0 0.0
  %3908 = vmatprep.subr.mxu0 0.0
  %3909 = vmatpush2.msra.mxu0 0.0
  %3910 = vmatprep.subr.mxu0 0.0
  %3911 = vmatpush2.msra.mxu0 0.0
  %3912 = vmatprep.subr.mxu0 0.0
  %3913 = vmatpush2.msra.mxu0 0.0
  %3914 = vmatprep.subr.mxu0 0.0
  %3915 = vmatpush2.msra.mxu0 0.0
  %3916 = vmatprep.subr.mxu0 0.0
  %3917 = vmatpush2.msra.mxu0 0.0
  %3918 = vmatprep.subr.mxu0 0.0
  %3919 = vmatpush2.msra.mxu0 0.0
  %3920 = vmatprep.subr.mxu0 0.0
  %3921 = vmatpush2.msra.mxu0 0.0
  %3922 = vmatprep.subr.mxu0 0.0
  %3923 = vmatpush2.msra.mxu0 0.0
  %3924 = vmatprep.subr.mxu0 0.0
  %3925 = vmatpush2.msra.mxu0 0.0
  %3926 = vmatprep.subr.mxu0 0.0
  %3927 = vmatpush2.msra.mxu0 0.0
  %3928 = vmatprep.subr.mxu0 0.0
  %3929 = vmatpush2.msra.mxu0 0.0
  %3930 = vmatprep.subr.mxu0 0.0
  %3931 = vmatpush2.msra.mxu0 0.0
  %3932 = vmatprep.subr.mxu0 0.0
  %3933 = vmatpush2.msra.mxu0 0.0
  %3934 = vmatprep.subr.mxu0 0.0
  %3935 = vmatpush2.msra.mxu0 0.0
  %3936 = vmatprep.subr.mxu0 0.0
  %3937 = vmatpush2.msra.mxu0 0.0
  %3938 = vmatprep.mubr.f32.mxu0 0.0
  %3939 = vmatmul.mubr.f32.gmra.mxu0 %v3592
  %v3940 = vpop.f32.mrf.mxu0
  %v3941 = vadd.f32 0.0, %v3940
  %v3942 = vpop.f32.mrf.mxu0
  %v3943 = vadd.f32 0.0, %v3942
  %3944 = vmatprep.mubr.f32.mxu0 0.0
  %3945 = vmatmul.mubr.f32.gmra.mxu0 %v3595
  %v3946 = vpop.f32.mrf.mxu0
  %v3947 = vadd.f32 0.0, %v3946
  %v3948 = vpop.f32.mrf.mxu0
  %v3949 = vadd.f32 0.0, %v3948
  %3950 = vmatprep.mubr.f32.mxu0 0.0
  %3951 = vmatmul.mubr.f32.gmra.mxu0 %v3598
  %v3952 = vpop.f32.mrf.mxu0
  %v3953 = vadd.f32 0.0, %v3952
  %v3954 = vpop.f32.mrf.mxu0
  %v3955 = vadd.f32 0.0, %v3954
  %3956 = vmatprep.mubr.f32.mxu0 0.0
  %3957 = vmatmul.mubr.f32.gmra.mxu0 %v3601
  %v3958 = vpop.f32.mrf.mxu0
  %v3959 = vadd.f32 0.0, %v3958
  %v3960 = vpop.f32.mrf.mxu0
  %v3961 = vadd.f32 0.0, %v3960
  %3962 = vmatprep.mubr.f32.mxu0 0.0
  %3963 = vmatmul.mubr.f32.gmra.mxu0 %v3604
  %v3964 = vpop.f32.mrf.mxu0
  %v3965 = vadd.f32 0.0, %v3964
  %v3966 = vpop.f32.mrf.mxu0
  %v3967 = vadd.f32 0.0, %v3966
  %3968 = vmatprep.mubr.f32.mxu0 0.0
  %3969 = vmatmul.mubr.f32.gmra.mxu0 %v3607
  %v3970 = vpop.f32.mrf.mxu0
  %v3971 = vadd.f32 0.0, %v3970
  %v3972 = vpop.f32.mrf.mxu0
  %v3973 = vadd.f32 0.0, %v3972
  %3974 = vmatprep.mubr.f32.mxu0 0.0
  %3975 = vmatmul.mubr.f32.gmra.mxu0 %v3610
  %v3976 = vpop.f32.mrf.mxu0
  %v3977 = vadd.f32 0.0, %v3976
  %v3978 = vpop.f32.mrf.mxu0
  %v3979 = vadd.f32 0.0, %v3978
  %3980 = vmatprep.mubr.f32.mxu0 0.0
  %3981 = vmatmul.mubr.f32.gmra.mxu0 %v3613
  %v3982 = vpop.f32.mrf.mxu0
  %v3983 = vadd.f32 0.0, %v3982
  %v3984 = vpop.f32.mrf.mxu0
  %v3985 = vadd.f32 0.0, %v3984
  %3986 = vmatprep.mubr.f32.mxu0 0.0
  %3987 = vmatmul.mubr.f32.gmra.mxu0 %v3616
  %v3988 = vpop.f32.mrf.mxu0
  %v3989 = vadd.f32 0.0, %v3988
  %v3990 = vpop.f32.mrf.mxu0
  %v3991 = vadd.f32 0.0, %v3990
  %3992 = vdwg.mxu0
  %3993 = vrot.lane.b32.xlu0 %v3703, 19
  %v3994 = vpop.permute.xlu0 %3993
  %3995 = vrot.lane.b32.xlu0 %v3705, 19
  %v3996 = vpop.permute.xlu0 %3995
  %3997 = vrot.lane.b32.xlu0 %v3822, 19
  %v3998 = vpop.permute.xlu0 %3997
  %3999 = vrot.lane.b32.xlu0 %v3824, 19
  %v4000 = vpop.permute.xlu0 %3999
  %4001 = vrot.lane.b32.xlu0 %v3941, 19
  %v4002 = vpop.permute.xlu0 %4001
  %4003 = vrot.lane.b32.xlu0 %v3943, 19
  %v4004 = vpop.permute.xlu0 %4003
  %v4005 = vsel %vm521, %v4002, %v4004
  %v4006 = vsel %vm521, %v4000, %v4002
  %v4007 = vsel %vm521, %v3998, %v4000
  %v4008 = vsel %vm521, %v3996, %v3998
  %v4009 = vsel %vm521, %v3994, %v3996
  %v4010 = vsel %vm521, %v4004, %v3994
  %4011 = vrot.lane.b32.xlu0 %v3709, 18
  %v4012 = vpop.permute.xlu0 %4011
  %4013 = vrot.lane.b32.xlu0 %v3711, 18
  %v4014 = vpop.permute.xlu0 %4013
  %4015 = vrot.lane.b32.xlu0 %v3828, 18
  %v4016 = vpop.permute.xlu0 %4015
  %4017 = vrot.lane.b32.xlu0 %v3830, 18
  %v4018 = vpop.permute.xlu0 %4017
  %4019 = vrot.lane.b32.xlu0 %v3947, 18
  %v4020 = vpop.permute.xlu0 %4019
  %4021 = vrot.lane.b32.xlu0 %v3949, 18
  %v4022 = vpop.permute.xlu0 %4021
  %v4023 = vsel %vm540, %v4020, %v4022
  %v4024 = vsel %vm540, %v4018, %v4020
  %v4025 = vsel %vm540, %v4016, %v4018
  %v4026 = vsel %vm540, %v4014, %v4016
  %v4027 = vsel %vm540, %v4012, %v4014
  %v4028 = vsel %vm540, %v4022, %v4012
  %v4029 = vadd.f32 %v4010, %v4028
  %v4030 = vadd.f32 %v4009, %v4027
  %v4031 = vadd.f32 %v4008, %v4026
  %v4032 = vadd.f32 %v4007, %v4025
  %v4033 = vadd.f32 %v4006, %v4024
  %v4034 = vadd.f32 %v4005, %v4023
  %4035 = vrot.lane.b32.xlu0 %v3715, 17
  %v4036 = vpop.permute.xlu0 %4035
  %4037 = vrot.lane.b32.xlu0 %v3717, 17
  %v4038 = vpop.permute.xlu0 %4037
  %4039 = vrot.lane.b32.xlu0 %v3834, 17
  %v4040 = vpop.permute.xlu0 %4039
  %4041 = vrot.lane.b32.xlu0 %v3836, 17
  %v4042 = vpop.permute.xlu0 %4041
  %4043 = vrot.lane.b32.xlu0 %v3953, 17
  %v4044 = vpop.permute.xlu0 %4043
  %4045 = vrot.lane.b32.xlu0 %v3955, 17
  %v4046 = vpop.permute.xlu0 %4045
  %v4047 = vsel %vm565, %v4044, %v4046
  %v4048 = vsel %vm565, %v4042, %v4044
  %v4049 = vsel %vm565, %v4040, %v4042
  %v4050 = vsel %vm565, %v4038, %v4040
  %v4051 = vsel %vm565, %v4036, %v4038
  %v4052 = vsel %vm565, %v4046, %v4036
  %v4053 = vadd.f32 %v4029, %v4052
  %v4054 = vadd.f32 %v4030, %v4051
  %v4055 = vadd.f32 %v4031, %v4050
  %v4056 = vadd.f32 %v4032, %v4049
  %v4057 = vadd.f32 %v4033, %v4048
  %v4058 = vadd.f32 %v4034, %v4047
  %4059 = vrot.lane.b32.xlu0 %v3721, 1
  %v4060 = vpop.permute.xlu0 %4059
  %4061 = vrot.lane.b32.xlu0 %v3723, 1
  %v4062 = vpop.permute.xlu0 %4061
  %4063 = vrot.lane.b32.xlu0 %v3840, 1
  %v4064 = vpop.permute.xlu0 %4063
  %4065 = vrot.lane.b32.xlu0 %v3842, 1
  %v4066 = vpop.permute.xlu0 %4065
  %4067 = vrot.lane.b32.xlu0 %v3959, 1
  %v4068 = vpop.permute.xlu0 %4067
  %4069 = vrot.lane.b32.xlu0 %v3961, 1
  %v4070 = vpop.permute.xlu0 %4069
  %v4071 = vsel %vm590, %v4068, %v4070
  %v4072 = vsel %vm590, %v4066, %v4068
  %v4073 = vsel %vm590, %v4064, %v4066
  %v4074 = vsel %vm590, %v4062, %v4064
  %v4075 = vsel %vm590, %v4060, %v4062
  %v4076 = vsel %vm590, %v4070, %v4060
  %v4077 = vadd.f32 %v4053, %v4076
  %v4078 = vadd.f32 %v4054, %v4075
  %v4079 = vadd.f32 %v4055, %v4074
  %v4080 = vadd.f32 %v4056, %v4073
  %v4081 = vadd.f32 %v4057, %v4072
  %v4082 = vadd.f32 %v4058, %v4071
  %v4083 = vadd.f32 %v4077, %v3727
  %v4084 = vadd.f32 %v4078, %v3729
  %v4085 = vadd.f32 %v4079, %v3846
  %v4086 = vadd.f32 %v4080, %v3848
  %v4087 = vadd.f32 %v4081, %v3965
  %v4088 = vadd.f32 %v4082, %v3967
  %4089 = vrot.lane.b32.xlu0 %v3733, 127
  %v4090 = vpop.permute.xlu0 %4089
  %4091 = vrot.lane.b32.xlu0 %v3735, 127
  %v4092 = vpop.permute.xlu0 %4091
  %4093 = vrot.lane.b32.xlu0 %v3852, 127
  %v4094 = vpop.permute.xlu0 %4093
  %4095 = vrot.lane.b32.xlu0 %v3854, 127
  %v4096 = vpop.permute.xlu0 %4095
  %4097 = vrot.lane.b32.xlu0 %v3971, 127
  %v4098 = vpop.permute.xlu0 %4097
  %4099 = vrot.lane.b32.xlu0 %v3973, 127
  %v4100 = vpop.permute.xlu0 %4099
  %v4101 = vsel %vm621, %v4098, %v4100
  %v4102 = vsel %vm621, %v4096, %v4098
  %v4103 = vsel %vm621, %v4094, %v4096
  %v4104 = vsel %vm621, %v4092, %v4094
  %v4105 = vsel %vm621, %v4090, %v4092
  %v4106 = vsel %vm621, %v4100, %v4090
  %v4107 = vadd.f32 %v4083, %v4105
  %v4108 = vadd.f32 %v4084, %v4104
  %v4109 = vadd.f32 %v4085, %v4103
  %v4110 = vadd.f32 %v4086, %v4102
  %v4111 = vadd.f32 %v4087, %v4101
  %v4112 = vadd.f32 %v4088, %v4106
  %4113 = vrot.lane.b32.xlu0 %v3739, 111
  %v4114 = vpop.permute.xlu0 %4113
  %4115 = vrot.lane.b32.xlu0 %v3741, 111
  %v4116 = vpop.permute.xlu0 %4115
  %4117 = vrot.lane.b32.xlu0 %v3858, 111
  %v4118 = vpop.permute.xlu0 %4117
  %4119 = vrot.lane.b32.xlu0 %v3860, 111
  %v4120 = vpop.permute.xlu0 %4119
  %4121 = vrot.lane.b32.xlu0 %v3977, 111
  %v4122 = vpop.permute.xlu0 %4121
  %4123 = vrot.lane.b32.xlu0 %v3979, 111
  %v4124 = vpop.permute.xlu0 %4123
  %v4125 = vsel %vm646, %v4122, %v4124
  %v4126 = vsel %vm646, %v4120, %v4122
  %v4127 = vsel %vm646, %v4118, %v4120
  %v4128 = vsel %vm646, %v4116, %v4118
  %v4129 = vsel %vm646, %v4114, %v4116
  %v4130 = vsel %vm646, %v4124, %v4114
  %v4131 = vadd.f32 %v4107, %v4129
  %v4132 = vadd.f32 %v4108, %v4128
  %v4133 = vadd.f32 %v4109, %v4127
  %v4134 = vadd.f32 %v4110, %v4126
  %v4135 = vadd.f32 %v4111, %v4125
  %v4136 = vadd.f32 %v4112, %v4130
  %4137 = vrot.lane.b32.xlu0 %v3745, 110
  %v4138 = vpop.permute.xlu0 %4137
  %4139 = vrot.lane.b32.xlu0 %v3747, 110
  %v4140 = vpop.permute.xlu0 %4139
  %4141 = vrot.lane.b32.xlu0 %v3864, 110
  %v4142 = vpop.permute.xlu0 %4141
  %4143 = vrot.lane.b32.xlu0 %v3866, 110
  %v4144 = vpop.permute.xlu0 %4143
  %4145 = vrot.lane.b32.xlu0 %v3983, 110
  %v4146 = vpop.permute.xlu0 %4145
  %4147 = vrot.lane.b32.xlu0 %v3985, 110
  %v4148 = vpop.permute.xlu0 %4147
  %v4149 = vsel %vm671, %v4146, %v4148
  %v4150 = vsel %vm671, %v4144, %v4146
  %v4151 = vsel %vm671, %v4142, %v4144
  %v4152 = vsel %vm671, %v4140, %v4142
  %v4153 = vsel %vm671, %v4138, %v4140
  %v4154 = vsel %vm671, %v4148, %v4138
  %v4155 = vadd.f32 %v4131, %v4153
  %v4156 = vadd.f32 %v4132, %v4152
  %v4157 = vadd.f32 %v4133, %v4151
  %v4158 = vadd.f32 %v4134, %v4150
  %v4159 = vadd.f32 %v4135, %v4149
  %v4160 = vadd.f32 %v4136, %v4154
  %4161 = vrot.lane.b32.xlu0 %v3751, 109
  %v4162 = vpop.permute.xlu0 %4161
  %4163 = vrot.lane.b32.xlu0 %v3753, 109
  %v4164 = vpop.permute.xlu0 %4163
  %4165 = vrot.lane.b32.xlu0 %v3870, 109
  %v4166 = vpop.permute.xlu0 %4165
  %4167 = vrot.lane.b32.xlu0 %v3872, 109
  %v4168 = vpop.permute.xlu0 %4167
  %4169 = vrot.lane.b32.xlu0 %v3989, 109
  %v4170 = vpop.permute.xlu0 %4169
  %4171 = vrot.lane.b32.xlu0 %v3991, 109
  %v4172 = vpop.permute.xlu0 %4171
  %v4173 = vsel %vm696, %v4170, %v4172
  %v4174 = vsel %vm696, %v4168, %v4170
  %v4175 = vsel %vm696, %v4166, %v4168
  %v4176 = vsel %vm696, %v4164, %v4166
  %v4177 = vsel %vm696, %v4162, %v4164
  %v4178 = vsel %vm696, %v4172, %v4162
  %v4179 = vadd.f32 %v4155, %v4177
  %v4180 = vadd.f32 %v4156, %v4176
  %v4181 = vadd.f32 %v4157, %v4175
  %v4182 = vadd.f32 %v4158, %v4174
  %v4183 = vadd.f32 %v4159, %v4173
  %v4184 = vadd.f32 %v4160, %v4178
  %4186 = vset.pattern.permute.xlu0 0
  %4187 = vperm.xlu0 %4186, %v3463
  %v4188 = vpop.permute.xlu0 %4187
  %v4190 = vadd.f32 %v4179, %v4188
  %v4191 = vadd.f32 %v4180, %v4188
  %v4192 = vadd.f32 %v4181, %v4188
  %v4193 = vadd.f32 %v4182, %v4188
  %v4194 = vadd.f32 %v4183, %v4188
  %v4195 = vadd.f32 %v4184, %v4188
  %v4196 = vmul.f32 %v4190, %v724
  %v4197 = vmul.f32 %v4191, %v728
  %v4198 = vmul.f32 %v4192, %v732
  %v4199 = vmul.f32 %v4193, %v736
  %v4200 = vmul.f32 %v4194, %v740
  %v4201 = vmul.f32 %v4195, %v744
  %v4202 = vsel %vm137, %v4196, 0.0
  %v4203 = vsel %vm137, %v4197, 0.0
  %v4204 = vadd.f32 %v4202, %v4203
  %v4205 = vsel %vm137, %v4198, 0.0
  %v4206 = vadd.f32 %v4204, %v4205
  %v4207 = vsel %vm137, %v4199, 0.0
  %v4208 = vadd.f32 %v4206, %v4207
  %v4209 = vsel %vm137, %v4200, 0.0
  %v4210 = vadd.f32 %v4208, %v4209
  %v4211 = vsel %vm137, %v4201, 0.0
  %v4212 = vadd.f32 %v4210, %v4211
  %4213 = vadd.xlane.f32.xlu0 %v4212
  %v4214 = vpop.xlane.xlu0 %4213
  %v4215 = vmul.f32 %v4214, 0.001953125
  %v4216 = vmul.f32 %v4196, %v4196
  %v4217 = vmul.f32 %v4197, %v4197
  %v4218 = vmul.f32 %v4198, %v4198
  %v4219 = vmul.f32 %v4199, %v4199
  %v4220 = vmul.f32 %v4200, %v4200
  %v4221 = vmul.f32 %v4201, %v4201
  %v4222 = vsel %vm137, %v4216, 0.0
  %v4223 = vsel %vm137, %v4217, 0.0
  %v4224 = vadd.f32 %v4222, %v4223
  %v4225 = vsel %vm137, %v4218, 0.0
  %v4226 = vadd.f32 %v4224, %v4225
  %v4227 = vsel %vm137, %v4219, 0.0
  %v4228 = vadd.f32 %v4226, %v4227
  %v4229 = vsel %vm137, %v4220, 0.0
  %v4230 = vadd.f32 %v4228, %v4229
  %v4231 = vsel %vm137, %v4221, 0.0
  %v4232 = vadd.f32 %v4230, %v4231
  %4233 = vadd.xlane.f32.xlu0 %v4232
  %v4234 = vpop.xlane.xlu0 %4233
  %v4235 = vmul.f32 %v4234, 0.001953125
  %v4236 = vmul.f32 %v4215, %v4215
  %v4237 = vsub.f32 %v4235, %v4236
  %v4238 = vadd.f32 %v4237, 1e-05
  %v4239 = vrsqrt.pop %v4238
  %v4240 = vmul.f32 %v3464, %v4239
  %v4241 = vsub.f32 %v4196, %v4215
  %v4242 = vsub.f32 %v4197, %v4215
  %v4243 = vsub.f32 %v4198, %v4215
  %v4244 = vsub.f32 %v4199, %v4215
  %v4245 = vsub.f32 %v4200, %v4215
  %v4246 = vsub.f32 %v4201, %v4215
  %4248 = vset.pattern.permute.xlu0 0
  %4249 = vperm.xlu0 %4248, %v4240
  %v4250 = vpop.permute.xlu0 %4249
  %v4252 = vmul.f32 %v4241, %v4250
  %v4253 = vmul.f32 %v4242, %v4250
  %v4254 = vmul.f32 %v4243, %v4250
  %v4255 = vmul.f32 %v4244, %v4250
  %v4256 = vmul.f32 %v4245, %v4250
  %v4257 = vmul.f32 %v4246, %v4250
  %4259 = vset.pattern.permute.xlu0 0
  %4260 = vperm.xlu0 %4259, %v3465
  %v4261 = vpop.permute.xlu0 %4260
  %v4263 = vadd.f32 %v4252, %v4261
  %v4264 = vadd.f32 %v4253, %v4261
  %v4265 = vadd.f32 %v4254, %v4261
  %v4266 = vadd.f32 %v4255, %v4261
  %v4267 = vadd.f32 %v4256, %v4261
  %v4268 = vadd.f32 %v4257, %v4261
  %v4269 = vsub.f32 0.0, %v4263
  %v4270 = vsub.f32 0.0, %v4264
  %v4271 = vsub.f32 0.0, %v4265
  %v4272 = vsub.f32 0.0, %v4266
  %v4273 = vsub.f32 0.0, %v4267
  %v4274 = vsub.f32 0.0, %v4268
  %v4275 = vmul.f32 %v4269, 1.442695
  %v4276 = vpow.pop %v4275
  %v4277 = vmul.f32 %v4270, 1.442695
  %v4278 = vpow.pop %v4277
  %v4279 = vmul.f32 %v4271, 1.442695
  %v4280 = vpow.pop %v4279
  %v4281 = vmul.f32 %v4272, 1.442695
  %v4282 = vpow.pop %v4281
  %v4283 = vmul.f32 %v4273, 1.442695
  %v4284 = vpow.pop %v4283
  %v4285 = vmul.f32 %v4274, 1.442695
  %v4286 = vpow.pop %v4285
  %v4287 = vadd.f32 %v4276, 1.0
  %v4288 = vadd.f32 %v4278, 1.0
  %v4289 = vadd.f32 %v4280, 1.0
  %v4290 = vadd.f32 %v4282, 1.0
  %v4291 = vadd.f32 %v4284, 1.0
  %v4292 = vadd.f32 %v4286, 1.0
  %v4293 = vrcp.pop %v4287
  %v4294 = vmul.f32 1.0, %v4293
  %v4295 = vrcp.pop %v4288
  %v4296 = vmul.f32 1.0, %v4295
  %v4297 = vrcp.pop %v4289
  %v4298 = vmul.f32 1.0, %v4297
  %v4299 = vrcp.pop %v4290
  %v4300 = vmul.f32 1.0, %v4299
  %v4301 = vrcp.pop %v4291
  %v4302 = vmul.f32 1.0, %v4301
  %v4303 = vrcp.pop %v4292
  %v4304 = vmul.f32 1.0, %v4303
  %v4305 = vmul.f32 %v4263, %v4294
  %v4306 = vmul.f32 %v4264, %v4296
  %v4307 = vmul.f32 %v4265, %v4298
  %v4308 = vmul.f32 %v4266, %v4300
  %v4309 = vmul.f32 %v4267, %v4302
  %v4310 = vmul.f32 %v4268, %v4304
  %v4311 = vmul.f32 %v4305, %v724
  %v4312 = vmul.f32 %v4306, %v728
  %v4313 = vmul.f32 %v4307, %v732
  %v4314 = vmul.f32 %v4308, %v736
  %v4315 = vmul.f32 %v4309, %v740
  %v4316 = vmul.f32 %v4310, %v744
  %v4318 = vsel %vm109, %v3466, 0
  %v4321 = vsel %vm109, %v3467, 0
  %v4324 = vsel %vm109, %v3468, 0
  %v4327 = vsel %vm109, %v3469, 0
  %v4330 = vsel %vm109, %v3470, 0
  %v4333 = vsel %vm109, %v3471, 0
  %v4336 = vsel %vm109, %v3472, 0
  %v4339 = vsel %vm109, %v3473, 0
  %v4342 = vsel %vm109, %v3474, 0
  %v4345 = vsel %vm137, %v4311, 0
  %v4348 = vsel %vm137, %v4312, 0
  %v4351 = vsel %vm137, %v4313, 0
  %v4354 = vsel %vm137, %v4314, 0
  %v4357 = vsel %vm137, %v4315, 0
  %v4360 = vsel %vm137, %v4316, 0
  %4362 = vmatprep.subr.mxu0 0.0
  %4363 = vmatpush1.msra.mxu0 0.0
  %4364 = vmatprep.subr.mxu0 0.0
  %4365 = vmatpush1.msra.mxu0 0.0
  %4366 = vmatprep.subr.mxu0 0.0
  %4367 = vmatpush1.msra.mxu0 0.0
  %4368 = vmatprep.subr.mxu0 0.0
  %4369 = vmatpush1.msra.mxu0 0.0
  %4370 = vmatprep.subr.mxu0 0.0
  %4371 = vmatpush1.msra.mxu0 0.0
  %4372 = vmatprep.subr.mxu0 0.0
  %4373 = vmatpush1.msra.mxu0 0.0
  %4374 = vmatprep.subr.mxu0 0.0
  %4375 = vmatpush1.msra.mxu0 0.0
  %4376 = vmatprep.subr.mxu0 0.0
  %4377 = vmatpush1.msra.mxu0 0.0
  %4378 = vmatprep.subr.mxu0 0.0
  %4379 = vmatpush1.msra.mxu0 0.0
  %4380 = vmatprep.subr.mxu0 0.0
  %4381 = vmatpush1.msra.mxu0 0.0
  %4382 = vmatprep.subr.mxu0 0.0
  %4383 = vmatpush1.msra.mxu0 0.0
  %4384 = vmatprep.subr.mxu0 0.0
  %4385 = vmatpush1.msra.mxu0 0.0
  %4386 = vmatprep.subr.mxu0 0.0
  %4387 = vmatpush1.msra.mxu0 0.0
  %4388 = vmatprep.subr.mxu0 0.0
  %4389 = vmatpush1.msra.mxu0 0.0
  %4390 = vmatprep.subr.mxu0 0.0
  %4391 = vmatpush1.msra.mxu0 0.0
  %4392 = vmatprep.subr.mxu0 %v4348
  %4393 = vmatpush1.msra.mxu0 %v4345
  %4394 = vmatprep.subr.mxu0 0.0
  %4395 = vmatpush2.msra.mxu0 0.0
  %4396 = vmatprep.subr.mxu0 0.0
  %4397 = vmatpush2.msra.mxu0 0.0
  %4398 = vmatprep.subr.mxu0 0.0
  %4399 = vmatpush2.msra.mxu0 0.0
  %4400 = vmatprep.subr.mxu0 0.0
  %4401 = vmatpush2.msra.mxu0 0.0
  %4402 = vmatprep.subr.mxu0 0.0
  %4403 = vmatpush2.msra.mxu0 0.0
  %4404 = vmatprep.subr.mxu0 0.0
  %4405 = vmatpush2.msra.mxu0 0.0
  %4406 = vmatprep.subr.mxu0 0.0
  %4407 = vmatpush2.msra.mxu0 0.0
  %4408 = vmatprep.subr.mxu0 0.0
  %4409 = vmatpush2.msra.mxu0 0.0
  %4410 = vmatprep.subr.mxu0 0.0
  %4411 = vmatpush2.msra.mxu0 0.0
  %4412 = vmatprep.subr.mxu0 0.0
  %4413 = vmatpush2.msra.mxu0 0.0
  %4414 = vmatprep.subr.mxu0 0.0
  %4415 = vmatpush2.msra.mxu0 0.0
  %4416 = vmatprep.subr.mxu0 0.0
  %4417 = vmatpush2.msra.mxu0 0.0
  %4418 = vmatprep.subr.mxu0 0.0
  %4419 = vmatpush2.msra.mxu0 0.0
  %4420 = vmatprep.subr.mxu0 0.0
  %4421 = vmatpush2.msra.mxu0 0.0
  %4422 = vmatprep.subr.mxu0 0.0
  %4423 = vmatpush2.msra.mxu0 0.0
  %4424 = vmatprep.subr.mxu0 0.0
  %4425 = vmatpush2.msra.mxu0 0.0
  %4426 = vmatprep.mubr.f32.mxu0 0.0
  %4427 = vmatmul.mubr.f32.gmra.mxu0 %v4318
  %v4428 = vpop.f32.mrf.mxu0
  %v4429 = vadd.f32 0.0, %v4428
  %v4430 = vpop.f32.mrf.mxu0
  %v4431 = vadd.f32 0.0, %v4430
  %4432 = vmatprep.mubr.f32.mxu0 0.0
  %4433 = vmatmul.mubr.f32.gmra.mxu0 %v4321
  %v4434 = vpop.f32.mrf.mxu0
  %v4435 = vadd.f32 0.0, %v4434
  %v4436 = vpop.f32.mrf.mxu0
  %v4437 = vadd.f32 0.0, %v4436
  %4438 = vmatprep.mubr.f32.mxu0 0.0
  %4439 = vmatmul.mubr.f32.gmra.mxu0 %v4324
  %v4440 = vpop.f32.mrf.mxu0
  %v4441 = vadd.f32 0.0, %v4440
  %v4442 = vpop.f32.mrf.mxu0
  %v4443 = vadd.f32 0.0, %v4442
  %4444 = vmatprep.mubr.f32.mxu0 0.0
  %4445 = vmatmul.mubr.f32.gmra.mxu0 %v4327
  %v4446 = vpop.f32.mrf.mxu0
  %v4447 = vadd.f32 0.0, %v4446
  %v4448 = vpop.f32.mrf.mxu0
  %v4449 = vadd.f32 0.0, %v4448
  %4450 = vmatprep.mubr.f32.mxu0 0.0
  %4451 = vmatmul.mubr.f32.gmra.mxu0 %v4330
  %v4452 = vpop.f32.mrf.mxu0
  %v4453 = vadd.f32 0.0, %v4452
  %v4454 = vpop.f32.mrf.mxu0
  %v4455 = vadd.f32 0.0, %v4454
  %4456 = vmatprep.mubr.f32.mxu0 0.0
  %4457 = vmatmul.mubr.f32.gmra.mxu0 %v4333
  %v4458 = vpop.f32.mrf.mxu0
  %v4459 = vadd.f32 0.0, %v4458
  %v4460 = vpop.f32.mrf.mxu0
  %v4461 = vadd.f32 0.0, %v4460
  %4462 = vmatprep.mubr.f32.mxu0 0.0
  %4463 = vmatmul.mubr.f32.gmra.mxu0 %v4336
  %v4464 = vpop.f32.mrf.mxu0
  %v4465 = vadd.f32 0.0, %v4464
  %v4466 = vpop.f32.mrf.mxu0
  %v4467 = vadd.f32 0.0, %v4466
  %4468 = vmatprep.mubr.f32.mxu0 0.0
  %4469 = vmatmul.mubr.f32.gmra.mxu0 %v4339
  %v4470 = vpop.f32.mrf.mxu0
  %v4471 = vadd.f32 0.0, %v4470
  %v4472 = vpop.f32.mrf.mxu0
  %v4473 = vadd.f32 0.0, %v4472
  %4474 = vmatprep.mubr.f32.mxu0 0.0
  %4475 = vmatmul.mubr.f32.gmra.mxu0 %v4342
  %v4476 = vpop.f32.mrf.mxu0
  %v4477 = vadd.f32 0.0, %v4476
  %v4478 = vpop.f32.mrf.mxu0
  %v4479 = vadd.f32 0.0, %v4478
  %4480 = vdwg.mxu0
  %4481 = vmatprep.subr.mxu0 0.0
  %4482 = vmatpush1.msra.mxu0 0.0
  %4483 = vmatprep.subr.mxu0 0.0
  %4484 = vmatpush1.msra.mxu0 0.0
  %4485 = vmatprep.subr.mxu0 0.0
  %4486 = vmatpush1.msra.mxu0 0.0
  %4487 = vmatprep.subr.mxu0 0.0
  %4488 = vmatpush1.msra.mxu0 0.0
  %4489 = vmatprep.subr.mxu0 0.0
  %4490 = vmatpush1.msra.mxu0 0.0
  %4491 = vmatprep.subr.mxu0 0.0
  %4492 = vmatpush1.msra.mxu0 0.0
  %4493 = vmatprep.subr.mxu0 0.0
  %4494 = vmatpush1.msra.mxu0 0.0
  %4495 = vmatprep.subr.mxu0 0.0
  %4496 = vmatpush1.msra.mxu0 0.0
  %4497 = vmatprep.subr.mxu0 0.0
  %4498 = vmatpush1.msra.mxu0 0.0
  %4499 = vmatprep.subr.mxu0 0.0
  %4500 = vmatpush1.msra.mxu0 0.0
  %4501 = vmatprep.subr.mxu0 0.0
  %4502 = vmatpush1.msra.mxu0 0.0
  %4503 = vmatprep.subr.mxu0 0.0
  %4504 = vmatpush1.msra.mxu0 0.0
  %4505 = vmatprep.subr.mxu0 0.0
  %4506 = vmatpush1.msra.mxu0 0.0
  %4507 = vmatprep.subr.mxu0 0.0
  %4508 = vmatpush1.msra.mxu0 0.0
  %4509 = vmatprep.subr.mxu0 0.0
  %4510 = vmatpush1.msra.mxu0 0.0
  %4511 = vmatprep.subr.mxu0 %v4354
  %4512 = vmatpush1.msra.mxu0 %v4351
  %4513 = vmatprep.subr.mxu0 0.0
  %4514 = vmatpush2.msra.mxu0 0.0
  %4515 = vmatprep.subr.mxu0 0.0
  %4516 = vmatpush2.msra.mxu0 0.0
  %4517 = vmatprep.subr.mxu0 0.0
  %4518 = vmatpush2.msra.mxu0 0.0
  %4519 = vmatprep.subr.mxu0 0.0
  %4520 = vmatpush2.msra.mxu0 0.0
  %4521 = vmatprep.subr.mxu0 0.0
  %4522 = vmatpush2.msra.mxu0 0.0
  %4523 = vmatprep.subr.mxu0 0.0
  %4524 = vmatpush2.msra.mxu0 0.0
  %4525 = vmatprep.subr.mxu0 0.0
  %4526 = vmatpush2.msra.mxu0 0.0
  %4527 = vmatprep.subr.mxu0 0.0
  %4528 = vmatpush2.msra.mxu0 0.0
  %4529 = vmatprep.subr.mxu0 0.0
  %4530 = vmatpush2.msra.mxu0 0.0
  %4531 = vmatprep.subr.mxu0 0.0
  %4532 = vmatpush2.msra.mxu0 0.0
  %4533 = vmatprep.subr.mxu0 0.0
  %4534 = vmatpush2.msra.mxu0 0.0
  %4535 = vmatprep.subr.mxu0 0.0
  %4536 = vmatpush2.msra.mxu0 0.0
  %4537 = vmatprep.subr.mxu0 0.0
  %4538 = vmatpush2.msra.mxu0 0.0
  %4539 = vmatprep.subr.mxu0 0.0
  %4540 = vmatpush2.msra.mxu0 0.0
  %4541 = vmatprep.subr.mxu0 0.0
  %4542 = vmatpush2.msra.mxu0 0.0
  %4543 = vmatprep.subr.mxu0 0.0
  %4544 = vmatpush2.msra.mxu0 0.0
  %4545 = vmatprep.mubr.f32.mxu0 0.0
  %4546 = vmatmul.mubr.f32.gmra.mxu0 %v4318
  %v4547 = vpop.f32.mrf.mxu0
  %v4548 = vadd.f32 0.0, %v4547
  %v4549 = vpop.f32.mrf.mxu0
  %v4550 = vadd.f32 0.0, %v4549
  %4551 = vmatprep.mubr.f32.mxu0 0.0
  %4552 = vmatmul.mubr.f32.gmra.mxu0 %v4321
  %v4553 = vpop.f32.mrf.mxu0
  %v4554 = vadd.f32 0.0, %v4553
  %v4555 = vpop.f32.mrf.mxu0
  %v4556 = vadd.f32 0.0, %v4555
  %4557 = vmatprep.mubr.f32.mxu0 0.0
  %4558 = vmatmul.mubr.f32.gmra.mxu0 %v4324
  %v4559 = vpop.f32.mrf.mxu0
  %v4560 = vadd.f32 0.0, %v4559
  %v4561 = vpop.f32.mrf.mxu0
  %v4562 = vadd.f32 0.0, %v4561
  %4563 = vmatprep.mubr.f32.mxu0 0.0
  %4564 = vmatmul.mubr.f32.gmra.mxu0 %v4327
  %v4565 = vpop.f32.mrf.mxu0
  %v4566 = vadd.f32 0.0, %v4565
  %v4567 = vpop.f32.mrf.mxu0
  %v4568 = vadd.f32 0.0, %v4567
  %4569 = vmatprep.mubr.f32.mxu0 0.0
  %4570 = vmatmul.mubr.f32.gmra.mxu0 %v4330
  %v4571 = vpop.f32.mrf.mxu0
  %v4572 = vadd.f32 0.0, %v4571
  %v4573 = vpop.f32.mrf.mxu0
  %v4574 = vadd.f32 0.0, %v4573
  %4575 = vmatprep.mubr.f32.mxu0 0.0
  %4576 = vmatmul.mubr.f32.gmra.mxu0 %v4333
  %v4577 = vpop.f32.mrf.mxu0
  %v4578 = vadd.f32 0.0, %v4577
  %v4579 = vpop.f32.mrf.mxu0
  %v4580 = vadd.f32 0.0, %v4579
  %4581 = vmatprep.mubr.f32.mxu0 0.0
  %4582 = vmatmul.mubr.f32.gmra.mxu0 %v4336
  %v4583 = vpop.f32.mrf.mxu0
  %v4584 = vadd.f32 0.0, %v4583
  %v4585 = vpop.f32.mrf.mxu0
  %v4586 = vadd.f32 0.0, %v4585
  %4587 = vmatprep.mubr.f32.mxu0 0.0
  %4588 = vmatmul.mubr.f32.gmra.mxu0 %v4339
  %v4589 = vpop.f32.mrf.mxu0
  %v4590 = vadd.f32 0.0, %v4589
  %v4591 = vpop.f32.mrf.mxu0
  %v4592 = vadd.f32 0.0, %v4591
  %4593 = vmatprep.mubr.f32.mxu0 0.0
  %4594 = vmatmul.mubr.f32.gmra.mxu0 %v4342
  %v4595 = vpop.f32.mrf.mxu0
  %v4596 = vadd.f32 0.0, %v4595
  %v4597 = vpop.f32.mrf.mxu0
  %v4598 = vadd.f32 0.0, %v4597
  %4599 = vdwg.mxu0
  %4600 = vmatprep.subr.mxu0 0.0
  %4601 = vmatpush1.msra.mxu0 0.0
  %4602 = vmatprep.subr.mxu0 0.0
  %4603 = vmatpush1.msra.mxu0 0.0
  %4604 = vmatprep.subr.mxu0 0.0
  %4605 = vmatpush1.msra.mxu0 0.0
  %4606 = vmatprep.subr.mxu0 0.0
  %4607 = vmatpush1.msra.mxu0 0.0
  %4608 = vmatprep.subr.mxu0 0.0
  %4609 = vmatpush1.msra.mxu0 0.0
  %4610 = vmatprep.subr.mxu0 0.0
  %4611 = vmatpush1.msra.mxu0 0.0
  %4612 = vmatprep.subr.mxu0 0.0
  %4613 = vmatpush1.msra.mxu0 0.0
  %4614 = vmatprep.subr.mxu0 0.0
  %4615 = vmatpush1.msra.mxu0 0.0
  %4616 = vmatprep.subr.mxu0 0.0
  %4617 = vmatpush1.msra.mxu0 0.0
  %4618 = vmatprep.subr.mxu0 0.0
  %4619 = vmatpush1.msra.mxu0 0.0
  %4620 = vmatprep.subr.mxu0 0.0
  %4621 = vmatpush1.msra.mxu0 0.0
  %4622 = vmatprep.subr.mxu0 0.0
  %4623 = vmatpush1.msra.mxu0 0.0
  %4624 = vmatprep.subr.mxu0 0.0
  %4625 = vmatpush1.msra.mxu0 0.0
  %4626 = vmatprep.subr.mxu0 0.0
  %4627 = vmatpush1.msra.mxu0 0.0
  %4628 = vmatprep.subr.mxu0 0.0
  %4629 = vmatpush1.msra.mxu0 0.0
  %4630 = vmatprep.subr.mxu0 %v4360
  %4631 = vmatpush1.msra.mxu0 %v4357
  %4632 = vmatprep.subr.mxu0 0.0
  %4633 = vmatpush2.msra.mxu0 0.0
  %4634 = vmatprep.subr.mxu0 0.0
  %4635 = vmatpush2.msra.mxu0 0.0
  %4636 = vmatprep.subr.mxu0 0.0
  %4637 = vmatpush2.msra.mxu0 0.0
  %4638 = vmatprep.subr.mxu0 0.0
  %4639 = vmatpush2.msra.mxu0 0.0
  %4640 = vmatprep.subr.mxu0 0.0
  %4641 = vmatpush2.msra.mxu0 0.0
  %4642 = vmatprep.subr.mxu0 0.0
  %4643 = vmatpush2.msra.mxu0 0.0
  %4644 = vmatprep.subr.mxu0 0.0
  %4645 = vmatpush2.msra.mxu0 0.0
  %4646 = vmatprep.subr.mxu0 0.0
  %4647 = vmatpush2.msra.mxu0 0.0
  %4648 = vmatprep.subr.mxu0 0.0
  %4649 = vmatpush2.msra.mxu0 0.0
  %4650 = vmatprep.subr.mxu0 0.0
  %4651 = vmatpush2.msra.mxu0 0.0
  %4652 = vmatprep.subr.mxu0 0.0
  %4653 = vmatpush2.msra.mxu0 0.0
  %4654 = vmatprep.subr.mxu0 0.0
  %4655 = vmatpush2.msra.mxu0 0.0
  %4656 = vmatprep.subr.mxu0 0.0
  %4657 = vmatpush2.msra.mxu0 0.0
  %4658 = vmatprep.subr.mxu0 0.0
  %4659 = vmatpush2.msra.mxu0 0.0
  %4660 = vmatprep.subr.mxu0 0.0
  %4661 = vmatpush2.msra.mxu0 0.0
  %4662 = vmatprep.subr.mxu0 0.0
  %4663 = vmatpush2.msra.mxu0 0.0
  %4664 = vmatprep.mubr.f32.mxu0 0.0
  %4665 = vmatmul.mubr.f32.gmra.mxu0 %v4318
  %v4666 = vpop.f32.mrf.mxu0
  %v4667 = vadd.f32 0.0, %v4666
  %v4668 = vpop.f32.mrf.mxu0
  %v4669 = vadd.f32 0.0, %v4668
  %4670 = vmatprep.mubr.f32.mxu0 0.0
  %4671 = vmatmul.mubr.f32.gmra.mxu0 %v4321
  %v4672 = vpop.f32.mrf.mxu0
  %v4673 = vadd.f32 0.0, %v4672
  %v4674 = vpop.f32.mrf.mxu0
  %v4675 = vadd.f32 0.0, %v4674
  %4676 = vmatprep.mubr.f32.mxu0 0.0
  %4677 = vmatmul.mubr.f32.gmra.mxu0 %v4324
  %v4678 = vpop.f32.mrf.mxu0
  %v4679 = vadd.f32 0.0, %v4678
  %v4680 = vpop.f32.mrf.mxu0
  %v4681 = vadd.f32 0.0, %v4680
  %4682 = vmatprep.mubr.f32.mxu0 0.0
  %4683 = vmatmul.mubr.f32.gmra.mxu0 %v4327
  %v4684 = vpop.f32.mrf.mxu0
  %v4685 = vadd.f32 0.0, %v4684
  %v4686 = vpop.f32.mrf.mxu0
  %v4687 = vadd.f32 0.0, %v4686
  %4688 = vmatprep.mubr.f32.mxu0 0.0
  %4689 = vmatmul.mubr.f32.gmra.mxu0 %v4330
  %v4690 = vpop.f32.mrf.mxu0
  %v4691 = vadd.f32 0.0, %v4690
  %v4692 = vpop.f32.mrf.mxu0
  %v4693 = vadd.f32 0.0, %v4692
  %4694 = vmatprep.mubr.f32.mxu0 0.0
  %4695 = vmatmul.mubr.f32.gmra.mxu0 %v4333
  %v4696 = vpop.f32.mrf.mxu0
  %v4697 = vadd.f32 0.0, %v4696
  %v4698 = vpop.f32.mrf.mxu0
  %v4699 = vadd.f32 0.0, %v4698
  %4700 = vmatprep.mubr.f32.mxu0 0.0
  %4701 = vmatmul.mubr.f32.gmra.mxu0 %v4336
  %v4702 = vpop.f32.mrf.mxu0
  %v4703 = vadd.f32 0.0, %v4702
  %v4704 = vpop.f32.mrf.mxu0
  %v4705 = vadd.f32 0.0, %v4704
  %4706 = vmatprep.mubr.f32.mxu0 0.0
  %4707 = vmatmul.mubr.f32.gmra.mxu0 %v4339
  %v4708 = vpop.f32.mrf.mxu0
  %v4709 = vadd.f32 0.0, %v4708
  %v4710 = vpop.f32.mrf.mxu0
  %v4711 = vadd.f32 0.0, %v4710
  %4712 = vmatprep.mubr.f32.mxu0 0.0
  %4713 = vmatmul.mubr.f32.gmra.mxu0 %v4342
  %v4714 = vpop.f32.mrf.mxu0
  %v4715 = vadd.f32 0.0, %v4714
  %v4716 = vpop.f32.mrf.mxu0
  %v4717 = vadd.f32 0.0, %v4716
  %4718 = vdwg.mxu0
  %4719 = vrot.lane.b32.xlu0 %v4429, 19
  %v4720 = vpop.permute.xlu0 %4719
  %4721 = vrot.lane.b32.xlu0 %v4431, 19
  %v4722 = vpop.permute.xlu0 %4721
  %4723 = vrot.lane.b32.xlu0 %v4548, 19
  %v4724 = vpop.permute.xlu0 %4723
  %4725 = vrot.lane.b32.xlu0 %v4550, 19
  %v4726 = vpop.permute.xlu0 %4725
  %4727 = vrot.lane.b32.xlu0 %v4667, 19
  %v4728 = vpop.permute.xlu0 %4727
  %4729 = vrot.lane.b32.xlu0 %v4669, 19
  %v4730 = vpop.permute.xlu0 %4729
  %v4731 = vsel %vm521, %v4728, %v4730
  %v4732 = vsel %vm521, %v4726, %v4728
  %v4733 = vsel %vm521, %v4724, %v4726
  %v4734 = vsel %vm521, %v4722, %v4724
  %v4735 = vsel %vm521, %v4720, %v4722
  %v4736 = vsel %vm521, %v4730, %v4720
  %4737 = vrot.lane.b32.xlu0 %v4435, 18
  %v4738 = vpop.permute.xlu0 %4737
  %4739 = vrot.lane.b32.xlu0 %v4437, 18
  %v4740 = vpop.permute.xlu0 %4739
  %4741 = vrot.lane.b32.xlu0 %v4554, 18
  %v4742 = vpop.permute.xlu0 %4741
  %4743 = vrot.lane.b32.xlu0 %v4556, 18
  %v4744 = vpop.permute.xlu0 %4743
  %4745 = vrot.lane.b32.xlu0 %v4673, 18
  %v4746 = vpop.permute.xlu0 %4745
  %4747 = vrot.lane.b32.xlu0 %v4675, 18
  %v4748 = vpop.permute.xlu0 %4747
  %v4749 = vsel %vm540, %v4746, %v4748
  %v4750 = vsel %vm540, %v4744, %v4746
  %v4751 = vsel %vm540, %v4742, %v4744
  %v4752 = vsel %vm540, %v4740, %v4742
  %v4753 = vsel %vm540, %v4738, %v4740
  %v4754 = vsel %vm540, %v4748, %v4738
  %v4755 = vadd.f32 %v4736, %v4754
  %v4756 = vadd.f32 %v4735, %v4753
  %v4757 = vadd.f32 %v4734, %v4752
  %v4758 = vadd.f32 %v4733, %v4751
  %v4759 = vadd.f32 %v4732, %v4750
  %v4760 = vadd.f32 %v4731, %v4749
  %4761 = vrot.lane.b32.xlu0 %v4441, 17
  %v4762 = vpop.permute.xlu0 %4761
  %4763 = vrot.lane.b32.xlu0 %v4443, 17
  %v4764 = vpop.permute.xlu0 %4763
  %4765 = vrot.lane.b32.xlu0 %v4560, 17
  %v4766 = vpop.permute.xlu0 %4765
  %4767 = vrot.lane.b32.xlu0 %v4562, 17
  %v4768 = vpop.permute.xlu0 %4767
  %4769 = vrot.lane.b32.xlu0 %v4679, 17
  %v4770 = vpop.permute.xlu0 %4769
  %4771 = vrot.lane.b32.xlu0 %v4681, 17
  %v4772 = vpop.permute.xlu0 %4771
  %v4773 = vsel %vm565, %v4770, %v4772
  %v4774 = vsel %vm565, %v4768, %v4770
  %v4775 = vsel %vm565, %v4766, %v4768
  %v4776 = vsel %vm565, %v4764, %v4766
  %v4777 = vsel %vm565, %v4762, %v4764
  %v4778 = vsel %vm565, %v4772, %v4762
  %v4779 = vadd.f32 %v4755, %v4778
  %v4780 = vadd.f32 %v4756, %v4777
  %v4781 = vadd.f32 %v4757, %v4776
  %v4782 = vadd.f32 %v4758, %v4775
  %v4783 = vadd.f32 %v4759, %v4774
  %v4784 = vadd.f32 %v4760, %v4773
  %4785 = vrot.lane.b32.xlu0 %v4447, 1
  %v4786 = vpop.permute.xlu0 %4785
  %4787 = vrot.lane.b32.xlu0 %v4449, 1
  %v4788 = vpop.permute.xlu0 %4787
  %4789 = vrot.lane.b32.xlu0 %v4566, 1
  %v4790 = vpop.permute.xlu0 %4789
  %4791 = vrot.lane.b32.xlu0 %v4568, 1
  %v4792 = vpop.permute.xlu0 %4791
  %4793 = vrot.lane.b32.xlu0 %v4685, 1
  %v4794 = vpop.permute.xlu0 %4793
  %4795 = vrot.lane.b32.xlu0 %v4687, 1
  %v4796 = vpop.permute.xlu0 %4795
  %v4797 = vsel %vm590, %v4794, %v4796
  %v4798 = vsel %vm590, %v4792, %v4794
  %v4799 = vsel %vm590, %v4790, %v4792
  %v4800 = vsel %vm590, %v4788, %v4790
  %v4801 = vsel %vm590, %v4786, %v4788
  %v4802 = vsel %vm590, %v4796, %v4786
  %v4803 = vadd.f32 %v4779, %v4802
  %v4804 = vadd.f32 %v4780, %v4801
  %v4805 = vadd.f32 %v4781, %v4800
  %v4806 = vadd.f32 %v4782, %v4799
  %v4807 = vadd.f32 %v4783, %v4798
  %v4808 = vadd.f32 %v4784, %v4797
  %v4809 = vadd.f32 %v4803, %v4453
  %v4810 = vadd.f32 %v4804, %v4455
  %v4811 = vadd.f32 %v4805, %v4572
  %v4812 = vadd.f32 %v4806, %v4574
  %v4813 = vadd.f32 %v4807, %v4691
  %v4814 = vadd.f32 %v4808, %v4693
  %4815 = vrot.lane.b32.xlu0 %v4459, 127
  %v4816 = vpop.permute.xlu0 %4815
  %4817 = vrot.lane.b32.xlu0 %v4461, 127
  %v4818 = vpop.permute.xlu0 %4817
  %4819 = vrot.lane.b32.xlu0 %v4578, 127
  %v4820 = vpop.permute.xlu0 %4819
  %4821 = vrot.lane.b32.xlu0 %v4580, 127
  %v4822 = vpop.permute.xlu0 %4821
  %4823 = vrot.lane.b32.xlu0 %v4697, 127
  %v4824 = vpop.permute.xlu0 %4823
  %4825 = vrot.lane.b32.xlu0 %v4699, 127
  %v4826 = vpop.permute.xlu0 %4825
  %v4827 = vsel %vm621, %v4824, %v4826
  %v4828 = vsel %vm621, %v4822, %v4824
  %v4829 = vsel %vm621, %v4820, %v4822
  %v4830 = vsel %vm621, %v4818, %v4820
  %v4831 = vsel %vm621, %v4816, %v4818
  %v4832 = vsel %vm621, %v4826, %v4816
  %v4833 = vadd.f32 %v4809, %v4831
  %v4834 = vadd.f32 %v4810, %v4830
  %v4835 = vadd.f32 %v4811, %v4829
  %v4836 = vadd.f32 %v4812, %v4828
  %v4837 = vadd.f32 %v4813, %v4827
  %v4838 = vadd.f32 %v4814, %v4832
  %4839 = vrot.lane.b32.xlu0 %v4465, 111
  %v4840 = vpop.permute.xlu0 %4839
  %4841 = vrot.lane.b32.xlu0 %v4467, 111
  %v4842 = vpop.permute.xlu0 %4841
  %4843 = vrot.lane.b32.xlu0 %v4584, 111
  %v4844 = vpop.permute.xlu0 %4843
  %4845 = vrot.lane.b32.xlu0 %v4586, 111
  %v4846 = vpop.permute.xlu0 %4845
  %4847 = vrot.lane.b32.xlu0 %v4703, 111
  %v4848 = vpop.permute.xlu0 %4847
  %4849 = vrot.lane.b32.xlu0 %v4705, 111
  %v4850 = vpop.permute.xlu0 %4849
  %v4851 = vsel %vm646, %v4848, %v4850
  %v4852 = vsel %vm646, %v4846, %v4848
  %v4853 = vsel %vm646, %v4844, %v4846
  %v4854 = vsel %vm646, %v4842, %v4844
  %v4855 = vsel %vm646, %v4840, %v4842
  %v4856 = vsel %vm646, %v4850, %v4840
  %v4857 = vadd.f32 %v4833, %v4855
  %v4858 = vadd.f32 %v4834, %v4854
  %v4859 = vadd.f32 %v4835, %v4853
  %v4860 = vadd.f32 %v4836, %v4852
  %v4861 = vadd.f32 %v4837, %v4851
  %v4862 = vadd.f32 %v4838, %v4856
  %4863 = vrot.lane.b32.xlu0 %v4471, 110
  %v4864 = vpop.permute.xlu0 %4863
  %4865 = vrot.lane.b32.xlu0 %v4473, 110
  %v4866 = vpop.permute.xlu0 %4865
  %4867 = vrot.lane.b32.xlu0 %v4590, 110
  %v4868 = vpop.permute.xlu0 %4867
  %4869 = vrot.lane.b32.xlu0 %v4592, 110
  %v4870 = vpop.permute.xlu0 %4869
  %4871 = vrot.lane.b32.xlu0 %v4709, 110
  %v4872 = vpop.permute.xlu0 %4871
  %4873 = vrot.lane.b32.xlu0 %v4711, 110
  %v4874 = vpop.permute.xlu0 %4873
  %v4875 = vsel %vm671, %v4872, %v4874
  %v4876 = vsel %vm671, %v4870, %v4872
  %v4877 = vsel %vm671, %v4868, %v4870
  %v4878 = vsel %vm671, %v4866, %v4868
  %v4879 = vsel %vm671, %v4864, %v4866
  %v4880 = vsel %vm671, %v4874, %v4864
  %v4881 = vadd.f32 %v4857, %v4879
  %v4882 = vadd.f32 %v4858, %v4878
  %v4883 = vadd.f32 %v4859, %v4877
  %v4884 = vadd.f32 %v4860, %v4876
  %v4885 = vadd.f32 %v4861, %v4875
  %v4886 = vadd.f32 %v4862, %v4880
  %4887 = vrot.lane.b32.xlu0 %v4477, 109
  %v4888 = vpop.permute.xlu0 %4887
  %4889 = vrot.lane.b32.xlu0 %v4479, 109
  %v4890 = vpop.permute.xlu0 %4889
  %4891 = vrot.lane.b32.xlu0 %v4596, 109
  %v4892 = vpop.permute.xlu0 %4891
  %4893 = vrot.lane.b32.xlu0 %v4598, 109
  %v4894 = vpop.permute.xlu0 %4893
  %4895 = vrot.lane.b32.xlu0 %v4715, 109
  %v4896 = vpop.permute.xlu0 %4895
  %4897 = vrot.lane.b32.xlu0 %v4717, 109
  %v4898 = vpop.permute.xlu0 %4897
  %v4899 = vsel %vm696, %v4896, %v4898
  %v4900 = vsel %vm696, %v4894, %v4896
  %v4901 = vsel %vm696, %v4892, %v4894
  %v4902 = vsel %vm696, %v4890, %v4892
  %v4903 = vsel %vm696, %v4888, %v4890
  %v4904 = vsel %vm696, %v4898, %v4888
  %v4905 = vadd.f32 %v4881, %v4903
  %v4906 = vadd.f32 %v4882, %v4902
  %v4907 = vadd.f32 %v4883, %v4901
  %v4908 = vadd.f32 %v4884, %v4900
  %v4909 = vadd.f32 %v4885, %v4899
  %v4910 = vadd.f32 %v4886, %v4904
  %4912 = vset.pattern.permute.xlu0 0
  %4913 = vperm.xlu0 %4912, %v3475
  %v4914 = vpop.permute.xlu0 %4913
  %v4916 = vadd.f32 %v4905, %v4914
  %v4917 = vadd.f32 %v4906, %v4914
  %v4918 = vadd.f32 %v4907, %v4914
  %v4919 = vadd.f32 %v4908, %v4914
  %v4920 = vadd.f32 %v4909, %v4914
  %v4921 = vadd.f32 %v4910, %v4914
  %v4922 = vadd.f32 %v4916, %v3446
  %v4923 = vadd.f32 %v4917, %v3447
  %v4924 = vadd.f32 %v4918, %v3448
  %v4925 = vadd.f32 %v4919, %v3449
  %v4926 = vadd.f32 %v4920, %v3450
  %v4927 = vadd.f32 %v4921, %v3451
  %v4928 = vmul.f32 %v4922, %v724
  %v4929 = vmul.f32 %v4923, %v728
  %v4930 = vmul.f32 %v4924, %v732
  %v4931 = vmul.f32 %v4925, %v736
  %v4932 = vmul.f32 %v4926, %v740
  %v4933 = vmul.f32 %v4927, %v744
  %v4940 = vcombine.low %v4928, %v4929
  %v4941 = vcombine.low %v4930, %v4931
  %v4942 = vcombine.low %v4932, %v4933
  %4946 = vst [vmem:[%s27] sm:$0xff] %v4940
  %4947 = vst [vmem:[%s27 + $0x8] sm:$0xff] %v4941
  %4948 = vst [vmem:[%s27 + $0x10] sm:$0xff] %v4942
  // Predicated region
  $region110: #{_lambda_.3} parent=0 // pred_check
    _
  $region111: #{_lambda_.3} parent=0 // pred_check_branch
    %4950 = sbr.rel (0) target = $region113
  $region112: #{_lambda_.3} parent=0 // pred_region
    _
  $region113: #{_lambda_.3} parent=0 // pred_fallthru
    _
  // Predicated region
  $region114: #{_lambda_.3} parent=0 // pred_check
    _
  $region115: #{_lambda_.3} parent=0 // pred_check_branch
    %4952 = sbr.rel (0) target = $region117
  $region116: #{_lambda_.3} parent=0 // pred_region
    _
  $region117: #{_lambda_.3} parent=0 // pred_fallthru
    _

</llo_original>
